<compile_context>
chip_gen: v5e
topology: v5e:2x2
jax: 0.10.0
libtpu: 0.0.40
codegen_flags: <defaults>
</compile_context>

<pallas_src>
import functools

import jax
import jax.numpy as jnp
from jax.experimental import pallas as pl
from jax.experimental.pallas import tpu as pltpu


def _round_up(x, m):
    return (x + m - 1) // m * m


def _pick_row_tile(hout, wout, tc):
    """Row-tile height TH: TH*Wout multiple of 8 (aligned dynamic slices) and
    the f32 partial (TH*Wout, TC) around ~128 KiB so it fits in vregs."""
    m_budget = max(wout, (128 * 1024) // (4 * tc))
    if hout * wout <= m_budget:
        return hout
    aligned = [d for d in range(1, hout + 1)
               if hout % d == 0 and (d * wout) % 8 == 0]
    within = [d for d in aligned if d * wout <= m_budget]
    if within:
        return max(within)
    if aligned:
        return min(aligned)
    return hout


def _vmem_limit(need_bytes):
    """Derived VMEM budget (double-buffered blocks already included in
    need_bytes), with headroom, capped by physical VMEM when queryable."""
    budget = 2 * need_bytes + (4 << 20)
    try:
        cap = int(pltpu.get_tpu_info().vmem_capacity_bytes) - (8 << 20)
    except Exception:  # noqa: BLE001 - fall back to a v7x-safe cap
        cap = 64 << 20
    cap = min(cap, 96 << 20)
    return int(max(32 << 20, min(budget, cap)))


# ----------------------------------------------------------------------------
# Kernel: one (batch, Cout-tile, Cin-tile) grid step of
#         conv3x3(stride=1, pad=1) + bias (+ residual) + ReLU
# ----------------------------------------------------------------------------
def _conv3x3_bn_act_kernel(x_ref, w_ref, b_ref, *rest, th, pad_out,
                           has_residual):
    # x_ref : (1, H+2, W+2, TCin)  bf16  spatially padded input (one Cin tile)
    # w_ref : (9, TCin, TC)        bf16  BN-scale-folded per-tap weights
    # b_ref : (1, TC)              f32   folded BN shift (bias)
    # res   : (1, Hout, Wout, TC)  bf16  residual (only when has_residual)
    # o_ref : (1, Hout(+2), Wout(+2), TC)
    # acc   : (Hout*Wout, TC)      f32   VMEM scratch, lives across Cin tiles
    if has_residual:
        res_ref, o_ref, acc_ref = rest
    else:
        o_ref, acc_ref = rest

    k = pl.program_id(2)
    nk = pl.num_programs(2)
    hp, wp, tcin = x_ref.shape[1], x_ref.shape[2], x_ref.shape[3]
    hout, wout = hp - 2, wp - 2
    tc = o_ref.shape[3]
    mtile = th * wout
    n_rows = hout // th

    @pl.when(k == 0)
    def _init():
        acc_ref[...] = jnp.zeros_like(acc_ref)

    def row_tile(r, carry):
        dyn = not isinstance(r, int)
        h0 = r * th
        m0 = r * mtile
        if dyn:
            m0 = pl.multiple_of(m0, 8)
        # 9 per-tap MXU matmuls summed into a register-resident f32 partial;
        # a single accumulator read-modify-write per row tile.
        part = jnp.zeros((mtile, tc), jnp.float32)
        for ky in range(3):
            xr = x_ref[0, pl.ds(h0 + ky, th), :, :]          # (TH, Wp, TCin)
            for kx in range(3):
                xt = xr[:, kx:kx + wout, :].reshape(mtile, tcin)
                part = part + jnp.dot(xt, w_ref[ky * 3 + kx],
                                      preferred_element_type=jnp.float32)
        acc_ref[pl.ds(m0, mtile), :] += part
        return carry

    if n_rows == 1:
        row_tile(0, 0)
    else:
        jax.lax.fori_loop(0, n_rows, row_tile, 0, unroll=False)

    @pl.when(k == nk - 1)
    def _epilogue():
        out = acc_ref[...] + b_ref[...]                      # f32 bias add
        if has_residual:
            out = out + res_ref[0].reshape(hout * wout, tc).astype(jnp.float32)
        out = jnp.maximum(out, 0.0)                          # ReLU
        out = out.reshape(hout, wout, tc).astype(o_ref.dtype)
        if pad_out:
            # Emit the 1-px halo directly: zero border, interior from acc.
            o_ref[...] = jnp.zeros(o_ref.shape, o_ref.dtype)
            o_ref[0, 1:hout + 1, 1:wout + 1, :] = out
        else:
            o_ref[0] = out


# ----------------------------------------------------------------------------
# Wrapper for a single fused conv+BN+(residual)+ReLU pass
# ----------------------------------------------------------------------------
def _conv3x3_bn_act(x_pad, w_taps, shift, residual, pad_out, out_dtype):
    n, hp, wp, cpad = x_pad.shape
    hout, wout = hp - 2, wp - 2
    nk9, tcin, _ = w_taps.shape
    nk = nk9 // 9

    # Cout tile: 256 feeds the v6e/v7x MXU natively, but only when N*nc >= 2
    # so the v7x megacore still has parallel grid points.
    tc = 256 if (cpad % 256 == 0 and n * (cpad // 256) >= 2) else 128
    nc = cpad // tc
    th = _pick_row_tile(hout, wout, tc)

    out_h = hp if pad_out else hout
    out_w = wp if pad_out else wout
    has_residual = residual is not None

    kernel = functools.partial(_conv3x3_bn_act_kernel, th=th, pad_out=pad_out,
                               has_residual=has_residual)

    in_specs = [
        pl.BlockSpec((1, hp, wp, tcin), lambda b, c, k: (b, 0, 0, k)),
        pl.BlockSpec((9, tcin, tc), lambda b, c, k: (k, 0, c)),
        pl.BlockSpec((1, tc), lambda b, c, k: (0, c)),
    ]
    args = [x_pad, w_taps, shift]
    if has_residual:
        in_specs.append(
            pl.BlockSpec((1, hout, wout, tc), lambda b, c, k: (b, 0, 0, c)))
        args.append(residual)

    out_spec = pl.BlockSpec((1, out_h, out_w, tc), lambda b, c, k: (b, 0, 0, c))

    def _isz(dt):
        return jnp.dtype(dt).itemsize

    block_bytes = (hp * wp * tcin * _isz(x_pad.dtype)
                   + 9 * tcin * tc * _isz(w_taps.dtype)
                   + tc * 4
                   + out_h * out_w * tc * _isz(out_dtype)
                   + (hout * wout * tc * _isz(residual.dtype)
                      if has_residual else 0))
    acc_bytes = hout * wout * tc * 4
    vmem_limit = _vmem_limit(2 * block_bytes + acc_bytes)

    flops = 2 * n * hout * wout * 9 * cpad * cpad
    bytes_accessed = (
        n * nc * nk * hp * wp * tcin * _isz(x_pad.dtype)
        + n * w_taps.size * _isz(w_taps.dtype)
        + shift.size * 4
        + n * out_h * out_w * cpad * _isz(out_dtype)
        + (residual.size * _isz(residual.dtype) if has_residual else 0))

    return pl.pallas_call(
        kernel,
        out_shape=jax.ShapeDtypeStruct((n, out_h, out_w, cpad), out_dtype),
        grid_spec=pltpu.PrefetchScalarGridSpec(
            num_scalar_prefetch=0,
            grid=(n, nc, nk),                       # Cin reduction innermost
            in_specs=in_specs,
            out_specs=out_spec,
            scratch_shapes=[pltpu.VMEM((hout * wout, tc), jnp.float32)],
        ),
        compiler_params=pltpu.CompilerParams(
            dimension_semantics=("parallel", "parallel", "arbitrary"),
            vmem_limit_bytes=vmem_limit,
        ),
        cost_estimate=pl.CostEstimate(
            flops=flops, transcendentals=0, bytes_accessed=bytes_accessed),
    )(*args)


# ----------------------------------------------------------------------------
# Parameter preparation (plain JAX glue)
# ----------------------------------------------------------------------------
def _fold_bn(gamma, beta, mean, var, eps):
    scale = gamma / jnp.sqrt(var + eps)
    shift = beta - mean * scale
    return scale, shift


def _prep_conv_weights(weight, bn_scale, cpad, tcin):
    """(Cout, Cin, 3, 3) + per-Cout BN scale -> (nK*9, TCin, Cpad) bf16,
    grouped as [cin-tile][tap] along the first axis, tap = ky*3 + kx."""
    cout, cin = weight.shape[0], weight.shape[1]
    w = weight * bn_scale[:, None, None, None]            # fold BN scale
    w = jnp.transpose(w, (2, 3, 1, 0))                    # (3, 3, Cin, Cout)
    w = jnp.pad(w, ((0, 0), (0, 0), (0, cpad - cin), (0, cpad - cout)))
    nk = cpad // tcin
    w = w.reshape(3, 3, nk, tcin, cpad)
    w = jnp.transpose(w, (2, 0, 1, 3, 4))                 # (nK, 3, 3, TCin, Cpad)
    return w.reshape(nk * 9, tcin, cpad).astype(jnp.bfloat16)


# ----------------------------------------------------------------------------
# BasicBlock forward (eval-mode BatchNorm2d, stride 1, inplanes == planes)
# ----------------------------------------------------------------------------
def basic_block_forward(x, params, eps=1e-5):
    """x: (N, C, H, W) f32  ->  (N, C, H, W) f32."""
    n, c, h, w_dim = x.shape
    cpad = _round_up(c, 128)       # lane-dense channel padding
    tcin = 128                     # Cin reduction tile (v5e MXU-native)

    s1, b1 = _fold_bn(params["bn1_gamma"], params["bn1_beta"],
                      params["bn1_mean"], params["bn1_var"], eps)
    s2, b2 = _fold_bn(params["bn2_gamma"], params["bn2_beta"],
                      params["bn2_mean"], params["bn2_var"], eps)

    w1 = _prep_conv_weights(params["conv1_w"], s1, cpad, tcin)
    w2 = _prep_conv_weights(params["conv2_w"], s2, cpad, tcin)
    shift1 = jnp.pad(b1, (0, cpad - c)).reshape(1, cpad).astype(jnp.float32)
    shift2 = jnp.pad(b2, (0, cpad - c)).reshape(1, cpad).astype(jnp.float32)

    # NCHW -> NHWC, channel-pad, bf16; the same bf16 tensor is the residual
    # and (after the one-time spatial pad) the conv1 input.
    x_nhwc = jnp.transpose(x, (0, 2, 3, 1))
    x_cpad = jnp.pad(x_nhwc,
                     ((0, 0), (0, 0), (0, 0), (0, cpad - c))).astype(jnp.bfloat16)
    x_sp = jnp.pad(x_cpad, ((0, 0), (1, 1), (1, 1), (0, 0)))

    # conv1 -> bn1 -> relu; output already carries the 1-px halo for conv2.
    y_sp = _conv3x3_bn_act(x_sp, w1, shift1, residual=None, pad_out=True,
                           out_dtype=jnp.bfloat16)
    # conv2 -> bn2 -> (+identity) -> relu
    out = _conv3x3_bn_act(y_sp, w2, shift2, residual=x_cpad, pad_out=False,
                          out_dtype=jnp.float32)

    # TODO(synk): if the downstream consumer accepts NHWC (and bf16), drop this
    # slice + transpose — it is an extra XLA HBM round trip of the output.
    out = out[:, :, :, :c]
    return jnp.transpose(out, (0, 3, 1, 2))


# ----------------------------------------------------------------------------
# Pure-JAX reference (eval-mode BasicBlock)
# ----------------------------------------------------------------------------
def _reference(x, params, eps=1e-5):
    def conv_bn(h, w, gamma, beta, mean, var):
        out = jax.lax.conv_general_dilated(
            h, w, window_strides=(1, 1), padding=((1, 1), (1, 1)),
            dimension_numbers=("NCHW", "OIHW", "NCHW"))
        scale = gamma / jnp.sqrt(var + eps)
        shift = beta - mean * scale
        return out * scale[None, :, None, None] + shift[None, :, None, None]

    y = jnp.maximum(conv_bn(x, params["conv1_w"], params["bn1_gamma"],
                            params["bn1_beta"], params["bn1_mean"],
                            params["bn1_var"]), 0.0)
    z = conv_bn(y, params["conv2_w"], params["bn2_gamma"], params["bn2_beta"],
                params["bn2_mean"], params["bn2_var"]) + x
    return jnp.maximum(z, 0.0)


if __name__ == "__main__":
    key = jax.random.PRNGKey(0)
    keys = jax.random.split(key, 11)

    # BasicBlock(inplanes=4, planes=4, norm_layer=nn.BatchNorm2d), eval mode.
    N, C, H, W = 2, 4, 16, 16

    x = jax.random.normal(keys[0], (N, C, H, W), jnp.float32)
    params = dict(
        conv1_w=0.1 * jax.random.normal(keys[1], (C, C, 3, 3), jnp.float32),
        bn1_gamma=1.0 + 0.1 * jax.random.normal(keys[2], (C,), jnp.float32),
        bn1_beta=0.05 * jax.random.normal(keys[3], (C,), jnp.float32),
        bn1_mean=0.01 * jax.random.normal(keys[4], (C,), jnp.float32),
        bn1_var=1.0 + 0.1 * jnp.abs(jax.random.normal(keys[5], (C,), jnp.float32)),
        conv2_w=0.1 * jax.random.normal(keys[6], (C, C, 3, 3), jnp.float32),
        bn2_gamma=1.0 + 0.1 * jax.random.normal(keys[7], (C,), jnp.float32),
        bn2_beta=0.05 * jax.random.normal(keys[8], (C,), jnp.float32),
        bn2_mean=0.01 * jax.random.normal(keys[9], (C,), jnp.float32),
        bn2_var=1.0 + 0.1 * jnp.abs(jax.random.normal(keys[10], (C,), jnp.float32)),
    )

    out = jax.block_until_ready(jax.jit(basic_block_forward)(x, params))
    ref = _reference(x, params)

    assert out.shape == ref.shape, (out.shape, ref.shape)
    max_err = float(jnp.max(jnp.abs(out - ref)))
    # bf16 activations/weights/residual (f32 accumulation) -> loose tolerance.
    assert jnp.allclose(out, ref, atol=5e-2, rtol=5e-2), max_err

    print("KERNEL_OK")
</pallas_src>

<mosaic_0001>
module attributes {stable_mosaic.version = 11 : i64} {
  func.func @_conv3x3_bn_act_kernel(%arg0: i32, %arg1: i32, %arg2: i32, %arg3: memref<1x18x18x128xbf16, #tpu.memory_space<vmem>>, %arg4: memref<9x128x128xbf16, #tpu.memory_space<vmem>>, %arg5: memref<1x128xf32, #tpu.memory_space<vmem>>, %arg6: memref<1x16x16x128xbf16, #tpu.memory_space<vmem>>, %arg7: memref<1x16x16x128xf32, #tpu.memory_space<vmem>>, %arg8: memref<256x128xf32, #tpu.memory_space<vmem>>) attributes {dimension_semantics = [#tpu.dimension_semantics<parallel>, #tpu.dimension_semantics<parallel>, #tpu.dimension_semantics<arbitrary>], iteration_bounds = array<i64: 2, 1, 1>, scalar_prefetch = 0 : i64, scratch_operands = 1 : i64, tpu.core_type = #tpu.core_type<tc>, window_params = [{transform_indices = @transform_0, window_bounds = array<i64: 1, 18, 18, 128>}, {transform_indices = @transform_1, window_bounds = array<i64: 9, 128, 128>}, {transform_indices = @transform_2, window_bounds = array<i64: 1, 128>}, {transform_indices = @transform_3, window_bounds = array<i64: 1, 16, 16, 128>}, {transform_indices = @transform_4, window_bounds = array<i64: 1, 16, 16, 128>}]} {
    %c0_i32 = arith.constant 0 : i32
    %0 = arith.cmpi eq, %arg2, %c0_i32 : i32
    %1 = arith.extui %0 : i1 to i32
    %c0_i32_0 = arith.constant 0 : i32
    %2 = arith.cmpi ne, %1, %c0_i32_0 : i32
    scf.if %2 {
      %cst_46 = arith.constant 0.000000e+00 : f32
      %70 = vector.broadcast %cst_46 : f32 to vector<256x128xf32>
      %c0_47 = arith.constant 0 : index
      %c0_48 = arith.constant 0 : index
      %71 = vector.load %arg8[%c0_47, %c0_48] : memref<256x128xf32, #tpu.memory_space<vmem>>, vector<256x128xf32>
      tpu.vector_store %arg8[%c0_47, %c0_48], %70 {strides = array<i32>} : memref<256x128xf32, #tpu.memory_space<vmem>>, vector<256x128xf32>,
    } else {
    }
    %cst = arith.constant 0.000000e+00 : f32
    %3 = vector.broadcast %cst : f32 to vector<256x128xf32>
    %c0 = arith.constant 0 : index
    %c0_1 = arith.constant 0 : index
    %c0_2 = arith.constant 0 : index
    %c0_3 = arith.constant 0 : index
    %4 = vector.load %arg3[%c0, %c0_1, %c0_2, %c0_3] : memref<1x18x18x128xbf16, #tpu.memory_space<vmem>>, vector<1x16x18x128xbf16>
    %5 = vector.shape_cast %4 : vector<1x16x18x128xbf16> to vector<16x18x128xbf16>
    %6 = vector.extract_strided_slice %5 {offsets = [0, 0, 0], sizes = [16, 16, 128], strides = [1, 1, 1]} : vector<16x18x128xbf16> to vector<16x16x128xbf16>
    %7 = vector.shape_cast %6 : vector<16x16x128xbf16> to vector<256x128xbf16>
    %c0_4 = arith.constant 0 : index
    %c0_5 = arith.constant 0 : index
    %c0_6 = arith.constant 0 : index
    %8 = vector.load %arg4[%c0_4, %c0_5, %c0_6] : memref<9x128x128xbf16, #tpu.memory_space<vmem>>, vector<1x128x128xbf16>
    %9 = vector.shape_cast %8 : vector<1x128x128xbf16> to vector<128x128xbf16>
    %cst_7 = arith.constant dense<0.000000e+00> : vector<256x128xf32>
    %10 = tpu.matmul %7, %9, %cst_7 {dimension_numbers = #tpu.dot_dimension_numbers<[1], [0], [0], [1], [0, 0, 1, 1], [], []>} : vector<256x128xbf16>, vector<128x128xbf16>, vector<256x128xf32> -> vector<256x128xf32>
    %11 = arith.addf %3, %10 : vector<256x128xf32>
    %12 = vector.extract_strided_slice %5 {offsets = [0, 1, 0], sizes = [16, 16, 128], strides = [1, 1, 1]} : vector<16x18x128xbf16> to vector<16x16x128xbf16>
    %13 = vector.shape_cast %12 : vector<16x16x128xbf16> to vector<256x128xbf16>
    %c1 = arith.constant 1 : index
    %c0_8 = arith.constant 0 : index
    %c0_9 = arith.constant 0 : index
    %14 = vector.load %arg4[%c1, %c0_8, %c0_9] : memref<9x128x128xbf16, #tpu.memory_space<vmem>>, vector<1x128x128xbf16>
    %15 = vector.shape_cast %14 : vector<1x128x128xbf16> to vector<128x128xbf16>
    %cst_10 = arith.constant dense<0.000000e+00> : vector<256x128xf32>
    %16 = tpu.matmul %13, %15, %cst_10 {dimension_numbers = #tpu.dot_dimension_numbers<[1], [0], [0], [1], [0, 0, 1, 1], [], []>} : vector<256x128xbf16>, vector<128x128xbf16>, vector<256x128xf32> -> vector<256x128xf32>
    %17 = arith.addf %11, %16 : vector<256x128xf32>
    %18 = vector.extract_strided_slice %5 {offsets = [0, 2, 0], sizes = [16, 16, 128], strides = [1, 1, 1]} : vector<16x18x128xbf16> to vector<16x16x128xbf16>
    %19 = vector.shape_cast %18 : vector<16x16x128xbf16> to vector<256x128xbf16>
    %c2 = arith.constant 2 : index
    %c0_11 = arith.constant 0 : index
    %c0_12 = arith.constant 0 : index
    %20 = vector.load %arg4[%c2, %c0_11, %c0_12] : memref<9x128x128xbf16, #tpu.memory_space<vmem>>, vector<1x128x128xbf16>
    %21 = vector.shape_cast %20 : vector<1x128x128xbf16> to vector<128x128xbf16>
    %cst_13 = arith.constant dense<0.000000e+00> : vector<256x128xf32>
    %22 = tpu.matmul %19, %21, %cst_13 {dimension_numbers = #tpu.dot_dimension_numbers<[1], [0], [0], [1], [0, 0, 1, 1], [], []>} : vector<256x128xbf16>, vector<128x128xbf16>, vector<256x128xf32> -> vector<256x128xf32>
    %23 = arith.addf %17, %22 : vector<256x128xf32>
    %c0_14 = arith.constant 0 : index
    %c1_15 = arith.constant 1 : index
    %c0_16 = arith.constant 0 : index
    %c0_17 = arith.constant 0 : index
    %24 = vector.load %arg3[%c0_14, %c1_15, %c0_16, %c0_17] : memref<1x18x18x128xbf16, #tpu.memory_space<vmem>>, vector<1x16x18x128xbf16>
    %25 = vector.shape_cast %24 : vector<1x16x18x128xbf16> to vector<16x18x128xbf16>
    %26 = vector.extract_strided_slice %25 {offsets = [0, 0, 0], sizes = [16, 16, 128], strides = [1, 1, 1]} : vector<16x18x128xbf16> to vector<16x16x128xbf16>
    %27 = vector.shape_cast %26 : vector<16x16x128xbf16> to vector<256x128xbf16>
    %c3 = arith.constant 3 : index
    %c0_18 = arith.constant 0 : index
    %c0_19 = arith.constant 0 : index
    %28 = vector.load %arg4[%c3, %c0_18, %c0_19] : memref<9x128x128xbf16, #tpu.memory_space<vmem>>, vector<1x128x128xbf16>
    %29 = vector.shape_cast %28 : vector<1x128x128xbf16> to vector<128x128xbf16>
    %cst_20 = arith.constant dense<0.000000e+00> : vector<256x128xf32>
    %30 = tpu.matmul %27, %29, %cst_20 {dimension_numbers = #tpu.dot_dimension_numbers<[1], [0], [0], [1], [0, 0, 1, 1], [], []>} : vector<256x128xbf16>, vector<128x128xbf16>, vector<256x128xf32> -> vector<256x128xf32>
    %31 = arith.addf %23, %30 : vector<256x128xf32>
    %32 = vector.extract_strided_slice %25 {offsets = [0, 1, 0], sizes = [16, 16, 128], strides = [1, 1, 1]} : vector<16x18x128xbf16> to vector<16x16x128xbf16>
    %33 = vector.shape_cast %32 : vector<16x16x128xbf16> to vector<256x128xbf16>
    %c4 = arith.constant 4 : index
    %c0_21 = arith.constant 0 : index
    %c0_22 = arith.constant 0 : index
    %34 = vector.load %arg4[%c4, %c0_21, %c0_22] : memref<9x128x128xbf16, #tpu.memory_space<vmem>>, vector<1x128x128xbf16>
    %35 = vector.shape_cast %34 : vector<1x128x128xbf16> to vector<128x128xbf16>
    %cst_23 = arith.constant dense<0.000000e+00> : vector<256x128xf32>
    %36 = tpu.matmul %33, %35, %cst_23 {dimension_numbers = #tpu.dot_dimension_numbers<[1], [0], [0], [1], [0, 0, 1, 1], [], []>} : vector<256x128xbf16>, vector<128x128xbf16>, vector<256x128xf32> -> vector<256x128xf32>
    %37 = arith.addf %31, %36 : vector<256x128xf32>
    %38 = vector.extract_strided_slice %25 {offsets = [0, 2, 0], sizes = [16, 16, 128], strides = [1, 1, 1]} : vector<16x18x128xbf16> to vector<16x16x128xbf16>
    %39 = vector.shape_cast %38 : vector<16x16x128xbf16> to vector<256x128xbf16>
    %c5 = arith.constant 5 : index
    %c0_24 = arith.constant 0 : index
    %c0_25 = arith.constant 0 : index
    %40 = vector.load %arg4[%c5, %c0_24, %c0_25] : memref<9x128x128xbf16, #tpu.memory_space<vmem>>, vector<1x128x128xbf16>
    %41 = vector.shape_cast %40 : vector<1x128x128xbf16> to vector<128x128xbf16>
    %cst_26 = arith.constant dense<0.000000e+00> : vector<256x128xf32>
    %42 = tpu.matmul %39, %41, %cst_26 {dimension_numbers = #tpu.dot_dimension_numbers<[1], [0], [0], [1], [0, 0, 1, 1], [], []>} : vector<256x128xbf16>, vector<128x128xbf16>, vector<256x128xf32> -> vector<256x128xf32>
    %43 = arith.addf %37, %42 : vector<256x128xf32>
    %c0_27 = arith.constant 0 : index
    %c2_28 = arith.constant 2 : index
    %c0_29 = arith.constant 0 : index
    %c0_30 = arith.constant 0 : index
    %44 = vector.load %arg3[%c0_27, %c2_28, %c0_29, %c0_30] : memref<1x18x18x128xbf16, #tpu.memory_space<vmem>>, vector<1x16x18x128xbf16>
    %45 = vector.shape_cast %44 : vector<1x16x18x128xbf16> to vector<16x18x128xbf16>
    %46 = vector.extract_strided_slice %45 {offsets = [0, 0, 0], sizes = [16, 16, 128], strides = [1, 1, 1]} : vector<16x18x128xbf16> to vector<16x16x128xbf16>
    %47 = vector.shape_cast %46 : vector<16x16x128xbf16> to vector<256x128xbf16>
    %c6 = arith.constant 6 : index
    %c0_31 = arith.constant 0 : index
    %c0_32 = arith.constant 0 : index
    %48 = vector.load %arg4[%c6, %c0_31, %c0_32] : memref<9x128x128xbf16, #tpu.memory_space<vmem>>, vector<1x128x128xbf16>
    %49 = vector.shape_cast %48 : vector<1x128x128xbf16> to vector<128x128xbf16>
    %cst_33 = arith.constant dense<0.000000e+00> : vector<256x128xf32>
    %50 = tpu.matmul %47, %49, %cst_33 {dimension_numbers = #tpu.dot_dimension_numbers<[1], [0], [0], [1], [0, 0, 1, 1], [], []>} : vector<256x128xbf16>, vector<128x128xbf16>, vector<256x128xf32> -> vector<256x128xf32>
    %51 = arith.addf %43, %50 : vector<256x128xf32>
    %52 = vector.extract_strided_slice %45 {offsets = [0, 1, 0], sizes = [16, 16, 128], strides = [1, 1, 1]} : vector<16x18x128xbf16> to vector<16x16x128xbf16>
    %53 = vector.shape_cast %52 : vector<16x16x128xbf16> to vector<256x128xbf16>
    %c7 = arith.constant 7 : index
    %c0_34 = arith.constant 0 : index
    %c0_35 = arith.constant 0 : index
    %54 = vector.load %arg4[%c7, %c0_34, %c0_35] : memref<9x128x128xbf16, #tpu.memory_space<vmem>>, vector<1x128x128xbf16>
    %55 = vector.shape_cast %54 : vector<1x128x128xbf16> to vector<128x128xbf16>
    %cst_36 = arith.constant dense<0.000000e+00> : vector<256x128xf32>
    %56 = tpu.matmul %53, %55, %cst_36 {dimension_numbers = #tpu.dot_dimension_numbers<[1], [0], [0], [1], [0, 0, 1, 1], [], []>} : vector<256x128xbf16>, vector<128x128xbf16>, vector<256x128xf32> -> vector<256x128xf32>
    %57 = arith.addf %51, %56 : vector<256x128xf32>
    %58 = vector.extract_strided_slice %45 {offsets = [0, 2, 0], sizes = [16, 16, 128], strides = [1, 1, 1]} : vector<16x18x128xbf16> to vector<16x16x128xbf16>
    %59 = vector.shape_cast %58 : vector<16x16x128xbf16> to vector<256x128xbf16>
    %c8 = arith.constant 8 : index
    %c0_37 = arith.constant 0 : index
    %c0_38 = arith.constant 0 : index
    %60 = vector.load %arg4[%c8, %c0_37, %c0_38] : memref<9x128x128xbf16, #tpu.memory_space<vmem>>, vector<1x128x128xbf16>
    %61 = vector.shape_cast %60 : vector<1x128x128xbf16> to vector<128x128xbf16>
    %cst_39 = arith.constant dense<0.000000e+00> : vector<256x128xf32>
    %62 = tpu.matmul %59, %61, %cst_39 {dimension_numbers = #tpu.dot_dimension_numbers<[1], [0], [0], [1], [0, 0, 1, 1], [], []>} : vector<256x128xbf16>, vector<128x128xbf16>, vector<256x128xf32> -> vector<256x128xf32>
    %63 = arith.addf %57, %62 : vector<256x128xf32>
    %c0_40 = arith.constant 0 : index
    %c0_41 = arith.constant 0 : index
    %64 = vector.load %arg8[%c0_40, %c0_41] : memref<256x128xf32, #tpu.memory_space<vmem>>, vector<256x128xf32>
    %65 = arith.addf %64, %63 : vector<256x128xf32>
    %c0_42 = arith.constant 0 : index
    %c0_43 = arith.constant 0 : index
    %66 = vector.load %arg8[%c0_42, %c0_43] : memref<256x128xf32, #tpu.memory_space<vmem>>, vector<256x128xf32>
    tpu.vector_store %arg8[%c0_42, %c0_43], %65 {strides = array<i32>} : memref<256x128xf32, #tpu.memory_space<vmem>>, vector<256x128xf32>,
    %c0_i32_44 = arith.constant 0 : i32
    %67 = arith.cmpi eq, %arg2, %c0_i32_44 : i32
    %68 = arith.extui %67 : i1 to i32
    %c0_i32_45 = arith.constant 0 : i32
    %69 = arith.cmpi ne, %68, %c0_i32_45 : i32
    scf.if %69 {
      %c0_46 = arith.constant 0 : index
      %c0_47 = arith.constant 0 : index
      %70 = vector.load %arg8[%c0_46, %c0_47] : memref<256x128xf32, #tpu.memory_space<vmem>>, vector<256x128xf32>
      %c0_48 = arith.constant 0 : index
      %c0_49 = arith.constant 0 : index
      %71 = vector.load %arg5[%c0_48, %c0_49] : memref<1x128xf32, #tpu.memory_space<vmem>>, vector<1x128xf32>
      %72 = vector.broadcast %71 : vector<1x128xf32> to vector<256x128xf32>
      %73 = arith.addf %70, %72 : vector<256x128xf32>
      %c0_50 = arith.constant 0 : index
      %c0_51 = arith.constant 0 : index
      %c0_52 = arith.constant 0 : index
      %c0_53 = arith.constant 0 : index
      %74 = vector.load %arg6[%c0_50, %c0_51, %c0_52, %c0_53] : memref<1x16x16x128xbf16, #tpu.memory_space<vmem>>, vector<1x16x16x128xbf16>
      %75 = vector.shape_cast %74 : vector<1x16x16x128xbf16> to vector<16x16x128xbf16>
      %76 = vector.shape_cast %75 : vector<16x16x128xbf16> to vector<256x128xbf16>
      %77 = arith.extf %76 : vector<256x128xbf16> to vector<256x128xf32>
      %78 = arith.addf %73, %77 : vector<256x128xf32>
      %cst_54 = arith.constant 0.000000e+00 : f32
      %79 = vector.broadcast %cst_54 : f32 to vector<256x128xf32>
      %80 = arith.maximumf %78, %79 : vector<256x128xf32>
      %81 = vector.shape_cast %80 : vector<256x128xf32> to vector<16x16x128xf32>
      %c0_55 = arith.constant 0 : index
      %c0_56 = arith.constant 0 : index
      %c0_57 = arith.constant 0 : index
      %c0_58 = arith.constant 0 : index
      %82 = vector.load %arg7[%c0_55, %c0_56, %c0_57, %c0_58] : memref<1x16x16x128xf32, #tpu.memory_space<vmem>>, vector<1x16x16x128xf32>
      %83 = vector.shape_cast %82 : vector<1x16x16x128xf32> to vector<16x16x128xf32>
      %84 = vector.shape_cast %81 : vector<16x16x128xf32> to vector<1x16x16x128xf32>
      tpu.vector_store %arg7[%c0_55, %c0_56, %c0_57, %c0_58], %84 {strides = array<i32>} : memref<1x16x16x128xf32, #tpu.memory_space<vmem>>, vector<1x16x16x128xf32>,
    } else {
    }
    return
  }
  func.func @transform_0(%arg0: i32, %arg1: i32, %arg2: i32) -> (i32, i32, i32, i32) {
    %c0_i32 = arith.constant 0 : i32
    %c0_i32_0 = arith.constant 0 : i32
    %c0_i32_1 = arith.constant 0 : i32
    return %arg0, %c0_i32, %c0_i32_0, %arg2 : i32, i32, i32, i32
  }
  func.func @transform_1(%arg0: i32, %arg1: i32, %arg2: i32) -> (i32, i32, i32) {
    %c0_i32 = arith.constant 0 : i32
    %c0_i32_0 = arith.constant 0 : i32
    return %arg2, %c0_i32, %arg1 : i32, i32, i32
  }
  func.func @transform_2(%arg0: i32, %arg1: i32, %arg2: i32) -> (i32, i32) {
    %c0_i32 = arith.constant 0 : i32
    %c0_i32_0 = arith.constant 0 : i32
    return %c0_i32, %arg1 : i32, i32
  }
  func.func @transform_3(%arg0: i32, %arg1: i32, %arg2: i32) -> (i32, i32, i32, i32) {
    %c0_i32 = arith.constant 0 : i32
    %c0_i32_0 = arith.constant 0 : i32
    %c0_i32_1 = arith.constant 0 : i32
    return %arg0, %c0_i32, %c0_i32_0, %arg1 : i32, i32, i32, i32
  }
  func.func @transform_4(%arg0: i32, %arg1: i32, %arg2: i32) -> (i32, i32, i32, i32) {
    %c0_i32 = arith.constant 0 : i32
    %c0_i32_0 = arith.constant 0 : i32
    %c0_i32_1 = arith.constant 0 : i32
    return %arg0, %c0_i32, %c0_i32_0, %arg1 : i32, i32, i32, i32
  }
}

module attributes {stable_mosaic.version = 11 : i64} {
  func.func @_conv3x3_bn_act_kernel(%arg0: i32, %arg1: i32, %arg2: i32, %arg3: memref<1x18x18x128xbf16, #tpu.memory_space<vmem>>, %arg4: memref<9x128x128xbf16, #tpu.memory_space<vmem>>, %arg5: memref<1x128xf32, #tpu.memory_space<vmem>>, %arg6: memref<1x18x18x128xbf16, #tpu.memory_space<vmem>>, %arg7: memref<256x128xf32, #tpu.memory_space<vmem>>) attributes {dimension_semantics = [#tpu.dimension_semantics<parallel>, #tpu.dimension_semantics<parallel>, #tpu.dimension_semantics<arbitrary>], iteration_bounds = array<i64: 2, 1, 1>, scalar_prefetch = 0 : i64, scratch_operands = 1 : i64, tpu.core_type = #tpu.core_type<tc>, window_params = [{transform_indices = @transform_0, window_bounds = array<i64: 1, 18, 18, 128>}, {transform_indices = @transform_1, window_bounds = array<i64: 9, 128, 128>}, {transform_indices = @transform_2, window_bounds = array<i64: 1, 128>}, {transform_indices = @transform_3, window_bounds = array<i64: 1, 18, 18, 128>}]} {
    %c0_i32 = arith.constant 0 : i32
    %0 = arith.cmpi eq, %arg2, %c0_i32 : i32
    %1 = arith.extui %0 : i1 to i32
    %c0_i32_0 = arith.constant 0 : i32
    %2 = arith.cmpi ne, %1, %c0_i32_0 : i32
    scf.if %2 {
      %cst_46 = arith.constant 0.000000e+00 : f32
      %70 = vector.broadcast %cst_46 : f32 to vector<256x128xf32>
      %c0_47 = arith.constant 0 : index
      %c0_48 = arith.constant 0 : index
      %71 = vector.load %arg7[%c0_47, %c0_48] : memref<256x128xf32, #tpu.memory_space<vmem>>, vector<256x128xf32>
      tpu.vector_store %arg7[%c0_47, %c0_48], %70 {strides = array<i32>} : memref<256x128xf32, #tpu.memory_space<vmem>>, vector<256x128xf32>,
    } else {
    }
    %cst = arith.constant 0.000000e+00 : f32
    %3 = vector.broadcast %cst : f32 to vector<256x128xf32>
    %c0 = arith.constant 0 : index
    %c0_1 = arith.constant 0 : index
    %c0_2 = arith.constant 0 : index
    %c0_3 = arith.constant 0 : index
    %4 = vector.load %arg3[%c0, %c0_1, %c0_2, %c0_3] : memref<1x18x18x128xbf16, #tpu.memory_space<vmem>>, vector<1x16x18x128xbf16>
    %5 = vector.shape_cast %4 : vector<1x16x18x128xbf16> to vector<16x18x128xbf16>
    %6 = vector.extract_strided_slice %5 {offsets = [0, 0, 0], sizes = [16, 16, 128], strides = [1, 1, 1]} : vector<16x18x128xbf16> to vector<16x16x128xbf16>
    %7 = vector.shape_cast %6 : vector<16x16x128xbf16> to vector<256x128xbf16>
    %c0_4 = arith.constant 0 : index
    %c0_5 = arith.constant 0 : index
    %c0_6 = arith.constant 0 : index
    %8 = vector.load %arg4[%c0_4, %c0_5, %c0_6] : memref<9x128x128xbf16, #tpu.memory_space<vmem>>, vector<1x128x128xbf16>
    %9 = vector.shape_cast %8 : vector<1x128x128xbf16> to vector<128x128xbf16>
    %cst_7 = arith.constant dense<0.000000e+00> : vector<256x128xf32>
    %10 = tpu.matmul %7, %9, %cst_7 {dimension_numbers = #tpu.dot_dimension_numbers<[1], [0], [0], [1], [0, 0, 1, 1], [], []>} : vector<256x128xbf16>, vector<128x128xbf16>, vector<256x128xf32> -> vector<256x128xf32>
    %11 = arith.addf %3, %10 : vector<256x128xf32>
    %12 = vector.extract_strided_slice %5 {offsets = [0, 1, 0], sizes = [16, 16, 128], strides = [1, 1, 1]} : vector<16x18x128xbf16> to vector<16x16x128xbf16>
    %13 = vector.shape_cast %12 : vector<16x16x128xbf16> to vector<256x128xbf16>
    %c1 = arith.constant 1 : index
    %c0_8 = arith.constant 0 : index
    %c0_9 = arith.constant 0 : index
    %14 = vector.load %arg4[%c1, %c0_8, %c0_9] : memref<9x128x128xbf16, #tpu.memory_space<vmem>>, vector<1x128x128xbf16>
    %15 = vector.shape_cast %14 : vector<1x128x128xbf16> to vector<128x128xbf16>
    %cst_10 = arith.constant dense<0.000000e+00> : vector<256x128xf32>
    %16 = tpu.matmul %13, %15, %cst_10 {dimension_numbers = #tpu.dot_dimension_numbers<[1], [0], [0], [1], [0, 0, 1, 1], [], []>} : vector<256x128xbf16>, vector<128x128xbf16>, vector<256x128xf32> -> vector<256x128xf32>
    %17 = arith.addf %11, %16 : vector<256x128xf32>
    %18 = vector.extract_strided_slice %5 {offsets = [0, 2, 0], sizes = [16, 16, 128], strides = [1, 1, 1]} : vector<16x18x128xbf16> to vector<16x16x128xbf16>
    %19 = vector.shape_cast %18 : vector<16x16x128xbf16> to vector<256x128xbf16>
    %c2 = arith.constant 2 : index
    %c0_11 = arith.constant 0 : index
    %c0_12 = arith.constant 0 : index
    %20 = vector.load %arg4[%c2, %c0_11, %c0_12] : memref<9x128x128xbf16, #tpu.memory_space<vmem>>, vector<1x128x128xbf16>
    %21 = vector.shape_cast %20 : vector<1x128x128xbf16> to vector<128x128xbf16>
    %cst_13 = arith.constant dense<0.000000e+00> : vector<256x128xf32>
    %22 = tpu.matmul %19, %21, %cst_13 {dimension_numbers = #tpu.dot_dimension_numbers<[1], [0], [0], [1], [0, 0, 1, 1], [], []>} : vector<256x128xbf16>, vector<128x128xbf16>, vector<256x128xf32> -> vector<256x128xf32>
    %23 = arith.addf %17, %22 : vector<256x128xf32>
    %c0_14 = arith.constant 0 : index
    %c1_15 = arith.constant 1 : index
    %c0_16 = arith.constant 0 : index
    %c0_17 = arith.constant 0 : index
    %24 = vector.load %arg3[%c0_14, %c1_15, %c0_16, %c0_17] : memref<1x18x18x128xbf16, #tpu.memory_space<vmem>>, vector<1x16x18x128xbf16>
    %25 = vector.shape_cast %24 : vector<1x16x18x128xbf16> to vector<16x18x128xbf16>
    %26 = vector.extract_strided_slice %25 {offsets = [0, 0, 0], sizes = [16, 16, 128], strides = [1, 1, 1]} : vector<16x18x128xbf16> to vector<16x16x128xbf16>
    %27 = vector.shape_cast %26 : vector<16x16x128xbf16> to vector<256x128xbf16>
    %c3 = arith.constant 3 : index
    %c0_18 = arith.constant 0 : index
    %c0_19 = arith.constant 0 : index
    %28 = vector.load %arg4[%c3, %c0_18, %c0_19] : memref<9x128x128xbf16, #tpu.memory_space<vmem>>, vector<1x128x128xbf16>
    %29 = vector.shape_cast %28 : vector<1x128x128xbf16> to vector<128x128xbf16>
    %cst_20 = arith.constant dense<0.000000e+00> : vector<256x128xf32>
    %30 = tpu.matmul %27, %29, %cst_20 {dimension_numbers = #tpu.dot_dimension_numbers<[1], [0], [0], [1], [0, 0, 1, 1], [], []>} : vector<256x128xbf16>, vector<128x128xbf16>, vector<256x128xf32> -> vector<256x128xf32>
    %31 = arith.addf %23, %30 : vector<256x128xf32>
    %32 = vector.extract_strided_slice %25 {offsets = [0, 1, 0], sizes = [16, 16, 128], strides = [1, 1, 1]} : vector<16x18x128xbf16> to vector<16x16x128xbf16>
    %33 = vector.shape_cast %32 : vector<16x16x128xbf16> to vector<256x128xbf16>
    %c4 = arith.constant 4 : index
    %c0_21 = arith.constant 0 : index
    %c0_22 = arith.constant 0 : index
    %34 = vector.load %arg4[%c4, %c0_21, %c0_22] : memref<9x128x128xbf16, #tpu.memory_space<vmem>>, vector<1x128x128xbf16>
    %35 = vector.shape_cast %34 : vector<1x128x128xbf16> to vector<128x128xbf16>
    %cst_23 = arith.constant dense<0.000000e+00> : vector<256x128xf32>
    %36 = tpu.matmul %33, %35, %cst_23 {dimension_numbers = #tpu.dot_dimension_numbers<[1], [0], [0], [1], [0, 0, 1, 1], [], []>} : vector<256x128xbf16>, vector<128x128xbf16>, vector<256x128xf32> -> vector<256x128xf32>
    %37 = arith.addf %31, %36 : vector<256x128xf32>
    %38 = vector.extract_strided_slice %25 {offsets = [0, 2, 0], sizes = [16, 16, 128], strides = [1, 1, 1]} : vector<16x18x128xbf16> to vector<16x16x128xbf16>
    %39 = vector.shape_cast %38 : vector<16x16x128xbf16> to vector<256x128xbf16>
    %c5 = arith.constant 5 : index
    %c0_24 = arith.constant 0 : index
    %c0_25 = arith.constant 0 : index
    %40 = vector.load %arg4[%c5, %c0_24, %c0_25] : memref<9x128x128xbf16, #tpu.memory_space<vmem>>, vector<1x128x128xbf16>
    %41 = vector.shape_cast %40 : vector<1x128x128xbf16> to vector<128x128xbf16>
    %cst_26 = arith.constant dense<0.000000e+00> : vector<256x128xf32>
    %42 = tpu.matmul %39, %41, %cst_26 {dimension_numbers = #tpu.dot_dimension_numbers<[1], [0], [0], [1], [0, 0, 1, 1], [], []>} : vector<256x128xbf16>, vector<128x128xbf16>, vector<256x128xf32> -> vector<256x128xf32>
    %43 = arith.addf %37, %42 : vector<256x128xf32>
    %c0_27 = arith.constant 0 : index
    %c2_28 = arith.constant 2 : index
    %c0_29 = arith.constant 0 : index
    %c0_30 = arith.constant 0 : index
    %44 = vector.load %arg3[%c0_27, %c2_28, %c0_29, %c0_30] : memref<1x18x18x128xbf16, #tpu.memory_space<vmem>>, vector<1x16x18x128xbf16>
    %45 = vector.shape_cast %44 : vector<1x16x18x128xbf16> to vector<16x18x128xbf16>
    %46 = vector.extract_strided_slice %45 {offsets = [0, 0, 0], sizes = [16, 16, 128], strides = [1, 1, 1]} : vector<16x18x128xbf16> to vector<16x16x128xbf16>
    %47 = vector.shape_cast %46 : vector<16x16x128xbf16> to vector<256x128xbf16>
    %c6 = arith.constant 6 : index
    %c0_31 = arith.constant 0 : index
    %c0_32 = arith.constant 0 : index
    %48 = vector.load %arg4[%c6, %c0_31, %c0_32] : memref<9x128x128xbf16, #tpu.memory_space<vmem>>, vector<1x128x128xbf16>
    %49 = vector.shape_cast %48 : vector<1x128x128xbf16> to vector<128x128xbf16>
    %cst_33 = arith.constant dense<0.000000e+00> : vector<256x128xf32>
    %50 = tpu.matmul %47, %49, %cst_33 {dimension_numbers = #tpu.dot_dimension_numbers<[1], [0], [0], [1], [0, 0, 1, 1], [], []>} : vector<256x128xbf16>, vector<128x128xbf16>, vector<256x128xf32> -> vector<256x128xf32>
    %51 = arith.addf %43, %50 : vector<256x128xf32>
    %52 = vector.extract_strided_slice %45 {offsets = [0, 1, 0], sizes = [16, 16, 128], strides = [1, 1, 1]} : vector<16x18x128xbf16> to vector<16x16x128xbf16>
    %53 = vector.shape_cast %52 : vector<16x16x128xbf16> to vector<256x128xbf16>
    %c7 = arith.constant 7 : index
    %c0_34 = arith.constant 0 : index
    %c0_35 = arith.constant 0 : index
    %54 = vector.load %arg4[%c7, %c0_34, %c0_35] : memref<9x128x128xbf16, #tpu.memory_space<vmem>>, vector<1x128x128xbf16>
    %55 = vector.shape_cast %54 : vector<1x128x128xbf16> to vector<128x128xbf16>
    %cst_36 = arith.constant dense<0.000000e+00> : vector<256x128xf32>
    %56 = tpu.matmul %53, %55, %cst_36 {dimension_numbers = #tpu.dot_dimension_numbers<[1], [0], [0], [1], [0, 0, 1, 1], [], []>} : vector<256x128xbf16>, vector<128x128xbf16>, vector<256x128xf32> -> vector<256x128xf32>
    %57 = arith.addf %51, %56 : vector<256x128xf32>
    %58 = vector.extract_strided_slice %45 {offsets = [0, 2, 0], sizes = [16, 16, 128], strides = [1, 1, 1]} : vector<16x18x128xbf16> to vector<16x16x128xbf16>
    %59 = vector.shape_cast %58 : vector<16x16x128xbf16> to vector<256x128xbf16>
    %c8 = arith.constant 8 : index
    %c0_37 = arith.constant 0 : index
    %c0_38 = arith.constant 0 : index
    %60 = vector.load %arg4[%c8, %c0_37, %c0_38] : memref<9x128x128xbf16, #tpu.memory_space<vmem>>, vector<1x128x128xbf16>
    %61 = vector.shape_cast %60 : vector<1x128x128xbf16> to vector<128x128xbf16>
    %cst_39 = arith.constant dense<0.000000e+00> : vector<256x128xf32>
    %62 = tpu.matmul %59, %61, %cst_39 {dimension_numbers = #tpu.dot_dimension_numbers<[1], [0], [0], [1], [0, 0, 1, 1], [], []>} : vector<256x128xbf16>, vector<128x128xbf16>, vector<256x128xf32> -> vector<256x128xf32>
    %63 = arith.addf %57, %62 : vector<256x128xf32>
    %c0_40 = arith.constant 0 : index
    %c0_41 = arith.constant 0 : index
    %64 = vector.load %arg7[%c0_40, %c0_41] : memref<256x128xf32, #tpu.memory_space<vmem>>, vector<256x128xf32>
    %65 = arith.addf %64, %63 : vector<256x128xf32>
    %c0_42 = arith.constant 0 : index
    %c0_43 = arith.constant 0 : index
    %66 = vector.load %arg7[%c0_42, %c0_43] : memref<256x128xf32, #tpu.memory_space<vmem>>, vector<256x128xf32>
    tpu.vector_store %arg7[%c0_42, %c0_43], %65 {strides = array<i32>} : memref<256x128xf32, #tpu.memory_space<vmem>>, vector<256x128xf32>,
    %c0_i32_44 = arith.constant 0 : i32
    %67 = arith.cmpi eq, %arg2, %c0_i32_44 : i32
    %68 = arith.extui %67 : i1 to i32
    %c0_i32_45 = arith.constant 0 : i32
    %69 = arith.cmpi ne, %68, %c0_i32_45 : i32
    scf.if %69 {
      %c0_46 = arith.constant 0 : index
      %c0_47 = arith.constant 0 : index
      %70 = vector.load %arg7[%c0_46, %c0_47] : memref<256x128xf32, #tpu.memory_space<vmem>>, vector<256x128xf32>
      %c0_48 = arith.constant 0 : index
      %c0_49 = arith.constant 0 : index
      %71 = vector.load %arg5[%c0_48, %c0_49] : memref<1x128xf32, #tpu.memory_space<vmem>>, vector<1x128xf32>
      %72 = vector.broadcast %71 : vector<1x128xf32> to vector<256x128xf32>
      %73 = arith.addf %70, %72 : vector<256x128xf32>
      %cst_50 = arith.constant 0.000000e+00 : f32
      %74 = vector.broadcast %cst_50 : f32 to vector<256x128xf32>
      %75 = arith.maximumf %73, %74 : vector<256x128xf32>
      %76 = vector.shape_cast %75 : vector<256x128xf32> to vector<16x16x128xf32>
      %77 = arith.truncf %76 : vector<16x16x128xf32> to vector<16x16x128xbf16>
      %cst_51 = arith.constant 0.000000e+00 : bf16
      %78 = vector.broadcast %cst_51 : bf16 to vector<1x18x18x128xbf16>
      %c0_52 = arith.constant 0 : index
      %c0_53 = arith.constant 0 : index
      %c0_54 = arith.constant 0 : index
      %c0_55 = arith.constant 0 : index
      %79 = vector.load %arg6[%c0_52, %c0_53, %c0_54, %c0_55] : memref<1x18x18x128xbf16, #tpu.memory_space<vmem>>, vector<1x18x18x128xbf16>
      tpu.vector_store %arg6[%c0_52, %c0_53, %c0_54, %c0_55], %78 {strides = array<i32>} : memref<1x18x18x128xbf16, #tpu.memory_space<vmem>>, vector<1x18x18x128xbf16>,
      %c0_56 = arith.constant 0 : index
      %c1_57 = arith.constant 1 : index
      %c1_58 = arith.constant 1 : index
      %c0_59 = arith.constant 0 : index
      %80 = vector.load %arg6[%c0_56, %c1_57, %c1_58, %c0_59] : memref<1x18x18x128xbf16, #tpu.memory_space<vmem>>, vector<1x16x16x128xbf16>
      %81 = vector.shape_cast %80 : vector<1x16x16x128xbf16> to vector<16x16x128xbf16>
      %82 = vector.shape_cast %77 : vector<16x16x128xbf16> to vector<1x16x16x128xbf16>
      tpu.vector_store %arg6[%c0_56, %c1_57, %c1_58, %c0_59], %82 {strides = array<i32>} : memref<1x18x18x128xbf16, #tpu.memory_space<vmem>>, vector<1x16x16x128xbf16>,
    } else {
    }
    return
  }
  func.func @transform_0(%arg0: i32, %arg1: i32, %arg2: i32) -> (i32, i32, i32, i32) {
    %c0_i32 = arith.constant 0 : i32
    %c0_i32_0 = arith.constant 0 : i32
    %c0_i32_1 = arith.constant 0 : i32
    return %arg0, %c0_i32, %c0_i32_0, %arg2 : i32, i32, i32, i32
  }
  func.func @transform_1(%arg0: i32, %arg1: i32, %arg2: i32) -> (i32, i32, i32) {
    %c0_i32 = arith.constant 0 : i32
    %c0_i32_0 = arith.constant 0 : i32
    return %arg2, %c0_i32, %arg1 : i32, i32, i32
  }
  func.func @transform_2(%arg0: i32, %arg1: i32, %arg2: i32) -> (i32, i32) {
    %c0_i32 = arith.constant 0 : i32
    %c0_i32_0 = arith.constant 0 : i32
    return %c0_i32, %arg1 : i32, i32
  }
  func.func @transform_3(%arg0: i32, %arg1: i32, %arg2: i32) -> (i32, i32, i32, i32) {
    %c0_i32 = arith.constant 0 : i32
    %c0_i32_0 = arith.constant 0 : i32
    %c0_i32_1 = arith.constant 0 : i32
    return %arg0, %c0_i32, %c0_i32_0, %arg1 : i32, i32, i32, i32
  }
}

</mosaic_0001>

<llo_original>
// kernel: basic_block_forward.3
$region0: #{basic_block_forward.3}
  #allocation0 [shape = 'u32[]', space=smem, size = 0x4, offset = 0x4, fixed_abs, tag = 'smem constant byte address 0x4 - core index']
  #allocation1 [shape = 'u32[72,128]{1,0:T(1,128)}', space=vmem, size = 0x9000, scoped, tag = 'internal scratch']
  #allocation2 [shape = 'f32[256,128]{1,0:T(8,128)}', space=vmem, size = 0x20000, scoped, tag = 'scratch operand']
  %s0 = inlined_call_operand.vmem [shape: bf16[2,18,18,128], index: 0, kind: input, shape index: {}]
  %s1 = inlined_call_operand.vmem [shape: bf16[9,128,128], index: 1, kind: input, shape index: {}]
  %s2 = inlined_call_operand.vmem [shape: f32[1,128], index: 2, kind: input, shape index: {}]
  %s3 = inlined_call_operand.vmem [shape: bf16[2,16,16,128], index: 3, kind: input, shape index: {}]
  %s4 = inlined_call_operand.vmem [shape: f32[2,16,16,128], index: 4, kind: output, shape index: {}]
  %s5 = sld [smem:[#allocation0]]
  $region57: #{basic_block_forward.3} parent=0
    _
  %s7 = ssub.s32 1, %s5
  %s8 = scalar_select 0, %s7, %s5
  loop: start=0, step=1, limit=4
  $region2: #{basic_block_forward.3} parent=0 // loop_pre_header
    _
  $region3: #{basic_block_forward.3} parent=0 // loop_header
    %s10 = sphi 0, %s14
    %p11 = scmp.ge.s32.totalorder %s10, 4
    %s17 = sphi 0, %s36
    %s18 = sphi 0, %s32
    %s19 = sphi 0, %s28
    %s20 = sphi 0, %s17
    %s21 = sphi 0, %s18
    %s22 = sphi 0, %s19
    %s23 = sphi 0, %s20
    %s24 = sphi 0, %s21
    %s25 = sphi 0, %s22
    %s41 = sphi 0, %s43
    %s44 = sphi 0, %s41
    %s45 = sphi 0, %s44
    %s61 = sphi 0, %s45
    %s69 = sphi 0, %s71
    %s72 = sphi 0, %s69
    %s73 = sphi 0, %s72
    %s89 = sphi 0, %s73
    %s95 = sphi 0, %s97
    %s98 = sphi 0, %s95
    %s99 = sphi 0, %s98
    %s115 = sphi 0, %s99
    %s123 = sphi 0, %s125
    %s126 = sphi 0, %s123
    %s127 = sphi 0, %s126
    %s143 = sphi 0, %s127
    %s151 = sphi 0, %s153
    %s154 = sphi 0, %s151
    %s155 = sphi 0, %s154
    %s171 = sphi 0, %s155
  $region4: #{basic_block_forward.3} parent=0 // loop_header_branch
    %13 = sbr.rel (%p11) target = $region8
  $region5: #{basic_block_forward.3} parent=0 // loop_body
    %s15 = ssub.s32 %s10, 1
    %s16 = ssub.s32 %s10, 2
    %s26 = sadd.s32 1, %s19
    %p27 = scmp.ge.s32.totalorder %s26, 1
    %s28 = scalar_select %p27, 0, %s26
    %s29 = sadd.s32 1, %s18
    %s30 = scalar_select %p27, %s29, %s18
    %p31 = scmp.ge.s32.totalorder %s30, 1
    %s32 = scalar_select %p31, 0, %s30
    %s33 = sadd.s32 1, %s17
    %s34 = scalar_select %p31, %s33, %s17
    %p35 = scmp.ge.s32.totalorder %s34, 2
    %s36 = scalar_select %p35, 0, %s34
    %s37 = ssub.s32 %s17, %s36
    %s38 = ssub.s32 %s19, %s28
    %s39 = sor.u32 %s37, %s38
    %p40 = scmp.eq.s32.totalorder %s39, 0
    %s42 = sadd.s32 %s41, 1
    %s43 = scalar_select %p40, %s41, %s42
    %p46 = pneg %p40
    %p47 = scmp.eq.s32.totalorder %s10, 1
    %p48 = por %p46, %p47
    %p49 = scmp.ne.s32.totalorder %s41, %s44
    %p50 = scmp.eq.s32.totalorder %s10, 0
    %p51 = por %p49, %p50
    %p52 = scmp.ne.s32.totalorder %s41, %s44
    %p53 = scmp.eq.s32.totalorder %s15, 1
    %p54 = por %p52, %p53
    %p55 = scmp.ne.s32.totalorder %s44, %s45
    %p56 = scmp.eq.s32.totalorder %s15, 0
    %p57 = por %p55, %p56
    %p58 = scmp.ne.s32.totalorder %s44, %s45
    %p59 = scmp.eq.s32.totalorder %s16, 1
    %p60 = por %p58, %p59
    %p62 = scmp.ne.s32.totalorder %s45, %s61
    %p63 = scmp.eq.s32.totalorder %s16, 0
    %p64 = por %p62, %p63
    %s65 = ssub.s32 %s19, %s28
    %s66 = ssub.s32 %s18, %s32
    %s67 = sor.u32 %s65, %s66
    %p68 = scmp.eq.s32.totalorder %s67, 0
    %s70 = sadd.s32 %s69, 1
    %s71 = scalar_select %p68, %s69, %s70
    %p74 = pneg %p68
    %p75 = scmp.eq.s32.totalorder %s10, 1
    %p76 = por %p74, %p75
    %p77 = scmp.ne.s32.totalorder %s69, %s72
    %p78 = scmp.eq.s32.totalorder %s10, 0
    %p79 = por %p77, %p78
    %p80 = scmp.ne.s32.totalorder %s69, %s72
    %p81 = scmp.eq.s32.totalorder %s15, 1
    %p82 = por %p80, %p81
    %p83 = scmp.ne.s32.totalorder %s72, %s73
    %p84 = scmp.eq.s32.totalorder %s15, 0
    %p85 = por %p83, %p84
    %p86 = scmp.ne.s32.totalorder %s72, %s73
    %p87 = scmp.eq.s32.totalorder %s16, 1
    %p88 = por %p86, %p87
    %p90 = scmp.ne.s32.totalorder %s73, %s89
    %p91 = scmp.eq.s32.totalorder %s16, 0
    %p92 = por %p90, %p91
    %s93 = ssub.s32 %s18, %s32
    %p94 = scmp.eq.s32.totalorder %s93, 0
    %s96 = sadd.s32 %s95, 1
    %s97 = scalar_select %p94, %s95, %s96
    %p100 = pneg %p94
    %p101 = scmp.eq.s32.totalorder %s10, 1
    %p102 = por %p100, %p101
    %p103 = scmp.ne.s32.totalorder %s95, %s98
    %p104 = scmp.eq.s32.totalorder %s10, 0
    %p105 = por %p103, %p104
    %p106 = scmp.ne.s32.totalorder %s95, %s98
    %p107 = scmp.eq.s32.totalorder %s15, 1
    %p108 = por %p106, %p107
    %p109 = scmp.ne.s32.totalorder %s98, %s99
    %p110 = scmp.eq.s32.totalorder %s15, 0
    %p111 = por %p109, %p110
    %p112 = scmp.ne.s32.totalorder %s98, %s99
    %p113 = scmp.eq.s32.totalorder %s16, 1
    %p114 = por %p112, %p113
    %p116 = scmp.ne.s32.totalorder %s99, %s115
    %p117 = scmp.eq.s32.totalorder %s16, 0
    %p118 = por %p116, %p117
    %s119 = ssub.s32 %s17, %s36
    %s120 = ssub.s32 %s18, %s32
    %s121 = sor.u32 %s119, %s120
    %p122 = scmp.eq.s32.totalorder %s121, 0
    %s124 = sadd.s32 %s123, 1
    %s125 = scalar_select %p122, %s123, %s124
    %p128 = pneg %p122
    %p129 = scmp.eq.s32.totalorder %s10, 1
    %p130 = por %p128, %p129
    %p131 = scmp.ne.s32.totalorder %s123, %s126
    %p132 = scmp.eq.s32.totalorder %s10, 0
    %p133 = por %p131, %p132
    %p134 = scmp.ne.s32.totalorder %s123, %s126
    %p135 = scmp.eq.s32.totalorder %s15, 1
    %p136 = por %p134, %p135
    %p137 = scmp.ne.s32.totalorder %s126, %s127
    %p138 = scmp.eq.s32.totalorder %s15, 0
    %p139 = por %p137, %p138
    %p140 = scmp.ne.s32.totalorder %s126, %s127
    %p141 = scmp.eq.s32.totalorder %s16, 1
    %p142 = por %p140, %p141
    %p144 = scmp.ne.s32.totalorder %s127, %s143
    %p145 = scmp.eq.s32.totalorder %s16, 0
    %p146 = por %p144, %p145
    %s147 = ssub.s32 %s17, %s36
    %s148 = ssub.s32 %s18, %s32
    %s149 = sor.u32 %s147, %s148
    %p150 = scmp.eq.s32.totalorder %s149, 0
    %s152 = sadd.s32 %s151, 1
    %s153 = scalar_select %p150, %s151, %s152
    %p156 = pneg %p150
    %p157 = scmp.eq.s32.totalorder %s10, 1
    %p158 = por %p156, %p157
    %p159 = scmp.ne.s32.totalorder %s151, %s154
    %p160 = scmp.eq.s32.totalorder %s10, 0
    %p161 = por %p159, %p160
    %p162 = scmp.ne.s32.totalorder %s151, %s154
    %p163 = scmp.eq.s32.totalorder %s15, 1
    %p164 = por %p162, %p163
    %p165 = scmp.ne.s32.totalorder %s154, %s155
    %p166 = scmp.eq.s32.totalorder %s15, 0
    %p167 = por %p165, %p166
    %p168 = scmp.ne.s32.totalorder %s154, %s155
    %p169 = scmp.eq.s32.totalorder %s16, 1
    %p170 = por %p168, %p169
    %p172 = scmp.ne.s32.totalorder %s155, %s171
    %p173 = scmp.eq.s32.totalorder %s16, 0
    %p174 = por %p172, %p173
    %p175 = scmp.le.s32.totalorder 1, %s10
    %p176 = scmp.lt.s32.totalorder %s10, 3
    %p177 = pnand %p175, %p176
    %p178 = pneg %p177
    // Predicated region
    $region9: #{basic_block_forward.3} parent=5 // pred_check
      _
    $region10: #{basic_block_forward.3} parent=5 // pred_check_branch
      %180 = sbr.rel (%p177) target = $region12
    $region11: #{basic_block_forward.3} parent=5 // pred_region
      %s181 = ssub.s32 %s10, 1
      // Predicated region
      $region13: #{basic_block_forward.3} parent=11 // pred_check
        %p182 = pneg %p85
      $region14: #{basic_block_forward.3} parent=11 // pred_check_branch
        %184 = sbr.rel (%p182) target = $region16
      $region15: #{basic_block_forward.3} parent=11 // pred_region
        %s185 = smul.u32 9, %s22
        %p186 = scmp.lt.s32.totalorder %s185, 8
        %s187 = scalar_select %p186, %s185, 8
        %p188 = scmp.lt.s32.totalorder %s21, 0
        %s189 = scalar_select %p188, %s21, 0
        %s190 = smul.addr %s187, 16
        %s191 = sadd.s32 %s189, %s190
        %s192 = smul.addr %s191, 4
        %s193 = scalar_lea.vmem %s1, %s192
        %s194 = smul.u32 9, %s22
      $region16: #{basic_block_forward.3} parent=11 // pred_fallthru
        _
      // Predicated region
      $region17: #{basic_block_forward.3} parent=11 // pred_check
        %p195 = pneg %p111
      $region18: #{basic_block_forward.3} parent=11 // pred_check_branch
        %197 = sbr.rel (%p195) target = $region20
      $region19: #{basic_block_forward.3} parent=11 // pred_region
        %p198 = scmp.lt.s32.totalorder %s21, 0
        %s199 = scalar_select %p198, %s21, 0
        %s200 = scalar_lea.vmem %s2, %s199
      $region20: #{basic_block_forward.3} parent=11 // pred_fallthru
        _
    $region12: #{basic_block_forward.3} parent=5 // pred_fallthru
      _
    %p201 = scmp.lt.s32.totalorder %s10, 2
    // Predicated region
    $region21: #{basic_block_forward.3} parent=5 // pred_check
      %p202 = pneg %p201
    $region22: #{basic_block_forward.3} parent=5 // pred_check_branch
      %204 = sbr.rel (%p202) target = $region24
    $region23: #{basic_block_forward.3} parent=5 // pred_region
      // Predicated region
      $region25: #{basic_block_forward.3} parent=23 // pred_check
        %p205 = pneg %p51
      $region26: #{basic_block_forward.3} parent=23 // pred_check_branch
        %207 = sbr.rel (%p205) target = $region28
      $region27: #{basic_block_forward.3} parent=23 // pred_region
        %p208 = scmp.lt.s32.totalorder %s17, 1
        %s209 = scalar_select %p208, %s17, 1
        %p210 = scmp.lt.s32.totalorder %s19, 0
        %s211 = scalar_select %p210, %s19, 0
        %s212 = smul.addr %s209, 54
        %s213 = sadd.s32 %s211, %s212
        %s214 = smul.addr %s213, 4
        %s215 = scalar_lea.vmem %s0, %s214
      $region28: #{basic_block_forward.3} parent=23 // pred_fallthru
        _
      // Predicated region
      $region29: #{basic_block_forward.3} parent=23 // pred_check
        %p216 = pneg %p133
      $region30: #{basic_block_forward.3} parent=23 // pred_check_branch
        %218 = sbr.rel (%p216) target = $region32
      $region31: #{basic_block_forward.3} parent=23 // pred_region
        %p219 = scmp.lt.s32.totalorder %s17, 1
        %s220 = scalar_select %p219, %s17, 1
        %p221 = scmp.lt.s32.totalorder %s18, 0
        %s222 = scalar_select %p221, %s18, 0
        %s223 = smul.addr %s220, 32
        %s224 = sadd.s32 %s222, %s223
        %s225 = smul.addr %s224, 4
        %s226 = scalar_lea.vmem %s3, %s225
      $region32: #{basic_block_forward.3} parent=23 // pred_fallthru
        _
    $region24: #{basic_block_forward.3} parent=5 // pred_fallthru
      _
    %p227 = scmp.le.s32.totalorder 1, %s10
    %p228 = scmp.lt.s32.totalorder %s10, 3
    %p229 = pnand %p227, %p228
    %p230 = pneg %p229
    // Predicated region
    $region33: #{basic_block_forward.3} parent=5 // pred_check
      _
    $region34: #{basic_block_forward.3} parent=5 // pred_check_branch
      %232 = sbr.rel (%p229) target = $region36
    $region35: #{basic_block_forward.3} parent=5 // pred_region
      %s233 = ssub.s32 %s10, 1
      %p234 = scmp.lt.s32.totalorder %s20, 1
      %s235 = scalar_select %p234, %s20, 1
      %p236 = scmp.lt.s32.totalorder %s22, 0
      %s237 = scalar_select %p236, %s22, 0
      %s238 = smul.addr %s235, 54
      %s239 = sadd.s32 %s237, %s238
      %s240 = smul.addr %s239, 4
      %s241 = scalar_lea.vmem %s0, %s240
      %p242 = pneg %p57
      %p243 = pneg %p54
      %s244 = smul.u32 9, %s22
      %p245 = scmp.lt.s32.totalorder %s244, 8
      %s246 = scalar_select %p245, %s244, 8
      %p247 = scmp.lt.s32.totalorder %s21, 0
      %s248 = scalar_select %p247, %s21, 0
      %s249 = smul.addr %s246, 16
      %s250 = sadd.s32 %s248, %s249
      %s251 = smul.addr %s250, 4
      %s252 = scalar_lea.vmem %s1, %s251
      %p253 = pneg %p85
      %p254 = pneg %p82
      %p255 = scmp.lt.s32.totalorder %s21, 0
      %s256 = scalar_select %p255, %s21, 0
      %s257 = scalar_lea.vmem %s2, %s256
      %p258 = pneg %p111
      %p259 = pneg %p108
      %p260 = scmp.lt.s32.totalorder %s20, 1
      %s261 = scalar_select %p260, %s20, 1
      %p262 = scmp.lt.s32.totalorder %s21, 0
      %s263 = scalar_select %p262, %s21, 0
      %s264 = smul.addr %s261, 32
      %s265 = sadd.s32 %s263, %s264
      %s266 = smul.addr %s265, 4
      %s267 = scalar_lea.vmem %s3, %s266
      %p268 = pneg %p139
      %p269 = pneg %p136
      %p270 = pneg %p167
      %p271 = pneg %p164
      %p272 = scmp.lt.s32.totalorder %s20, 1
      %s273 = scalar_select %p272, %s20, 1
      %p274 = scmp.lt.s32.totalorder %s21, 0
      %s275 = scalar_select %p274, %s21, 0
      %s276 = smul.addr %s273, 32
      %s277 = sadd.s32 %s275, %s276
      %s278 = smul.addr %s277, 8
      %s279 = scalar_lea.vmem %s4, %s278
      %p280 = scmp.lt.s32.totalorder %s20, 1
      %s281 = scalar_select %p280, %s20, 1
      %p282 = scmp.lt.s32.totalorder %s22, 0
      %s283 = scalar_select %p282, %s22, 0
      %s284 = smul.addr %s281, 54
      %s285 = sadd.s32 %s283, %s284
      %s286 = smul.addr %s285, 4
      %s287 = scalar_lea.vmem %s0, %s286
      %s288 = smul.u32 9, %s22
      %p289 = scmp.lt.s32.totalorder %s288, 8
      %s290 = scalar_select %p289, %s288, 8
      %p291 = scmp.lt.s32.totalorder %s21, 0
      %s292 = scalar_select %p291, %s21, 0
      %s293 = smul.addr %s290, 16
      %s294 = sadd.s32 %s292, %s293
      %s295 = smul.addr %s294, 4
      %s296 = scalar_lea.vmem %s1, %s295
      %s297 = smul.u32 9, %s22
      %p298 = scmp.lt.s32.totalorder %s21, 0
      %s299 = scalar_select %p298, %s21, 0
      %s300 = scalar_lea.vmem %s2, %s299
      %p301 = scmp.lt.s32.totalorder %s20, 1
      %s302 = scalar_select %p301, %s20, 1
      %p303 = scmp.lt.s32.totalorder %s21, 0
      %s304 = scalar_select %p303, %s21, 0
      %s305 = smul.addr %s302, 32
      %s306 = sadd.s32 %s304, %s305
      %s307 = smul.addr %s306, 4
      %s308 = scalar_lea.vmem %s3, %s307
      %p309 = scmp.lt.s32.totalorder %s20, 1
      %s310 = scalar_select %p309, %s20, 1
      %p311 = scmp.lt.s32.totalorder %s21, 0
      %s312 = scalar_select %p311, %s21, 0
      %s313 = smul.addr %s310, 32
      %s314 = sadd.s32 %s312, %s313
      %s315 = smul.addr %s314, 8
      %s316 = scalar_lea.vmem %s4, %s315
      %p317 = scmp.eq.s32.totalorder %s22, 0
      // Predicated region
      $region37: #{basic_block_forward.3} parent=35 // pred_check
        %p318 = pneg %p317
      $region38: #{basic_block_forward.3} parent=35 // pred_check_branch
        %320 = sbr.rel (%p318) target = $region40
      $region39: #{basic_block_forward.3} parent=35 // pred_region
        %321 = vst [vmem:[#allocation2] sm:$0xff] 0.0
        %322 = vst [vmem:[#allocation2 + $0x8] sm:$0xff] 0.0
        %323 = vst [vmem:[#allocation2 + $0x10] sm:$0xff] 0.0
        %324 = vst [vmem:[#allocation2 + $0x18] sm:$0xff] 0.0
        %325 = vst [vmem:[#allocation2 + $0x20] sm:$0xff] 0.0
        %326 = vst [vmem:[#allocation2 + $0x28] sm:$0xff] 0.0
        %327 = vst [vmem:[#allocation2 + $0x30] sm:$0xff] 0.0
        %328 = vst [vmem:[#allocation2 + $0x38] sm:$0xff] 0.0
        %329 = vst [vmem:[#allocation2 + $0x40] sm:$0xff] 0.0
        %330 = vst [vmem:[#allocation2 + $0x48] sm:$0xff] 0.0
        %331 = vst [vmem:[#allocation2 + $0x50] sm:$0xff] 0.0
        %332 = vst [vmem:[#allocation2 + $0x58] sm:$0xff] 0.0
        %333 = vst [vmem:[#allocation2 + $0x60] sm:$0xff] 0.0
        %334 = vst [vmem:[#allocation2 + $0x68] sm:$0xff] 0.0
        %335 = vst [vmem:[#allocation2 + $0x70] sm:$0xff] 0.0
        %336 = vst [vmem:[#allocation2 + $0x78] sm:$0xff] 0.0
        %337 = vst [vmem:[#allocation2 + $0x80] sm:$0xff] 0.0
        %338 = vst [vmem:[#allocation2 + $0x88] sm:$0xff] 0.0
        %339 = vst [vmem:[#allocation2 + $0x90] sm:$0xff] 0.0
        %340 = vst [vmem:[#allocation2 + $0x98] sm:$0xff] 0.0
        %341 = vst [vmem:[#allocation2 + $0xa0] sm:$0xff] 0.0
        %342 = vst [vmem:[#allocation2 + $0xa8] sm:$0xff] 0.0
        %343 = vst [vmem:[#allocation2 + $0xb0] sm:$0xff] 0.0
        %344 = vst [vmem:[#allocation2 + $0xb8] sm:$0xff] 0.0
        %345 = vst [vmem:[#allocation2 + $0xc0] sm:$0xff] 0.0
        %346 = vst [vmem:[#allocation2 + $0xc8] sm:$0xff] 0.0
        %347 = vst [vmem:[#allocation2 + $0xd0] sm:$0xff] 0.0
        %348 = vst [vmem:[#allocation2 + $0xd8] sm:$0xff] 0.0
        %349 = vst [vmem:[#allocation2 + $0xe0] sm:$0xff] 0.0
        %350 = vst [vmem:[#allocation2 + $0xe8] sm:$0xff] 0.0
        %351 = vst [vmem:[#allocation2 + $0xf0] sm:$0xff] 0.0
        %352 = vst [vmem:[#allocation2 + $0xf8] sm:$0xff] 0.0
      $region40: #{basic_block_forward.3} parent=35 // pred_fallthru
        _
      %v353 = vld [vmem:[%s287] sm:$0xf]
      %v354 = vld [vmem:[%s287 + $0x4] sm:$0xf]
      %v355 = vld [vmem:[%s287 + $0x8] sm:$0x1]
      %v356 = vld [vmem:[%s287 + $0xc] sm:$0xf]
      %v357 = vld [vmem:[%s287 + $0x10] sm:$0xf]
      %v358 = vld [vmem:[%s287 + $0x14] sm:$0x1]
      %v359 = vld [vmem:[%s287 + $0x18] sm:$0xf]
      %v360 = vld [vmem:[%s287 + $0x1c] sm:$0xf]
      %v361 = vld [vmem:[%s287 + $0x20] sm:$0x1]
      %v362 = vld [vmem:[%s287 + $0x24] sm:$0xf]
      %v363 = vld [vmem:[%s287 + $0x28] sm:$0xf]
      %v364 = vld [vmem:[%s287 + $0x2c] sm:$0x1]
      %v365 = vld [vmem:[%s287 + $0x30] sm:$0xf]
      %v366 = vld [vmem:[%s287 + $0x34] sm:$0xf]
      %v367 = vld [vmem:[%s287 + $0x38] sm:$0x1]
      %v368 = vld [vmem:[%s287 + $0x3c] sm:$0xf]
      %v369 = vld [vmem:[%s287 + $0x40] sm:$0xf]
      %v370 = vld [vmem:[%s287 + $0x44] sm:$0x1]
      %v371 = vld [vmem:[%s287 + $0x48] sm:$0xf]
      %v372 = vld [vmem:[%s287 + $0x4c] sm:$0xf]
      %v373 = vld [vmem:[%s287 + $0x50] sm:$0x1]
      %v374 = vld [vmem:[%s287 + $0x54] sm:$0xf]
      %v375 = vld [vmem:[%s287 + $0x58] sm:$0xf]
      %v376 = vld [vmem:[%s287 + $0x5c] sm:$0x1]
      %v377 = vld [vmem:[%s287 + $0x60] sm:$0xf]
      %v378 = vld [vmem:[%s287 + $0x64] sm:$0xf]
      %v379 = vld [vmem:[%s287 + $0x68] sm:$0x1]
      %v380 = vld [vmem:[%s287 + $0x6c] sm:$0xf]
      %v381 = vld [vmem:[%s287 + $0x70] sm:$0xf]
      %v382 = vld [vmem:[%s287 + $0x74] sm:$0x1]
      %v383 = vld [vmem:[%s287 + $0x78] sm:$0xf]
      %v384 = vld [vmem:[%s287 + $0x7c] sm:$0xf]
      %v385 = vld [vmem:[%s287 + $0x80] sm:$0x1]
      %v386 = vld [vmem:[%s287 + $0x84] sm:$0xf]
      %v387 = vld [vmem:[%s287 + $0x88] sm:$0xf]
      %v388 = vld [vmem:[%s287 + $0x8c] sm:$0x1]
      %v389 = vld [vmem:[%s287 + $0x90] sm:$0xf]
      %v390 = vld [vmem:[%s287 + $0x94] sm:$0xf]
      %v391 = vld [vmem:[%s287 + $0x98] sm:$0x1]
      %v392 = vld [vmem:[%s287 + $0x9c] sm:$0xf]
      %v393 = vld [vmem:[%s287 + $0xa0] sm:$0xf]
      %v394 = vld [vmem:[%s287 + $0xa4] sm:$0x1]
      %v395 = vld [vmem:[%s287 + $0xa8] sm:$0xf]
      %v396 = vld [vmem:[%s287 + $0xac] sm:$0xf]
      %v397 = vld [vmem:[%s287 + $0xb0] sm:$0x1]
      %v398 = vld [vmem:[%s287 + $0xb4] sm:$0xf]
      %v399 = vld [vmem:[%s287 + $0xb8] sm:$0xf]
      %v400 = vld [vmem:[%s287 + $0xbc] sm:$0x1]
      %v401 = vld [vmem:[%s296] sm:$0xf]
      %v402 = vld [vmem:[%s296 + $0x4] sm:$0xf]
      %v403 = vld [vmem:[%s296 + $0x8] sm:$0xf]
      %v404 = vld [vmem:[%s296 + $0xc] sm:$0xf]
      %v405 = vld [vmem:[%s296 + $0x10] sm:$0xf]
      %v406 = vld [vmem:[%s296 + $0x14] sm:$0xf]
      %v407 = vld [vmem:[%s296 + $0x18] sm:$0xf]
      %v408 = vld [vmem:[%s296 + $0x1c] sm:$0xf]
      %v409 = vld [vmem:[%s296 + $0x20] sm:$0xf]
      %v410 = vld [vmem:[%s296 + $0x24] sm:$0xf]
      %v411 = vld [vmem:[%s296 + $0x28] sm:$0xf]
      %v412 = vld [vmem:[%s296 + $0x2c] sm:$0xf]
      %v413 = vld [vmem:[%s296 + $0x30] sm:$0xf]
      %v414 = vld [vmem:[%s296 + $0x34] sm:$0xf]
      %v415 = vld [vmem:[%s296 + $0x38] sm:$0xf]
      %v416 = vld [vmem:[%s296 + $0x3c] sm:$0xf]
      %vm417 = vsmask.f32 3328
      %vm418 = vsmask.f32 7440
      %vm419 = vmor %vm417, %vm418
      %v421 = vshrl.u32 %v353, 16
      %v423 = vrot.slane %v421, 4
      %v424 = vshll.u32 %v353, 16
      %v426 = vrot.slane %v424, 5
      %v427 = vor.u32 %v423, %v426
      %v428 = vrot.slane %v427, 4
      %v430 = vshll.u32 %v354, 16
      %v432 = vrot.slane %v430, 5
      %v433 = vsel %vm419, %v428, %v432
      %v434 = vshrl.u32 %v354, 16
      %v436 = vrot.slane %v434, 4
      %v437 = vor.u32 %v436, %v432
      %v438 = vrot.slane %v437, 4
      %v440 = vshll.u32 %v355, 16
      %v442 = vrot.slane %v440, 5
      %v443 = vsel %vm419, %v438, %v442
      %v445 = vshrl.u32 %v356, 16
      %v447 = vrot.slane %v445, 4
      %v448 = vshll.u32 %v356, 16
      %v450 = vrot.slane %v448, 5
      %v451 = vor.u32 %v447, %v450
      %v452 = vrot.slane %v451, 4
      %v454 = vshll.u32 %v357, 16
      %v456 = vrot.slane %v454, 5
      %v457 = vsel %vm419, %v452, %v456
      %v458 = vshrl.u32 %v357, 16
      %v460 = vrot.slane %v458, 4
      %v461 = vor.u32 %v460, %v456
      %v462 = vrot.slane %v461, 4
      %v464 = vshll.u32 %v358, 16
      %v466 = vrot.slane %v464, 5
      %v467 = vsel %vm419, %v462, %v466
      %v469 = vshrl.u32 %v359, 16
      %v471 = vrot.slane %v469, 4
      %v472 = vshll.u32 %v359, 16
      %v474 = vrot.slane %v472, 5
      %v475 = vor.u32 %v471, %v474
      %v476 = vrot.slane %v475, 4
      %v478 = vshll.u32 %v360, 16
      %v480 = vrot.slane %v478, 5
      %v481 = vsel %vm419, %v476, %v480
      %v482 = vshrl.u32 %v360, 16
      %v484 = vrot.slane %v482, 4
      %v485 = vor.u32 %v484, %v480
      %v486 = vrot.slane %v485, 4
      %v488 = vshll.u32 %v361, 16
      %v490 = vrot.slane %v488, 5
      %v491 = vsel %vm419, %v486, %v490
      %v493 = vshrl.u32 %v362, 16
      %v495 = vrot.slane %v493, 4
      %v496 = vshll.u32 %v362, 16
      %v498 = vrot.slane %v496, 5
      %v499 = vor.u32 %v495, %v498
      %v500 = vrot.slane %v499, 4
      %v502 = vshll.u32 %v363, 16
      %v504 = vrot.slane %v502, 5
      %v505 = vsel %vm419, %v500, %v504
      %v506 = vshrl.u32 %v363, 16
      %v508 = vrot.slane %v506, 4
      %v509 = vor.u32 %v508, %v504
      %v510 = vrot.slane %v509, 4
      %v512 = vshll.u32 %v364, 16
      %v514 = vrot.slane %v512, 5
      %v515 = vsel %vm419, %v510, %v514
      %v517 = vshrl.u32 %v365, 16
      %v519 = vrot.slane %v517, 4
      %v520 = vshll.u32 %v365, 16
      %v522 = vrot.slane %v520, 5
      %v523 = vor.u32 %v519, %v522
      %v524 = vrot.slane %v523, 4
      %v526 = vshll.u32 %v366, 16
      %v528 = vrot.slane %v526, 5
      %v529 = vsel %vm419, %v524, %v528
      %v530 = vshrl.u32 %v366, 16
      %v532 = vrot.slane %v530, 4
      %v533 = vor.u32 %v532, %v528
      %v534 = vrot.slane %v533, 4
      %v536 = vshll.u32 %v367, 16
      %v538 = vrot.slane %v536, 5
      %v539 = vsel %vm419, %v534, %v538
      %v541 = vshrl.u32 %v368, 16
      %v543 = vrot.slane %v541, 4
      %v544 = vshll.u32 %v368, 16
      %v546 = vrot.slane %v544, 5
      %v547 = vor.u32 %v543, %v546
      %v548 = vrot.slane %v547, 4
      %v550 = vshll.u32 %v369, 16
      %v552 = vrot.slane %v550, 5
      %v553 = vsel %vm419, %v548, %v552
      %v554 = vshrl.u32 %v369, 16
      %v556 = vrot.slane %v554, 4
      %v557 = vor.u32 %v556, %v552
      %v558 = vrot.slane %v557, 4
      %v560 = vshll.u32 %v370, 16
      %v562 = vrot.slane %v560, 5
      %v563 = vsel %vm419, %v558, %v562
      %v565 = vshrl.u32 %v371, 16
      %v567 = vrot.slane %v565, 4
      %v568 = vshll.u32 %v371, 16
      %v570 = vrot.slane %v568, 5
      %v571 = vor.u32 %v567, %v570
      %v572 = vrot.slane %v571, 4
      %v574 = vshll.u32 %v372, 16
      %v576 = vrot.slane %v574, 5
      %v577 = vsel %vm419, %v572, %v576
      %v578 = vshrl.u32 %v372, 16
      %v580 = vrot.slane %v578, 4
      %v581 = vor.u32 %v580, %v576
      %v582 = vrot.slane %v581, 4
      %v584 = vshll.u32 %v373, 16
      %v586 = vrot.slane %v584, 5
      %v587 = vsel %vm419, %v582, %v586
      %v589 = vshrl.u32 %v374, 16
      %v591 = vrot.slane %v589, 4
      %v592 = vshll.u32 %v374, 16
      %v594 = vrot.slane %v592, 5
      %v595 = vor.u32 %v591, %v594
      %v596 = vrot.slane %v595, 4
      %v598 = vshll.u32 %v375, 16
      %v600 = vrot.slane %v598, 5
      %v601 = vsel %vm419, %v596, %v600
      %v602 = vshrl.u32 %v375, 16
      %v604 = vrot.slane %v602, 4
      %v605 = vor.u32 %v604, %v600
      %v606 = vrot.slane %v605, 4
      %v608 = vshll.u32 %v376, 16
      %v610 = vrot.slane %v608, 5
      %v611 = vsel %vm419, %v606, %v610
      %v613 = vshrl.u32 %v377, 16
      %v615 = vrot.slane %v613, 4
      %v616 = vshll.u32 %v377, 16
      %v618 = vrot.slane %v616, 5
      %v619 = vor.u32 %v615, %v618
      %v620 = vrot.slane %v619, 4
      %v622 = vshll.u32 %v378, 16
      %v624 = vrot.slane %v622, 5
      %v625 = vsel %vm419, %v620, %v624
      %v626 = vshrl.u32 %v378, 16
      %v628 = vrot.slane %v626, 4
      %v629 = vor.u32 %v628, %v624
      %v630 = vrot.slane %v629, 4
      %v632 = vshll.u32 %v379, 16
      %v634 = vrot.slane %v632, 5
      %v635 = vsel %vm419, %v630, %v634
      %v637 = vshrl.u32 %v380, 16
      %v639 = vrot.slane %v637, 4
      %v640 = vshll.u32 %v380, 16
      %v642 = vrot.slane %v640, 5
      %v643 = vor.u32 %v639, %v642
      %v644 = vrot.slane %v643, 4
      %v646 = vshll.u32 %v381, 16
      %v648 = vrot.slane %v646, 5
      %v649 = vsel %vm419, %v644, %v648
      %v650 = vshrl.u32 %v381, 16
      %v652 = vrot.slane %v650, 4
      %v653 = vor.u32 %v652, %v648
      %v654 = vrot.slane %v653, 4
      %v656 = vshll.u32 %v382, 16
      %v658 = vrot.slane %v656, 5
      %v659 = vsel %vm419, %v654, %v658
      %v661 = vshrl.u32 %v383, 16
      %v663 = vrot.slane %v661, 4
      %v664 = vshll.u32 %v383, 16
      %v666 = vrot.slane %v664, 5
      %v667 = vor.u32 %v663, %v666
      %v668 = vrot.slane %v667, 4
      %v670 = vshll.u32 %v384, 16
      %v672 = vrot.slane %v670, 5
      %v673 = vsel %vm419, %v668, %v672
      %v674 = vshrl.u32 %v384, 16
      %v676 = vrot.slane %v674, 4
      %v677 = vor.u32 %v676, %v672
      %v678 = vrot.slane %v677, 4
      %v680 = vshll.u32 %v385, 16
      %v682 = vrot.slane %v680, 5
      %v683 = vsel %vm419, %v678, %v682
      %v685 = vshrl.u32 %v386, 16
      %v687 = vrot.slane %v685, 4
      %v688 = vshll.u32 %v386, 16
      %v690 = vrot.slane %v688, 5
      %v691 = vor.u32 %v687, %v690
      %v692 = vrot.slane %v691, 4
      %v694 = vshll.u32 %v387, 16
      %v696 = vrot.slane %v694, 5
      %v697 = vsel %vm419, %v692, %v696
      %v698 = vshrl.u32 %v387, 16
      %v700 = vrot.slane %v698, 4
      %v701 = vor.u32 %v700, %v696
      %v702 = vrot.slane %v701, 4
      %v704 = vshll.u32 %v388, 16
      %v706 = vrot.slane %v704, 5
      %v707 = vsel %vm419, %v702, %v706
      %v709 = vshrl.u32 %v389, 16
      %v711 = vrot.slane %v709, 4
      %v712 = vshll.u32 %v389, 16
      %v714 = vrot.slane %v712, 5
      %v715 = vor.u32 %v711, %v714
      %v716 = vrot.slane %v715, 4
      %v718 = vshll.u32 %v390, 16
      %v720 = vrot.slane %v718, 5
      %v721 = vsel %vm419, %v716, %v720
      %v722 = vshrl.u32 %v390, 16
      %v724 = vrot.slane %v722, 4
      %v725 = vor.u32 %v724, %v720
      %v726 = vrot.slane %v725, 4
      %v728 = vshll.u32 %v391, 16
      %v730 = vrot.slane %v728, 5
      %v731 = vsel %vm419, %v726, %v730
      %v733 = vshrl.u32 %v392, 16
      %v735 = vrot.slane %v733, 4
      %v736 = vshll.u32 %v392, 16
      %v738 = vrot.slane %v736, 5
      %v739 = vor.u32 %v735, %v738
      %v740 = vrot.slane %v739, 4
      %v742 = vshll.u32 %v393, 16
      %v744 = vrot.slane %v742, 5
      %v745 = vsel %vm419, %v740, %v744
      %v746 = vshrl.u32 %v393, 16
      %v748 = vrot.slane %v746, 4
      %v749 = vor.u32 %v748, %v744
      %v750 = vrot.slane %v749, 4
      %v752 = vshll.u32 %v394, 16
      %v754 = vrot.slane %v752, 5
      %v755 = vsel %vm419, %v750, %v754
      %v757 = vshrl.u32 %v395, 16
      %v759 = vrot.slane %v757, 4
      %v760 = vshll.u32 %v395, 16
      %v762 = vrot.slane %v760, 5
      %v763 = vor.u32 %v759, %v762
      %v764 = vrot.slane %v763, 4
      %v766 = vshll.u32 %v396, 16
      %v768 = vrot.slane %v766, 5
      %v769 = vsel %vm419, %v764, %v768
      %v770 = vshrl.u32 %v396, 16
      %v772 = vrot.slane %v770, 4
      %v773 = vor.u32 %v772, %v768
      %v774 = vrot.slane %v773, 4
      %v776 = vshll.u32 %v397, 16
      %v778 = vrot.slane %v776, 5
      %v779 = vsel %vm419, %v774, %v778
      %v781 = vshrl.u32 %v398, 16
      %v783 = vrot.slane %v781, 4
      %v784 = vshll.u32 %v398, 16
      %v786 = vrot.slane %v784, 5
      %v787 = vor.u32 %v783, %v786
      %v788 = vrot.slane %v787, 4
      %v790 = vshll.u32 %v399, 16
      %v792 = vrot.slane %v790, 5
      %v793 = vsel %vm419, %v788, %v792
      %v794 = vshrl.u32 %v399, 16
      %v796 = vrot.slane %v794, 4
      %v797 = vor.u32 %v796, %v792
      %v798 = vrot.slane %v797, 4
      %v800 = vshll.u32 %v400, 16
      %v802 = vrot.slane %v800, 5
      %v803 = vsel %vm419, %v798, %v802
      %s804 = scalar_lea.vmem %s296, 64
      %v805 = vld [vmem:[%s804] sm:$0xf]
      %v806 = vld [vmem:[%s804 + $0x4] sm:$0xf]
      %v807 = vld [vmem:[%s804 + $0x8] sm:$0xf]
      %v808 = vld [vmem:[%s804 + $0xc] sm:$0xf]
      %v809 = vld [vmem:[%s804 + $0x10] sm:$0xf]
      %v810 = vld [vmem:[%s804 + $0x14] sm:$0xf]
      %v811 = vld [vmem:[%s804 + $0x18] sm:$0xf]
      %v812 = vld [vmem:[%s804 + $0x1c] sm:$0xf]
      %v813 = vld [vmem:[%s804 + $0x20] sm:$0xf]
      %v814 = vld [vmem:[%s804 + $0x24] sm:$0xf]
      %v815 = vld [vmem:[%s804 + $0x28] sm:$0xf]
      %v816 = vld [vmem:[%s804 + $0x2c] sm:$0xf]
      %v817 = vld [vmem:[%s804 + $0x30] sm:$0xf]
      %v818 = vld [vmem:[%s804 + $0x34] sm:$0xf]
      %v819 = vld [vmem:[%s804 + $0x38] sm:$0xf]
      %v820 = vld [vmem:[%s804 + $0x3c] sm:$0xf]
      %v821 = vunpack.c.l.b16 %v433
      %v822 = vunpack.c.l.b16 %v443
      %v823 = vunpack.c.l.b16 %v457
      %v824 = vunpack.c.l.b16 %v467
      %v825 = vunpack.c.l.b16 %v481
      %v826 = vunpack.c.l.b16 %v491
      %v827 = vunpack.c.l.b16 %v505
      %v828 = vunpack.c.l.b16 %v515
      %v829 = vunpack.c.l.b16 %v529
      %v830 = vunpack.c.l.b16 %v539
      %v831 = vunpack.c.l.b16 %v553
      %v832 = vunpack.c.l.b16 %v563
      %v833 = vunpack.c.l.b16 %v577
      %v834 = vunpack.c.l.b16 %v587
      %v835 = vunpack.c.l.b16 %v601
      %v836 = vunpack.c.l.b16 %v611
      %v837 = vunpack.c.l.b16 %v625
      %v838 = vunpack.c.l.b16 %v635
      %v839 = vunpack.c.l.b16 %v649
      %v840 = vunpack.c.l.b16 %v659
      %v841 = vunpack.c.l.b16 %v673
      %v842 = vunpack.c.l.b16 %v683
      %v843 = vunpack.c.l.b16 %v697
      %v844 = vunpack.c.l.b16 %v707
      %v845 = vunpack.c.l.b16 %v721
      %v846 = vunpack.c.l.b16 %v731
      %v847 = vunpack.c.l.b16 %v745
      %v848 = vunpack.c.l.b16 %v755
      %v849 = vunpack.c.l.b16 %v769
      %v850 = vunpack.c.l.b16 %v779
      %v851 = vunpack.c.l.b16 %v793
      %v852 = vunpack.c.l.b16 %v803
      %v853 = vpack.c.b16 %v822, %v821
      %v854 = vpack.c.b16 %v824, %v823
      %v855 = vpack.c.b16 %v826, %v825
      %v856 = vpack.c.b16 %v828, %v827
      %v857 = vpack.c.b16 %v830, %v829
      %v858 = vpack.c.b16 %v832, %v831
      %v859 = vpack.c.b16 %v834, %v833
      %v860 = vpack.c.b16 %v836, %v835
      %v861 = vpack.c.b16 %v838, %v837
      %v862 = vpack.c.b16 %v840, %v839
      %v863 = vpack.c.b16 %v842, %v841
      %v864 = vpack.c.b16 %v844, %v843
      %v865 = vpack.c.b16 %v846, %v845
      %v866 = vpack.c.b16 %v848, %v847
      %v867 = vpack.c.b16 %v850, %v849
      %v868 = vpack.c.b16 %v852, %v851
      %v901 = vunpack.c.l.b16 %v805
      %v902 = vunpack.c.l.b16 %v806
      %v903 = vunpack.c.l.b16 %v807
      %v904 = vunpack.c.l.b16 %v808
      %v905 = vunpack.c.l.b16 %v809
      %v906 = vunpack.c.l.b16 %v810
      %v907 = vunpack.c.l.b16 %v811
      %v908 = vunpack.c.l.b16 %v812
      %v909 = vunpack.c.l.b16 %v813
      %v910 = vunpack.c.l.b16 %v814
      %v911 = vunpack.c.l.b16 %v815
      %v912 = vunpack.c.l.b16 %v816
      %v913 = vunpack.c.l.b16 %v817
      %v914 = vunpack.c.l.b16 %v818
      %v915 = vunpack.c.l.b16 %v819
      %v916 = vunpack.c.l.b16 %v820
      %v917 = vpack.c.b16 %v902, %v901
      %v918 = vpack.c.b16 %v904, %v903
      %v919 = vpack.c.b16 %v906, %v905
      %v920 = vpack.c.b16 %v908, %v907
      %v921 = vpack.c.b16 %v910, %v909
      %v922 = vpack.c.b16 %v912, %v911
      %v923 = vpack.c.b16 %v914, %v913
      %v924 = vpack.c.b16 %v916, %v915
      %933 = vmatpush.bf16.msra.mxu0 %v924
      %934 = vmatpush.bf16.msra.mxu0 %v923
      %935 = vmatpush.bf16.msra.mxu0 %v922
      %936 = vmatpush.bf16.msra.mxu0 %v921
      %937 = vmatpush.bf16.msra.mxu0 %v920
      %938 = vmatpush.bf16.msra.mxu0 %v919
      %939 = vmatpush.bf16.msra.mxu0 %v918
      %940 = vmatpush.bf16.msra.mxu0 %v917
      %941 = vmatmul.bf16.gmra.mxu0 %v853
      %v942 = vpop.f32.mrf.mxu0
      %v943 = vadd.f32 0.0, %v942
      %v944 = vpop.f32.mrf.mxu0
      %v945 = vadd.f32 0.0, %v944
      %946 = vmatmul.bf16.gmra.mxu0 %v854
      %v947 = vpop.f32.mrf.mxu0
      %v948 = vadd.f32 0.0, %v947
      %v949 = vpop.f32.mrf.mxu0
      %v950 = vadd.f32 0.0, %v949
      %951 = vmatmul.bf16.gmra.mxu0 %v855
      %v952 = vpop.f32.mrf.mxu0
      %v953 = vadd.f32 0.0, %v952
      %v954 = vpop.f32.mrf.mxu0
      %v955 = vadd.f32 0.0, %v954
      %956 = vmatmul.bf16.gmra.mxu0 %v856
      %v957 = vpop.f32.mrf.mxu0
      %v958 = vadd.f32 0.0, %v957
      %v959 = vpop.f32.mrf.mxu0
      %v960 = vadd.f32 0.0, %v959
      %961 = vmatmul.bf16.gmra.mxu0 %v857
      %v962 = vpop.f32.mrf.mxu0
      %v963 = vadd.f32 0.0, %v962
      %v964 = vpop.f32.mrf.mxu0
      %v965 = vadd.f32 0.0, %v964
      %966 = vmatmul.bf16.gmra.mxu0 %v858
      %v967 = vpop.f32.mrf.mxu0
      %v968 = vadd.f32 0.0, %v967
      %v969 = vpop.f32.mrf.mxu0
      %v970 = vadd.f32 0.0, %v969
      %971 = vmatmul.bf16.gmra.mxu0 %v859
      %v972 = vpop.f32.mrf.mxu0
      %v973 = vadd.f32 0.0, %v972
      %v974 = vpop.f32.mrf.mxu0
      %v975 = vadd.f32 0.0, %v974
      %976 = vmatmul.bf16.gmra.mxu0 %v860
      %v977 = vpop.f32.mrf.mxu0
      %v978 = vadd.f32 0.0, %v977
      %v979 = vpop.f32.mrf.mxu0
      %v980 = vadd.f32 0.0, %v979
      %981 = vmatmul.bf16.gmra.mxu0 %v861
      %v982 = vpop.f32.mrf.mxu0
      %v983 = vadd.f32 0.0, %v982
      %v984 = vpop.f32.mrf.mxu0
      %v985 = vadd.f32 0.0, %v984
      %986 = vmatmul.bf16.gmra.mxu0 %v862
      %v987 = vpop.f32.mrf.mxu0
      %v988 = vadd.f32 0.0, %v987
      %v989 = vpop.f32.mrf.mxu0
      %v990 = vadd.f32 0.0, %v989
      %991 = vmatmul.bf16.gmra.mxu0 %v863
      %v992 = vpop.f32.mrf.mxu0
      %v993 = vadd.f32 0.0, %v992
      %v994 = vpop.f32.mrf.mxu0
      %v995 = vadd.f32 0.0, %v994
      %996 = vmatmul.bf16.gmra.mxu0 %v864
      %v997 = vpop.f32.mrf.mxu0
      %v998 = vadd.f32 0.0, %v997
      %v999 = vpop.f32.mrf.mxu0
      %v1000 = vadd.f32 0.0, %v999
      %1001 = vmatmul.bf16.gmra.mxu0 %v865
      %v1002 = vpop.f32.mrf.mxu0
      %v1003 = vadd.f32 0.0, %v1002
      %v1004 = vpop.f32.mrf.mxu0
      %v1005 = vadd.f32 0.0, %v1004
      %1006 = vmatmul.bf16.gmra.mxu0 %v866
      %v1007 = vpop.f32.mrf.mxu0
      %v1008 = vadd.f32 0.0, %v1007
      %v1009 = vpop.f32.mrf.mxu0
      %v1010 = vadd.f32 0.0, %v1009
      %1011 = vmatmul.bf16.gmra.mxu0 %v867
      %v1012 = vpop.f32.mrf.mxu0
      %v1013 = vadd.f32 0.0, %v1012
      %v1014 = vpop.f32.mrf.mxu0
      %v1015 = vadd.f32 0.0, %v1014
      %1016 = vmatmul.bf16.gmra.mxu0 %v868
      %v1017 = vpop.f32.mrf.mxu0
      %v1018 = vadd.f32 0.0, %v1017
      %v1019 = vpop.f32.mrf.mxu0
      %v1020 = vadd.f32 0.0, %v1019
      %1021 = vdwg.mxu0
      %v1054 = vunpack.c.l.b16 %v353
      %v1055 = vunpack.c.l.b16 %v354
      %v1056 = vunpack.c.l.b16 %v356
      %v1057 = vunpack.c.l.b16 %v357
      %v1058 = vunpack.c.l.b16 %v359
      %v1059 = vunpack.c.l.b16 %v360
      %v1060 = vunpack.c.l.b16 %v362
      %v1061 = vunpack.c.l.b16 %v363
      %v1062 = vunpack.c.l.b16 %v365
      %v1063 = vunpack.c.l.b16 %v366
      %v1064 = vunpack.c.l.b16 %v368
      %v1065 = vunpack.c.l.b16 %v369
      %v1066 = vunpack.c.l.b16 %v371
      %v1067 = vunpack.c.l.b16 %v372
      %v1068 = vunpack.c.l.b16 %v374
      %v1069 = vunpack.c.l.b16 %v375
      %v1070 = vunpack.c.l.b16 %v377
      %v1071 = vunpack.c.l.b16 %v378
      %v1072 = vunpack.c.l.b16 %v380
      %v1073 = vunpack.c.l.b16 %v381
      %v1074 = vunpack.c.l.b16 %v383
      %v1075 = vunpack.c.l.b16 %v384
      %v1076 = vunpack.c.l.b16 %v386
      %v1077 = vunpack.c.l.b16 %v387
      %v1078 = vunpack.c.l.b16 %v389
      %v1079 = vunpack.c.l.b16 %v390
      %v1080 = vunpack.c.l.b16 %v392
      %v1081 = vunpack.c.l.b16 %v393
      %v1082 = vunpack.c.l.b16 %v395
      %v1083 = vunpack.c.l.b16 %v396
      %v1084 = vunpack.c.l.b16 %v398
      %v1085 = vunpack.c.l.b16 %v399
      %v1086 = vpack.c.b16 %v1055, %v1054
      %v1087 = vpack.c.b16 %v1057, %v1056
      %v1088 = vpack.c.b16 %v1059, %v1058
      %v1089 = vpack.c.b16 %v1061, %v1060
      %v1090 = vpack.c.b16 %v1063, %v1062
      %v1091 = vpack.c.b16 %v1065, %v1064
      %v1092 = vpack.c.b16 %v1067, %v1066
      %v1093 = vpack.c.b16 %v1069, %v1068
      %v1094 = vpack.c.b16 %v1071, %v1070
      %v1095 = vpack.c.b16 %v1073, %v1072
      %v1096 = vpack.c.b16 %v1075, %v1074
      %v1097 = vpack.c.b16 %v1077, %v1076
      %v1098 = vpack.c.b16 %v1079, %v1078
      %v1099 = vpack.c.b16 %v1081, %v1080
      %v1100 = vpack.c.b16 %v1083, %v1082
      %v1101 = vpack.c.b16 %v1085, %v1084
      %v1134 = vunpack.c.l.b16 %v401
      %v1135 = vunpack.c.l.b16 %v402
      %v1136 = vunpack.c.l.b16 %v403
      %v1137 = vunpack.c.l.b16 %v404
      %v1138 = vunpack.c.l.b16 %v405
      %v1139 = vunpack.c.l.b16 %v406
      %v1140 = vunpack.c.l.b16 %v407
      %v1141 = vunpack.c.l.b16 %v408
      %v1142 = vunpack.c.l.b16 %v409
      %v1143 = vunpack.c.l.b16 %v410
      %v1144 = vunpack.c.l.b16 %v411
      %v1145 = vunpack.c.l.b16 %v412
      %v1146 = vunpack.c.l.b16 %v413
      %v1147 = vunpack.c.l.b16 %v414
      %v1148 = vunpack.c.l.b16 %v415
      %v1149 = vunpack.c.l.b16 %v416
      %v1150 = vpack.c.b16 %v1135, %v1134
      %v1151 = vpack.c.b16 %v1137, %v1136
      %v1152 = vpack.c.b16 %v1139, %v1138
      %v1153 = vpack.c.b16 %v1141, %v1140
      %v1154 = vpack.c.b16 %v1143, %v1142
      %v1155 = vpack.c.b16 %v1145, %v1144
      %v1156 = vpack.c.b16 %v1147, %v1146
      %v1157 = vpack.c.b16 %v1149, %v1148
      %1166 = vmatpush.bf16.msra.mxu0 %v1157
      %1167 = vmatpush.bf16.msra.mxu0 %v1156
      %1168 = vmatpush.bf16.msra.mxu0 %v1155
      %1169 = vmatpush.bf16.msra.mxu0 %v1154
      %1170 = vmatpush.bf16.msra.mxu0 %v1153
      %1171 = vmatpush.bf16.msra.mxu0 %v1152
      %1172 = vmatpush.bf16.msra.mxu0 %v1151
      %1173 = vmatpush.bf16.msra.mxu0 %v1150
      %1174 = vmatmul.bf16.gmra.mxu0 %v1086
      %v1175 = vpop.f32.mrf.mxu0
      %v1176 = vadd.f32 %v943, %v1175
      %v1177 = vpop.f32.mrf.mxu0
      %v1178 = vadd.f32 %v945, %v1177
      %1179 = vmatmul.bf16.gmra.mxu0 %v1087
      %v1180 = vpop.f32.mrf.mxu0
      %v1181 = vadd.f32 %v948, %v1180
      %v1182 = vpop.f32.mrf.mxu0
      %v1183 = vadd.f32 %v950, %v1182
      %1184 = vmatmul.bf16.gmra.mxu0 %v1088
      %v1185 = vpop.f32.mrf.mxu0
      %v1186 = vadd.f32 %v953, %v1185
      %v1187 = vpop.f32.mrf.mxu0
      %v1188 = vadd.f32 %v955, %v1187
      %1189 = vmatmul.bf16.gmra.mxu0 %v1089
      %v1190 = vpop.f32.mrf.mxu0
      %v1191 = vadd.f32 %v958, %v1190
      %v1192 = vpop.f32.mrf.mxu0
      %v1193 = vadd.f32 %v960, %v1192
      %1194 = vmatmul.bf16.gmra.mxu0 %v1090
      %v1195 = vpop.f32.mrf.mxu0
      %v1196 = vadd.f32 %v963, %v1195
      %v1197 = vpop.f32.mrf.mxu0
      %v1198 = vadd.f32 %v965, %v1197
      %1199 = vmatmul.bf16.gmra.mxu0 %v1091
      %v1200 = vpop.f32.mrf.mxu0
      %v1201 = vadd.f32 %v968, %v1200
      %v1202 = vpop.f32.mrf.mxu0
      %v1203 = vadd.f32 %v970, %v1202
      %1204 = vmatmul.bf16.gmra.mxu0 %v1092
      %v1205 = vpop.f32.mrf.mxu0
      %v1206 = vadd.f32 %v973, %v1205
      %v1207 = vpop.f32.mrf.mxu0
      %v1208 = vadd.f32 %v975, %v1207
      %1209 = vmatmul.bf16.gmra.mxu0 %v1093
      %v1210 = vpop.f32.mrf.mxu0
      %v1211 = vadd.f32 %v978, %v1210
      %v1212 = vpop.f32.mrf.mxu0
      %v1213 = vadd.f32 %v980, %v1212
      %1214 = vmatmul.bf16.gmra.mxu0 %v1094
      %v1215 = vpop.f32.mrf.mxu0
      %v1216 = vadd.f32 %v983, %v1215
      %v1217 = vpop.f32.mrf.mxu0
      %v1218 = vadd.f32 %v985, %v1217
      %1219 = vmatmul.bf16.gmra.mxu0 %v1095
      %v1220 = vpop.f32.mrf.mxu0
      %v1221 = vadd.f32 %v988, %v1220
      %v1222 = vpop.f32.mrf.mxu0
      %v1223 = vadd.f32 %v990, %v1222
      %1224 = vmatmul.bf16.gmra.mxu0 %v1096
      %v1225 = vpop.f32.mrf.mxu0
      %v1226 = vadd.f32 %v993, %v1225
      %v1227 = vpop.f32.mrf.mxu0
      %v1228 = vadd.f32 %v995, %v1227
      %1229 = vmatmul.bf16.gmra.mxu0 %v1097
      %v1230 = vpop.f32.mrf.mxu0
      %v1231 = vadd.f32 %v998, %v1230
      %v1232 = vpop.f32.mrf.mxu0
      %v1233 = vadd.f32 %v1000, %v1232
      %1234 = vmatmul.bf16.gmra.mxu0 %v1098
      %v1235 = vpop.f32.mrf.mxu0
      %v1236 = vadd.f32 %v1003, %v1235
      %v1237 = vpop.f32.mrf.mxu0
      %v1238 = vadd.f32 %v1005, %v1237
      %1239 = vmatmul.bf16.gmra.mxu0 %v1099
      %v1240 = vpop.f32.mrf.mxu0
      %v1241 = vadd.f32 %v1008, %v1240
      %v1242 = vpop.f32.mrf.mxu0
      %v1243 = vadd.f32 %v1010, %v1242
      %1244 = vmatmul.bf16.gmra.mxu0 %v1100
      %v1245 = vpop.f32.mrf.mxu0
      %v1246 = vadd.f32 %v1013, %v1245
      %v1247 = vpop.f32.mrf.mxu0
      %v1248 = vadd.f32 %v1015, %v1247
      %1249 = vmatmul.bf16.gmra.mxu0 %v1101
      %v1250 = vpop.f32.mrf.mxu0
      %v1251 = vadd.f32 %v1018, %v1250
      %v1252 = vpop.f32.mrf.mxu0
      %v1253 = vadd.f32 %v1020, %v1252
      %1254 = vdwg.mxu0
      %vm1271 = vcmask 1042432
      %vm1272 = vcmask 1046532
      %vm1273 = vmor %vm1271, %vm1272
      %v1274 = vrot.slane %v353, 5
      %v1275 = vrot.slane %v1274, 4
      %v1276 = vrot.slane %v354, 5
      %v1277 = vsel %vm1273, %v1275, %v1276
      %v1278 = vrot.slane %v1276, 4
      %v1279 = vrot.slane %v355, 5
      %v1280 = vsel %vm1273, %v1278, %v1279
      %v1281 = vrot.slane %v356, 5
      %v1282 = vrot.slane %v1281, 4
      %v1283 = vrot.slane %v357, 5
      %v1284 = vsel %vm1273, %v1282, %v1283
      %v1285 = vrot.slane %v1283, 4
      %v1286 = vrot.slane %v358, 5
      %v1287 = vsel %vm1273, %v1285, %v1286
      %v1288 = vrot.slane %v359, 5
      %v1289 = vrot.slane %v1288, 4
      %v1290 = vrot.slane %v360, 5
      %v1291 = vsel %vm1273, %v1289, %v1290
      %v1292 = vrot.slane %v1290, 4
      %v1293 = vrot.slane %v361, 5
      %v1294 = vsel %vm1273, %v1292, %v1293
      %v1295 = vrot.slane %v362, 5
      %v1296 = vrot.slane %v1295, 4
      %v1297 = vrot.slane %v363, 5
      %v1298 = vsel %vm1273, %v1296, %v1297
      %v1299 = vrot.slane %v1297, 4
      %v1300 = vrot.slane %v364, 5
      %v1301 = vsel %vm1273, %v1299, %v1300
      %v1302 = vrot.slane %v365, 5
      %v1303 = vrot.slane %v1302, 4
      %v1304 = vrot.slane %v366, 5
      %v1305 = vsel %vm1273, %v1303, %v1304
      %v1306 = vrot.slane %v1304, 4
      %v1307 = vrot.slane %v367, 5
      %v1308 = vsel %vm1273, %v1306, %v1307
      %v1309 = vrot.slane %v368, 5
      %v1310 = vrot.slane %v1309, 4
      %v1311 = vrot.slane %v369, 5
      %v1312 = vsel %vm1273, %v1310, %v1311
      %v1313 = vrot.slane %v1311, 4
      %v1314 = vrot.slane %v370, 5
      %v1315 = vsel %vm1273, %v1313, %v1314
      %v1316 = vrot.slane %v371, 5
      %v1317 = vrot.slane %v1316, 4
      %v1318 = vrot.slane %v372, 5
      %v1319 = vsel %vm1273, %v1317, %v1318
      %v1320 = vrot.slane %v1318, 4
      %v1321 = vrot.slane %v373, 5
      %v1322 = vsel %vm1273, %v1320, %v1321
      %v1323 = vrot.slane %v374, 5
      %v1324 = vrot.slane %v1323, 4
      %v1325 = vrot.slane %v375, 5
      %v1326 = vsel %vm1273, %v1324, %v1325
      %v1327 = vrot.slane %v1325, 4
      %v1328 = vrot.slane %v376, 5
      %v1329 = vsel %vm1273, %v1327, %v1328
      %v1330 = vrot.slane %v377, 5
      %v1331 = vrot.slane %v1330, 4
      %v1332 = vrot.slane %v378, 5
      %v1333 = vsel %vm1273, %v1331, %v1332
      %v1334 = vrot.slane %v1332, 4
      %v1335 = vrot.slane %v379, 5
      %v1336 = vsel %vm1273, %v1334, %v1335
      %v1337 = vrot.slane %v380, 5
      %v1338 = vrot.slane %v1337, 4
      %v1339 = vrot.slane %v381, 5
      %v1340 = vsel %vm1273, %v1338, %v1339
      %v1341 = vrot.slane %v1339, 4
      %v1342 = vrot.slane %v382, 5
      %v1343 = vsel %vm1273, %v1341, %v1342
      %v1344 = vrot.slane %v383, 5
      %v1345 = vrot.slane %v1344, 4
      %v1346 = vrot.slane %v384, 5
      %v1347 = vsel %vm1273, %v1345, %v1346
      %v1348 = vrot.slane %v1346, 4
      %v1349 = vrot.slane %v385, 5
      %v1350 = vsel %vm1273, %v1348, %v1349
      %v1351 = vrot.slane %v386, 5
      %v1352 = vrot.slane %v1351, 4
      %v1353 = vrot.slane %v387, 5
      %v1354 = vsel %vm1273, %v1352, %v1353
      %v1355 = vrot.slane %v1353, 4
      %v1356 = vrot.slane %v388, 5
      %v1357 = vsel %vm1273, %v1355, %v1356
      %v1358 = vrot.slane %v389, 5
      %v1359 = vrot.slane %v1358, 4
      %v1360 = vrot.slane %v390, 5
      %v1361 = vsel %vm1273, %v1359, %v1360
      %v1362 = vrot.slane %v1360, 4
      %v1363 = vrot.slane %v391, 5
      %v1364 = vsel %vm1273, %v1362, %v1363
      %v1365 = vrot.slane %v392, 5
      %v1366 = vrot.slane %v1365, 4
      %v1367 = vrot.slane %v393, 5
      %v1368 = vsel %vm1273, %v1366, %v1367
      %v1369 = vrot.slane %v1367, 4
      %v1370 = vrot.slane %v394, 5
      %v1371 = vsel %vm1273, %v1369, %v1370
      %v1372 = vrot.slane %v395, 5
      %v1373 = vrot.slane %v1372, 4
      %v1374 = vrot.slane %v396, 5
      %v1375 = vsel %vm1273, %v1373, %v1374
      %v1376 = vrot.slane %v1374, 4
      %v1377 = vrot.slane %v397, 5
      %v1378 = vsel %vm1273, %v1376, %v1377
      %v1379 = vrot.slane %v398, 5
      %v1380 = vrot.slane %v1379, 4
      %v1381 = vrot.slane %v399, 5
      %v1382 = vsel %vm1273, %v1380, %v1381
      %v1383 = vrot.slane %v1381, 4
      %v1384 = vrot.slane %v400, 5
      %v1385 = vsel %vm1273, %v1383, %v1384
      %s1386 = scalar_lea.vmem %s296, 128
      %v1387 = vld [vmem:[%s1386] sm:$0xf]
      %v1388 = vld [vmem:[%s1386 + $0x4] sm:$0xf]
      %v1389 = vld [vmem:[%s1386 + $0x8] sm:$0xf]
      %v1390 = vld [vmem:[%s1386 + $0xc] sm:$0xf]
      %v1391 = vld [vmem:[%s1386 + $0x10] sm:$0xf]
      %v1392 = vld [vmem:[%s1386 + $0x14] sm:$0xf]
      %v1393 = vld [vmem:[%s1386 + $0x18] sm:$0xf]
      %v1394 = vld [vmem:[%s1386 + $0x1c] sm:$0xf]
      %v1395 = vld [vmem:[%s1386 + $0x20] sm:$0xf]
      %v1396 = vld [vmem:[%s1386 + $0x24] sm:$0xf]
      %v1397 = vld [vmem:[%s1386 + $0x28] sm:$0xf]
      %v1398 = vld [vmem:[%s1386 + $0x2c] sm:$0xf]
      %v1399 = vld [vmem:[%s1386 + $0x30] sm:$0xf]
      %v1400 = vld [vmem:[%s1386 + $0x34] sm:$0xf]
      %v1401 = vld [vmem:[%s1386 + $0x38] sm:$0xf]
      %v1402 = vld [vmem:[%s1386 + $0x3c] sm:$0xf]
      %v1403 = vunpack.c.l.b16 %v1277
      %v1404 = vunpack.c.l.b16 %v1280
      %v1405 = vunpack.c.l.b16 %v1284
      %v1406 = vunpack.c.l.b16 %v1287
      %v1407 = vunpack.c.l.b16 %v1291
      %v1408 = vunpack.c.l.b16 %v1294
      %v1409 = vunpack.c.l.b16 %v1298
      %v1410 = vunpack.c.l.b16 %v1301
      %v1411 = vunpack.c.l.b16 %v1305
      %v1412 = vunpack.c.l.b16 %v1308
      %v1413 = vunpack.c.l.b16 %v1312
      %v1414 = vunpack.c.l.b16 %v1315
      %v1415 = vunpack.c.l.b16 %v1319
      %v1416 = vunpack.c.l.b16 %v1322
      %v1417 = vunpack.c.l.b16 %v1326
      %v1418 = vunpack.c.l.b16 %v1329
      %v1419 = vunpack.c.l.b16 %v1333
      %v1420 = vunpack.c.l.b16 %v1336
      %v1421 = vunpack.c.l.b16 %v1340
      %v1422 = vunpack.c.l.b16 %v1343
      %v1423 = vunpack.c.l.b16 %v1347
      %v1424 = vunpack.c.l.b16 %v1350
      %v1425 = vunpack.c.l.b16 %v1354
      %v1426 = vunpack.c.l.b16 %v1357
      %v1427 = vunpack.c.l.b16 %v1361
      %v1428 = vunpack.c.l.b16 %v1364
      %v1429 = vunpack.c.l.b16 %v1368
      %v1430 = vunpack.c.l.b16 %v1371
      %v1431 = vunpack.c.l.b16 %v1375
      %v1432 = vunpack.c.l.b16 %v1378
      %v1433 = vunpack.c.l.b16 %v1382
      %v1434 = vunpack.c.l.b16 %v1385
      %v1435 = vpack.c.b16 %v1404, %v1403
      %v1436 = vpack.c.b16 %v1406, %v1405
      %v1437 = vpack.c.b16 %v1408, %v1407
      %v1438 = vpack.c.b16 %v1410, %v1409
      %v1439 = vpack.c.b16 %v1412, %v1411
      %v1440 = vpack.c.b16 %v1414, %v1413
      %v1441 = vpack.c.b16 %v1416, %v1415
      %v1442 = vpack.c.b16 %v1418, %v1417
      %v1443 = vpack.c.b16 %v1420, %v1419
      %v1444 = vpack.c.b16 %v1422, %v1421
      %v1445 = vpack.c.b16 %v1424, %v1423
      %v1446 = vpack.c.b16 %v1426, %v1425
      %v1447 = vpack.c.b16 %v1428, %v1427
      %v1448 = vpack.c.b16 %v1430, %v1429
      %v1449 = vpack.c.b16 %v1432, %v1431
      %v1450 = vpack.c.b16 %v1434, %v1433
      %v1483 = vunpack.c.l.b16 %v1387
      %v1484 = vunpack.c.l.b16 %v1388
      %v1485 = vunpack.c.l.b16 %v1389
      %v1486 = vunpack.c.l.b16 %v1390
      %v1487 = vunpack.c.l.b16 %v1391
      %v1488 = vunpack.c.l.b16 %v1392
      %v1489 = vunpack.c.l.b16 %v1393
      %v1490 = vunpack.c.l.b16 %v1394
      %v1491 = vunpack.c.l.b16 %v1395
      %v1492 = vunpack.c.l.b16 %v1396
      %v1493 = vunpack.c.l.b16 %v1397
      %v1494 = vunpack.c.l.b16 %v1398
      %v1495 = vunpack.c.l.b16 %v1399
      %v1496 = vunpack.c.l.b16 %v1400
      %v1497 = vunpack.c.l.b16 %v1401
      %v1498 = vunpack.c.l.b16 %v1402
      %v1499 = vpack.c.b16 %v1484, %v1483
      %v1500 = vpack.c.b16 %v1486, %v1485
      %v1501 = vpack.c.b16 %v1488, %v1487
      %v1502 = vpack.c.b16 %v1490, %v1489
      %v1503 = vpack.c.b16 %v1492, %v1491
      %v1504 = vpack.c.b16 %v1494, %v1493
      %v1505 = vpack.c.b16 %v1496, %v1495
      %v1506 = vpack.c.b16 %v1498, %v1497
      %1515 = vmatpush.bf16.msra.mxu0 %v1506
      %1516 = vmatpush.bf16.msra.mxu0 %v1505
      %1517 = vmatpush.bf16.msra.mxu0 %v1504
      %1518 = vmatpush.bf16.msra.mxu0 %v1503
      %1519 = vmatpush.bf16.msra.mxu0 %v1502
      %1520 = vmatpush.bf16.msra.mxu0 %v1501
      %1521 = vmatpush.bf16.msra.mxu0 %v1500
      %1522 = vmatpush.bf16.msra.mxu0 %v1499
      %1523 = vmatmul.bf16.gmra.mxu0 %v1435
      %v1524 = vpop.f32.mrf.mxu0
      %v1525 = vadd.f32 0.0, %v1524
      %v1526 = vpop.f32.mrf.mxu0
      %v1527 = vadd.f32 0.0, %v1526
      %1528 = vmatmul.bf16.gmra.mxu0 %v1436
      %v1529 = vpop.f32.mrf.mxu0
      %v1530 = vadd.f32 0.0, %v1529
      %v1531 = vpop.f32.mrf.mxu0
      %v1532 = vadd.f32 0.0, %v1531
      %1533 = vmatmul.bf16.gmra.mxu0 %v1437
      %v1534 = vpop.f32.mrf.mxu0
      %v1535 = vadd.f32 0.0, %v1534
      %v1536 = vpop.f32.mrf.mxu0
      %v1537 = vadd.f32 0.0, %v1536
      %1538 = vmatmul.bf16.gmra.mxu0 %v1438
      %v1539 = vpop.f32.mrf.mxu0
      %v1540 = vadd.f32 0.0, %v1539
      %v1541 = vpop.f32.mrf.mxu0
      %v1542 = vadd.f32 0.0, %v1541
      %1543 = vmatmul.bf16.gmra.mxu0 %v1439
      %v1544 = vpop.f32.mrf.mxu0
      %v1545 = vadd.f32 0.0, %v1544
      %v1546 = vpop.f32.mrf.mxu0
      %v1547 = vadd.f32 0.0, %v1546
      %1548 = vmatmul.bf16.gmra.mxu0 %v1440
      %v1549 = vpop.f32.mrf.mxu0
      %v1550 = vadd.f32 0.0, %v1549
      %v1551 = vpop.f32.mrf.mxu0
      %v1552 = vadd.f32 0.0, %v1551
      %1553 = vmatmul.bf16.gmra.mxu0 %v1441
      %v1554 = vpop.f32.mrf.mxu0
      %v1555 = vadd.f32 0.0, %v1554
      %v1556 = vpop.f32.mrf.mxu0
      %v1557 = vadd.f32 0.0, %v1556
      %1558 = vmatmul.bf16.gmra.mxu0 %v1442
      %v1559 = vpop.f32.mrf.mxu0
      %v1560 = vadd.f32 0.0, %v1559
      %v1561 = vpop.f32.mrf.mxu0
      %v1562 = vadd.f32 0.0, %v1561
      %1563 = vmatmul.bf16.gmra.mxu0 %v1443
      %v1564 = vpop.f32.mrf.mxu0
      %v1565 = vadd.f32 0.0, %v1564
      %v1566 = vpop.f32.mrf.mxu0
      %v1567 = vadd.f32 0.0, %v1566
      %1568 = vmatmul.bf16.gmra.mxu0 %v1444
      %v1569 = vpop.f32.mrf.mxu0
      %v1570 = vadd.f32 0.0, %v1569
      %v1571 = vpop.f32.mrf.mxu0
      %v1572 = vadd.f32 0.0, %v1571
      %1573 = vmatmul.bf16.gmra.mxu0 %v1445
      %v1574 = vpop.f32.mrf.mxu0
      %v1575 = vadd.f32 0.0, %v1574
      %v1576 = vpop.f32.mrf.mxu0
      %v1577 = vadd.f32 0.0, %v1576
      %1578 = vmatmul.bf16.gmra.mxu0 %v1446
      %v1579 = vpop.f32.mrf.mxu0
      %v1580 = vadd.f32 0.0, %v1579
      %v1581 = vpop.f32.mrf.mxu0
      %v1582 = vadd.f32 0.0, %v1581
      %1583 = vmatmul.bf16.gmra.mxu0 %v1447
      %v1584 = vpop.f32.mrf.mxu0
      %v1585 = vadd.f32 0.0, %v1584
      %v1586 = vpop.f32.mrf.mxu0
      %v1587 = vadd.f32 0.0, %v1586
      %1588 = vmatmul.bf16.gmra.mxu0 %v1448
      %v1589 = vpop.f32.mrf.mxu0
      %v1590 = vadd.f32 0.0, %v1589
      %v1591 = vpop.f32.mrf.mxu0
      %v1592 = vadd.f32 0.0, %v1591
      %1593 = vmatmul.bf16.gmra.mxu0 %v1449
      %v1594 = vpop.f32.mrf.mxu0
      %v1595 = vadd.f32 0.0, %v1594
      %v1596 = vpop.f32.mrf.mxu0
      %v1597 = vadd.f32 0.0, %v1596
      %1598 = vmatmul.bf16.gmra.mxu0 %v1450
      %v1599 = vpop.f32.mrf.mxu0
      %v1600 = vadd.f32 0.0, %v1599
      %v1601 = vpop.f32.mrf.mxu0
      %v1602 = vadd.f32 0.0, %v1601
      %1603 = vdwg.mxu0
      %v1604 = vadd.f32 %v1176, %v1525
      %v1605 = vadd.f32 %v1178, %v1527
      %v1606 = vadd.f32 %v1181, %v1530
      %v1607 = vadd.f32 %v1183, %v1532
      %v1608 = vadd.f32 %v1186, %v1535
      %v1609 = vadd.f32 %v1188, %v1537
      %v1610 = vadd.f32 %v1191, %v1540
      %v1611 = vadd.f32 %v1193, %v1542
      %v1612 = vadd.f32 %v1196, %v1545
      %v1613 = vadd.f32 %v1198, %v1547
      %v1614 = vadd.f32 %v1201, %v1550
      %v1615 = vadd.f32 %v1203, %v1552
      %v1616 = vadd.f32 %v1206, %v1555
      %v1617 = vadd.f32 %v1208, %v1557
      %v1618 = vadd.f32 %v1211, %v1560
      %v1619 = vadd.f32 %v1213, %v1562
      %v1620 = vadd.f32 %v1216, %v1565
      %v1621 = vadd.f32 %v1218, %v1567
      %v1622 = vadd.f32 %v1221, %v1570
      %v1623 = vadd.f32 %v1223, %v1572
      %v1624 = vadd.f32 %v1226, %v1575
      %v1625 = vadd.f32 %v1228, %v1577
      %v1626 = vadd.f32 %v1231, %v1580
      %v1627 = vadd.f32 %v1233, %v1582
      %v1628 = vadd.f32 %v1236, %v1585
      %v1629 = vadd.f32 %v1238, %v1587
      %v1630 = vadd.f32 %v1241, %v1590
      %v1631 = vadd.f32 %v1243, %v1592
      %v1632 = vadd.f32 %v1246, %v1595
      %v1633 = vadd.f32 %v1248, %v1597
      %v1634 = vadd.f32 %v1251, %v1600
      %v1635 = vadd.f32 %v1253, %v1602
      %s1636 = scalar_lea.vmem %s287, 12
      %v1637 = vld [vmem:[%s1636] sm:$0xf]
      %v1638 = vld [vmem:[%s1636 + $0x4] sm:$0xf]
      %v1639 = vld [vmem:[%s1636 + $0x8] sm:$0x1]
      %v1640 = vld [vmem:[%s1636 + $0xc] sm:$0xf]
      %v1641 = vld [vmem:[%s1636 + $0x10] sm:$0xf]
      %v1642 = vld [vmem:[%s1636 + $0x14] sm:$0x1]
      %v1643 = vld [vmem:[%s1636 + $0x18] sm:$0xf]
      %v1644 = vld [vmem:[%s1636 + $0x1c] sm:$0xf]
      %v1645 = vld [vmem:[%s1636 + $0x20] sm:$0x1]
      %v1646 = vld [vmem:[%s1636 + $0x24] sm:$0xf]
      %v1647 = vld [vmem:[%s1636 + $0x28] sm:$0xf]
      %v1648 = vld [vmem:[%s1636 + $0x2c] sm:$0x1]
      %v1649 = vld [vmem:[%s1636 + $0x30] sm:$0xf]
      %v1650 = vld [vmem:[%s1636 + $0x34] sm:$0xf]
      %v1651 = vld [vmem:[%s1636 + $0x38] sm:$0x1]
      %v1652 = vld [vmem:[%s1636 + $0x3c] sm:$0xf]
      %v1653 = vld [vmem:[%s1636 + $0x40] sm:$0xf]
      %v1654 = vld [vmem:[%s1636 + $0x44] sm:$0x1]
      %v1655 = vld [vmem:[%s1636 + $0x48] sm:$0xf]
      %v1656 = vld [vmem:[%s1636 + $0x4c] sm:$0xf]
      %v1657 = vld [vmem:[%s1636 + $0x50] sm:$0x1]
      %v1658 = vld [vmem:[%s1636 + $0x54] sm:$0xf]
      %v1659 = vld [vmem:[%s1636 + $0x58] sm:$0xf]
      %v1660 = vld [vmem:[%s1636 + $0x5c] sm:$0x1]
      %v1661 = vld [vmem:[%s1636 + $0x60] sm:$0xf]
      %v1662 = vld [vmem:[%s1636 + $0x64] sm:$0xf]
      %v1663 = vld [vmem:[%s1636 + $0x68] sm:$0x1]
      %v1664 = vld [vmem:[%s1636 + $0x6c] sm:$0xf]
      %v1665 = vld [vmem:[%s1636 + $0x70] sm:$0xf]
      %v1666 = vld [vmem:[%s1636 + $0x74] sm:$0x1]
      %v1667 = vld [vmem:[%s1636 + $0x78] sm:$0xf]
      %v1668 = vld [vmem:[%s1636 + $0x7c] sm:$0xf]
      %v1669 = vld [vmem:[%s1636 + $0x80] sm:$0x1]
      %v1670 = vld [vmem:[%s1636 + $0x84] sm:$0xf]
      %v1671 = vld [vmem:[%s1636 + $0x88] sm:$0xf]
      %v1672 = vld [vmem:[%s1636 + $0x8c] sm:$0x1]
      %v1673 = vld [vmem:[%s1636 + $0x90] sm:$0xf]
      %v1674 = vld [vmem:[%s1636 + $0x94] sm:$0xf]
      %v1675 = vld [vmem:[%s1636 + $0x98] sm:$0x1]
      %v1676 = vld [vmem:[%s1636 + $0x9c] sm:$0xf]
      %v1677 = vld [vmem:[%s1636 + $0xa0] sm:$0xf]
      %v1678 = vld [vmem:[%s1636 + $0xa4] sm:$0x1]
      %v1679 = vld [vmem:[%s1636 + $0xa8] sm:$0xf]
      %v1680 = vld [vmem:[%s1636 + $0xac] sm:$0xf]
      %v1681 = vld [vmem:[%s1636 + $0xb0] sm:$0x1]
      %v1682 = vld [vmem:[%s1636 + $0xb4] sm:$0xf]
      %v1683 = vld [vmem:[%s1636 + $0xb8] sm:$0xf]
      %v1684 = vld [vmem:[%s1636 + $0xbc] sm:$0x1]
      %s1685 = scalar_lea.vmem %s296, 192
      %v1686 = vld [vmem:[%s1685] sm:$0xf]
      %v1687 = vld [vmem:[%s1685 + $0x4] sm:$0xf]
      %v1688 = vld [vmem:[%s1685 + $0x8] sm:$0xf]
      %v1689 = vld [vmem:[%s1685 + $0xc] sm:$0xf]
      %v1690 = vld [vmem:[%s1685 + $0x10] sm:$0xf]
      %v1691 = vld [vmem:[%s1685 + $0x14] sm:$0xf]
      %v1692 = vld [vmem:[%s1685 + $0x18] sm:$0xf]
      %v1693 = vld [vmem:[%s1685 + $0x1c] sm:$0xf]
      %v1694 = vld [vmem:[%s1685 + $0x20] sm:$0xf]
      %v1695 = vld [vmem:[%s1685 + $0x24] sm:$0xf]
      %v1696 = vld [vmem:[%s1685 + $0x28] sm:$0xf]
      %v1697 = vld [vmem:[%s1685 + $0x2c] sm:$0xf]
      %v1698 = vld [vmem:[%s1685 + $0x30] sm:$0xf]
      %v1699 = vld [vmem:[%s1685 + $0x34] sm:$0xf]
      %v1700 = vld [vmem:[%s1685 + $0x38] sm:$0xf]
      %v1701 = vld [vmem:[%s1685 + $0x3c] sm:$0xf]
      %v1734 = vunpack.c.l.b16 %v1637
      %v1735 = vunpack.c.l.b16 %v1638
      %v1736 = vunpack.c.l.b16 %v1640
      %v1737 = vunpack.c.l.b16 %v1641
      %v1738 = vunpack.c.l.b16 %v1643
      %v1739 = vunpack.c.l.b16 %v1644
      %v1740 = vunpack.c.l.b16 %v1646
      %v1741 = vunpack.c.l.b16 %v1647
      %v1742 = vunpack.c.l.b16 %v1649
      %v1743 = vunpack.c.l.b16 %v1650
      %v1744 = vunpack.c.l.b16 %v1652
      %v1745 = vunpack.c.l.b16 %v1653
      %v1746 = vunpack.c.l.b16 %v1655
      %v1747 = vunpack.c.l.b16 %v1656
      %v1748 = vunpack.c.l.b16 %v1658
      %v1749 = vunpack.c.l.b16 %v1659
      %v1750 = vunpack.c.l.b16 %v1661
      %v1751 = vunpack.c.l.b16 %v1662
      %v1752 = vunpack.c.l.b16 %v1664
      %v1753 = vunpack.c.l.b16 %v1665
      %v1754 = vunpack.c.l.b16 %v1667
      %v1755 = vunpack.c.l.b16 %v1668
      %v1756 = vunpack.c.l.b16 %v1670
      %v1757 = vunpack.c.l.b16 %v1671
      %v1758 = vunpack.c.l.b16 %v1673
      %v1759 = vunpack.c.l.b16 %v1674
      %v1760 = vunpack.c.l.b16 %v1676
      %v1761 = vunpack.c.l.b16 %v1677
      %v1762 = vunpack.c.l.b16 %v1679
      %v1763 = vunpack.c.l.b16 %v1680
      %v1764 = vunpack.c.l.b16 %v1682
      %v1765 = vunpack.c.l.b16 %v1683
      %v1766 = vpack.c.b16 %v1735, %v1734
      %v1767 = vpack.c.b16 %v1737, %v1736
      %v1768 = vpack.c.b16 %v1739, %v1738
      %v1769 = vpack.c.b16 %v1741, %v1740
      %v1770 = vpack.c.b16 %v1743, %v1742
      %v1771 = vpack.c.b16 %v1745, %v1744
      %v1772 = vpack.c.b16 %v1747, %v1746
      %v1773 = vpack.c.b16 %v1749, %v1748
      %v1774 = vpack.c.b16 %v1751, %v1750
      %v1775 = vpack.c.b16 %v1753, %v1752
      %v1776 = vpack.c.b16 %v1755, %v1754
      %v1777 = vpack.c.b16 %v1757, %v1756
      %v1778 = vpack.c.b16 %v1759, %v1758
      %v1779 = vpack.c.b16 %v1761, %v1760
      %v1780 = vpack.c.b16 %v1763, %v1762
      %v1781 = vpack.c.b16 %v1765, %v1764
      %v1814 = vunpack.c.l.b16 %v1686
      %v1815 = vunpack.c.l.b16 %v1687
      %v1816 = vunpack.c.l.b16 %v1688
      %v1817 = vunpack.c.l.b16 %v1689
      %v1818 = vunpack.c.l.b16 %v1690
      %v1819 = vunpack.c.l.b16 %v1691
      %v1820 = vunpack.c.l.b16 %v1692
      %v1821 = vunpack.c.l.b16 %v1693
      %v1822 = vunpack.c.l.b16 %v1694
      %v1823 = vunpack.c.l.b16 %v1695
      %v1824 = vunpack.c.l.b16 %v1696
      %v1825 = vunpack.c.l.b16 %v1697
      %v1826 = vunpack.c.l.b16 %v1698
      %v1827 = vunpack.c.l.b16 %v1699
      %v1828 = vunpack.c.l.b16 %v1700
      %v1829 = vunpack.c.l.b16 %v1701
      %v1830 = vpack.c.b16 %v1815, %v1814
      %v1831 = vpack.c.b16 %v1817, %v1816
      %v1832 = vpack.c.b16 %v1819, %v1818
      %v1833 = vpack.c.b16 %v1821, %v1820
      %v1834 = vpack.c.b16 %v1823, %v1822
      %v1835 = vpack.c.b16 %v1825, %v1824
      %v1836 = vpack.c.b16 %v1827, %v1826
      %v1837 = vpack.c.b16 %v1829, %v1828
      %1846 = vmatpush.bf16.msra.mxu0 %v1837
      %1847 = vmatpush.bf16.msra.mxu0 %v1836
      %1848 = vmatpush.bf16.msra.mxu0 %v1835
      %1849 = vmatpush.bf16.msra.mxu0 %v1834
      %1850 = vmatpush.bf16.msra.mxu0 %v1833
      %1851 = vmatpush.bf16.msra.mxu0 %v1832
      %1852 = vmatpush.bf16.msra.mxu0 %v1831
      %1853 = vmatpush.bf16.msra.mxu0 %v1830
      %1854 = vmatmul.bf16.gmra.mxu0 %v1766
      %v1855 = vpop.f32.mrf.mxu0
      %v1856 = vadd.f32 0.0, %v1855
      %v1857 = vpop.f32.mrf.mxu0
      %v1858 = vadd.f32 0.0, %v1857
      %1859 = vmatmul.bf16.gmra.mxu0 %v1767
      %v1860 = vpop.f32.mrf.mxu0
      %v1861 = vadd.f32 0.0, %v1860
      %v1862 = vpop.f32.mrf.mxu0
      %v1863 = vadd.f32 0.0, %v1862
      %1864 = vmatmul.bf16.gmra.mxu0 %v1768
      %v1865 = vpop.f32.mrf.mxu0
      %v1866 = vadd.f32 0.0, %v1865
      %v1867 = vpop.f32.mrf.mxu0
      %v1868 = vadd.f32 0.0, %v1867
      %1869 = vmatmul.bf16.gmra.mxu0 %v1769
      %v1870 = vpop.f32.mrf.mxu0
      %v1871 = vadd.f32 0.0, %v1870
      %v1872 = vpop.f32.mrf.mxu0
      %v1873 = vadd.f32 0.0, %v1872
      %1874 = vmatmul.bf16.gmra.mxu0 %v1770
      %v1875 = vpop.f32.mrf.mxu0
      %v1876 = vadd.f32 0.0, %v1875
      %v1877 = vpop.f32.mrf.mxu0
      %v1878 = vadd.f32 0.0, %v1877
      %1879 = vmatmul.bf16.gmra.mxu0 %v1771
      %v1880 = vpop.f32.mrf.mxu0
      %v1881 = vadd.f32 0.0, %v1880
      %v1882 = vpop.f32.mrf.mxu0
      %v1883 = vadd.f32 0.0, %v1882
      %1884 = vmatmul.bf16.gmra.mxu0 %v1772
      %v1885 = vpop.f32.mrf.mxu0
      %v1886 = vadd.f32 0.0, %v1885
      %v1887 = vpop.f32.mrf.mxu0
      %v1888 = vadd.f32 0.0, %v1887
      %1889 = vmatmul.bf16.gmra.mxu0 %v1773
      %v1890 = vpop.f32.mrf.mxu0
      %v1891 = vadd.f32 0.0, %v1890
      %v1892 = vpop.f32.mrf.mxu0
      %v1893 = vadd.f32 0.0, %v1892
      %1894 = vmatmul.bf16.gmra.mxu0 %v1774
      %v1895 = vpop.f32.mrf.mxu0
      %v1896 = vadd.f32 0.0, %v1895
      %v1897 = vpop.f32.mrf.mxu0
      %v1898 = vadd.f32 0.0, %v1897
      %1899 = vmatmul.bf16.gmra.mxu0 %v1775
      %v1900 = vpop.f32.mrf.mxu0
      %v1901 = vadd.f32 0.0, %v1900
      %v1902 = vpop.f32.mrf.mxu0
      %v1903 = vadd.f32 0.0, %v1902
      %1904 = vmatmul.bf16.gmra.mxu0 %v1776
      %v1905 = vpop.f32.mrf.mxu0
      %v1906 = vadd.f32 0.0, %v1905
      %v1907 = vpop.f32.mrf.mxu0
      %v1908 = vadd.f32 0.0, %v1907
      %1909 = vmatmul.bf16.gmra.mxu0 %v1777
      %v1910 = vpop.f32.mrf.mxu0
      %v1911 = vadd.f32 0.0, %v1910
      %v1912 = vpop.f32.mrf.mxu0
      %v1913 = vadd.f32 0.0, %v1912
      %1914 = vmatmul.bf16.gmra.mxu0 %v1778
      %v1915 = vpop.f32.mrf.mxu0
      %v1916 = vadd.f32 0.0, %v1915
      %v1917 = vpop.f32.mrf.mxu0
      %v1918 = vadd.f32 0.0, %v1917
      %1919 = vmatmul.bf16.gmra.mxu0 %v1779
      %v1920 = vpop.f32.mrf.mxu0
      %v1921 = vadd.f32 0.0, %v1920
      %v1922 = vpop.f32.mrf.mxu0
      %v1923 = vadd.f32 0.0, %v1922
      %1924 = vmatmul.bf16.gmra.mxu0 %v1780
      %v1925 = vpop.f32.mrf.mxu0
      %v1926 = vadd.f32 0.0, %v1925
      %v1927 = vpop.f32.mrf.mxu0
      %v1928 = vadd.f32 0.0, %v1927
      %1929 = vmatmul.bf16.gmra.mxu0 %v1781
      %v1930 = vpop.f32.mrf.mxu0
      %v1931 = vadd.f32 0.0, %v1930
      %v1932 = vpop.f32.mrf.mxu0
      %v1933 = vadd.f32 0.0, %v1932
      %1934 = vdwg.mxu0
      %v1935 = vadd.f32 %v1604, %v1856
      %v1936 = vadd.f32 %v1605, %v1858
      %v1937 = vadd.f32 %v1606, %v1861
      %v1938 = vadd.f32 %v1607, %v1863
      %v1939 = vadd.f32 %v1608, %v1866
      %v1940 = vadd.f32 %v1609, %v1868
      %v1941 = vadd.f32 %v1610, %v1871
      %v1942 = vadd.f32 %v1611, %v1873
      %v1943 = vadd.f32 %v1612, %v1876
      %v1944 = vadd.f32 %v1613, %v1878
      %v1945 = vadd.f32 %v1614, %v1881
      %v1946 = vadd.f32 %v1615, %v1883
      %v1947 = vadd.f32 %v1616, %v1886
      %v1948 = vadd.f32 %v1617, %v1888
      %v1949 = vadd.f32 %v1618, %v1891
      %v1950 = vadd.f32 %v1619, %v1893
      %v1951 = vadd.f32 %v1620, %v1896
      %v1952 = vadd.f32 %v1621, %v1898
      %v1953 = vadd.f32 %v1622, %v1901
      %v1954 = vadd.f32 %v1623, %v1903
      %v1955 = vadd.f32 %v1624, %v1906
      %v1956 = vadd.f32 %v1625, %v1908
      %v1957 = vadd.f32 %v1626, %v1911
      %v1958 = vadd.f32 %v1627, %v1913
      %v1959 = vadd.f32 %v1628, %v1916
      %v1960 = vadd.f32 %v1629, %v1918
      %v1961 = vadd.f32 %v1630, %v1921
      %v1962 = vadd.f32 %v1631, %v1923
      %v1963 = vadd.f32 %v1632, %v1926
      %v1964 = vadd.f32 %v1633, %v1928
      %v1965 = vadd.f32 %v1634, %v1931
      %v1966 = vadd.f32 %v1635, %v1933
      %v1968 = vshrl.u32 %v1637, 16
      %v1970 = vrot.slane %v1968, 4
      %v1971 = vshll.u32 %v1637, 16
      %v1973 = vrot.slane %v1971, 5
      %v1974 = vor.u32 %v1970, %v1973
      %v1975 = vrot.slane %v1974, 4
      %v1977 = vshll.u32 %v1638, 16
      %v1979 = vrot.slane %v1977, 5
      %v1980 = vsel %vm419, %v1975, %v1979
      %v1981 = vshrl.u32 %v1638, 16
      %v1983 = vrot.slane %v1981, 4
      %v1984 = vor.u32 %v1983, %v1979
      %v1985 = vrot.slane %v1984, 4
      %v1987 = vshll.u32 %v1639, 16
      %v1989 = vrot.slane %v1987, 5
      %v1990 = vsel %vm419, %v1985, %v1989
      %v1992 = vshrl.u32 %v1640, 16
      %v1994 = vrot.slane %v1992, 4
      %v1995 = vshll.u32 %v1640, 16
      %v1997 = vrot.slane %v1995, 5
      %v1998 = vor.u32 %v1994, %v1997
      %v1999 = vrot.slane %v1998, 4
      %v2001 = vshll.u32 %v1641, 16
      %v2003 = vrot.slane %v2001, 5
      %v2004 = vsel %vm419, %v1999, %v2003
      %v2005 = vshrl.u32 %v1641, 16
      %v2007 = vrot.slane %v2005, 4
      %v2008 = vor.u32 %v2007, %v2003
      %v2009 = vrot.slane %v2008, 4
      %v2011 = vshll.u32 %v1642, 16
      %v2013 = vrot.slane %v2011, 5
      %v2014 = vsel %vm419, %v2009, %v2013
      %v2016 = vshrl.u32 %v1643, 16
      %v2018 = vrot.slane %v2016, 4
      %v2019 = vshll.u32 %v1643, 16
      %v2021 = vrot.slane %v2019, 5
      %v2022 = vor.u32 %v2018, %v2021
      %v2023 = vrot.slane %v2022, 4
      %v2025 = vshll.u32 %v1644, 16
      %v2027 = vrot.slane %v2025, 5
      %v2028 = vsel %vm419, %v2023, %v2027
      %v2029 = vshrl.u32 %v1644, 16
      %v2031 = vrot.slane %v2029, 4
      %v2032 = vor.u32 %v2031, %v2027
      %v2033 = vrot.slane %v2032, 4
      %v2035 = vshll.u32 %v1645, 16
      %v2037 = vrot.slane %v2035, 5
      %v2038 = vsel %vm419, %v2033, %v2037
      %v2040 = vshrl.u32 %v1646, 16
      %v2042 = vrot.slane %v2040, 4
      %v2043 = vshll.u32 %v1646, 16
      %v2045 = vrot.slane %v2043, 5
      %v2046 = vor.u32 %v2042, %v2045
      %v2047 = vrot.slane %v2046, 4
      %v2049 = vshll.u32 %v1647, 16
      %v2051 = vrot.slane %v2049, 5
      %v2052 = vsel %vm419, %v2047, %v2051
      %v2053 = vshrl.u32 %v1647, 16
      %v2055 = vrot.slane %v2053, 4
      %v2056 = vor.u32 %v2055, %v2051
      %v2057 = vrot.slane %v2056, 4
      %v2059 = vshll.u32 %v1648, 16
      %v2061 = vrot.slane %v2059, 5
      %v2062 = vsel %vm419, %v2057, %v2061
      %v2064 = vshrl.u32 %v1649, 16
      %v2066 = vrot.slane %v2064, 4
      %v2067 = vshll.u32 %v1649, 16
      %v2069 = vrot.slane %v2067, 5
      %v2070 = vor.u32 %v2066, %v2069
      %v2071 = vrot.slane %v2070, 4
      %v2073 = vshll.u32 %v1650, 16
      %v2075 = vrot.slane %v2073, 5
      %v2076 = vsel %vm419, %v2071, %v2075
      %v2077 = vshrl.u32 %v1650, 16
      %v2079 = vrot.slane %v2077, 4
      %v2080 = vor.u32 %v2079, %v2075
      %v2081 = vrot.slane %v2080, 4
      %v2083 = vshll.u32 %v1651, 16
      %v2085 = vrot.slane %v2083, 5
      %v2086 = vsel %vm419, %v2081, %v2085
      %v2088 = vshrl.u32 %v1652, 16
      %v2090 = vrot.slane %v2088, 4
      %v2091 = vshll.u32 %v1652, 16
      %v2093 = vrot.slane %v2091, 5
      %v2094 = vor.u32 %v2090, %v2093
      %v2095 = vrot.slane %v2094, 4
      %v2097 = vshll.u32 %v1653, 16
      %v2099 = vrot.slane %v2097, 5
      %v2100 = vsel %vm419, %v2095, %v2099
      %v2101 = vshrl.u32 %v1653, 16
      %v2103 = vrot.slane %v2101, 4
      %v2104 = vor.u32 %v2103, %v2099
      %v2105 = vrot.slane %v2104, 4
      %v2107 = vshll.u32 %v1654, 16
      %v2109 = vrot.slane %v2107, 5
      %v2110 = vsel %vm419, %v2105, %v2109
      %v2112 = vshrl.u32 %v1655, 16
      %v2114 = vrot.slane %v2112, 4
      %v2115 = vshll.u32 %v1655, 16
      %v2117 = vrot.slane %v2115, 5
      %v2118 = vor.u32 %v2114, %v2117
      %v2119 = vrot.slane %v2118, 4
      %v2121 = vshll.u32 %v1656, 16
      %v2123 = vrot.slane %v2121, 5
      %v2124 = vsel %vm419, %v2119, %v2123
      %v2125 = vshrl.u32 %v1656, 16
      %v2127 = vrot.slane %v2125, 4
      %v2128 = vor.u32 %v2127, %v2123
      %v2129 = vrot.slane %v2128, 4
      %v2131 = vshll.u32 %v1657, 16
      %v2133 = vrot.slane %v2131, 5
      %v2134 = vsel %vm419, %v2129, %v2133
      %v2136 = vshrl.u32 %v1658, 16
      %v2138 = vrot.slane %v2136, 4
      %v2139 = vshll.u32 %v1658, 16
      %v2141 = vrot.slane %v2139, 5
      %v2142 = vor.u32 %v2138, %v2141
      %v2143 = vrot.slane %v2142, 4
      %v2145 = vshll.u32 %v1659, 16
      %v2147 = vrot.slane %v2145, 5
      %v2148 = vsel %vm419, %v2143, %v2147
      %v2149 = vshrl.u32 %v1659, 16
      %v2151 = vrot.slane %v2149, 4
      %v2152 = vor.u32 %v2151, %v2147
      %v2153 = vrot.slane %v2152, 4
      %v2155 = vshll.u32 %v1660, 16
      %v2157 = vrot.slane %v2155, 5
      %v2158 = vsel %vm419, %v2153, %v2157
      %v2160 = vshrl.u32 %v1661, 16
      %v2162 = vrot.slane %v2160, 4
      %v2163 = vshll.u32 %v1661, 16
      %v2165 = vrot.slane %v2163, 5
      %v2166 = vor.u32 %v2162, %v2165
      %v2167 = vrot.slane %v2166, 4
      %v2169 = vshll.u32 %v1662, 16
      %v2171 = vrot.slane %v2169, 5
      %v2172 = vsel %vm419, %v2167, %v2171
      %v2173 = vshrl.u32 %v1662, 16
      %v2175 = vrot.slane %v2173, 4
      %v2176 = vor.u32 %v2175, %v2171
      %v2177 = vrot.slane %v2176, 4
      %v2179 = vshll.u32 %v1663, 16
      %v2181 = vrot.slane %v2179, 5
      %v2182 = vsel %vm419, %v2177, %v2181
      %v2184 = vshrl.u32 %v1664, 16
      %v2186 = vrot.slane %v2184, 4
      %v2187 = vshll.u32 %v1664, 16
      %v2189 = vrot.slane %v2187, 5
      %v2190 = vor.u32 %v2186, %v2189
      %v2191 = vrot.slane %v2190, 4
      %v2193 = vshll.u32 %v1665, 16
      %v2195 = vrot.slane %v2193, 5
      %v2196 = vsel %vm419, %v2191, %v2195
      %v2197 = vshrl.u32 %v1665, 16
      %v2199 = vrot.slane %v2197, 4
      %v2200 = vor.u32 %v2199, %v2195
      %v2201 = vrot.slane %v2200, 4
      %v2203 = vshll.u32 %v1666, 16
      %v2205 = vrot.slane %v2203, 5
      %v2206 = vsel %vm419, %v2201, %v2205
      %v2208 = vshrl.u32 %v1667, 16
      %v2210 = vrot.slane %v2208, 4
      %v2211 = vshll.u32 %v1667, 16
      %v2213 = vrot.slane %v2211, 5
      %v2214 = vor.u32 %v2210, %v2213
      %v2215 = vrot.slane %v2214, 4
      %v2217 = vshll.u32 %v1668, 16
      %v2219 = vrot.slane %v2217, 5
      %v2220 = vsel %vm419, %v2215, %v2219
      %v2221 = vshrl.u32 %v1668, 16
      %v2223 = vrot.slane %v2221, 4
      %v2224 = vor.u32 %v2223, %v2219
      %v2225 = vrot.slane %v2224, 4
      %v2227 = vshll.u32 %v1669, 16
      %v2229 = vrot.slane %v2227, 5
      %v2230 = vsel %vm419, %v2225, %v2229
      %v2232 = vshrl.u32 %v1670, 16
      %v2234 = vrot.slane %v2232, 4
      %v2235 = vshll.u32 %v1670, 16
      %v2237 = vrot.slane %v2235, 5
      %v2238 = vor.u32 %v2234, %v2237
      %v2239 = vrot.slane %v2238, 4
      %v2241 = vshll.u32 %v1671, 16
      %v2243 = vrot.slane %v2241, 5
      %v2244 = vsel %vm419, %v2239, %v2243
      %v2245 = vshrl.u32 %v1671, 16
      %v2247 = vrot.slane %v2245, 4
      %v2248 = vor.u32 %v2247, %v2243
      %v2249 = vrot.slane %v2248, 4
      %v2251 = vshll.u32 %v1672, 16
      %v2253 = vrot.slane %v2251, 5
      %v2254 = vsel %vm419, %v2249, %v2253
      %v2256 = vshrl.u32 %v1673, 16
      %v2258 = vrot.slane %v2256, 4
      %v2259 = vshll.u32 %v1673, 16
      %v2261 = vrot.slane %v2259, 5
      %v2262 = vor.u32 %v2258, %v2261
      %v2263 = vrot.slane %v2262, 4
      %v2265 = vshll.u32 %v1674, 16
      %v2267 = vrot.slane %v2265, 5
      %v2268 = vsel %vm419, %v2263, %v2267
      %v2269 = vshrl.u32 %v1674, 16
      %v2271 = vrot.slane %v2269, 4
      %v2272 = vor.u32 %v2271, %v2267
      %v2273 = vrot.slane %v2272, 4
      %v2275 = vshll.u32 %v1675, 16
      %v2277 = vrot.slane %v2275, 5
      %v2278 = vsel %vm419, %v2273, %v2277
      %v2280 = vshrl.u32 %v1676, 16
      %v2282 = vrot.slane %v2280, 4
      %v2283 = vshll.u32 %v1676, 16
      %v2285 = vrot.slane %v2283, 5
      %v2286 = vor.u32 %v2282, %v2285
      %v2287 = vrot.slane %v2286, 4
      %v2289 = vshll.u32 %v1677, 16
      %v2291 = vrot.slane %v2289, 5
      %v2292 = vsel %vm419, %v2287, %v2291
      %v2293 = vshrl.u32 %v1677, 16
      %v2295 = vrot.slane %v2293, 4
      %v2296 = vor.u32 %v2295, %v2291
      %v2297 = vrot.slane %v2296, 4
      %v2299 = vshll.u32 %v1678, 16
      %v2301 = vrot.slane %v2299, 5
      %v2302 = vsel %vm419, %v2297, %v2301
      %v2304 = vshrl.u32 %v1679, 16
      %v2306 = vrot.slane %v2304, 4
      %v2307 = vshll.u32 %v1679, 16
      %v2309 = vrot.slane %v2307, 5
      %v2310 = vor.u32 %v2306, %v2309
      %v2311 = vrot.slane %v2310, 4
      %v2313 = vshll.u32 %v1680, 16
      %v2315 = vrot.slane %v2313, 5
      %v2316 = vsel %vm419, %v2311, %v2315
      %v2317 = vshrl.u32 %v1680, 16
      %v2319 = vrot.slane %v2317, 4
      %v2320 = vor.u32 %v2319, %v2315
      %v2321 = vrot.slane %v2320, 4
      %v2323 = vshll.u32 %v1681, 16
      %v2325 = vrot.slane %v2323, 5
      %v2326 = vsel %vm419, %v2321, %v2325
      %v2328 = vshrl.u32 %v1682, 16
      %v2330 = vrot.slane %v2328, 4
      %v2331 = vshll.u32 %v1682, 16
      %v2333 = vrot.slane %v2331, 5
      %v2334 = vor.u32 %v2330, %v2333
      %v2335 = vrot.slane %v2334, 4
      %v2337 = vshll.u32 %v1683, 16
      %v2339 = vrot.slane %v2337, 5
      %v2340 = vsel %vm419, %v2335, %v2339
      %v2341 = vshrl.u32 %v1683, 16
      %v2343 = vrot.slane %v2341, 4
      %v2344 = vor.u32 %v2343, %v2339
      %v2345 = vrot.slane %v2344, 4
      %v2347 = vshll.u32 %v1684, 16
      %v2349 = vrot.slane %v2347, 5
      %v2350 = vsel %vm419, %v2345, %v2349
      %s2351 = scalar_lea.vmem %s296, 256
      %v2352 = vld [vmem:[%s2351] sm:$0xf]
      %v2353 = vld [vmem:[%s2351 + $0x4] sm:$0xf]
      %v2354 = vld [vmem:[%s2351 + $0x8] sm:$0xf]
      %v2355 = vld [vmem:[%s2351 + $0xc] sm:$0xf]
      %v2356 = vld [vmem:[%s2351 + $0x10] sm:$0xf]
      %v2357 = vld [vmem:[%s2351 + $0x14] sm:$0xf]
      %v2358 = vld [vmem:[%s2351 + $0x18] sm:$0xf]
      %v2359 = vld [vmem:[%s2351 + $0x1c] sm:$0xf]
      %v2360 = vld [vmem:[%s2351 + $0x20] sm:$0xf]
      %v2361 = vld [vmem:[%s2351 + $0x24] sm:$0xf]
      %v2362 = vld [vmem:[%s2351 + $0x28] sm:$0xf]
      %v2363 = vld [vmem:[%s2351 + $0x2c] sm:$0xf]
      %v2364 = vld [vmem:[%s2351 + $0x30] sm:$0xf]
      %v2365 = vld [vmem:[%s2351 + $0x34] sm:$0xf]
      %v2366 = vld [vmem:[%s2351 + $0x38] sm:$0xf]
      %v2367 = vld [vmem:[%s2351 + $0x3c] sm:$0xf]
      %v2368 = vunpack.c.l.b16 %v1980
      %v2369 = vunpack.c.l.b16 %v1990
      %v2370 = vunpack.c.l.b16 %v2004
      %v2371 = vunpack.c.l.b16 %v2014
      %v2372 = vunpack.c.l.b16 %v2028
      %v2373 = vunpack.c.l.b16 %v2038
      %v2374 = vunpack.c.l.b16 %v2052
      %v2375 = vunpack.c.l.b16 %v2062
      %v2376 = vunpack.c.l.b16 %v2076
      %v2377 = vunpack.c.l.b16 %v2086
      %v2378 = vunpack.c.l.b16 %v2100
      %v2379 = vunpack.c.l.b16 %v2110
      %v2380 = vunpack.c.l.b16 %v2124
      %v2381 = vunpack.c.l.b16 %v2134
      %v2382 = vunpack.c.l.b16 %v2148
      %v2383 = vunpack.c.l.b16 %v2158
      %v2384 = vunpack.c.l.b16 %v2172
      %v2385 = vunpack.c.l.b16 %v2182
      %v2386 = vunpack.c.l.b16 %v2196
      %v2387 = vunpack.c.l.b16 %v2206
      %v2388 = vunpack.c.l.b16 %v2220
      %v2389 = vunpack.c.l.b16 %v2230
      %v2390 = vunpack.c.l.b16 %v2244
      %v2391 = vunpack.c.l.b16 %v2254
      %v2392 = vunpack.c.l.b16 %v2268
      %v2393 = vunpack.c.l.b16 %v2278
      %v2394 = vunpack.c.l.b16 %v2292
      %v2395 = vunpack.c.l.b16 %v2302
      %v2396 = vunpack.c.l.b16 %v2316
      %v2397 = vunpack.c.l.b16 %v2326
      %v2398 = vunpack.c.l.b16 %v2340
      %v2399 = vunpack.c.l.b16 %v2350
      %v2400 = vpack.c.b16 %v2369, %v2368
      %v2401 = vpack.c.b16 %v2371, %v2370
      %v2402 = vpack.c.b16 %v2373, %v2372
      %v2403 = vpack.c.b16 %v2375, %v2374
      %v2404 = vpack.c.b16 %v2377, %v2376
      %v2405 = vpack.c.b16 %v2379, %v2378
      %v2406 = vpack.c.b16 %v2381, %v2380
      %v2407 = vpack.c.b16 %v2383, %v2382
      %v2408 = vpack.c.b16 %v2385, %v2384
      %v2409 = vpack.c.b16 %v2387, %v2386
      %v2410 = vpack.c.b16 %v2389, %v2388
      %v2411 = vpack.c.b16 %v2391, %v2390
      %v2412 = vpack.c.b16 %v2393, %v2392
      %v2413 = vpack.c.b16 %v2395, %v2394
      %v2414 = vpack.c.b16 %v2397, %v2396
      %v2415 = vpack.c.b16 %v2399, %v2398
      %v2448 = vunpack.c.l.b16 %v2352
      %v2449 = vunpack.c.l.b16 %v2353
      %v2450 = vunpack.c.l.b16 %v2354
      %v2451 = vunpack.c.l.b16 %v2355
      %v2452 = vunpack.c.l.b16 %v2356
      %v2453 = vunpack.c.l.b16 %v2357
      %v2454 = vunpack.c.l.b16 %v2358
      %v2455 = vunpack.c.l.b16 %v2359
      %v2456 = vunpack.c.l.b16 %v2360
      %v2457 = vunpack.c.l.b16 %v2361
      %v2458 = vunpack.c.l.b16 %v2362
      %v2459 = vunpack.c.l.b16 %v2363
      %v2460 = vunpack.c.l.b16 %v2364
      %v2461 = vunpack.c.l.b16 %v2365
      %v2462 = vunpack.c.l.b16 %v2366
      %v2463 = vunpack.c.l.b16 %v2367
      %v2464 = vpack.c.b16 %v2449, %v2448
      %v2465 = vpack.c.b16 %v2451, %v2450
      %v2466 = vpack.c.b16 %v2453, %v2452
      %v2467 = vpack.c.b16 %v2455, %v2454
      %v2468 = vpack.c.b16 %v2457, %v2456
      %v2469 = vpack.c.b16 %v2459, %v2458
      %v2470 = vpack.c.b16 %v2461, %v2460
      %v2471 = vpack.c.b16 %v2463, %v2462
      %2480 = vmatpush.bf16.msra.mxu0 %v2471
      %2481 = vmatpush.bf16.msra.mxu0 %v2470
      %2482 = vmatpush.bf16.msra.mxu0 %v2469
      %2483 = vmatpush.bf16.msra.mxu0 %v2468
      %2484 = vmatpush.bf16.msra.mxu0 %v2467
      %2485 = vmatpush.bf16.msra.mxu0 %v2466
      %2486 = vmatpush.bf16.msra.mxu0 %v2465
      %2487 = vmatpush.bf16.msra.mxu0 %v2464
      %2488 = vmatmul.bf16.gmra.mxu0 %v2400
      %v2489 = vpop.f32.mrf.mxu0
      %v2490 = vadd.f32 0.0, %v2489
      %v2491 = vpop.f32.mrf.mxu0
      %v2492 = vadd.f32 0.0, %v2491
      %2493 = vmatmul.bf16.gmra.mxu0 %v2401
      %v2494 = vpop.f32.mrf.mxu0
      %v2495 = vadd.f32 0.0, %v2494
      %v2496 = vpop.f32.mrf.mxu0
      %v2497 = vadd.f32 0.0, %v2496
      %2498 = vmatmul.bf16.gmra.mxu0 %v2402
      %v2499 = vpop.f32.mrf.mxu0
      %v2500 = vadd.f32 0.0, %v2499
      %v2501 = vpop.f32.mrf.mxu0
      %v2502 = vadd.f32 0.0, %v2501
      %2503 = vmatmul.bf16.gmra.mxu0 %v2403
      %v2504 = vpop.f32.mrf.mxu0
      %v2505 = vadd.f32 0.0, %v2504
      %v2506 = vpop.f32.mrf.mxu0
      %v2507 = vadd.f32 0.0, %v2506
      %2508 = vmatmul.bf16.gmra.mxu0 %v2404
      %v2509 = vpop.f32.mrf.mxu0
      %v2510 = vadd.f32 0.0, %v2509
      %v2511 = vpop.f32.mrf.mxu0
      %v2512 = vadd.f32 0.0, %v2511
      %2513 = vmatmul.bf16.gmra.mxu0 %v2405
      %v2514 = vpop.f32.mrf.mxu0
      %v2515 = vadd.f32 0.0, %v2514
      %v2516 = vpop.f32.mrf.mxu0
      %v2517 = vadd.f32 0.0, %v2516
      %2518 = vmatmul.bf16.gmra.mxu0 %v2406
      %v2519 = vpop.f32.mrf.mxu0
      %v2520 = vadd.f32 0.0, %v2519
      %v2521 = vpop.f32.mrf.mxu0
      %v2522 = vadd.f32 0.0, %v2521
      %2523 = vmatmul.bf16.gmra.mxu0 %v2407
      %v2524 = vpop.f32.mrf.mxu0
      %v2525 = vadd.f32 0.0, %v2524
      %v2526 = vpop.f32.mrf.mxu0
      %v2527 = vadd.f32 0.0, %v2526
      %2528 = vmatmul.bf16.gmra.mxu0 %v2408
      %v2529 = vpop.f32.mrf.mxu0
      %v2530 = vadd.f32 0.0, %v2529
      %v2531 = vpop.f32.mrf.mxu0
      %v2532 = vadd.f32 0.0, %v2531
      %2533 = vmatmul.bf16.gmra.mxu0 %v2409
      %v2534 = vpop.f32.mrf.mxu0
      %v2535 = vadd.f32 0.0, %v2534
      %v2536 = vpop.f32.mrf.mxu0
      %v2537 = vadd.f32 0.0, %v2536
      %2538 = vmatmul.bf16.gmra.mxu0 %v2410
      %v2539 = vpop.f32.mrf.mxu0
      %v2540 = vadd.f32 0.0, %v2539
      %v2541 = vpop.f32.mrf.mxu0
      %v2542 = vadd.f32 0.0, %v2541
      %2543 = vmatmul.bf16.gmra.mxu0 %v2411
      %v2544 = vpop.f32.mrf.mxu0
      %v2545 = vadd.f32 0.0, %v2544
      %v2546 = vpop.f32.mrf.mxu0
      %v2547 = vadd.f32 0.0, %v2546
      %2548 = vmatmul.bf16.gmra.mxu0 %v2412
      %v2549 = vpop.f32.mrf.mxu0
      %v2550 = vadd.f32 0.0, %v2549
      %v2551 = vpop.f32.mrf.mxu0
      %v2552 = vadd.f32 0.0, %v2551
      %2553 = vmatmul.bf16.gmra.mxu0 %v2413
      %v2554 = vpop.f32.mrf.mxu0
      %v2555 = vadd.f32 0.0, %v2554
      %v2556 = vpop.f32.mrf.mxu0
      %v2557 = vadd.f32 0.0, %v2556
      %2558 = vmatmul.bf16.gmra.mxu0 %v2414
      %v2559 = vpop.f32.mrf.mxu0
      %v2560 = vadd.f32 0.0, %v2559
      %v2561 = vpop.f32.mrf.mxu0
      %v2562 = vadd.f32 0.0, %v2561
      %2563 = vmatmul.bf16.gmra.mxu0 %v2415
      %v2564 = vpop.f32.mrf.mxu0
      %v2565 = vadd.f32 0.0, %v2564
      %v2566 = vpop.f32.mrf.mxu0
      %v2567 = vadd.f32 0.0, %v2566
      %2568 = vdwg.mxu0
      %v2569 = vadd.f32 %v1935, %v2490
      %v2570 = vadd.f32 %v1936, %v2492
      %v2571 = vadd.f32 %v1937, %v2495
      %v2572 = vadd.f32 %v1938, %v2497
      %v2573 = vadd.f32 %v1939, %v2500
      %v2574 = vadd.f32 %v1940, %v2502
      %v2575 = vadd.f32 %v1941, %v2505
      %v2576 = vadd.f32 %v1942, %v2507
      %v2577 = vadd.f32 %v1943, %v2510
      %v2578 = vadd.f32 %v1944, %v2512
      %v2579 = vadd.f32 %v1945, %v2515
      %v2580 = vadd.f32 %v1946, %v2517
      %v2581 = vadd.f32 %v1947, %v2520
      %v2582 = vadd.f32 %v1948, %v2522
      %v2583 = vadd.f32 %v1949, %v2525
      %v2584 = vadd.f32 %v1950, %v2527
      %v2585 = vadd.f32 %v1951, %v2530
      %v2586 = vadd.f32 %v1952, %v2532
      %v2587 = vadd.f32 %v1953, %v2535
      %v2588 = vadd.f32 %v1954, %v2537
      %v2589 = vadd.f32 %v1955, %v2540
      %v2590 = vadd.f32 %v1956, %v2542
      %v2591 = vadd.f32 %v1957, %v2545
      %v2592 = vadd.f32 %v1958, %v2547
      %v2593 = vadd.f32 %v1959, %v2550
      %v2594 = vadd.f32 %v1960, %v2552
      %v2595 = vadd.f32 %v1961, %v2555
      %v2596 = vadd.f32 %v1962, %v2557
      %v2597 = vadd.f32 %v1963, %v2560
      %v2598 = vadd.f32 %v1964, %v2562
      %v2599 = vadd.f32 %v1965, %v2565
      %v2600 = vadd.f32 %v1966, %v2567
      %v2617 = vrot.slane %v1637, 5
      %v2618 = vrot.slane %v2617, 4
      %v2619 = vrot.slane %v1638, 5
      %v2620 = vsel %vm1273, %v2618, %v2619
      %v2621 = vrot.slane %v2619, 4
      %v2622 = vrot.slane %v1639, 5
      %v2623 = vsel %vm1273, %v2621, %v2622
      %v2624 = vrot.slane %v1640, 5
      %v2625 = vrot.slane %v2624, 4
      %v2626 = vrot.slane %v1641, 5
      %v2627 = vsel %vm1273, %v2625, %v2626
      %v2628 = vrot.slane %v2626, 4
      %v2629 = vrot.slane %v1642, 5
      %v2630 = vsel %vm1273, %v2628, %v2629
      %v2631 = vrot.slane %v1643, 5
      %v2632 = vrot.slane %v2631, 4
      %v2633 = vrot.slane %v1644, 5
      %v2634 = vsel %vm1273, %v2632, %v2633
      %v2635 = vrot.slane %v2633, 4
      %v2636 = vrot.slane %v1645, 5
      %v2637 = vsel %vm1273, %v2635, %v2636
      %v2638 = vrot.slane %v1646, 5
      %v2639 = vrot.slane %v2638, 4
      %v2640 = vrot.slane %v1647, 5
      %v2641 = vsel %vm1273, %v2639, %v2640
      %v2642 = vrot.slane %v2640, 4
      %v2643 = vrot.slane %v1648, 5
      %v2644 = vsel %vm1273, %v2642, %v2643
      %v2645 = vrot.slane %v1649, 5
      %v2646 = vrot.slane %v2645, 4
      %v2647 = vrot.slane %v1650, 5
      %v2648 = vsel %vm1273, %v2646, %v2647
      %v2649 = vrot.slane %v2647, 4
      %v2650 = vrot.slane %v1651, 5
      %v2651 = vsel %vm1273, %v2649, %v2650
      %v2652 = vrot.slane %v1652, 5
      %v2653 = vrot.slane %v2652, 4
      %v2654 = vrot.slane %v1653, 5
      %v2655 = vsel %vm1273, %v2653, %v2654
      %v2656 = vrot.slane %v2654, 4
      %v2657 = vrot.slane %v1654, 5
      %v2658 = vsel %vm1273, %v2656, %v2657
      %v2659 = vrot.slane %v1655, 5
      %v2660 = vrot.slane %v2659, 4
      %v2661 = vrot.slane %v1656, 5
      %v2662 = vsel %vm1273, %v2660, %v2661
      %v2663 = vrot.slane %v2661, 4
      %v2664 = vrot.slane %v1657, 5
      %v2665 = vsel %vm1273, %v2663, %v2664
      %v2666 = vrot.slane %v1658, 5
      %v2667 = vrot.slane %v2666, 4
      %v2668 = vrot.slane %v1659, 5
      %v2669 = vsel %vm1273, %v2667, %v2668
      %v2670 = vrot.slane %v2668, 4
      %v2671 = vrot.slane %v1660, 5
      %v2672 = vsel %vm1273, %v2670, %v2671
      %v2673 = vrot.slane %v1661, 5
      %v2674 = vrot.slane %v2673, 4
      %v2675 = vrot.slane %v1662, 5
      %v2676 = vsel %vm1273, %v2674, %v2675
      %v2677 = vrot.slane %v2675, 4
      %v2678 = vrot.slane %v1663, 5
      %v2679 = vsel %vm1273, %v2677, %v2678
      %v2680 = vrot.slane %v1664, 5
      %v2681 = vrot.slane %v2680, 4
      %v2682 = vrot.slane %v1665, 5
      %v2683 = vsel %vm1273, %v2681, %v2682
      %v2684 = vrot.slane %v2682, 4
      %v2685 = vrot.slane %v1666, 5
      %v2686 = vsel %vm1273, %v2684, %v2685
      %v2687 = vrot.slane %v1667, 5
      %v2688 = vrot.slane %v2687, 4
      %v2689 = vrot.slane %v1668, 5
      %v2690 = vsel %vm1273, %v2688, %v2689
      %v2691 = vrot.slane %v2689, 4
      %v2692 = vrot.slane %v1669, 5
      %v2693 = vsel %vm1273, %v2691, %v2692
      %v2694 = vrot.slane %v1670, 5
      %v2695 = vrot.slane %v2694, 4
      %v2696 = vrot.slane %v1671, 5
      %v2697 = vsel %vm1273, %v2695, %v2696
      %v2698 = vrot.slane %v2696, 4
      %v2699 = vrot.slane %v1672, 5
      %v2700 = vsel %vm1273, %v2698, %v2699
      %v2701 = vrot.slane %v1673, 5
      %v2702 = vrot.slane %v2701, 4
      %v2703 = vrot.slane %v1674, 5
      %v2704 = vsel %vm1273, %v2702, %v2703
      %v2705 = vrot.slane %v2703, 4
      %v2706 = vrot.slane %v1675, 5
      %v2707 = vsel %vm1273, %v2705, %v2706
      %v2708 = vrot.slane %v1676, 5
      %v2709 = vrot.slane %v2708, 4
      %v2710 = vrot.slane %v1677, 5
      %v2711 = vsel %vm1273, %v2709, %v2710
      %v2712 = vrot.slane %v2710, 4
      %v2713 = vrot.slane %v1678, 5
      %v2714 = vsel %vm1273, %v2712, %v2713
      %v2715 = vrot.slane %v1679, 5
      %v2716 = vrot.slane %v2715, 4
      %v2717 = vrot.slane %v1680, 5
      %v2718 = vsel %vm1273, %v2716, %v2717
      %v2719 = vrot.slane %v2717, 4
      %v2720 = vrot.slane %v1681, 5
      %v2721 = vsel %vm1273, %v2719, %v2720
      %v2722 = vrot.slane %v1682, 5
      %v2723 = vrot.slane %v2722, 4
      %v2724 = vrot.slane %v1683, 5
      %v2725 = vsel %vm1273, %v2723, %v2724
      %v2726 = vrot.slane %v2724, 4
      %v2727 = vrot.slane %v1684, 5
      %v2728 = vsel %vm1273, %v2726, %v2727
      %s2729 = scalar_lea.vmem %s296, 320
      %v2730 = vld [vmem:[%s2729] sm:$0xf]
      %v2731 = vld [vmem:[%s2729 + $0x4] sm:$0xf]
      %v2732 = vld [vmem:[%s2729 + $0x8] sm:$0xf]
      %v2733 = vld [vmem:[%s2729 + $0xc] sm:$0xf]
      %v2734 = vld [vmem:[%s2729 + $0x10] sm:$0xf]
      %v2735 = vld [vmem:[%s2729 + $0x14] sm:$0xf]
      %v2736 = vld [vmem:[%s2729 + $0x18] sm:$0xf]
      %v2737 = vld [vmem:[%s2729 + $0x1c] sm:$0xf]
      %v2738 = vld [vmem:[%s2729 + $0x20] sm:$0xf]
      %v2739 = vld [vmem:[%s2729 + $0x24] sm:$0xf]
      %v2740 = vld [vmem:[%s2729 + $0x28] sm:$0xf]
      %v2741 = vld [vmem:[%s2729 + $0x2c] sm:$0xf]
      %v2742 = vld [vmem:[%s2729 + $0x30] sm:$0xf]
      %v2743 = vld [vmem:[%s2729 + $0x34] sm:$0xf]
      %v2744 = vld [vmem:[%s2729 + $0x38] sm:$0xf]
      %v2745 = vld [vmem:[%s2729 + $0x3c] sm:$0xf]
      %v2746 = vunpack.c.l.b16 %v2620
      %v2747 = vunpack.c.l.b16 %v2623
      %v2748 = vunpack.c.l.b16 %v2627
      %v2749 = vunpack.c.l.b16 %v2630
      %v2750 = vunpack.c.l.b16 %v2634
      %v2751 = vunpack.c.l.b16 %v2637
      %v2752 = vunpack.c.l.b16 %v2641
      %v2753 = vunpack.c.l.b16 %v2644
      %v2754 = vunpack.c.l.b16 %v2648
      %v2755 = vunpack.c.l.b16 %v2651
      %v2756 = vunpack.c.l.b16 %v2655
      %v2757 = vunpack.c.l.b16 %v2658
      %v2758 = vunpack.c.l.b16 %v2662
      %v2759 = vunpack.c.l.b16 %v2665
      %v2760 = vunpack.c.l.b16 %v2669
      %v2761 = vunpack.c.l.b16 %v2672
      %v2762 = vunpack.c.l.b16 %v2676
      %v2763 = vunpack.c.l.b16 %v2679
      %v2764 = vunpack.c.l.b16 %v2683
      %v2765 = vunpack.c.l.b16 %v2686
      %v2766 = vunpack.c.l.b16 %v2690
      %v2767 = vunpack.c.l.b16 %v2693
      %v2768 = vunpack.c.l.b16 %v2697
      %v2769 = vunpack.c.l.b16 %v2700
      %v2770 = vunpack.c.l.b16 %v2704
      %v2771 = vunpack.c.l.b16 %v2707
      %v2772 = vunpack.c.l.b16 %v2711
      %v2773 = vunpack.c.l.b16 %v2714
      %v2774 = vunpack.c.l.b16 %v2718
      %v2775 = vunpack.c.l.b16 %v2721
      %v2776 = vunpack.c.l.b16 %v2725
      %v2777 = vunpack.c.l.b16 %v2728
      %v2778 = vpack.c.b16 %v2747, %v2746
      %v2779 = vpack.c.b16 %v2749, %v2748
      %v2780 = vpack.c.b16 %v2751, %v2750
      %v2781 = vpack.c.b16 %v2753, %v2752
      %v2782 = vpack.c.b16 %v2755, %v2754
      %v2783 = vpack.c.b16 %v2757, %v2756
      %v2784 = vpack.c.b16 %v2759, %v2758
      %v2785 = vpack.c.b16 %v2761, %v2760
      %v2786 = vpack.c.b16 %v2763, %v2762
      %v2787 = vpack.c.b16 %v2765, %v2764
      %v2788 = vpack.c.b16 %v2767, %v2766
      %v2789 = vpack.c.b16 %v2769, %v2768
      %v2790 = vpack.c.b16 %v2771, %v2770
      %v2791 = vpack.c.b16 %v2773, %v2772
      %v2792 = vpack.c.b16 %v2775, %v2774
      %v2793 = vpack.c.b16 %v2777, %v2776
      %v2826 = vunpack.c.l.b16 %v2730
      %v2827 = vunpack.c.l.b16 %v2731
      %v2828 = vunpack.c.l.b16 %v2732
      %v2829 = vunpack.c.l.b16 %v2733
      %v2830 = vunpack.c.l.b16 %v2734
      %v2831 = vunpack.c.l.b16 %v2735
      %v2832 = vunpack.c.l.b16 %v2736
      %v2833 = vunpack.c.l.b16 %v2737
      %v2834 = vunpack.c.l.b16 %v2738
      %v2835 = vunpack.c.l.b16 %v2739
      %v2836 = vunpack.c.l.b16 %v2740
      %v2837 = vunpack.c.l.b16 %v2741
      %v2838 = vunpack.c.l.b16 %v2742
      %v2839 = vunpack.c.l.b16 %v2743
      %v2840 = vunpack.c.l.b16 %v2744
      %v2841 = vunpack.c.l.b16 %v2745
      %v2842 = vpack.c.b16 %v2827, %v2826
      %v2843 = vpack.c.b16 %v2829, %v2828
      %v2844 = vpack.c.b16 %v2831, %v2830
      %v2845 = vpack.c.b16 %v2833, %v2832
      %v2846 = vpack.c.b16 %v2835, %v2834
      %v2847 = vpack.c.b16 %v2837, %v2836
      %v2848 = vpack.c.b16 %v2839, %v2838
      %v2849 = vpack.c.b16 %v2841, %v2840
      %2858 = vmatpush.bf16.msra.mxu0 %v2849
      %2859 = vmatpush.bf16.msra.mxu0 %v2848
      %2860 = vmatpush.bf16.msra.mxu0 %v2847
      %2861 = vmatpush.bf16.msra.mxu0 %v2846
      %2862 = vmatpush.bf16.msra.mxu0 %v2845
      %2863 = vmatpush.bf16.msra.mxu0 %v2844
      %2864 = vmatpush.bf16.msra.mxu0 %v2843
      %2865 = vmatpush.bf16.msra.mxu0 %v2842
      %2866 = vmatmul.bf16.gmra.mxu0 %v2778
      %v2867 = vpop.f32.mrf.mxu0
      %v2868 = vadd.f32 0.0, %v2867
      %v2869 = vpop.f32.mrf.mxu0
      %v2870 = vadd.f32 0.0, %v2869
      %2871 = vmatmul.bf16.gmra.mxu0 %v2779
      %v2872 = vpop.f32.mrf.mxu0
      %v2873 = vadd.f32 0.0, %v2872
      %v2874 = vpop.f32.mrf.mxu0
      %v2875 = vadd.f32 0.0, %v2874
      %2876 = vmatmul.bf16.gmra.mxu0 %v2780
      %v2877 = vpop.f32.mrf.mxu0
      %v2878 = vadd.f32 0.0, %v2877
      %v2879 = vpop.f32.mrf.mxu0
      %v2880 = vadd.f32 0.0, %v2879
      %2881 = vmatmul.bf16.gmra.mxu0 %v2781
      %v2882 = vpop.f32.mrf.mxu0
      %v2883 = vadd.f32 0.0, %v2882
      %v2884 = vpop.f32.mrf.mxu0
      %v2885 = vadd.f32 0.0, %v2884
      %2886 = vmatmul.bf16.gmra.mxu0 %v2782
      %v2887 = vpop.f32.mrf.mxu0
      %v2888 = vadd.f32 0.0, %v2887
      %v2889 = vpop.f32.mrf.mxu0
      %v2890 = vadd.f32 0.0, %v2889
      %2891 = vmatmul.bf16.gmra.mxu0 %v2783
      %v2892 = vpop.f32.mrf.mxu0
      %v2893 = vadd.f32 0.0, %v2892
      %v2894 = vpop.f32.mrf.mxu0
      %v2895 = vadd.f32 0.0, %v2894
      %2896 = vmatmul.bf16.gmra.mxu0 %v2784
      %v2897 = vpop.f32.mrf.mxu0
      %v2898 = vadd.f32 0.0, %v2897
      %v2899 = vpop.f32.mrf.mxu0
      %v2900 = vadd.f32 0.0, %v2899
      %2901 = vmatmul.bf16.gmra.mxu0 %v2785
      %v2902 = vpop.f32.mrf.mxu0
      %v2903 = vadd.f32 0.0, %v2902
      %v2904 = vpop.f32.mrf.mxu0
      %v2905 = vadd.f32 0.0, %v2904
      %2906 = vmatmul.bf16.gmra.mxu0 %v2786
      %v2907 = vpop.f32.mrf.mxu0
      %v2908 = vadd.f32 0.0, %v2907
      %v2909 = vpop.f32.mrf.mxu0
      %v2910 = vadd.f32 0.0, %v2909
      %2911 = vmatmul.bf16.gmra.mxu0 %v2787
      %v2912 = vpop.f32.mrf.mxu0
      %v2913 = vadd.f32 0.0, %v2912
      %v2914 = vpop.f32.mrf.mxu0
      %v2915 = vadd.f32 0.0, %v2914
      %2916 = vmatmul.bf16.gmra.mxu0 %v2788
      %v2917 = vpop.f32.mrf.mxu0
      %v2918 = vadd.f32 0.0, %v2917
      %v2919 = vpop.f32.mrf.mxu0
      %v2920 = vadd.f32 0.0, %v2919
      %2921 = vmatmul.bf16.gmra.mxu0 %v2789
      %v2922 = vpop.f32.mrf.mxu0
      %v2923 = vadd.f32 0.0, %v2922
      %v2924 = vpop.f32.mrf.mxu0
      %v2925 = vadd.f32 0.0, %v2924
      %2926 = vmatmul.bf16.gmra.mxu0 %v2790
      %v2927 = vpop.f32.mrf.mxu0
      %v2928 = vadd.f32 0.0, %v2927
      %v2929 = vpop.f32.mrf.mxu0
      %v2930 = vadd.f32 0.0, %v2929
      %2931 = vmatmul.bf16.gmra.mxu0 %v2791
      %v2932 = vpop.f32.mrf.mxu0
      %v2933 = vadd.f32 0.0, %v2932
      %v2934 = vpop.f32.mrf.mxu0
      %v2935 = vadd.f32 0.0, %v2934
      %2936 = vmatmul.bf16.gmra.mxu0 %v2792
      %v2937 = vpop.f32.mrf.mxu0
      %v2938 = vadd.f32 0.0, %v2937
      %v2939 = vpop.f32.mrf.mxu0
      %v2940 = vadd.f32 0.0, %v2939
      %2941 = vmatmul.bf16.gmra.mxu0 %v2793
      %v2942 = vpop.f32.mrf.mxu0
      %v2943 = vadd.f32 0.0, %v2942
      %v2944 = vpop.f32.mrf.mxu0
      %v2945 = vadd.f32 0.0, %v2944
      %2946 = vdwg.mxu0
      %v2947 = vadd.f32 %v2569, %v2868
      %v2948 = vadd.f32 %v2570, %v2870
      %v2949 = vadd.f32 %v2571, %v2873
      %v2950 = vadd.f32 %v2572, %v2875
      %v2951 = vadd.f32 %v2573, %v2878
      %v2952 = vadd.f32 %v2574, %v2880
      %v2953 = vadd.f32 %v2575, %v2883
      %v2954 = vadd.f32 %v2576, %v2885
      %v2955 = vadd.f32 %v2577, %v2888
      %v2956 = vadd.f32 %v2578, %v2890
      %v2957 = vadd.f32 %v2579, %v2893
      %v2958 = vadd.f32 %v2580, %v2895
      %v2959 = vadd.f32 %v2581, %v2898
      %v2960 = vadd.f32 %v2582, %v2900
      %v2961 = vadd.f32 %v2583, %v2903
      %v2962 = vadd.f32 %v2584, %v2905
      %v2963 = vadd.f32 %v2585, %v2908
      %v2964 = vadd.f32 %v2586, %v2910
      %v2965 = vadd.f32 %v2587, %v2913
      %v2966 = vadd.f32 %v2588, %v2915
      %v2967 = vadd.f32 %v2589, %v2918
      %v2968 = vadd.f32 %v2590, %v2920
      %v2969 = vadd.f32 %v2591, %v2923
      %v2970 = vadd.f32 %v2592, %v2925
      %v2971 = vadd.f32 %v2593, %v2928
      %v2972 = vadd.f32 %v2594, %v2930
      %v2973 = vadd.f32 %v2595, %v2933
      %v2974 = vadd.f32 %v2596, %v2935
      %v2975 = vadd.f32 %v2597, %v2938
      %v2976 = vadd.f32 %v2598, %v2940
      %v2977 = vadd.f32 %v2599, %v2943
      %v2978 = vadd.f32 %v2600, %v2945
      %s2979 = scalar_lea.vmem %s287, 24
      %v2980 = vld [vmem:[%s2979] sm:$0xf]
      %v2981 = vld [vmem:[%s2979 + $0x4] sm:$0xf]
      %v2982 = vld [vmem:[%s2979 + $0x8] sm:$0x1]
      %v2983 = vld [vmem:[%s2979 + $0xc] sm:$0xf]
      %v2984 = vld [vmem:[%s2979 + $0x10] sm:$0xf]
      %v2985 = vld [vmem:[%s2979 + $0x14] sm:$0x1]
      %v2986 = vld [vmem:[%s2979 + $0x18] sm:$0xf]
      %v2987 = vld [vmem:[%s2979 + $0x1c] sm:$0xf]
      %v2988 = vld [vmem:[%s2979 + $0x20] sm:$0x1]
      %v2989 = vld [vmem:[%s2979 + $0x24] sm:$0xf]
      %v2990 = vld [vmem:[%s2979 + $0x28] sm:$0xf]
      %v2991 = vld [vmem:[%s2979 + $0x2c] sm:$0x1]
      %v2992 = vld [vmem:[%s2979 + $0x30] sm:$0xf]
      %v2993 = vld [vmem:[%s2979 + $0x34] sm:$0xf]
      %v2994 = vld [vmem:[%s2979 + $0x38] sm:$0x1]
      %v2995 = vld [vmem:[%s2979 + $0x3c] sm:$0xf]
      %v2996 = vld [vmem:[%s2979 + $0x40] sm:$0xf]
      %v2997 = vld [vmem:[%s2979 + $0x44] sm:$0x1]
      %v2998 = vld [vmem:[%s2979 + $0x48] sm:$0xf]
      %v2999 = vld [vmem:[%s2979 + $0x4c] sm:$0xf]
      %v3000 = vld [vmem:[%s2979 + $0x50] sm:$0x1]
      %v3001 = vld [vmem:[%s2979 + $0x54] sm:$0xf]
      %v3002 = vld [vmem:[%s2979 + $0x58] sm:$0xf]
      %v3003 = vld [vmem:[%s2979 + $0x5c] sm:$0x1]
      %v3004 = vld [vmem:[%s2979 + $0x60] sm:$0xf]
      %v3005 = vld [vmem:[%s2979 + $0x64] sm:$0xf]
      %v3006 = vld [vmem:[%s2979 + $0x68] sm:$0x1]
      %v3007 = vld [vmem:[%s2979 + $0x6c] sm:$0xf]
      %v3008 = vld [vmem:[%s2979 + $0x70] sm:$0xf]
      %v3009 = vld [vmem:[%s2979 + $0x74] sm:$0x1]
      %v3010 = vld [vmem:[%s2979 + $0x78] sm:$0xf]
      %v3011 = vld [vmem:[%s2979 + $0x7c] sm:$0xf]
      %v3012 = vld [vmem:[%s2979 + $0x80] sm:$0x1]
      %v3013 = vld [vmem:[%s2979 + $0x84] sm:$0xf]
      %v3014 = vld [vmem:[%s2979 + $0x88] sm:$0xf]
      %v3015 = vld [vmem:[%s2979 + $0x8c] sm:$0x1]
      %v3016 = vld [vmem:[%s2979 + $0x90] sm:$0xf]
      %v3017 = vld [vmem:[%s2979 + $0x94] sm:$0xf]
      %v3018 = vld [vmem:[%s2979 + $0x98] sm:$0x1]
      %v3019 = vld [vmem:[%s2979 + $0x9c] sm:$0xf]
      %v3020 = vld [vmem:[%s2979 + $0xa0] sm:$0xf]
      %v3021 = vld [vmem:[%s2979 + $0xa4] sm:$0x1]
      %v3022 = vld [vmem:[%s2979 + $0xa8] sm:$0xf]
      %v3023 = vld [vmem:[%s2979 + $0xac] sm:$0xf]
      %v3024 = vld [vmem:[%s2979 + $0xb0] sm:$0x1]
      %v3025 = vld [vmem:[%s2979 + $0xb4] sm:$0xf]
      %v3026 = vld [vmem:[%s2979 + $0xb8] sm:$0xf]
      %v3027 = vld [vmem:[%s2979 + $0xbc] sm:$0x1]
      %s3028 = scalar_lea.vmem %s296, 384
      %v3029 = vld [vmem:[%s3028] sm:$0xf]
      %v3030 = vld [vmem:[%s3028 + $0x4] sm:$0xf]
      %v3031 = vld [vmem:[%s3028 + $0x8] sm:$0xf]
      %v3032 = vld [vmem:[%s3028 + $0xc] sm:$0xf]
      %v3033 = vld [vmem:[%s3028 + $0x10] sm:$0xf]
      %v3034 = vld [vmem:[%s3028 + $0x14] sm:$0xf]
      %v3035 = vld [vmem:[%s3028 + $0x18] sm:$0xf]
      %v3036 = vld [vmem:[%s3028 + $0x1c] sm:$0xf]
      %v3037 = vld [vmem:[%s3028 + $0x20] sm:$0xf]
      %v3038 = vld [vmem:[%s3028 + $0x24] sm:$0xf]
      %v3039 = vld [vmem:[%s3028 + $0x28] sm:$0xf]
      %v3040 = vld [vmem:[%s3028 + $0x2c] sm:$0xf]
      %v3041 = vld [vmem:[%s3028 + $0x30] sm:$0xf]
      %v3042 = vld [vmem:[%s3028 + $0x34] sm:$0xf]
      %v3043 = vld [vmem:[%s3028 + $0x38] sm:$0xf]
      %v3044 = vld [vmem:[%s3028 + $0x3c] sm:$0xf]
      %v3077 = vunpack.c.l.b16 %v2980
      %v3078 = vunpack.c.l.b16 %v2981
      %v3079 = vunpack.c.l.b16 %v2983
      %v3080 = vunpack.c.l.b16 %v2984
      %v3081 = vunpack.c.l.b16 %v2986
      %v3082 = vunpack.c.l.b16 %v2987
      %v3083 = vunpack.c.l.b16 %v2989
      %v3084 = vunpack.c.l.b16 %v2990
      %v3085 = vunpack.c.l.b16 %v2992
      %v3086 = vunpack.c.l.b16 %v2993
      %v3087 = vunpack.c.l.b16 %v2995
      %v3088 = vunpack.c.l.b16 %v2996
      %v3089 = vunpack.c.l.b16 %v2998
      %v3090 = vunpack.c.l.b16 %v2999
      %v3091 = vunpack.c.l.b16 %v3001
      %v3092 = vunpack.c.l.b16 %v3002
      %v3093 = vunpack.c.l.b16 %v3004
      %v3094 = vunpack.c.l.b16 %v3005
      %v3095 = vunpack.c.l.b16 %v3007
      %v3096 = vunpack.c.l.b16 %v3008
      %v3097 = vunpack.c.l.b16 %v3010
      %v3098 = vunpack.c.l.b16 %v3011
      %v3099 = vunpack.c.l.b16 %v3013
      %v3100 = vunpack.c.l.b16 %v3014
      %v3101 = vunpack.c.l.b16 %v3016
      %v3102 = vunpack.c.l.b16 %v3017
      %v3103 = vunpack.c.l.b16 %v3019
      %v3104 = vunpack.c.l.b16 %v3020
      %v3105 = vunpack.c.l.b16 %v3022
      %v3106 = vunpack.c.l.b16 %v3023
      %v3107 = vunpack.c.l.b16 %v3025
      %v3108 = vunpack.c.l.b16 %v3026
      %v3109 = vpack.c.b16 %v3078, %v3077
      %v3110 = vpack.c.b16 %v3080, %v3079
      %v3111 = vpack.c.b16 %v3082, %v3081
      %v3112 = vpack.c.b16 %v3084, %v3083
      %v3113 = vpack.c.b16 %v3086, %v3085
      %v3114 = vpack.c.b16 %v3088, %v3087
      %v3115 = vpack.c.b16 %v3090, %v3089
      %v3116 = vpack.c.b16 %v3092, %v3091
      %v3117 = vpack.c.b16 %v3094, %v3093
      %v3118 = vpack.c.b16 %v3096, %v3095
      %v3119 = vpack.c.b16 %v3098, %v3097
      %v3120 = vpack.c.b16 %v3100, %v3099
      %v3121 = vpack.c.b16 %v3102, %v3101
      %v3122 = vpack.c.b16 %v3104, %v3103
      %v3123 = vpack.c.b16 %v3106, %v3105
      %v3124 = vpack.c.b16 %v3108, %v3107
      %v3157 = vunpack.c.l.b16 %v3029
      %v3158 = vunpack.c.l.b16 %v3030
      %v3159 = vunpack.c.l.b16 %v3031
      %v3160 = vunpack.c.l.b16 %v3032
      %v3161 = vunpack.c.l.b16 %v3033
      %v3162 = vunpack.c.l.b16 %v3034
      %v3163 = vunpack.c.l.b16 %v3035
      %v3164 = vunpack.c.l.b16 %v3036
      %v3165 = vunpack.c.l.b16 %v3037
      %v3166 = vunpack.c.l.b16 %v3038
      %v3167 = vunpack.c.l.b16 %v3039
      %v3168 = vunpack.c.l.b16 %v3040
      %v3169 = vunpack.c.l.b16 %v3041
      %v3170 = vunpack.c.l.b16 %v3042
      %v3171 = vunpack.c.l.b16 %v3043
      %v3172 = vunpack.c.l.b16 %v3044
      %v3173 = vpack.c.b16 %v3158, %v3157
      %v3174 = vpack.c.b16 %v3160, %v3159
      %v3175 = vpack.c.b16 %v3162, %v3161
      %v3176 = vpack.c.b16 %v3164, %v3163
      %v3177 = vpack.c.b16 %v3166, %v3165
      %v3178 = vpack.c.b16 %v3168, %v3167
      %v3179 = vpack.c.b16 %v3170, %v3169
      %v3180 = vpack.c.b16 %v3172, %v3171
      %3189 = vmatpush.bf16.msra.mxu0 %v3180
      %3190 = vmatpush.bf16.msra.mxu0 %v3179
      %3191 = vmatpush.bf16.msra.mxu0 %v3178
      %3192 = vmatpush.bf16.msra.mxu0 %v3177
      %3193 = vmatpush.bf16.msra.mxu0 %v3176
      %3194 = vmatpush.bf16.msra.mxu0 %v3175
      %3195 = vmatpush.bf16.msra.mxu0 %v3174
      %3196 = vmatpush.bf16.msra.mxu0 %v3173
      %3197 = vmatmul.bf16.gmra.mxu0 %v3109
      %v3198 = vpop.f32.mrf.mxu0
      %v3199 = vadd.f32 0.0, %v3198
      %v3200 = vpop.f32.mrf.mxu0
      %v3201 = vadd.f32 0.0, %v3200
      %3202 = vmatmul.bf16.gmra.mxu0 %v3110
      %v3203 = vpop.f32.mrf.mxu0
      %v3204 = vadd.f32 0.0, %v3203
      %v3205 = vpop.f32.mrf.mxu0
      %v3206 = vadd.f32 0.0, %v3205
      %3207 = vmatmul.bf16.gmra.mxu0 %v3111
      %v3208 = vpop.f32.mrf.mxu0
      %v3209 = vadd.f32 0.0, %v3208
      %v3210 = vpop.f32.mrf.mxu0
      %v3211 = vadd.f32 0.0, %v3210
      %3212 = vmatmul.bf16.gmra.mxu0 %v3112
      %v3213 = vpop.f32.mrf.mxu0
      %v3214 = vadd.f32 0.0, %v3213
      %v3215 = vpop.f32.mrf.mxu0
      %v3216 = vadd.f32 0.0, %v3215
      %3217 = vmatmul.bf16.gmra.mxu0 %v3113
      %v3218 = vpop.f32.mrf.mxu0
      %v3219 = vadd.f32 0.0, %v3218
      %v3220 = vpop.f32.mrf.mxu0
      %v3221 = vadd.f32 0.0, %v3220
      %3222 = vmatmul.bf16.gmra.mxu0 %v3114
      %v3223 = vpop.f32.mrf.mxu0
      %v3224 = vadd.f32 0.0, %v3223
      %v3225 = vpop.f32.mrf.mxu0
      %v3226 = vadd.f32 0.0, %v3225
      %3227 = vmatmul.bf16.gmra.mxu0 %v3115
      %v3228 = vpop.f32.mrf.mxu0
      %v3229 = vadd.f32 0.0, %v3228
      %v3230 = vpop.f32.mrf.mxu0
      %v3231 = vadd.f32 0.0, %v3230
      %3232 = vmatmul.bf16.gmra.mxu0 %v3116
      %v3233 = vpop.f32.mrf.mxu0
      %v3234 = vadd.f32 0.0, %v3233
      %v3235 = vpop.f32.mrf.mxu0
      %v3236 = vadd.f32 0.0, %v3235
      %3237 = vmatmul.bf16.gmra.mxu0 %v3117
      %v3238 = vpop.f32.mrf.mxu0
      %v3239 = vadd.f32 0.0, %v3238
      %v3240 = vpop.f32.mrf.mxu0
      %v3241 = vadd.f32 0.0, %v3240
      %3242 = vmatmul.bf16.gmra.mxu0 %v3118
      %v3243 = vpop.f32.mrf.mxu0
      %v3244 = vadd.f32 0.0, %v3243
      %v3245 = vpop.f32.mrf.mxu0
      %v3246 = vadd.f32 0.0, %v3245
      %3247 = vmatmul.bf16.gmra.mxu0 %v3119
      %v3248 = vpop.f32.mrf.mxu0
      %v3249 = vadd.f32 0.0, %v3248
      %v3250 = vpop.f32.mrf.mxu0
      %v3251 = vadd.f32 0.0, %v3250
      %3252 = vmatmul.bf16.gmra.mxu0 %v3120
      %v3253 = vpop.f32.mrf.mxu0
      %v3254 = vadd.f32 0.0, %v3253
      %v3255 = vpop.f32.mrf.mxu0
      %v3256 = vadd.f32 0.0, %v3255
      %3257 = vmatmul.bf16.gmra.mxu0 %v3121
      %v3258 = vpop.f32.mrf.mxu0
      %v3259 = vadd.f32 0.0, %v3258
      %v3260 = vpop.f32.mrf.mxu0
      %v3261 = vadd.f32 0.0, %v3260
      %3262 = vmatmul.bf16.gmra.mxu0 %v3122
      %v3263 = vpop.f32.mrf.mxu0
      %v3264 = vadd.f32 0.0, %v3263
      %v3265 = vpop.f32.mrf.mxu0
      %v3266 = vadd.f32 0.0, %v3265
      %3267 = vmatmul.bf16.gmra.mxu0 %v3123
      %v3268 = vpop.f32.mrf.mxu0
      %v3269 = vadd.f32 0.0, %v3268
      %v3270 = vpop.f32.mrf.mxu0
      %v3271 = vadd.f32 0.0, %v3270
      %3272 = vmatmul.bf16.gmra.mxu0 %v3124
      %v3273 = vpop.f32.mrf.mxu0
      %v3274 = vadd.f32 0.0, %v3273
      %v3275 = vpop.f32.mrf.mxu0
      %v3276 = vadd.f32 0.0, %v3275
      %3277 = vdwg.mxu0
      %v3278 = vadd.f32 %v2947, %v3199
      %v3279 = vadd.f32 %v2948, %v3201
      %v3280 = vadd.f32 %v2949, %v3204
      %v3281 = vadd.f32 %v2950, %v3206
      %v3282 = vadd.f32 %v2951, %v3209
      %v3283 = vadd.f32 %v2952, %v3211
      %v3284 = vadd.f32 %v2953, %v3214
      %v3285 = vadd.f32 %v2954, %v3216
      %v3286 = vadd.f32 %v2955, %v3219
      %v3287 = vadd.f32 %v2956, %v3221
      %v3288 = vadd.f32 %v2957, %v3224
      %v3289 = vadd.f32 %v2958, %v3226
      %v3290 = vadd.f32 %v2959, %v3229
      %v3291 = vadd.f32 %v2960, %v3231
      %v3292 = vadd.f32 %v2961, %v3234
      %v3293 = vadd.f32 %v2962, %v3236
      %v3294 = vadd.f32 %v2963, %v3239
      %v3295 = vadd.f32 %v2964, %v3241
      %v3296 = vadd.f32 %v2965, %v3244
      %v3297 = vadd.f32 %v2966, %v3246
      %v3298 = vadd.f32 %v2967, %v3249
      %v3299 = vadd.f32 %v2968, %v3251
      %v3300 = vadd.f32 %v2969, %v3254
      %v3301 = vadd.f32 %v2970, %v3256
      %v3302 = vadd.f32 %v2971, %v3259
      %v3303 = vadd.f32 %v2972, %v3261
      %v3304 = vadd.f32 %v2973, %v3264
      %v3305 = vadd.f32 %v2974, %v3266
      %v3306 = vadd.f32 %v2975, %v3269
      %v3307 = vadd.f32 %v2976, %v3271
      %v3308 = vadd.f32 %v2977, %v3274
      %v3309 = vadd.f32 %v2978, %v3276
      %v3311 = vshrl.u32 %v2980, 16
      %v3313 = vrot.slane %v3311, 4
      %v3314 = vshll.u32 %v2980, 16
      %v3316 = vrot.slane %v3314, 5
      %v3317 = vor.u32 %v3313, %v3316
      %v3318 = vrot.slane %v3317, 4
      %v3320 = vshll.u32 %v2981, 16
      %v3322 = vrot.slane %v3320, 5
      %v3323 = vsel %vm419, %v3318, %v3322
      %v3324 = vshrl.u32 %v2981, 16
      %v3326 = vrot.slane %v3324, 4
      %v3327 = vor.u32 %v3326, %v3322
      %v3328 = vrot.slane %v3327, 4
      %v3330 = vshll.u32 %v2982, 16
      %v3332 = vrot.slane %v3330, 5
      %v3333 = vsel %vm419, %v3328, %v3332
      %v3335 = vshrl.u32 %v2983, 16
      %v3337 = vrot.slane %v3335, 4
      %v3338 = vshll.u32 %v2983, 16
      %v3340 = vrot.slane %v3338, 5
      %v3341 = vor.u32 %v3337, %v3340
      %v3342 = vrot.slane %v3341, 4
      %v3344 = vshll.u32 %v2984, 16
      %v3346 = vrot.slane %v3344, 5
      %v3347 = vsel %vm419, %v3342, %v3346
      %v3348 = vshrl.u32 %v2984, 16
      %v3350 = vrot.slane %v3348, 4
      %v3351 = vor.u32 %v3350, %v3346
      %v3352 = vrot.slane %v3351, 4
      %v3354 = vshll.u32 %v2985, 16
      %v3356 = vrot.slane %v3354, 5
      %v3357 = vsel %vm419, %v3352, %v3356
      %v3359 = vshrl.u32 %v2986, 16
      %v3361 = vrot.slane %v3359, 4
      %v3362 = vshll.u32 %v2986, 16
      %v3364 = vrot.slane %v3362, 5
      %v3365 = vor.u32 %v3361, %v3364
      %v3366 = vrot.slane %v3365, 4
      %v3368 = vshll.u32 %v2987, 16
      %v3370 = vrot.slane %v3368, 5
      %v3371 = vsel %vm419, %v3366, %v3370
      %v3372 = vshrl.u32 %v2987, 16
      %v3374 = vrot.slane %v3372, 4
      %v3375 = vor.u32 %v3374, %v3370
      %v3376 = vrot.slane %v3375, 4
      %v3378 = vshll.u32 %v2988, 16
      %v3380 = vrot.slane %v3378, 5
      %v3381 = vsel %vm419, %v3376, %v3380
      %v3383 = vshrl.u32 %v2989, 16
      %v3385 = vrot.slane %v3383, 4
      %v3386 = vshll.u32 %v2989, 16
      %v3388 = vrot.slane %v3386, 5
      %v3389 = vor.u32 %v3385, %v3388
      %v3390 = vrot.slane %v3389, 4
      %v3392 = vshll.u32 %v2990, 16
      %v3394 = vrot.slane %v3392, 5
      %v3395 = vsel %vm419, %v3390, %v3394
      %v3396 = vshrl.u32 %v2990, 16
      %v3398 = vrot.slane %v3396, 4
      %v3399 = vor.u32 %v3398, %v3394
      %v3400 = vrot.slane %v3399, 4
      %v3402 = vshll.u32 %v2991, 16
      %v3404 = vrot.slane %v3402, 5
      %v3405 = vsel %vm419, %v3400, %v3404
      %v3407 = vshrl.u32 %v2992, 16
      %v3409 = vrot.slane %v3407, 4
      %v3410 = vshll.u32 %v2992, 16
      %v3412 = vrot.slane %v3410, 5
      %v3413 = vor.u32 %v3409, %v3412
      %v3414 = vrot.slane %v3413, 4
      %v3416 = vshll.u32 %v2993, 16
      %v3418 = vrot.slane %v3416, 5
      %v3419 = vsel %vm419, %v3414, %v3418
      %v3420 = vshrl.u32 %v2993, 16
      %v3422 = vrot.slane %v3420, 4
      %v3423 = vor.u32 %v3422, %v3418
      %v3424 = vrot.slane %v3423, 4
      %v3426 = vshll.u32 %v2994, 16
      %v3428 = vrot.slane %v3426, 5
      %v3429 = vsel %vm419, %v3424, %v3428
      %v3431 = vshrl.u32 %v2995, 16
      %v3433 = vrot.slane %v3431, 4
      %v3434 = vshll.u32 %v2995, 16
      %v3436 = vrot.slane %v3434, 5
      %v3437 = vor.u32 %v3433, %v3436
      %v3438 = vrot.slane %v3437, 4
      %v3440 = vshll.u32 %v2996, 16
      %v3442 = vrot.slane %v3440, 5
      %v3443 = vsel %vm419, %v3438, %v3442
      %v3444 = vshrl.u32 %v2996, 16
      %v3446 = vrot.slane %v3444, 4
      %v3447 = vor.u32 %v3446, %v3442
      %v3448 = vrot.slane %v3447, 4
      %v3450 = vshll.u32 %v2997, 16
      %v3452 = vrot.slane %v3450, 5
      %v3453 = vsel %vm419, %v3448, %v3452
      %v3455 = vshrl.u32 %v2998, 16
      %v3457 = vrot.slane %v3455, 4
      %v3458 = vshll.u32 %v2998, 16
      %v3460 = vrot.slane %v3458, 5
      %v3461 = vor.u32 %v3457, %v3460
      %v3462 = vrot.slane %v3461, 4
      %v3464 = vshll.u32 %v2999, 16
      %v3466 = vrot.slane %v3464, 5
      %v3467 = vsel %vm419, %v3462, %v3466
      %v3468 = vshrl.u32 %v2999, 16
      %v3470 = vrot.slane %v3468, 4
      %v3471 = vor.u32 %v3470, %v3466
      %v3472 = vrot.slane %v3471, 4
      %v3474 = vshll.u32 %v3000, 16
      %v3476 = vrot.slane %v3474, 5
      %v3477 = vsel %vm419, %v3472, %v3476
      %v3479 = vshrl.u32 %v3001, 16
      %v3481 = vrot.slane %v3479, 4
      %v3482 = vshll.u32 %v3001, 16
      %v3484 = vrot.slane %v3482, 5
      %v3485 = vor.u32 %v3481, %v3484
      %v3486 = vrot.slane %v3485, 4
      %v3488 = vshll.u32 %v3002, 16
      %v3490 = vrot.slane %v3488, 5
      %v3491 = vsel %vm419, %v3486, %v3490
      %v3492 = vshrl.u32 %v3002, 16
      %v3494 = vrot.slane %v3492, 4
      %v3495 = vor.u32 %v3494, %v3490
      %v3496 = vrot.slane %v3495, 4
      %v3498 = vshll.u32 %v3003, 16
      %v3500 = vrot.slane %v3498, 5
      %v3501 = vsel %vm419, %v3496, %v3500
      %v3503 = vshrl.u32 %v3004, 16
      %v3505 = vrot.slane %v3503, 4
      %v3506 = vshll.u32 %v3004, 16
      %v3508 = vrot.slane %v3506, 5
      %v3509 = vor.u32 %v3505, %v3508
      %v3510 = vrot.slane %v3509, 4
      %v3512 = vshll.u32 %v3005, 16
      %v3514 = vrot.slane %v3512, 5
      %v3515 = vsel %vm419, %v3510, %v3514
      %v3516 = vshrl.u32 %v3005, 16
      %v3518 = vrot.slane %v3516, 4
      %v3519 = vor.u32 %v3518, %v3514
      %v3520 = vrot.slane %v3519, 4
      %v3522 = vshll.u32 %v3006, 16
      %v3524 = vrot.slane %v3522, 5
      %v3525 = vsel %vm419, %v3520, %v3524
      %v3527 = vshrl.u32 %v3007, 16
      %v3529 = vrot.slane %v3527, 4
      %v3530 = vshll.u32 %v3007, 16
      %v3532 = vrot.slane %v3530, 5
      %v3533 = vor.u32 %v3529, %v3532
      %v3534 = vrot.slane %v3533, 4
      %v3536 = vshll.u32 %v3008, 16
      %v3538 = vrot.slane %v3536, 5
      %v3539 = vsel %vm419, %v3534, %v3538
      %v3540 = vshrl.u32 %v3008, 16
      %v3542 = vrot.slane %v3540, 4
      %v3543 = vor.u32 %v3542, %v3538
      %v3544 = vrot.slane %v3543, 4
      %v3546 = vshll.u32 %v3009, 16
      %v3548 = vrot.slane %v3546, 5
      %v3549 = vsel %vm419, %v3544, %v3548
      %v3551 = vshrl.u32 %v3010, 16
      %v3553 = vrot.slane %v3551, 4
      %v3554 = vshll.u32 %v3010, 16
      %v3556 = vrot.slane %v3554, 5
      %v3557 = vor.u32 %v3553, %v3556
      %v3558 = vrot.slane %v3557, 4
      %v3560 = vshll.u32 %v3011, 16
      %v3562 = vrot.slane %v3560, 5
      %v3563 = vsel %vm419, %v3558, %v3562
      %v3564 = vshrl.u32 %v3011, 16
      %v3566 = vrot.slane %v3564, 4
      %v3567 = vor.u32 %v3566, %v3562
      %v3568 = vrot.slane %v3567, 4
      %v3570 = vshll.u32 %v3012, 16
      %v3572 = vrot.slane %v3570, 5
      %v3573 = vsel %vm419, %v3568, %v3572
      %v3575 = vshrl.u32 %v3013, 16
      %v3577 = vrot.slane %v3575, 4
      %v3578 = vshll.u32 %v3013, 16
      %v3580 = vrot.slane %v3578, 5
      %v3581 = vor.u32 %v3577, %v3580
      %v3582 = vrot.slane %v3581, 4
      %v3584 = vshll.u32 %v3014, 16
      %v3586 = vrot.slane %v3584, 5
      %v3587 = vsel %vm419, %v3582, %v3586
      %v3588 = vshrl.u32 %v3014, 16
      %v3590 = vrot.slane %v3588, 4
      %v3591 = vor.u32 %v3590, %v3586
      %v3592 = vrot.slane %v3591, 4
      %v3594 = vshll.u32 %v3015, 16
      %v3596 = vrot.slane %v3594, 5
      %v3597 = vsel %vm419, %v3592, %v3596
      %v3599 = vshrl.u32 %v3016, 16
      %v3601 = vrot.slane %v3599, 4
      %v3602 = vshll.u32 %v3016, 16
      %v3604 = vrot.slane %v3602, 5
      %v3605 = vor.u32 %v3601, %v3604
      %v3606 = vrot.slane %v3605, 4
      %v3608 = vshll.u32 %v3017, 16
      %v3610 = vrot.slane %v3608, 5
      %v3611 = vsel %vm419, %v3606, %v3610
      %v3612 = vshrl.u32 %v3017, 16
      %v3614 = vrot.slane %v3612, 4
      %v3615 = vor.u32 %v3614, %v3610
      %v3616 = vrot.slane %v3615, 4
      %v3618 = vshll.u32 %v3018, 16
      %v3620 = vrot.slane %v3618, 5
      %v3621 = vsel %vm419, %v3616, %v3620
      %v3623 = vshrl.u32 %v3019, 16
      %v3625 = vrot.slane %v3623, 4
      %v3626 = vshll.u32 %v3019, 16
      %v3628 = vrot.slane %v3626, 5
      %v3629 = vor.u32 %v3625, %v3628
      %v3630 = vrot.slane %v3629, 4
      %v3632 = vshll.u32 %v3020, 16
      %v3634 = vrot.slane %v3632, 5
      %v3635 = vsel %vm419, %v3630, %v3634
      %v3636 = vshrl.u32 %v3020, 16
      %v3638 = vrot.slane %v3636, 4
      %v3639 = vor.u32 %v3638, %v3634
      %v3640 = vrot.slane %v3639, 4
      %v3642 = vshll.u32 %v3021, 16
      %v3644 = vrot.slane %v3642, 5
      %v3645 = vsel %vm419, %v3640, %v3644
      %v3647 = vshrl.u32 %v3022, 16
      %v3649 = vrot.slane %v3647, 4
      %v3650 = vshll.u32 %v3022, 16
      %v3652 = vrot.slane %v3650, 5
      %v3653 = vor.u32 %v3649, %v3652
      %v3654 = vrot.slane %v3653, 4
      %v3656 = vshll.u32 %v3023, 16
      %v3658 = vrot.slane %v3656, 5
      %v3659 = vsel %vm419, %v3654, %v3658
      %v3660 = vshrl.u32 %v3023, 16
      %v3662 = vrot.slane %v3660, 4
      %v3663 = vor.u32 %v3662, %v3658
      %v3664 = vrot.slane %v3663, 4
      %v3666 = vshll.u32 %v3024, 16
      %v3668 = vrot.slane %v3666, 5
      %v3669 = vsel %vm419, %v3664, %v3668
      %v3671 = vshrl.u32 %v3025, 16
      %v3673 = vrot.slane %v3671, 4
      %v3674 = vshll.u32 %v3025, 16
      %v3676 = vrot.slane %v3674, 5
      %v3677 = vor.u32 %v3673, %v3676
      %v3678 = vrot.slane %v3677, 4
      %v3680 = vshll.u32 %v3026, 16
      %v3682 = vrot.slane %v3680, 5
      %v3683 = vsel %vm419, %v3678, %v3682
      %v3684 = vshrl.u32 %v3026, 16
      %v3686 = vrot.slane %v3684, 4
      %v3687 = vor.u32 %v3686, %v3682
      %v3688 = vrot.slane %v3687, 4
      %v3690 = vshll.u32 %v3027, 16
      %v3692 = vrot.slane %v3690, 5
      %v3693 = vsel %vm419, %v3688, %v3692
      %s3694 = scalar_lea.vmem %s296, 448
      %v3695 = vld [vmem:[%s3694] sm:$0xf]
      %v3696 = vld [vmem:[%s3694 + $0x4] sm:$0xf]
      %v3697 = vld [vmem:[%s3694 + $0x8] sm:$0xf]
      %v3698 = vld [vmem:[%s3694 + $0xc] sm:$0xf]
      %v3699 = vld [vmem:[%s3694 + $0x10] sm:$0xf]
      %v3700 = vld [vmem:[%s3694 + $0x14] sm:$0xf]
      %v3701 = vld [vmem:[%s3694 + $0x18] sm:$0xf]
      %v3702 = vld [vmem:[%s3694 + $0x1c] sm:$0xf]
      %v3703 = vld [vmem:[%s3694 + $0x20] sm:$0xf]
      %v3704 = vld [vmem:[%s3694 + $0x24] sm:$0xf]
      %v3705 = vld [vmem:[%s3694 + $0x28] sm:$0xf]
      %v3706 = vld [vmem:[%s3694 + $0x2c] sm:$0xf]
      %v3707 = vld [vmem:[%s3694 + $0x30] sm:$0xf]
      %v3708 = vld [vmem:[%s3694 + $0x34] sm:$0xf]
      %v3709 = vld [vmem:[%s3694 + $0x38] sm:$0xf]
      %v3710 = vld [vmem:[%s3694 + $0x3c] sm:$0xf]
      %v3711 = vunpack.c.l.b16 %v3323
      %v3712 = vunpack.c.l.b16 %v3333
      %v3713 = vunpack.c.l.b16 %v3347
      %v3714 = vunpack.c.l.b16 %v3357
      %v3715 = vunpack.c.l.b16 %v3371
      %v3716 = vunpack.c.l.b16 %v3381
      %v3717 = vunpack.c.l.b16 %v3395
      %v3718 = vunpack.c.l.b16 %v3405
      %v3719 = vunpack.c.l.b16 %v3419
      %v3720 = vunpack.c.l.b16 %v3429
      %v3721 = vunpack.c.l.b16 %v3443
      %v3722 = vunpack.c.l.b16 %v3453
      %v3723 = vunpack.c.l.b16 %v3467
      %v3724 = vunpack.c.l.b16 %v3477
      %v3725 = vunpack.c.l.b16 %v3491
      %v3726 = vunpack.c.l.b16 %v3501
      %v3727 = vunpack.c.l.b16 %v3515
      %v3728 = vunpack.c.l.b16 %v3525
      %v3729 = vunpack.c.l.b16 %v3539
      %v3730 = vunpack.c.l.b16 %v3549
      %v3731 = vunpack.c.l.b16 %v3563
      %v3732 = vunpack.c.l.b16 %v3573
      %v3733 = vunpack.c.l.b16 %v3587
      %v3734 = vunpack.c.l.b16 %v3597
      %v3735 = vunpack.c.l.b16 %v3611
      %v3736 = vunpack.c.l.b16 %v3621
      %v3737 = vunpack.c.l.b16 %v3635
      %v3738 = vunpack.c.l.b16 %v3645
      %v3739 = vunpack.c.l.b16 %v3659
      %v3740 = vunpack.c.l.b16 %v3669
      %v3741 = vunpack.c.l.b16 %v3683
      %v3742 = vunpack.c.l.b16 %v3693
      %v3743 = vpack.c.b16 %v3712, %v3711
      %v3744 = vpack.c.b16 %v3714, %v3713
      %v3745 = vpack.c.b16 %v3716, %v3715
      %v3746 = vpack.c.b16 %v3718, %v3717
      %v3747 = vpack.c.b16 %v3720, %v3719
      %v3748 = vpack.c.b16 %v3722, %v3721
      %v3749 = vpack.c.b16 %v3724, %v3723
      %v3750 = vpack.c.b16 %v3726, %v3725
      %v3751 = vpack.c.b16 %v3728, %v3727
      %v3752 = vpack.c.b16 %v3730, %v3729
      %v3753 = vpack.c.b16 %v3732, %v3731
      %v3754 = vpack.c.b16 %v3734, %v3733
      %v3755 = vpack.c.b16 %v3736, %v3735
      %v3756 = vpack.c.b16 %v3738, %v3737
      %v3757 = vpack.c.b16 %v3740, %v3739
      %v3758 = vpack.c.b16 %v3742, %v3741
      %v3791 = vunpack.c.l.b16 %v3695
      %v3792 = vunpack.c.l.b16 %v3696
      %v3793 = vunpack.c.l.b16 %v3697
      %v3794 = vunpack.c.l.b16 %v3698
      %v3795 = vunpack.c.l.b16 %v3699
      %v3796 = vunpack.c.l.b16 %v3700
      %v3797 = vunpack.c.l.b16 %v3701
      %v3798 = vunpack.c.l.b16 %v3702
      %v3799 = vunpack.c.l.b16 %v3703
      %v3800 = vunpack.c.l.b16 %v3704
      %v3801 = vunpack.c.l.b16 %v3705
      %v3802 = vunpack.c.l.b16 %v3706
      %v3803 = vunpack.c.l.b16 %v3707
      %v3804 = vunpack.c.l.b16 %v3708
      %v3805 = vunpack.c.l.b16 %v3709
      %v3806 = vunpack.c.l.b16 %v3710
      %v3807 = vpack.c.b16 %v3792, %v3791
      %v3808 = vpack.c.b16 %v3794, %v3793
      %v3809 = vpack.c.b16 %v3796, %v3795
      %v3810 = vpack.c.b16 %v3798, %v3797
      %v3811 = vpack.c.b16 %v3800, %v3799
      %v3812 = vpack.c.b16 %v3802, %v3801
      %v3813 = vpack.c.b16 %v3804, %v3803
      %v3814 = vpack.c.b16 %v3806, %v3805
      %3823 = vmatpush.bf16.msra.mxu0 %v3814
      %3824 = vmatpush.bf16.msra.mxu0 %v3813
      %3825 = vmatpush.bf16.msra.mxu0 %v3812
      %3826 = vmatpush.bf16.msra.mxu0 %v3811
      %3827 = vmatpush.bf16.msra.mxu0 %v3810
      %3828 = vmatpush.bf16.msra.mxu0 %v3809
      %3829 = vmatpush.bf16.msra.mxu0 %v3808
      %3830 = vmatpush.bf16.msra.mxu0 %v3807
      %3831 = vmatmul.bf16.gmra.mxu0 %v3743
      %v3832 = vpop.f32.mrf.mxu0
      %v3833 = vadd.f32 0.0, %v3832
      %v3834 = vpop.f32.mrf.mxu0
      %v3835 = vadd.f32 0.0, %v3834
      %3836 = vmatmul.bf16.gmra.mxu0 %v3744
      %v3837 = vpop.f32.mrf.mxu0
      %v3838 = vadd.f32 0.0, %v3837
      %v3839 = vpop.f32.mrf.mxu0
      %v3840 = vadd.f32 0.0, %v3839
      %3841 = vmatmul.bf16.gmra.mxu0 %v3745
      %v3842 = vpop.f32.mrf.mxu0
      %v3843 = vadd.f32 0.0, %v3842
      %v3844 = vpop.f32.mrf.mxu0
      %v3845 = vadd.f32 0.0, %v3844
      %3846 = vmatmul.bf16.gmra.mxu0 %v3746
      %v3847 = vpop.f32.mrf.mxu0
      %v3848 = vadd.f32 0.0, %v3847
      %v3849 = vpop.f32.mrf.mxu0
      %v3850 = vadd.f32 0.0, %v3849
      %3851 = vmatmul.bf16.gmra.mxu0 %v3747
      %v3852 = vpop.f32.mrf.mxu0
      %v3853 = vadd.f32 0.0, %v3852
      %v3854 = vpop.f32.mrf.mxu0
      %v3855 = vadd.f32 0.0, %v3854
      %3856 = vmatmul.bf16.gmra.mxu0 %v3748
      %v3857 = vpop.f32.mrf.mxu0
      %v3858 = vadd.f32 0.0, %v3857
      %v3859 = vpop.f32.mrf.mxu0
      %v3860 = vadd.f32 0.0, %v3859
      %3861 = vmatmul.bf16.gmra.mxu0 %v3749
      %v3862 = vpop.f32.mrf.mxu0
      %v3863 = vadd.f32 0.0, %v3862
      %v3864 = vpop.f32.mrf.mxu0
      %v3865 = vadd.f32 0.0, %v3864
      %3866 = vmatmul.bf16.gmra.mxu0 %v3750
      %v3867 = vpop.f32.mrf.mxu0
      %v3868 = vadd.f32 0.0, %v3867
      %v3869 = vpop.f32.mrf.mxu0
      %v3870 = vadd.f32 0.0, %v3869
      %3871 = vmatmul.bf16.gmra.mxu0 %v3751
      %v3872 = vpop.f32.mrf.mxu0
      %v3873 = vadd.f32 0.0, %v3872
      %v3874 = vpop.f32.mrf.mxu0
      %v3875 = vadd.f32 0.0, %v3874
      %3876 = vmatmul.bf16.gmra.mxu0 %v3752
      %v3877 = vpop.f32.mrf.mxu0
      %v3878 = vadd.f32 0.0, %v3877
      %v3879 = vpop.f32.mrf.mxu0
      %v3880 = vadd.f32 0.0, %v3879
      %3881 = vmatmul.bf16.gmra.mxu0 %v3753
      %v3882 = vpop.f32.mrf.mxu0
      %v3883 = vadd.f32 0.0, %v3882
      %v3884 = vpop.f32.mrf.mxu0
      %v3885 = vadd.f32 0.0, %v3884
      %3886 = vmatmul.bf16.gmra.mxu0 %v3754
      %v3887 = vpop.f32.mrf.mxu0
      %v3888 = vadd.f32 0.0, %v3887
      %v3889 = vpop.f32.mrf.mxu0
      %v3890 = vadd.f32 0.0, %v3889
      %3891 = vmatmul.bf16.gmra.mxu0 %v3755
      %v3892 = vpop.f32.mrf.mxu0
      %v3893 = vadd.f32 0.0, %v3892
      %v3894 = vpop.f32.mrf.mxu0
      %v3895 = vadd.f32 0.0, %v3894
      %3896 = vmatmul.bf16.gmra.mxu0 %v3756
      %v3897 = vpop.f32.mrf.mxu0
      %v3898 = vadd.f32 0.0, %v3897
      %v3899 = vpop.f32.mrf.mxu0
      %v3900 = vadd.f32 0.0, %v3899
      %3901 = vmatmul.bf16.gmra.mxu0 %v3757
      %v3902 = vpop.f32.mrf.mxu0
      %v3903 = vadd.f32 0.0, %v3902
      %v3904 = vpop.f32.mrf.mxu0
      %v3905 = vadd.f32 0.0, %v3904
      %3906 = vmatmul.bf16.gmra.mxu0 %v3758
      %v3907 = vpop.f32.mrf.mxu0
      %v3908 = vadd.f32 0.0, %v3907
      %v3909 = vpop.f32.mrf.mxu0
      %v3910 = vadd.f32 0.0, %v3909
      %3911 = vdwg.mxu0
      %v3912 = vadd.f32 %v3278, %v3833
      %v3913 = vadd.f32 %v3279, %v3835
      %v3914 = vadd.f32 %v3280, %v3838
      %v3915 = vadd.f32 %v3281, %v3840
      %v3916 = vadd.f32 %v3282, %v3843
      %v3917 = vadd.f32 %v3283, %v3845
      %v3918 = vadd.f32 %v3284, %v3848
      %v3919 = vadd.f32 %v3285, %v3850
      %v3920 = vadd.f32 %v3286, %v3853
      %v3921 = vadd.f32 %v3287, %v3855
      %v3922 = vadd.f32 %v3288, %v3858
      %v3923 = vadd.f32 %v3289, %v3860
      %v3924 = vadd.f32 %v3290, %v3863
      %v3925 = vadd.f32 %v3291, %v3865
      %v3926 = vadd.f32 %v3292, %v3868
      %v3927 = vadd.f32 %v3293, %v3870
      %v3928 = vadd.f32 %v3294, %v3873
      %v3929 = vadd.f32 %v3295, %v3875
      %v3930 = vadd.f32 %v3296, %v3878
      %v3931 = vadd.f32 %v3297, %v3880
      %v3932 = vadd.f32 %v3298, %v3883
      %v3933 = vadd.f32 %v3299, %v3885
      %v3934 = vadd.f32 %v3300, %v3888
      %v3935 = vadd.f32 %v3301, %v3890
      %v3936 = vadd.f32 %v3302, %v3893
      %v3937 = vadd.f32 %v3303, %v3895
      %v3938 = vadd.f32 %v3304, %v3898
      %v3939 = vadd.f32 %v3305, %v3900
      %v3940 = vadd.f32 %v3306, %v3903
      %v3941 = vadd.f32 %v3307, %v3905
      %v3942 = vadd.f32 %v3308, %v3908
      %v3943 = vadd.f32 %v3309, %v3910
      %v3960 = vrot.slane %v2980, 5
      %v3961 = vrot.slane %v3960, 4
      %v3962 = vrot.slane %v2981, 5
      %v3963 = vsel %vm1273, %v3961, %v3962
      %v3964 = vrot.slane %v3962, 4
      %v3965 = vrot.slane %v2982, 5
      %v3966 = vsel %vm1273, %v3964, %v3965
      %v3967 = vrot.slane %v2983, 5
      %v3968 = vrot.slane %v3967, 4
      %v3969 = vrot.slane %v2984, 5
      %v3970 = vsel %vm1273, %v3968, %v3969
      %v3971 = vrot.slane %v3969, 4
      %v3972 = vrot.slane %v2985, 5
      %v3973 = vsel %vm1273, %v3971, %v3972
      %v3974 = vrot.slane %v2986, 5
      %v3975 = vrot.slane %v3974, 4
      %v3976 = vrot.slane %v2987, 5
      %v3977 = vsel %vm1273, %v3975, %v3976
      %v3978 = vrot.slane %v3976, 4
      %v3979 = vrot.slane %v2988, 5
      %v3980 = vsel %vm1273, %v3978, %v3979
      %v3981 = vrot.slane %v2989, 5
      %v3982 = vrot.slane %v3981, 4
      %v3983 = vrot.slane %v2990, 5
      %v3984 = vsel %vm1273, %v3982, %v3983
      %v3985 = vrot.slane %v3983, 4
      %v3986 = vrot.slane %v2991, 5
      %v3987 = vsel %vm1273, %v3985, %v3986
      %v3988 = vrot.slane %v2992, 5
      %v3989 = vrot.slane %v3988, 4
      %v3990 = vrot.slane %v2993, 5
      %v3991 = vsel %vm1273, %v3989, %v3990
      %v3992 = vrot.slane %v3990, 4
      %v3993 = vrot.slane %v2994, 5
      %v3994 = vsel %vm1273, %v3992, %v3993
      %v3995 = vrot.slane %v2995, 5
      %v3996 = vrot.slane %v3995, 4
      %v3997 = vrot.slane %v2996, 5
      %v3998 = vsel %vm1273, %v3996, %v3997
      %v3999 = vrot.slane %v3997, 4
      %v4000 = vrot.slane %v2997, 5
      %v4001 = vsel %vm1273, %v3999, %v4000
      %v4002 = vrot.slane %v2998, 5
      %v4003 = vrot.slane %v4002, 4
      %v4004 = vrot.slane %v2999, 5
      %v4005 = vsel %vm1273, %v4003, %v4004
      %v4006 = vrot.slane %v4004, 4
      %v4007 = vrot.slane %v3000, 5
      %v4008 = vsel %vm1273, %v4006, %v4007
      %v4009 = vrot.slane %v3001, 5
      %v4010 = vrot.slane %v4009, 4
      %v4011 = vrot.slane %v3002, 5
      %v4012 = vsel %vm1273, %v4010, %v4011
      %v4013 = vrot.slane %v4011, 4
      %v4014 = vrot.slane %v3003, 5
      %v4015 = vsel %vm1273, %v4013, %v4014
      %v4016 = vrot.slane %v3004, 5
      %v4017 = vrot.slane %v4016, 4
      %v4018 = vrot.slane %v3005, 5
      %v4019 = vsel %vm1273, %v4017, %v4018
      %v4020 = vrot.slane %v4018, 4
      %v4021 = vrot.slane %v3006, 5
      %v4022 = vsel %vm1273, %v4020, %v4021
      %v4023 = vrot.slane %v3007, 5
      %v4024 = vrot.slane %v4023, 4
      %v4025 = vrot.slane %v3008, 5
      %v4026 = vsel %vm1273, %v4024, %v4025
      %v4027 = vrot.slane %v4025, 4
      %v4028 = vrot.slane %v3009, 5
      %v4029 = vsel %vm1273, %v4027, %v4028
      %v4030 = vrot.slane %v3010, 5
      %v4031 = vrot.slane %v4030, 4
      %v4032 = vrot.slane %v3011, 5
      %v4033 = vsel %vm1273, %v4031, %v4032
      %v4034 = vrot.slane %v4032, 4
      %v4035 = vrot.slane %v3012, 5
      %v4036 = vsel %vm1273, %v4034, %v4035
      %v4037 = vrot.slane %v3013, 5
      %v4038 = vrot.slane %v4037, 4
      %v4039 = vrot.slane %v3014, 5
      %v4040 = vsel %vm1273, %v4038, %v4039
      %v4041 = vrot.slane %v4039, 4
      %v4042 = vrot.slane %v3015, 5
      %v4043 = vsel %vm1273, %v4041, %v4042
      %v4044 = vrot.slane %v3016, 5
      %v4045 = vrot.slane %v4044, 4
      %v4046 = vrot.slane %v3017, 5
      %v4047 = vsel %vm1273, %v4045, %v4046
      %v4048 = vrot.slane %v4046, 4
      %v4049 = vrot.slane %v3018, 5
      %v4050 = vsel %vm1273, %v4048, %v4049
      %v4051 = vrot.slane %v3019, 5
      %v4052 = vrot.slane %v4051, 4
      %v4053 = vrot.slane %v3020, 5
      %v4054 = vsel %vm1273, %v4052, %v4053
      %v4055 = vrot.slane %v4053, 4
      %v4056 = vrot.slane %v3021, 5
      %v4057 = vsel %vm1273, %v4055, %v4056
      %v4058 = vrot.slane %v3022, 5
      %v4059 = vrot.slane %v4058, 4
      %v4060 = vrot.slane %v3023, 5
      %v4061 = vsel %vm1273, %v4059, %v4060
      %v4062 = vrot.slane %v4060, 4
      %v4063 = vrot.slane %v3024, 5
      %v4064 = vsel %vm1273, %v4062, %v4063
      %v4065 = vrot.slane %v3025, 5
      %v4066 = vrot.slane %v4065, 4
      %v4067 = vrot.slane %v3026, 5
      %v4068 = vsel %vm1273, %v4066, %v4067
      %v4069 = vrot.slane %v4067, 4
      %v4070 = vrot.slane %v3027, 5
      %v4071 = vsel %vm1273, %v4069, %v4070
      %s4072 = scalar_lea.vmem %s296, 512
      %v4073 = vld [vmem:[%s4072] sm:$0xf]
      %v4074 = vld [vmem:[%s4072 + $0x4] sm:$0xf]
      %v4075 = vld [vmem:[%s4072 + $0x8] sm:$0xf]
      %v4076 = vld [vmem:[%s4072 + $0xc] sm:$0xf]
      %v4077 = vld [vmem:[%s4072 + $0x10] sm:$0xf]
      %v4078 = vld [vmem:[%s4072 + $0x14] sm:$0xf]
      %v4079 = vld [vmem:[%s4072 + $0x18] sm:$0xf]
      %v4080 = vld [vmem:[%s4072 + $0x1c] sm:$0xf]
      %v4081 = vld [vmem:[%s4072 + $0x20] sm:$0xf]
      %v4082 = vld [vmem:[%s4072 + $0x24] sm:$0xf]
      %v4083 = vld [vmem:[%s4072 + $0x28] sm:$0xf]
      %v4084 = vld [vmem:[%s4072 + $0x2c] sm:$0xf]
      %v4085 = vld [vmem:[%s4072 + $0x30] sm:$0xf]
      %v4086 = vld [vmem:[%s4072 + $0x34] sm:$0xf]
      %v4087 = vld [vmem:[%s4072 + $0x38] sm:$0xf]
      %v4088 = vld [vmem:[%s4072 + $0x3c] sm:$0xf]
      %v4089 = vunpack.c.l.b16 %v3963
      %v4090 = vunpack.c.l.b16 %v3966
      %v4091 = vunpack.c.l.b16 %v3970
      %v4092 = vunpack.c.l.b16 %v3973
      %v4093 = vunpack.c.l.b16 %v3977
      %v4094 = vunpack.c.l.b16 %v3980
      %v4095 = vunpack.c.l.b16 %v3984
      %v4096 = vunpack.c.l.b16 %v3987
      %v4097 = vunpack.c.l.b16 %v3991
      %v4098 = vunpack.c.l.b16 %v3994
      %v4099 = vunpack.c.l.b16 %v3998
      %v4100 = vunpack.c.l.b16 %v4001
      %v4101 = vunpack.c.l.b16 %v4005
      %v4102 = vunpack.c.l.b16 %v4008
      %v4103 = vunpack.c.l.b16 %v4012
      %v4104 = vunpack.c.l.b16 %v4015
      %v4105 = vunpack.c.l.b16 %v4019
      %v4106 = vunpack.c.l.b16 %v4022
      %v4107 = vunpack.c.l.b16 %v4026
      %v4108 = vunpack.c.l.b16 %v4029
      %v4109 = vunpack.c.l.b16 %v4033
      %v4110 = vunpack.c.l.b16 %v4036
      %v4111 = vunpack.c.l.b16 %v4040
      %v4112 = vunpack.c.l.b16 %v4043
      %v4113 = vunpack.c.l.b16 %v4047
      %v4114 = vunpack.c.l.b16 %v4050
      %v4115 = vunpack.c.l.b16 %v4054
      %v4116 = vunpack.c.l.b16 %v4057
      %v4117 = vunpack.c.l.b16 %v4061
      %v4118 = vunpack.c.l.b16 %v4064
      %v4119 = vunpack.c.l.b16 %v4068
      %v4120 = vunpack.c.l.b16 %v4071
      %v4121 = vpack.c.b16 %v4090, %v4089
      %v4122 = vpack.c.b16 %v4092, %v4091
      %v4123 = vpack.c.b16 %v4094, %v4093
      %v4124 = vpack.c.b16 %v4096, %v4095
      %v4125 = vpack.c.b16 %v4098, %v4097
      %v4126 = vpack.c.b16 %v4100, %v4099
      %v4127 = vpack.c.b16 %v4102, %v4101
      %v4128 = vpack.c.b16 %v4104, %v4103
      %v4129 = vpack.c.b16 %v4106, %v4105
      %v4130 = vpack.c.b16 %v4108, %v4107
      %v4131 = vpack.c.b16 %v4110, %v4109
      %v4132 = vpack.c.b16 %v4112, %v4111
      %v4133 = vpack.c.b16 %v4114, %v4113
      %v4134 = vpack.c.b16 %v4116, %v4115
      %v4135 = vpack.c.b16 %v4118, %v4117
      %v4136 = vpack.c.b16 %v4120, %v4119
      %v4169 = vunpack.c.l.b16 %v4073
      %v4170 = vunpack.c.l.b16 %v4074
      %v4171 = vunpack.c.l.b16 %v4075
      %v4172 = vunpack.c.l.b16 %v4076
      %v4173 = vunpack.c.l.b16 %v4077
      %v4174 = vunpack.c.l.b16 %v4078
      %v4175 = vunpack.c.l.b16 %v4079
      %v4176 = vunpack.c.l.b16 %v4080
      %v4177 = vunpack.c.l.b16 %v4081
      %v4178 = vunpack.c.l.b16 %v4082
      %v4179 = vunpack.c.l.b16 %v4083
      %v4180 = vunpack.c.l.b16 %v4084
      %v4181 = vunpack.c.l.b16 %v4085
      %v4182 = vunpack.c.l.b16 %v4086
      %v4183 = vunpack.c.l.b16 %v4087
      %v4184 = vunpack.c.l.b16 %v4088
      %v4185 = vpack.c.b16 %v4170, %v4169
      %v4186 = vpack.c.b16 %v4172, %v4171
      %v4187 = vpack.c.b16 %v4174, %v4173
      %v4188 = vpack.c.b16 %v4176, %v4175
      %v4189 = vpack.c.b16 %v4178, %v4177
      %v4190 = vpack.c.b16 %v4180, %v4179
      %v4191 = vpack.c.b16 %v4182, %v4181
      %v4192 = vpack.c.b16 %v4184, %v4183
      %4201 = vmatpush.bf16.msra.mxu0 %v4192
      %4202 = vmatpush.bf16.msra.mxu0 %v4191
      %4203 = vmatpush.bf16.msra.mxu0 %v4190
      %4204 = vmatpush.bf16.msra.mxu0 %v4189
      %4205 = vmatpush.bf16.msra.mxu0 %v4188
      %4206 = vmatpush.bf16.msra.mxu0 %v4187
      %4207 = vmatpush.bf16.msra.mxu0 %v4186
      %4208 = vmatpush.bf16.msra.mxu0 %v4185
      %4209 = vmatmul.bf16.gmra.mxu0 %v4121
      %v4210 = vpop.f32.mrf.mxu0
      %v4211 = vadd.f32 0.0, %v4210
      %v4212 = vpop.f32.mrf.mxu0
      %v4213 = vadd.f32 0.0, %v4212
      %4214 = vmatmul.bf16.gmra.mxu0 %v4122
      %v4215 = vpop.f32.mrf.mxu0
      %v4216 = vadd.f32 0.0, %v4215
      %v4217 = vpop.f32.mrf.mxu0
      %v4218 = vadd.f32 0.0, %v4217
      %4219 = vmatmul.bf16.gmra.mxu0 %v4123
      %v4220 = vpop.f32.mrf.mxu0
      %v4221 = vadd.f32 0.0, %v4220
      %v4222 = vpop.f32.mrf.mxu0
      %v4223 = vadd.f32 0.0, %v4222
      %4224 = vmatmul.bf16.gmra.mxu0 %v4124
      %v4225 = vpop.f32.mrf.mxu0
      %v4226 = vadd.f32 0.0, %v4225
      %v4227 = vpop.f32.mrf.mxu0
      %v4228 = vadd.f32 0.0, %v4227
      %4229 = vmatmul.bf16.gmra.mxu0 %v4125
      %v4230 = vpop.f32.mrf.mxu0
      %v4231 = vadd.f32 0.0, %v4230
      %v4232 = vpop.f32.mrf.mxu0
      %v4233 = vadd.f32 0.0, %v4232
      %4234 = vmatmul.bf16.gmra.mxu0 %v4126
      %v4235 = vpop.f32.mrf.mxu0
      %v4236 = vadd.f32 0.0, %v4235
      %v4237 = vpop.f32.mrf.mxu0
      %v4238 = vadd.f32 0.0, %v4237
      %4239 = vmatmul.bf16.gmra.mxu0 %v4127
      %v4240 = vpop.f32.mrf.mxu0
      %v4241 = vadd.f32 0.0, %v4240
      %v4242 = vpop.f32.mrf.mxu0
      %v4243 = vadd.f32 0.0, %v4242
      %4244 = vmatmul.bf16.gmra.mxu0 %v4128
      %v4245 = vpop.f32.mrf.mxu0
      %v4246 = vadd.f32 0.0, %v4245
      %v4247 = vpop.f32.mrf.mxu0
      %v4248 = vadd.f32 0.0, %v4247
      %4249 = vmatmul.bf16.gmra.mxu0 %v4129
      %v4250 = vpop.f32.mrf.mxu0
      %v4251 = vadd.f32 0.0, %v4250
      %v4252 = vpop.f32.mrf.mxu0
      %v4253 = vadd.f32 0.0, %v4252
      %4254 = vmatmul.bf16.gmra.mxu0 %v4130
      %v4255 = vpop.f32.mrf.mxu0
      %v4256 = vadd.f32 0.0, %v4255
      %v4257 = vpop.f32.mrf.mxu0
      %v4258 = vadd.f32 0.0, %v4257
      %4259 = vmatmul.bf16.gmra.mxu0 %v4131
      %v4260 = vpop.f32.mrf.mxu0
      %v4261 = vadd.f32 0.0, %v4260
      %v4262 = vpop.f32.mrf.mxu0
      %v4263 = vadd.f32 0.0, %v4262
      %4264 = vmatmul.bf16.gmra.mxu0 %v4132
      %v4265 = vpop.f32.mrf.mxu0
      %v4266 = vadd.f32 0.0, %v4265
      %v4267 = vpop.f32.mrf.mxu0
      %v4268 = vadd.f32 0.0, %v4267
      %4269 = vmatmul.bf16.gmra.mxu0 %v4133
      %v4270 = vpop.f32.mrf.mxu0
      %v4271 = vadd.f32 0.0, %v4270
      %v4272 = vpop.f32.mrf.mxu0
      %v4273 = vadd.f32 0.0, %v4272
      %4274 = vmatmul.bf16.gmra.mxu0 %v4134
      %v4275 = vpop.f32.mrf.mxu0
      %v4276 = vadd.f32 0.0, %v4275
      %v4277 = vpop.f32.mrf.mxu0
      %v4278 = vadd.f32 0.0, %v4277
      %4279 = vmatmul.bf16.gmra.mxu0 %v4135
      %v4280 = vpop.f32.mrf.mxu0
      %v4281 = vadd.f32 0.0, %v4280
      %v4282 = vpop.f32.mrf.mxu0
      %v4283 = vadd.f32 0.0, %v4282
      %4284 = vmatmul.bf16.gmra.mxu0 %v4136
      %v4285 = vpop.f32.mrf.mxu0
      %v4286 = vadd.f32 0.0, %v4285
      %v4287 = vpop.f32.mrf.mxu0
      %v4288 = vadd.f32 0.0, %v4287
      %4289 = vdwg.mxu0
      %v4290 = vadd.f32 %v3912, %v4211
      %v4291 = vadd.f32 %v3913, %v4213
      %v4292 = vadd.f32 %v3914, %v4216
      %v4293 = vadd.f32 %v3915, %v4218
      %v4294 = vadd.f32 %v3916, %v4221
      %v4295 = vadd.f32 %v3917, %v4223
      %v4296 = vadd.f32 %v3918, %v4226
      %v4297 = vadd.f32 %v3919, %v4228
      %v4298 = vadd.f32 %v3920, %v4231
      %v4299 = vadd.f32 %v3921, %v4233
      %v4300 = vadd.f32 %v3922, %v4236
      %v4301 = vadd.f32 %v3923, %v4238
      %v4302 = vadd.f32 %v3924, %v4241
      %v4303 = vadd.f32 %v3925, %v4243
      %v4304 = vadd.f32 %v3926, %v4246
      %v4305 = vadd.f32 %v3927, %v4248
      %v4306 = vadd.f32 %v3928, %v4251
      %v4307 = vadd.f32 %v3929, %v4253
      %v4308 = vadd.f32 %v3930, %v4256
      %v4309 = vadd.f32 %v3931, %v4258
      %v4310 = vadd.f32 %v3932, %v4261
      %v4311 = vadd.f32 %v3933, %v4263
      %v4312 = vadd.f32 %v3934, %v4266
      %v4313 = vadd.f32 %v3935, %v4268
      %v4314 = vadd.f32 %v3936, %v4271
      %v4315 = vadd.f32 %v3937, %v4273
      %v4316 = vadd.f32 %v3938, %v4276
      %v4317 = vadd.f32 %v3939, %v4278
      %v4318 = vadd.f32 %v3940, %v4281
      %v4319 = vadd.f32 %v3941, %v4283
      %v4320 = vadd.f32 %v3942, %v4286
      %v4321 = vadd.f32 %v3943, %v4288
      %v4322 = vld [vmem:[#allocation2] sm:$0xff]
      %v4323 = vld [vmem:[#allocation2 + $0x8] sm:$0xff]
      %v4324 = vld [vmem:[#allocation2 + $0x10] sm:$0xff]
      %v4325 = vld [vmem:[#allocation2 + $0x18] sm:$0xff]
      %v4326 = vld [vmem:[#allocation2 + $0x20] sm:$0xff]
      %v4327 = vld [vmem:[#allocation2 + $0x28] sm:$0xff]
      %v4328 = vld [vmem:[#allocation2 + $0x30] sm:$0xff]
      %v4329 = vld [vmem:[#allocation2 + $0x38] sm:$0xff]
      %v4330 = vld [vmem:[#allocation2 + $0x40] sm:$0xff]
      %v4331 = vld [vmem:[#allocation2 + $0x48] sm:$0xff]
      %v4332 = vld [vmem:[#allocation2 + $0x50] sm:$0xff]
      %v4333 = vld [vmem:[#allocation2 + $0x58] sm:$0xff]
      %v4334 = vld [vmem:[#allocation2 + $0x60] sm:$0xff]
      %v4335 = vld [vmem:[#allocation2 + $0x68] sm:$0xff]
      %v4336 = vld [vmem:[#allocation2 + $0x70] sm:$0xff]
      %v4337 = vld [vmem:[#allocation2 + $0x78] sm:$0xff]
      %v4338 = vld [vmem:[#allocation2 + $0x80] sm:$0xff]
      %v4339 = vld [vmem:[#allocation2 + $0x88] sm:$0xff]
      %v4340 = vld [vmem:[#allocation2 + $0x90] sm:$0xff]
      %v4341 = vld [vmem:[#allocation2 + $0x98] sm:$0xff]
      %v4342 = vld [vmem:[#allocation2 + $0xa0] sm:$0xff]
      %v4343 = vld [vmem:[#allocation2 + $0xa8] sm:$0xff]
      %v4344 = vld [vmem:[#allocation2 + $0xb0] sm:$0xff]
      %v4345 = vld [vmem:[#allocation2 + $0xb8] sm:$0xff]
      %v4346 = vld [vmem:[#allocation2 + $0xc0] sm:$0xff]
      %v4347 = vld [vmem:[#allocation2 + $0xc8] sm:$0xff]
      %v4348 = vld [vmem:[#allocation2 + $0xd0] sm:$0xff]
      %v4349 = vld [vmem:[#allocation2 + $0xd8] sm:$0xff]
      %v4350 = vld [vmem:[#allocation2 + $0xe0] sm:$0xff]
      %v4351 = vld [vmem:[#allocation2 + $0xe8] sm:$0xff]
      %v4352 = vld [vmem:[#allocation2 + $0xf0] sm:$0xff]
      %v4353 = vld [vmem:[#allocation2 + $0xf8] sm:$0xff]
      %v4354 = vadd.f32 %v4322, %v4290
      %v4355 = vadd.f32 %v4323, %v4291
      %v4356 = vadd.f32 %v4324, %v4292
      %v4357 = vadd.f32 %v4325, %v4293
      %v4358 = vadd.f32 %v4326, %v4294
      %v4359 = vadd.f32 %v4327, %v4295
      %v4360 = vadd.f32 %v4328, %v4296
      %v4361 = vadd.f32 %v4329, %v4297
      %v4362 = vadd.f32 %v4330, %v4298
      %v4363 = vadd.f32 %v4331, %v4299
      %v4364 = vadd.f32 %v4332, %v4300
      %v4365 = vadd.f32 %v4333, %v4301
      %v4366 = vadd.f32 %v4334, %v4302
      %v4367 = vadd.f32 %v4335, %v4303
      %v4368 = vadd.f32 %v4336, %v4304
      %v4369 = vadd.f32 %v4337, %v4305
      %v4370 = vadd.f32 %v4338, %v4306
      %v4371 = vadd.f32 %v4339, %v4307
      %v4372 = vadd.f32 %v4340, %v4308
      %v4373 = vadd.f32 %v4341, %v4309
      %v4374 = vadd.f32 %v4342, %v4310
      %v4375 = vadd.f32 %v4343, %v4311
      %v4376 = vadd.f32 %v4344, %v4312
      %v4377 = vadd.f32 %v4345, %v4313
      %v4378 = vadd.f32 %v4346, %v4314
      %v4379 = vadd.f32 %v4347, %v4315
      %v4380 = vadd.f32 %v4348, %v4316
      %v4381 = vadd.f32 %v4349, %v4317
      %v4382 = vadd.f32 %v4350, %v4318
      %v4383 = vadd.f32 %v4351, %v4319
      %v4384 = vadd.f32 %v4352, %v4320
      %v4385 = vadd.f32 %v4353, %v4321
      %4386 = vst [vmem:[#allocation2] sm:$0xff] %v4354
      %4387 = vst [vmem:[#allocation2 + $0x8] sm:$0xff] %v4355
      %4388 = vst [vmem:[#allocation2 + $0x10] sm:$0xff] %v4356
      %4389 = vst [vmem:[#allocation2 + $0x18] sm:$0xff] %v4357
      %4390 = vst [vmem:[#allocation2 + $0x20] sm:$0xff] %v4358
      %4391 = vst [vmem:[#allocation2 + $0x28] sm:$0xff] %v4359
      %4392 = vst [vmem:[#allocation2 + $0x30] sm:$0xff] %v4360
      %4393 = vst [vmem:[#allocation2 + $0x38] sm:$0xff] %v4361
      %4394 = vst [vmem:[#allocation2 + $0x40] sm:$0xff] %v4362
      %4395 = vst [vmem:[#allocation2 + $0x48] sm:$0xff] %v4363
      %4396 = vst [vmem:[#allocation2 + $0x50] sm:$0xff] %v4364
      %4397 = vst [vmem:[#allocation2 + $0x58] sm:$0xff] %v4365
      %4398 = vst [vmem:[#allocation2 + $0x60] sm:$0xff] %v4366
      %4399 = vst [vmem:[#allocation2 + $0x68] sm:$0xff] %v4367
      %4400 = vst [vmem:[#allocation2 + $0x70] sm:$0xff] %v4368
      %4401 = vst [vmem:[#allocation2 + $0x78] sm:$0xff] %v4369
      %4402 = vst [vmem:[#allocation2 + $0x80] sm:$0xff] %v4370
      %4403 = vst [vmem:[#allocation2 + $0x88] sm:$0xff] %v4371
      %4404 = vst [vmem:[#allocation2 + $0x90] sm:$0xff] %v4372
      %4405 = vst [vmem:[#allocation2 + $0x98] sm:$0xff] %v4373
      %4406 = vst [vmem:[#allocation2 + $0xa0] sm:$0xff] %v4374
      %4407 = vst [vmem:[#allocation2 + $0xa8] sm:$0xff] %v4375
      %4408 = vst [vmem:[#allocation2 + $0xb0] sm:$0xff] %v4376
      %4409 = vst [vmem:[#allocation2 + $0xb8] sm:$0xff] %v4377
      %4410 = vst [vmem:[#allocation2 + $0xc0] sm:$0xff] %v4378
      %4411 = vst [vmem:[#allocation2 + $0xc8] sm:$0xff] %v4379
      %4412 = vst [vmem:[#allocation2 + $0xd0] sm:$0xff] %v4380
      %4413 = vst [vmem:[#allocation2 + $0xd8] sm:$0xff] %v4381
      %4414 = vst [vmem:[#allocation2 + $0xe0] sm:$0xff] %v4382
      %4415 = vst [vmem:[#allocation2 + $0xe8] sm:$0xff] %v4383
      %4416 = vst [vmem:[#allocation2 + $0xf0] sm:$0xff] %v4384
      %4417 = vst [vmem:[#allocation2 + $0xf8] sm:$0xff] %v4385
      // Predicated region
      $region41: #{basic_block_forward.3} parent=35 // pred_check
        %p4418 = pneg %p317
      $region42: #{basic_block_forward.3} parent=35 // pred_check_branch
        %4420 = sbr.rel (%p4418) target = $region44
      $region43: #{basic_block_forward.3} parent=35 // pred_region
        %v4421 = vld [vmem:[#allocation2] sm:$0xff]
        %v4422 = vld [vmem:[#allocation2 + $0x8] sm:$0xff]
        %v4423 = vld [vmem:[#allocation2 + $0x10] sm:$0xff]
        %v4424 = vld [vmem:[#allocation2 + $0x18] sm:$0xff]
        %v4425 = vld [vmem:[#allocation2 + $0x20] sm:$0xff]
        %v4426 = vld [vmem:[#allocation2 + $0x28] sm:$0xff]
        %v4427 = vld [vmem:[#allocation2 + $0x30] sm:$0xff]
        %v4428 = vld [vmem:[#allocation2 + $0x38] sm:$0xff]
        %v4429 = vld [vmem:[#allocation2 + $0x40] sm:$0xff]
        %v4430 = vld [vmem:[#allocation2 + $0x48] sm:$0xff]
        %v4431 = vld [vmem:[#allocation2 + $0x50] sm:$0xff]
        %v4432 = vld [vmem:[#allocation2 + $0x58] sm:$0xff]
        %v4433 = vld [vmem:[#allocation2 + $0x60] sm:$0xff]
        %v4434 = vld [vmem:[#allocation2 + $0x68] sm:$0xff]
        %v4435 = vld [vmem:[#allocation2 + $0x70] sm:$0xff]
        %v4436 = vld [vmem:[#allocation2 + $0x78] sm:$0xff]
        %v4437 = vld [vmem:[#allocation2 + $0x80] sm:$0xff]
        %v4438 = vld [vmem:[#allocation2 + $0x88] sm:$0xff]
        %v4439 = vld [vmem:[#allocation2 + $0x90] sm:$0xff]
        %v4440 = vld [vmem:[#allocation2 + $0x98] sm:$0xff]
        %v4441 = vld [vmem:[#allocation2 + $0xa0] sm:$0xff]
        %v4442 = vld [vmem:[#allocation2 + $0xa8] sm:$0xff]
        %v4443 = vld [vmem:[#allocation2 + $0xb0] sm:$0xff]
        %v4444 = vld [vmem:[#allocation2 + $0xb8] sm:$0xff]
        %v4445 = vld [vmem:[#allocation2 + $0xc0] sm:$0xff]
        %v4446 = vld [vmem:[#allocation2 + $0xc8] sm:$0xff]
        %v4447 = vld [vmem:[#allocation2 + $0xd0] sm:$0xff]
        %v4448 = vld [vmem:[#allocation2 + $0xd8] sm:$0xff]
        %v4449 = vld [vmem:[#allocation2 + $0xe0] sm:$0xff]
        %v4450 = vld [vmem:[#allocation2 + $0xe8] sm:$0xff]
        %v4451 = vld [vmem:[#allocation2 + $0xf0] sm:$0xff]
        %v4452 = vld [vmem:[#allocation2 + $0xf8] sm:$0xff]
        %v4453 = vld [vmem:[%s300] sm:$0x1]
        %v4455 = vperm.slane %v4453, 0
        %v4457 = vadd.f32 %v4421, %v4455
        %v4458 = vadd.f32 %v4422, %v4455
        %v4459 = vadd.f32 %v4423, %v4455
        %v4460 = vadd.f32 %v4424, %v4455
        %v4461 = vadd.f32 %v4425, %v4455
        %v4462 = vadd.f32 %v4426, %v4455
        %v4463 = vadd.f32 %v4427, %v4455
        %v4464 = vadd.f32 %v4428, %v4455
        %v4465 = vadd.f32 %v4429, %v4455
        %v4466 = vadd.f32 %v4430, %v4455
        %v4467 = vadd.f32 %v4431, %v4455
        %v4468 = vadd.f32 %v4432, %v4455
        %v4469 = vadd.f32 %v4433, %v4455
        %v4470 = vadd.f32 %v4434, %v4455
        %v4471 = vadd.f32 %v4435, %v4455
        %v4472 = vadd.f32 %v4436, %v4455
        %v4473 = vadd.f32 %v4437, %v4455
        %v4474 = vadd.f32 %v4438, %v4455
        %v4475 = vadd.f32 %v4439, %v4455
        %v4476 = vadd.f32 %v4440, %v4455
        %v4477 = vadd.f32 %v4441, %v4455
        %v4478 = vadd.f32 %v4442, %v4455
        %v4479 = vadd.f32 %v4443, %v4455
        %v4480 = vadd.f32 %v4444, %v4455
        %v4481 = vadd.f32 %v4445, %v4455
        %v4482 = vadd.f32 %v4446, %v4455
        %v4483 = vadd.f32 %v4447, %v4455
        %v4484 = vadd.f32 %v4448, %v4455
        %v4485 = vadd.f32 %v4449, %v4455
        %v4486 = vadd.f32 %v4450, %v4455
        %v4487 = vadd.f32 %v4451, %v4455
        %v4488 = vadd.f32 %v4452, %v4455
        %v4489 = vld [vmem:[%s308] sm:$0xf]
        %v4490 = vld [vmem:[%s308 + $0x4] sm:$0xf]
        %v4491 = vld [vmem:[%s308 + $0x8] sm:$0xf]
        %v4492 = vld [vmem:[%s308 + $0xc] sm:$0xf]
        %v4493 = vld [vmem:[%s308 + $0x10] sm:$0xf]
        %v4494 = vld [vmem:[%s308 + $0x14] sm:$0xf]
        %v4495 = vld [vmem:[%s308 + $0x18] sm:$0xf]
        %v4496 = vld [vmem:[%s308 + $0x1c] sm:$0xf]
        %v4497 = vld [vmem:[%s308 + $0x20] sm:$0xf]
        %v4498 = vld [vmem:[%s308 + $0x24] sm:$0xf]
        %v4499 = vld [vmem:[%s308 + $0x28] sm:$0xf]
        %v4500 = vld [vmem:[%s308 + $0x2c] sm:$0xf]
        %v4501 = vld [vmem:[%s308 + $0x30] sm:$0xf]
        %v4502 = vld [vmem:[%s308 + $0x34] sm:$0xf]
        %v4503 = vld [vmem:[%s308 + $0x38] sm:$0xf]
        %v4504 = vld [vmem:[%s308 + $0x3c] sm:$0xf]
        %v4505 = vld [vmem:[%s308 + $0x40] sm:$0xf]
        %v4506 = vld [vmem:[%s308 + $0x44] sm:$0xf]
        %v4507 = vld [vmem:[%s308 + $0x48] sm:$0xf]
        %v4508 = vld [vmem:[%s308 + $0x4c] sm:$0xf]
        %v4509 = vld [vmem:[%s308 + $0x50] sm:$0xf]
        %v4510 = vld [vmem:[%s308 + $0x54] sm:$0xf]
        %v4511 = vld [vmem:[%s308 + $0x58] sm:$0xf]
        %v4512 = vld [vmem:[%s308 + $0x5c] sm:$0xf]
        %v4513 = vld [vmem:[%s308 + $0x60] sm:$0xf]
        %v4514 = vld [vmem:[%s308 + $0x64] sm:$0xf]
        %v4515 = vld [vmem:[%s308 + $0x68] sm:$0xf]
        %v4516 = vld [vmem:[%s308 + $0x6c] sm:$0xf]
        %v4517 = vld [vmem:[%s308 + $0x70] sm:$0xf]
        %v4518 = vld [vmem:[%s308 + $0x74] sm:$0xf]
        %v4519 = vld [vmem:[%s308 + $0x78] sm:$0xf]
        %v4520 = vld [vmem:[%s308 + $0x7c] sm:$0xf]
        %v4521 = vunpack.c.l.bf16 %v4489
        %v4522 = vunpack.c.l.bf16 %v4490
        %v4523 = vunpack.c.l.bf16 %v4491
        %v4524 = vunpack.c.l.bf16 %v4492
        %v4525 = vunpack.c.l.bf16 %v4493
        %v4526 = vunpack.c.l.bf16 %v4494
        %v4527 = vunpack.c.l.bf16 %v4495
        %v4528 = vunpack.c.l.bf16 %v4496
        %v4529 = vunpack.c.l.bf16 %v4497
        %v4530 = vunpack.c.l.bf16 %v4498
        %v4531 = vunpack.c.l.bf16 %v4499
        %v4532 = vunpack.c.l.bf16 %v4500
        %v4533 = vunpack.c.l.bf16 %v4501
        %v4534 = vunpack.c.l.bf16 %v4502
        %v4535 = vunpack.c.l.bf16 %v4503
        %v4536 = vunpack.c.l.bf16 %v4504
        %v4537 = vunpack.c.l.bf16 %v4505
        %v4538 = vunpack.c.l.bf16 %v4506
        %v4539 = vunpack.c.l.bf16 %v4507
        %v4540 = vunpack.c.l.bf16 %v4508
        %v4541 = vunpack.c.l.bf16 %v4509
        %v4542 = vunpack.c.l.bf16 %v4510
        %v4543 = vunpack.c.l.bf16 %v4511
        %v4544 = vunpack.c.l.bf16 %v4512
        %v4545 = vunpack.c.l.bf16 %v4513
        %v4546 = vunpack.c.l.bf16 %v4514
        %v4547 = vunpack.c.l.bf16 %v4515
        %v4548 = vunpack.c.l.bf16 %v4516
        %v4549 = vunpack.c.l.bf16 %v4517
        %v4550 = vunpack.c.l.bf16 %v4518
        %v4551 = vunpack.c.l.bf16 %v4519
        %v4552 = vunpack.c.l.bf16 %v4520
        %v4553 = vadd.f32 %v4457, %v4521
        %v4554 = vadd.f32 %v4458, %v4522
        %v4555 = vadd.f32 %v4459, %v4523
        %v4556 = vadd.f32 %v4460, %v4524
        %v4557 = vadd.f32 %v4461, %v4525
        %v4558 = vadd.f32 %v4462, %v4526
        %v4559 = vadd.f32 %v4463, %v4527
        %v4560 = vadd.f32 %v4464, %v4528
        %v4561 = vadd.f32 %v4465, %v4529
        %v4562 = vadd.f32 %v4466, %v4530
        %v4563 = vadd.f32 %v4467, %v4531
        %v4564 = vadd.f32 %v4468, %v4532
        %v4565 = vadd.f32 %v4469, %v4533
        %v4566 = vadd.f32 %v4470, %v4534
        %v4567 = vadd.f32 %v4471, %v4535
        %v4568 = vadd.f32 %v4472, %v4536
        %v4569 = vadd.f32 %v4473, %v4537
        %v4570 = vadd.f32 %v4474, %v4538
        %v4571 = vadd.f32 %v4475, %v4539
        %v4572 = vadd.f32 %v4476, %v4540
        %v4573 = vadd.f32 %v4477, %v4541
        %v4574 = vadd.f32 %v4478, %v4542
        %v4575 = vadd.f32 %v4479, %v4543
        %v4576 = vadd.f32 %v4480, %v4544
        %v4577 = vadd.f32 %v4481, %v4545
        %v4578 = vadd.f32 %v4482, %v4546
        %v4579 = vadd.f32 %v4483, %v4547
        %v4580 = vadd.f32 %v4484, %v4548
        %v4581 = vadd.f32 %v4485, %v4549
        %v4582 = vadd.f32 %v4486, %v4550
        %v4583 = vadd.f32 %v4487, %v4551
        %v4584 = vadd.f32 %v4488, %v4552
        %v4585 = vmax.f32 %v4553, 0.0
        %v4586 = vmax.f32 %v4554, 0.0
        %v4587 = vmax.f32 %v4555, 0.0
        %v4588 = vmax.f32 %v4556, 0.0
        %v4589 = vmax.f32 %v4557, 0.0
        %v4590 = vmax.f32 %v4558, 0.0
        %v4591 = vmax.f32 %v4559, 0.0
        %v4592 = vmax.f32 %v4560, 0.0
        %v4593 = vmax.f32 %v4561, 0.0
        %v4594 = vmax.f32 %v4562, 0.0
        %v4595 = vmax.f32 %v4563, 0.0
        %v4596 = vmax.f32 %v4564, 0.0
        %v4597 = vmax.f32 %v4565, 0.0
        %v4598 = vmax.f32 %v4566, 0.0
        %v4599 = vmax.f32 %v4567, 0.0
        %v4600 = vmax.f32 %v4568, 0.0
        %v4601 = vmax.f32 %v4569, 0.0
        %v4602 = vmax.f32 %v4570, 0.0
        %v4603 = vmax.f32 %v4571, 0.0
        %v4604 = vmax.f32 %v4572, 0.0
        %v4605 = vmax.f32 %v4573, 0.0
        %v4606 = vmax.f32 %v4574, 0.0
        %v4607 = vmax.f32 %v4575, 0.0
        %v4608 = vmax.f32 %v4576, 0.0
        %v4609 = vmax.f32 %v4577, 0.0
        %v4610 = vmax.f32 %v4578, 0.0
        %v4611 = vmax.f32 %v4579, 0.0
        %v4612 = vmax.f32 %v4580, 0.0
        %v4613 = vmax.f32 %v4581, 0.0
        %v4614 = vmax.f32 %v4582, 0.0
        %v4615 = vmax.f32 %v4583, 0.0
        %v4616 = vmax.f32 %v4584, 0.0
        %4617 = vst [vmem:[%s316] sm:$0xff] %v4585
        %4618 = vst [vmem:[%s316 + $0x8] sm:$0xff] %v4586
        %4619 = vst [vmem:[%s316 + $0x10] sm:$0xff] %v4587
        %4620 = vst [vmem:[%s316 + $0x18] sm:$0xff] %v4588
        %4621 = vst [vmem:[%s316 + $0x20] sm:$0xff] %v4589
        %4622 = vst [vmem:[%s316 + $0x28] sm:$0xff] %v4590
        %4623 = vst [vmem:[%s316 + $0x30] sm:$0xff] %v4591
        %4624 = vst [vmem:[%s316 + $0x38] sm:$0xff] %v4592
        %4625 = vst [vmem:[%s316 + $0x40] sm:$0xff] %v4593
        %4626 = vst [vmem:[%s316 + $0x48] sm:$0xff] %v4594
        %4627 = vst [vmem:[%s316 + $0x50] sm:$0xff] %v4595
        %4628 = vst [vmem:[%s316 + $0x58] sm:$0xff] %v4596
        %4629 = vst [vmem:[%s316 + $0x60] sm:$0xff] %v4597
        %4630 = vst [vmem:[%s316 + $0x68] sm:$0xff] %v4598
        %4631 = vst [vmem:[%s316 + $0x70] sm:$0xff] %v4599
        %4632 = vst [vmem:[%s316 + $0x78] sm:$0xff] %v4600
        %4633 = vst [vmem:[%s316 + $0x80] sm:$0xff] %v4601
        %4634 = vst [vmem:[%s316 + $0x88] sm:$0xff] %v4602
        %4635 = vst [vmem:[%s316 + $0x90] sm:$0xff] %v4603
        %4636 = vst [vmem:[%s316 + $0x98] sm:$0xff] %v4604
        %4637 = vst [vmem:[%s316 + $0xa0] sm:$0xff] %v4605
        %4638 = vst [vmem:[%s316 + $0xa8] sm:$0xff] %v4606
        %4639 = vst [vmem:[%s316 + $0xb0] sm:$0xff] %v4607
        %4640 = vst [vmem:[%s316 + $0xb8] sm:$0xff] %v4608
        %4641 = vst [vmem:[%s316 + $0xc0] sm:$0xff] %v4609
        %4642 = vst [vmem:[%s316 + $0xc8] sm:$0xff] %v4610
        %4643 = vst [vmem:[%s316 + $0xd0] sm:$0xff] %v4611
        %4644 = vst [vmem:[%s316 + $0xd8] sm:$0xff] %v4612
        %4645 = vst [vmem:[%s316 + $0xe0] sm:$0xff] %v4613
        %4646 = vst [vmem:[%s316 + $0xe8] sm:$0xff] %v4614
        %4647 = vst [vmem:[%s316 + $0xf0] sm:$0xff] %v4615
        %4648 = vst [vmem:[%s316 + $0xf8] sm:$0xff] %v4616
      $region44: #{basic_block_forward.3} parent=35 // pred_fallthru
        _
      %p4649 = scmp.lt.s32.totalorder %s20, 1
      %s4650 = scalar_select %p4649, %s20, 1
      %p4651 = scmp.lt.s32.totalorder %s21, 0
      %s4652 = scalar_select %p4651, %s21, 0
      %s4653 = smul.addr %s4650, 32
      %s4654 = sadd.s32 %s4652, %s4653
      %s4655 = smul.addr %s4654, 8
      %s4656 = scalar_lea.vmem %s4, %s4655
      // Predicated region
      $region45: #{basic_block_forward.3} parent=35 // pred_check
        %p4657 = pneg %p164
      $region46: #{basic_block_forward.3} parent=35 // pred_check_branch
        %4659 = sbr.rel (%p4657) target = $region48
      $region47: #{basic_block_forward.3} parent=35 // pred_region
        _
      $region48: #{basic_block_forward.3} parent=35 // pred_fallthru
        _
    $region36: #{basic_block_forward.3} parent=5 // pred_fallthru
      _
    %p4660 = scmp.le.s32.totalorder 2, %s10
    // Predicated region
    $region49: #{basic_block_forward.3} parent=5 // pred_check
      %p4661 = pneg %p4660
    $region50: #{basic_block_forward.3} parent=5 // pred_check_branch
      %4663 = sbr.rel (%p4661) target = $region52
    $region51: #{basic_block_forward.3} parent=5 // pred_region
      %s4664 = ssub.s32 %s10, 2
      // Predicated region
      $region53: #{basic_block_forward.3} parent=51 // pred_check
        %p4665 = pneg %p170
      $region54: #{basic_block_forward.3} parent=51 // pred_check_branch
        %4667 = sbr.rel (%p4665) target = $region56
      $region55: #{basic_block_forward.3} parent=51 // pred_region
        %p4668 = scmp.lt.s32.totalorder %s23, 1
        %s4669 = scalar_select %p4668, %s23, 1
        %p4670 = scmp.lt.s32.totalorder %s24, 0
        %s4671 = scalar_select %p4670, %s24, 0
        %s4672 = smul.addr %s4669, 32
        %s4673 = sadd.s32 %s4671, %s4672
        %s4674 = smul.addr %s4673, 8
        %s4675 = scalar_lea.vmem %s4, %s4674
      $region56: #{basic_block_forward.3} parent=51 // pred_fallthru
        _
    $region52: #{basic_block_forward.3} parent=5 // pred_fallthru
      _
  $region6: #{basic_block_forward.3} parent=0 // loop_footer
    %s14 = sadd.s32 1, %s10
  $region7: #{basic_block_forward.3} parent=0 // loop_footer_branch
    %9 = sbr.rel target = $region3
  $region8: #{basic_block_forward.3} parent=0 // loop_exit
    _

// kernel: basic_block_forward.2
$region0: #{basic_block_forward.2}
  #allocation0 [shape = 'u32[]', space=smem, size = 0x4, offset = 0x4, fixed_abs, tag = 'smem constant byte address 0x4 - core index']
  #allocation1 [shape = 'u32[72,128]{1,0:T(1,128)}', space=vmem, size = 0x9000, scoped, tag = 'internal scratch']
  #allocation2 [shape = 'f32[256,128]{1,0:T(8,128)}', space=vmem, size = 0x20000, scoped, tag = 'scratch operand']
  %s0 = inlined_call_operand.vmem [shape: bf16[2,18,18,128], index: 0, kind: input, shape index: {}]
  %s1 = inlined_call_operand.vmem [shape: bf16[9,128,128], index: 1, kind: input, shape index: {}]
  %s2 = inlined_call_operand.vmem [shape: f32[1,128], index: 2, kind: input, shape index: {}]
  %s3 = inlined_call_operand.vmem [shape: bf16[2,18,18,128], index: 3, kind: output, shape index: {}]
  %s4 = sld [smem:[#allocation0]]
  $region53: #{basic_block_forward.2} parent=0
    _
  %s6 = ssub.s32 1, %s4
  %s7 = scalar_select 0, %s6, %s4
  loop: start=0, step=1, limit=4
  $region2: #{basic_block_forward.2} parent=0 // loop_pre_header
    _
  $region3: #{basic_block_forward.2} parent=0 // loop_header
    %s9 = sphi 0, %s13
    %p10 = scmp.ge.s32.totalorder %s9, 4
    %s16 = sphi 0, %s35
    %s17 = sphi 0, %s31
    %s18 = sphi 0, %s27
    %s19 = sphi 0, %s16
    %s20 = sphi 0, %s17
    %s21 = sphi 0, %s18
    %s22 = sphi 0, %s19
    %s23 = sphi 0, %s20
    %s24 = sphi 0, %s21
    %s40 = sphi 0, %s42
    %s43 = sphi 0, %s40
    %s44 = sphi 0, %s43
    %s60 = sphi 0, %s44
    %s68 = sphi 0, %s70
    %s71 = sphi 0, %s68
    %s72 = sphi 0, %s71
    %s88 = sphi 0, %s72
    %s94 = sphi 0, %s96
    %s97 = sphi 0, %s94
    %s98 = sphi 0, %s97
    %s114 = sphi 0, %s98
    %s122 = sphi 0, %s124
    %s125 = sphi 0, %s122
    %s126 = sphi 0, %s125
    %s142 = sphi 0, %s126
  $region4: #{basic_block_forward.2} parent=0 // loop_header_branch
    %12 = sbr.rel (%p10) target = $region8
  $region5: #{basic_block_forward.2} parent=0 // loop_body
    %s14 = ssub.s32 %s9, 1
    %s15 = ssub.s32 %s9, 2
    %s25 = sadd.s32 1, %s18
    %p26 = scmp.ge.s32.totalorder %s25, 1
    %s27 = scalar_select %p26, 0, %s25
    %s28 = sadd.s32 1, %s17
    %s29 = scalar_select %p26, %s28, %s17
    %p30 = scmp.ge.s32.totalorder %s29, 1
    %s31 = scalar_select %p30, 0, %s29
    %s32 = sadd.s32 1, %s16
    %s33 = scalar_select %p30, %s32, %s16
    %p34 = scmp.ge.s32.totalorder %s33, 2
    %s35 = scalar_select %p34, 0, %s33
    %s36 = ssub.s32 %s16, %s35
    %s37 = ssub.s32 %s18, %s27
    %s38 = sor.u32 %s36, %s37
    %p39 = scmp.eq.s32.totalorder %s38, 0
    %s41 = sadd.s32 %s40, 1
    %s42 = scalar_select %p39, %s40, %s41
    %p45 = pneg %p39
    %p46 = scmp.eq.s32.totalorder %s9, 1
    %p47 = por %p45, %p46
    %p48 = scmp.ne.s32.totalorder %s40, %s43
    %p49 = scmp.eq.s32.totalorder %s9, 0
    %p50 = por %p48, %p49
    %p51 = scmp.ne.s32.totalorder %s40, %s43
    %p52 = scmp.eq.s32.totalorder %s14, 1
    %p53 = por %p51, %p52
    %p54 = scmp.ne.s32.totalorder %s43, %s44
    %p55 = scmp.eq.s32.totalorder %s14, 0
    %p56 = por %p54, %p55
    %p57 = scmp.ne.s32.totalorder %s43, %s44
    %p58 = scmp.eq.s32.totalorder %s15, 1
    %p59 = por %p57, %p58
    %p61 = scmp.ne.s32.totalorder %s44, %s60
    %p62 = scmp.eq.s32.totalorder %s15, 0
    %p63 = por %p61, %p62
    %s64 = ssub.s32 %s18, %s27
    %s65 = ssub.s32 %s17, %s31
    %s66 = sor.u32 %s64, %s65
    %p67 = scmp.eq.s32.totalorder %s66, 0
    %s69 = sadd.s32 %s68, 1
    %s70 = scalar_select %p67, %s68, %s69
    %p73 = pneg %p67
    %p74 = scmp.eq.s32.totalorder %s9, 1
    %p75 = por %p73, %p74
    %p76 = scmp.ne.s32.totalorder %s68, %s71
    %p77 = scmp.eq.s32.totalorder %s9, 0
    %p78 = por %p76, %p77
    %p79 = scmp.ne.s32.totalorder %s68, %s71
    %p80 = scmp.eq.s32.totalorder %s14, 1
    %p81 = por %p79, %p80
    %p82 = scmp.ne.s32.totalorder %s71, %s72
    %p83 = scmp.eq.s32.totalorder %s14, 0
    %p84 = por %p82, %p83
    %p85 = scmp.ne.s32.totalorder %s71, %s72
    %p86 = scmp.eq.s32.totalorder %s15, 1
    %p87 = por %p85, %p86
    %p89 = scmp.ne.s32.totalorder %s72, %s88
    %p90 = scmp.eq.s32.totalorder %s15, 0
    %p91 = por %p89, %p90
    %s92 = ssub.s32 %s17, %s31
    %p93 = scmp.eq.s32.totalorder %s92, 0
    %s95 = sadd.s32 %s94, 1
    %s96 = scalar_select %p93, %s94, %s95
    %p99 = pneg %p93
    %p100 = scmp.eq.s32.totalorder %s9, 1
    %p101 = por %p99, %p100
    %p102 = scmp.ne.s32.totalorder %s94, %s97
    %p103 = scmp.eq.s32.totalorder %s9, 0
    %p104 = por %p102, %p103
    %p105 = scmp.ne.s32.totalorder %s94, %s97
    %p106 = scmp.eq.s32.totalorder %s14, 1
    %p107 = por %p105, %p106
    %p108 = scmp.ne.s32.totalorder %s97, %s98
    %p109 = scmp.eq.s32.totalorder %s14, 0
    %p110 = por %p108, %p109
    %p111 = scmp.ne.s32.totalorder %s97, %s98
    %p112 = scmp.eq.s32.totalorder %s15, 1
    %p113 = por %p111, %p112
    %p115 = scmp.ne.s32.totalorder %s98, %s114
    %p116 = scmp.eq.s32.totalorder %s15, 0
    %p117 = por %p115, %p116
    %s118 = ssub.s32 %s16, %s35
    %s119 = ssub.s32 %s17, %s31
    %s120 = sor.u32 %s118, %s119
    %p121 = scmp.eq.s32.totalorder %s120, 0
    %s123 = sadd.s32 %s122, 1
    %s124 = scalar_select %p121, %s122, %s123
    %p127 = pneg %p121
    %p128 = scmp.eq.s32.totalorder %s9, 1
    %p129 = por %p127, %p128
    %p130 = scmp.ne.s32.totalorder %s122, %s125
    %p131 = scmp.eq.s32.totalorder %s9, 0
    %p132 = por %p130, %p131
    %p133 = scmp.ne.s32.totalorder %s122, %s125
    %p134 = scmp.eq.s32.totalorder %s14, 1
    %p135 = por %p133, %p134
    %p136 = scmp.ne.s32.totalorder %s125, %s126
    %p137 = scmp.eq.s32.totalorder %s14, 0
    %p138 = por %p136, %p137
    %p139 = scmp.ne.s32.totalorder %s125, %s126
    %p140 = scmp.eq.s32.totalorder %s15, 1
    %p141 = por %p139, %p140
    %p143 = scmp.ne.s32.totalorder %s126, %s142
    %p144 = scmp.eq.s32.totalorder %s15, 0
    %p145 = por %p143, %p144
    %p146 = scmp.le.s32.totalorder 1, %s9
    %p147 = scmp.lt.s32.totalorder %s9, 3
    %p148 = pnand %p146, %p147
    %p149 = pneg %p148
    // Predicated region
    $region9: #{basic_block_forward.2} parent=5 // pred_check
      _
    $region10: #{basic_block_forward.2} parent=5 // pred_check_branch
      %151 = sbr.rel (%p148) target = $region12
    $region11: #{basic_block_forward.2} parent=5 // pred_region
      %s152 = ssub.s32 %s9, 1
      // Predicated region
      $region13: #{basic_block_forward.2} parent=11 // pred_check
        %p153 = pneg %p84
      $region14: #{basic_block_forward.2} parent=11 // pred_check_branch
        %155 = sbr.rel (%p153) target = $region16
      $region15: #{basic_block_forward.2} parent=11 // pred_region
        %s156 = smul.u32 9, %s21
        %p157 = scmp.lt.s32.totalorder %s156, 8
        %s158 = scalar_select %p157, %s156, 8
        %p159 = scmp.lt.s32.totalorder %s20, 0
        %s160 = scalar_select %p159, %s20, 0
        %s161 = smul.addr %s158, 16
        %s162 = sadd.s32 %s160, %s161
        %s163 = smul.addr %s162, 4
        %s164 = scalar_lea.vmem %s1, %s163
        %s165 = smul.u32 9, %s21
      $region16: #{basic_block_forward.2} parent=11 // pred_fallthru
        _
      // Predicated region
      $region17: #{basic_block_forward.2} parent=11 // pred_check
        %p166 = pneg %p110
      $region18: #{basic_block_forward.2} parent=11 // pred_check_branch
        %168 = sbr.rel (%p166) target = $region20
      $region19: #{basic_block_forward.2} parent=11 // pred_region
        %p169 = scmp.lt.s32.totalorder %s20, 0
        %s170 = scalar_select %p169, %s20, 0
        %s171 = scalar_lea.vmem %s2, %s170
      $region20: #{basic_block_forward.2} parent=11 // pred_fallthru
        _
    $region12: #{basic_block_forward.2} parent=5 // pred_fallthru
      _
    %p172 = scmp.lt.s32.totalorder %s9, 2
    // Predicated region
    $region21: #{basic_block_forward.2} parent=5 // pred_check
      %p173 = pneg %p172
    $region22: #{basic_block_forward.2} parent=5 // pred_check_branch
      %175 = sbr.rel (%p173) target = $region24
    $region23: #{basic_block_forward.2} parent=5 // pred_region
      // Predicated region
      $region25: #{basic_block_forward.2} parent=23 // pred_check
        %p176 = pneg %p50
      $region26: #{basic_block_forward.2} parent=23 // pred_check_branch
        %178 = sbr.rel (%p176) target = $region28
      $region27: #{basic_block_forward.2} parent=23 // pred_region
        %p179 = scmp.lt.s32.totalorder %s16, 1
        %s180 = scalar_select %p179, %s16, 1
        %p181 = scmp.lt.s32.totalorder %s18, 0
        %s182 = scalar_select %p181, %s18, 0
        %s183 = smul.addr %s180, 54
        %s184 = sadd.s32 %s182, %s183
        %s185 = smul.addr %s184, 4
        %s186 = scalar_lea.vmem %s0, %s185
      $region28: #{basic_block_forward.2} parent=23 // pred_fallthru
        _
    $region24: #{basic_block_forward.2} parent=5 // pred_fallthru
      _
    %p187 = scmp.le.s32.totalorder 1, %s9
    %p188 = scmp.lt.s32.totalorder %s9, 3
    %p189 = pnand %p187, %p188
    %p190 = pneg %p189
    // Predicated region
    $region29: #{basic_block_forward.2} parent=5 // pred_check
      _
    $region30: #{basic_block_forward.2} parent=5 // pred_check_branch
      %192 = sbr.rel (%p189) target = $region32
    $region31: #{basic_block_forward.2} parent=5 // pred_region
      %s193 = ssub.s32 %s9, 1
      %p194 = scmp.lt.s32.totalorder %s19, 1
      %s195 = scalar_select %p194, %s19, 1
      %p196 = scmp.lt.s32.totalorder %s21, 0
      %s197 = scalar_select %p196, %s21, 0
      %s198 = smul.addr %s195, 54
      %s199 = sadd.s32 %s197, %s198
      %s200 = smul.addr %s199, 4
      %s201 = scalar_lea.vmem %s0, %s200
      %p202 = pneg %p56
      %p203 = pneg %p53
      %s204 = smul.u32 9, %s21
      %p205 = scmp.lt.s32.totalorder %s204, 8
      %s206 = scalar_select %p205, %s204, 8
      %p207 = scmp.lt.s32.totalorder %s20, 0
      %s208 = scalar_select %p207, %s20, 0
      %s209 = smul.addr %s206, 16
      %s210 = sadd.s32 %s208, %s209
      %s211 = smul.addr %s210, 4
      %s212 = scalar_lea.vmem %s1, %s211
      %p213 = pneg %p84
      %p214 = pneg %p81
      %p215 = scmp.lt.s32.totalorder %s20, 0
      %s216 = scalar_select %p215, %s20, 0
      %s217 = scalar_lea.vmem %s2, %s216
      %p218 = pneg %p110
      %p219 = pneg %p107
      %p220 = pneg %p138
      %p221 = pneg %p135
      %p222 = scmp.lt.s32.totalorder %s19, 1
      %s223 = scalar_select %p222, %s19, 1
      %p224 = scmp.lt.s32.totalorder %s20, 0
      %s225 = scalar_select %p224, %s20, 0
      %s226 = smul.addr %s223, 54
      %s227 = sadd.s32 %s225, %s226
      %s228 = smul.addr %s227, 4
      %s229 = scalar_lea.vmem %s3, %s228
      %p230 = scmp.lt.s32.totalorder %s19, 1
      %s231 = scalar_select %p230, %s19, 1
      %p232 = scmp.lt.s32.totalorder %s21, 0
      %s233 = scalar_select %p232, %s21, 0
      %s234 = smul.addr %s231, 54
      %s235 = sadd.s32 %s233, %s234
      %s236 = smul.addr %s235, 4
      %s237 = scalar_lea.vmem %s0, %s236
      %s238 = smul.u32 9, %s21
      %p239 = scmp.lt.s32.totalorder %s238, 8
      %s240 = scalar_select %p239, %s238, 8
      %p241 = scmp.lt.s32.totalorder %s20, 0
      %s242 = scalar_select %p241, %s20, 0
      %s243 = smul.addr %s240, 16
      %s244 = sadd.s32 %s242, %s243
      %s245 = smul.addr %s244, 4
      %s246 = scalar_lea.vmem %s1, %s245
      %s247 = smul.u32 9, %s21
      %p248 = scmp.lt.s32.totalorder %s20, 0
      %s249 = scalar_select %p248, %s20, 0
      %s250 = scalar_lea.vmem %s2, %s249
      %p251 = scmp.lt.s32.totalorder %s19, 1
      %s252 = scalar_select %p251, %s19, 1
      %p253 = scmp.lt.s32.totalorder %s20, 0
      %s254 = scalar_select %p253, %s20, 0
      %s255 = smul.addr %s252, 54
      %s256 = sadd.s32 %s254, %s255
      %s257 = smul.addr %s256, 4
      %s258 = scalar_lea.vmem %s3, %s257
      %p260 = scmp.eq.s32.totalorder %s21, 0
      // Predicated region
      $region33: #{basic_block_forward.2} parent=31 // pred_check
        %p261 = pneg %p260
      $region34: #{basic_block_forward.2} parent=31 // pred_check_branch
        %263 = sbr.rel (%p261) target = $region36
      $region35: #{basic_block_forward.2} parent=31 // pred_region
        %264 = vst [vmem:[#allocation2] sm:$0xff] 0.0
        %265 = vst [vmem:[#allocation2 + $0x8] sm:$0xff] 0.0
        %266 = vst [vmem:[#allocation2 + $0x10] sm:$0xff] 0.0
        %267 = vst [vmem:[#allocation2 + $0x18] sm:$0xff] 0.0
        %268 = vst [vmem:[#allocation2 + $0x20] sm:$0xff] 0.0
        %269 = vst [vmem:[#allocation2 + $0x28] sm:$0xff] 0.0
        %270 = vst [vmem:[#allocation2 + $0x30] sm:$0xff] 0.0
        %271 = vst [vmem:[#allocation2 + $0x38] sm:$0xff] 0.0
        %272 = vst [vmem:[#allocation2 + $0x40] sm:$0xff] 0.0
        %273 = vst [vmem:[#allocation2 + $0x48] sm:$0xff] 0.0
        %274 = vst [vmem:[#allocation2 + $0x50] sm:$0xff] 0.0
        %275 = vst [vmem:[#allocation2 + $0x58] sm:$0xff] 0.0
        %276 = vst [vmem:[#allocation2 + $0x60] sm:$0xff] 0.0
        %277 = vst [vmem:[#allocation2 + $0x68] sm:$0xff] 0.0
        %278 = vst [vmem:[#allocation2 + $0x70] sm:$0xff] 0.0
        %279 = vst [vmem:[#allocation2 + $0x78] sm:$0xff] 0.0
        %280 = vst [vmem:[#allocation2 + $0x80] sm:$0xff] 0.0
        %281 = vst [vmem:[#allocation2 + $0x88] sm:$0xff] 0.0
        %282 = vst [vmem:[#allocation2 + $0x90] sm:$0xff] 0.0
        %283 = vst [vmem:[#allocation2 + $0x98] sm:$0xff] 0.0
        %284 = vst [vmem:[#allocation2 + $0xa0] sm:$0xff] 0.0
        %285 = vst [vmem:[#allocation2 + $0xa8] sm:$0xff] 0.0
        %286 = vst [vmem:[#allocation2 + $0xb0] sm:$0xff] 0.0
        %287 = vst [vmem:[#allocation2 + $0xb8] sm:$0xff] 0.0
        %288 = vst [vmem:[#allocation2 + $0xc0] sm:$0xff] 0.0
        %289 = vst [vmem:[#allocation2 + $0xc8] sm:$0xff] 0.0
        %290 = vst [vmem:[#allocation2 + $0xd0] sm:$0xff] 0.0
        %291 = vst [vmem:[#allocation2 + $0xd8] sm:$0xff] 0.0
        %292 = vst [vmem:[#allocation2 + $0xe0] sm:$0xff] 0.0
        %293 = vst [vmem:[#allocation2 + $0xe8] sm:$0xff] 0.0
        %294 = vst [vmem:[#allocation2 + $0xf0] sm:$0xff] 0.0
        %295 = vst [vmem:[#allocation2 + $0xf8] sm:$0xff] 0.0
      $region36: #{basic_block_forward.2} parent=31 // pred_fallthru
        _
      %v296 = vld [vmem:[%s237] sm:$0xf]
      %v297 = vld [vmem:[%s237 + $0x4] sm:$0xf]
      %v298 = vld [vmem:[%s237 + $0x8] sm:$0x1]
      %v299 = vld [vmem:[%s237 + $0xc] sm:$0xf]
      %v300 = vld [vmem:[%s237 + $0x10] sm:$0xf]
      %v301 = vld [vmem:[%s237 + $0x14] sm:$0x1]
      %v302 = vld [vmem:[%s237 + $0x18] sm:$0xf]
      %v303 = vld [vmem:[%s237 + $0x1c] sm:$0xf]
      %v304 = vld [vmem:[%s237 + $0x20] sm:$0x1]
      %v305 = vld [vmem:[%s237 + $0x24] sm:$0xf]
      %v306 = vld [vmem:[%s237 + $0x28] sm:$0xf]
      %v307 = vld [vmem:[%s237 + $0x2c] sm:$0x1]
      %v308 = vld [vmem:[%s237 + $0x30] sm:$0xf]
      %v309 = vld [vmem:[%s237 + $0x34] sm:$0xf]
      %v310 = vld [vmem:[%s237 + $0x38] sm:$0x1]
      %v311 = vld [vmem:[%s237 + $0x3c] sm:$0xf]
      %v312 = vld [vmem:[%s237 + $0x40] sm:$0xf]
      %v313 = vld [vmem:[%s237 + $0x44] sm:$0x1]
      %v314 = vld [vmem:[%s237 + $0x48] sm:$0xf]
      %v315 = vld [vmem:[%s237 + $0x4c] sm:$0xf]
      %v316 = vld [vmem:[%s237 + $0x50] sm:$0x1]
      %v317 = vld [vmem:[%s237 + $0x54] sm:$0xf]
      %v318 = vld [vmem:[%s237 + $0x58] sm:$0xf]
      %v319 = vld [vmem:[%s237 + $0x5c] sm:$0x1]
      %v320 = vld [vmem:[%s237 + $0x60] sm:$0xf]
      %v321 = vld [vmem:[%s237 + $0x64] sm:$0xf]
      %v322 = vld [vmem:[%s237 + $0x68] sm:$0x1]
      %v323 = vld [vmem:[%s237 + $0x6c] sm:$0xf]
      %v324 = vld [vmem:[%s237 + $0x70] sm:$0xf]
      %v325 = vld [vmem:[%s237 + $0x74] sm:$0x1]
      %v326 = vld [vmem:[%s237 + $0x78] sm:$0xf]
      %v327 = vld [vmem:[%s237 + $0x7c] sm:$0xf]
      %v328 = vld [vmem:[%s237 + $0x80] sm:$0x1]
      %v329 = vld [vmem:[%s237 + $0x84] sm:$0xf]
      %v330 = vld [vmem:[%s237 + $0x88] sm:$0xf]
      %v331 = vld [vmem:[%s237 + $0x8c] sm:$0x1]
      %v332 = vld [vmem:[%s237 + $0x90] sm:$0xf]
      %v333 = vld [vmem:[%s237 + $0x94] sm:$0xf]
      %v334 = vld [vmem:[%s237 + $0x98] sm:$0x1]
      %v335 = vld [vmem:[%s237 + $0x9c] sm:$0xf]
      %v336 = vld [vmem:[%s237 + $0xa0] sm:$0xf]
      %v337 = vld [vmem:[%s237 + $0xa4] sm:$0x1]
      %v338 = vld [vmem:[%s237 + $0xa8] sm:$0xf]
      %v339 = vld [vmem:[%s237 + $0xac] sm:$0xf]
      %v340 = vld [vmem:[%s237 + $0xb0] sm:$0x1]
      %v341 = vld [vmem:[%s237 + $0xb4] sm:$0xf]
      %v342 = vld [vmem:[%s237 + $0xb8] sm:$0xf]
      %v343 = vld [vmem:[%s237 + $0xbc] sm:$0x1]
      %v344 = vld [vmem:[%s246] sm:$0xf]
      %v345 = vld [vmem:[%s246 + $0x4] sm:$0xf]
      %v346 = vld [vmem:[%s246 + $0x8] sm:$0xf]
      %v347 = vld [vmem:[%s246 + $0xc] sm:$0xf]
      %v348 = vld [vmem:[%s246 + $0x10] sm:$0xf]
      %v349 = vld [vmem:[%s246 + $0x14] sm:$0xf]
      %v350 = vld [vmem:[%s246 + $0x18] sm:$0xf]
      %v351 = vld [vmem:[%s246 + $0x1c] sm:$0xf]
      %v352 = vld [vmem:[%s246 + $0x20] sm:$0xf]
      %v353 = vld [vmem:[%s246 + $0x24] sm:$0xf]
      %v354 = vld [vmem:[%s246 + $0x28] sm:$0xf]
      %v355 = vld [vmem:[%s246 + $0x2c] sm:$0xf]
      %v356 = vld [vmem:[%s246 + $0x30] sm:$0xf]
      %v357 = vld [vmem:[%s246 + $0x34] sm:$0xf]
      %v358 = vld [vmem:[%s246 + $0x38] sm:$0xf]
      %v359 = vld [vmem:[%s246 + $0x3c] sm:$0xf]
      %vm360 = vsmask.f32 3328
      %vm361 = vsmask.f32 7440
      %vm362 = vmor %vm360, %vm361
      %v364 = vshrl.u32 %v296, 16
      %v366 = vrot.slane %v364, 4
      %v367 = vshll.u32 %v296, 16
      %v369 = vrot.slane %v367, 5
      %v370 = vor.u32 %v366, %v369
      %v371 = vrot.slane %v370, 4
      %v373 = vshll.u32 %v297, 16
      %v375 = vrot.slane %v373, 5
      %v376 = vsel %vm362, %v371, %v375
      %v377 = vshrl.u32 %v297, 16
      %v379 = vrot.slane %v377, 4
      %v380 = vor.u32 %v379, %v375
      %v381 = vrot.slane %v380, 4
      %v383 = vshll.u32 %v298, 16
      %v385 = vrot.slane %v383, 5
      %v386 = vsel %vm362, %v381, %v385
      %v388 = vshrl.u32 %v299, 16
      %v390 = vrot.slane %v388, 4
      %v391 = vshll.u32 %v299, 16
      %v393 = vrot.slane %v391, 5
      %v394 = vor.u32 %v390, %v393
      %v395 = vrot.slane %v394, 4
      %v397 = vshll.u32 %v300, 16
      %v399 = vrot.slane %v397, 5
      %v400 = vsel %vm362, %v395, %v399
      %v401 = vshrl.u32 %v300, 16
      %v403 = vrot.slane %v401, 4
      %v404 = vor.u32 %v403, %v399
      %v405 = vrot.slane %v404, 4
      %v407 = vshll.u32 %v301, 16
      %v409 = vrot.slane %v407, 5
      %v410 = vsel %vm362, %v405, %v409
      %v412 = vshrl.u32 %v302, 16
      %v414 = vrot.slane %v412, 4
      %v415 = vshll.u32 %v302, 16
      %v417 = vrot.slane %v415, 5
      %v418 = vor.u32 %v414, %v417
      %v419 = vrot.slane %v418, 4
      %v421 = vshll.u32 %v303, 16
      %v423 = vrot.slane %v421, 5
      %v424 = vsel %vm362, %v419, %v423
      %v425 = vshrl.u32 %v303, 16
      %v427 = vrot.slane %v425, 4
      %v428 = vor.u32 %v427, %v423
      %v429 = vrot.slane %v428, 4
      %v431 = vshll.u32 %v304, 16
      %v433 = vrot.slane %v431, 5
      %v434 = vsel %vm362, %v429, %v433
      %v436 = vshrl.u32 %v305, 16
      %v438 = vrot.slane %v436, 4
      %v439 = vshll.u32 %v305, 16
      %v441 = vrot.slane %v439, 5
      %v442 = vor.u32 %v438, %v441
      %v443 = vrot.slane %v442, 4
      %v445 = vshll.u32 %v306, 16
      %v447 = vrot.slane %v445, 5
      %v448 = vsel %vm362, %v443, %v447
      %v449 = vshrl.u32 %v306, 16
      %v451 = vrot.slane %v449, 4
      %v452 = vor.u32 %v451, %v447
      %v453 = vrot.slane %v452, 4
      %v455 = vshll.u32 %v307, 16
      %v457 = vrot.slane %v455, 5
      %v458 = vsel %vm362, %v453, %v457
      %v460 = vshrl.u32 %v308, 16
      %v462 = vrot.slane %v460, 4
      %v463 = vshll.u32 %v308, 16
      %v465 = vrot.slane %v463, 5
      %v466 = vor.u32 %v462, %v465
      %v467 = vrot.slane %v466, 4
      %v469 = vshll.u32 %v309, 16
      %v471 = vrot.slane %v469, 5
      %v472 = vsel %vm362, %v467, %v471
      %v473 = vshrl.u32 %v309, 16
      %v475 = vrot.slane %v473, 4
      %v476 = vor.u32 %v475, %v471
      %v477 = vrot.slane %v476, 4
      %v479 = vshll.u32 %v310, 16
      %v481 = vrot.slane %v479, 5
      %v482 = vsel %vm362, %v477, %v481
      %v484 = vshrl.u32 %v311, 16
      %v486 = vrot.slane %v484, 4
      %v487 = vshll.u32 %v311, 16
      %v489 = vrot.slane %v487, 5
      %v490 = vor.u32 %v486, %v489
      %v491 = vrot.slane %v490, 4
      %v493 = vshll.u32 %v312, 16
      %v495 = vrot.slane %v493, 5
      %v496 = vsel %vm362, %v491, %v495
      %v497 = vshrl.u32 %v312, 16
      %v499 = vrot.slane %v497, 4
      %v500 = vor.u32 %v499, %v495
      %v501 = vrot.slane %v500, 4
      %v503 = vshll.u32 %v313, 16
      %v505 = vrot.slane %v503, 5
      %v506 = vsel %vm362, %v501, %v505
      %v508 = vshrl.u32 %v314, 16
      %v510 = vrot.slane %v508, 4
      %v511 = vshll.u32 %v314, 16
      %v513 = vrot.slane %v511, 5
      %v514 = vor.u32 %v510, %v513
      %v515 = vrot.slane %v514, 4
      %v517 = vshll.u32 %v315, 16
      %v519 = vrot.slane %v517, 5
      %v520 = vsel %vm362, %v515, %v519
      %v521 = vshrl.u32 %v315, 16
      %v523 = vrot.slane %v521, 4
      %v524 = vor.u32 %v523, %v519
      %v525 = vrot.slane %v524, 4
      %v527 = vshll.u32 %v316, 16
      %v529 = vrot.slane %v527, 5
      %v530 = vsel %vm362, %v525, %v529
      %v532 = vshrl.u32 %v317, 16
      %v534 = vrot.slane %v532, 4
      %v535 = vshll.u32 %v317, 16
      %v537 = vrot.slane %v535, 5
      %v538 = vor.u32 %v534, %v537
      %v539 = vrot.slane %v538, 4
      %v541 = vshll.u32 %v318, 16
      %v543 = vrot.slane %v541, 5
      %v544 = vsel %vm362, %v539, %v543
      %v545 = vshrl.u32 %v318, 16
      %v547 = vrot.slane %v545, 4
      %v548 = vor.u32 %v547, %v543
      %v549 = vrot.slane %v548, 4
      %v551 = vshll.u32 %v319, 16
      %v553 = vrot.slane %v551, 5
      %v554 = vsel %vm362, %v549, %v553
      %v556 = vshrl.u32 %v320, 16
      %v558 = vrot.slane %v556, 4
      %v559 = vshll.u32 %v320, 16
      %v561 = vrot.slane %v559, 5
      %v562 = vor.u32 %v558, %v561
      %v563 = vrot.slane %v562, 4
      %v565 = vshll.u32 %v321, 16
      %v567 = vrot.slane %v565, 5
      %v568 = vsel %vm362, %v563, %v567
      %v569 = vshrl.u32 %v321, 16
      %v571 = vrot.slane %v569, 4
      %v572 = vor.u32 %v571, %v567
      %v573 = vrot.slane %v572, 4
      %v575 = vshll.u32 %v322, 16
      %v577 = vrot.slane %v575, 5
      %v578 = vsel %vm362, %v573, %v577
      %v580 = vshrl.u32 %v323, 16
      %v582 = vrot.slane %v580, 4
      %v583 = vshll.u32 %v323, 16
      %v585 = vrot.slane %v583, 5
      %v586 = vor.u32 %v582, %v585
      %v587 = vrot.slane %v586, 4
      %v589 = vshll.u32 %v324, 16
      %v591 = vrot.slane %v589, 5
      %v592 = vsel %vm362, %v587, %v591
      %v593 = vshrl.u32 %v324, 16
      %v595 = vrot.slane %v593, 4
      %v596 = vor.u32 %v595, %v591
      %v597 = vrot.slane %v596, 4
      %v599 = vshll.u32 %v325, 16
      %v601 = vrot.slane %v599, 5
      %v602 = vsel %vm362, %v597, %v601
      %v604 = vshrl.u32 %v326, 16
      %v606 = vrot.slane %v604, 4
      %v607 = vshll.u32 %v326, 16
      %v609 = vrot.slane %v607, 5
      %v610 = vor.u32 %v606, %v609
      %v611 = vrot.slane %v610, 4
      %v613 = vshll.u32 %v327, 16
      %v615 = vrot.slane %v613, 5
      %v616 = vsel %vm362, %v611, %v615
      %v617 = vshrl.u32 %v327, 16
      %v619 = vrot.slane %v617, 4
      %v620 = vor.u32 %v619, %v615
      %v621 = vrot.slane %v620, 4
      %v623 = vshll.u32 %v328, 16
      %v625 = vrot.slane %v623, 5
      %v626 = vsel %vm362, %v621, %v625
      %v628 = vshrl.u32 %v329, 16
      %v630 = vrot.slane %v628, 4
      %v631 = vshll.u32 %v329, 16
      %v633 = vrot.slane %v631, 5
      %v634 = vor.u32 %v630, %v633
      %v635 = vrot.slane %v634, 4
      %v637 = vshll.u32 %v330, 16
      %v639 = vrot.slane %v637, 5
      %v640 = vsel %vm362, %v635, %v639
      %v641 = vshrl.u32 %v330, 16
      %v643 = vrot.slane %v641, 4
      %v644 = vor.u32 %v643, %v639
      %v645 = vrot.slane %v644, 4
      %v647 = vshll.u32 %v331, 16
      %v649 = vrot.slane %v647, 5
      %v650 = vsel %vm362, %v645, %v649
      %v652 = vshrl.u32 %v332, 16
      %v654 = vrot.slane %v652, 4
      %v655 = vshll.u32 %v332, 16
      %v657 = vrot.slane %v655, 5
      %v658 = vor.u32 %v654, %v657
      %v659 = vrot.slane %v658, 4
      %v661 = vshll.u32 %v333, 16
      %v663 = vrot.slane %v661, 5
      %v664 = vsel %vm362, %v659, %v663
      %v665 = vshrl.u32 %v333, 16
      %v667 = vrot.slane %v665, 4
      %v668 = vor.u32 %v667, %v663
      %v669 = vrot.slane %v668, 4
      %v671 = vshll.u32 %v334, 16
      %v673 = vrot.slane %v671, 5
      %v674 = vsel %vm362, %v669, %v673
      %v676 = vshrl.u32 %v335, 16
      %v678 = vrot.slane %v676, 4
      %v679 = vshll.u32 %v335, 16
      %v681 = vrot.slane %v679, 5
      %v682 = vor.u32 %v678, %v681
      %v683 = vrot.slane %v682, 4
      %v685 = vshll.u32 %v336, 16
      %v687 = vrot.slane %v685, 5
      %v688 = vsel %vm362, %v683, %v687
      %v689 = vshrl.u32 %v336, 16
      %v691 = vrot.slane %v689, 4
      %v692 = vor.u32 %v691, %v687
      %v693 = vrot.slane %v692, 4
      %v695 = vshll.u32 %v337, 16
      %v697 = vrot.slane %v695, 5
      %v698 = vsel %vm362, %v693, %v697
      %v700 = vshrl.u32 %v338, 16
      %v702 = vrot.slane %v700, 4
      %v703 = vshll.u32 %v338, 16
      %v705 = vrot.slane %v703, 5
      %v706 = vor.u32 %v702, %v705
      %v707 = vrot.slane %v706, 4
      %v709 = vshll.u32 %v339, 16
      %v711 = vrot.slane %v709, 5
      %v712 = vsel %vm362, %v707, %v711
      %v713 = vshrl.u32 %v339, 16
      %v715 = vrot.slane %v713, 4
      %v716 = vor.u32 %v715, %v711
      %v717 = vrot.slane %v716, 4
      %v719 = vshll.u32 %v340, 16
      %v721 = vrot.slane %v719, 5
      %v722 = vsel %vm362, %v717, %v721
      %v724 = vshrl.u32 %v341, 16
      %v726 = vrot.slane %v724, 4
      %v727 = vshll.u32 %v341, 16
      %v729 = vrot.slane %v727, 5
      %v730 = vor.u32 %v726, %v729
      %v731 = vrot.slane %v730, 4
      %v733 = vshll.u32 %v342, 16
      %v735 = vrot.slane %v733, 5
      %v736 = vsel %vm362, %v731, %v735
      %v737 = vshrl.u32 %v342, 16
      %v739 = vrot.slane %v737, 4
      %v740 = vor.u32 %v739, %v735
      %v741 = vrot.slane %v740, 4
      %v743 = vshll.u32 %v343, 16
      %v745 = vrot.slane %v743, 5
      %v746 = vsel %vm362, %v741, %v745
      %s747 = scalar_lea.vmem %s246, 64
      %v748 = vld [vmem:[%s747] sm:$0xf]
      %v749 = vld [vmem:[%s747 + $0x4] sm:$0xf]
      %v750 = vld [vmem:[%s747 + $0x8] sm:$0xf]
      %v751 = vld [vmem:[%s747 + $0xc] sm:$0xf]
      %v752 = vld [vmem:[%s747 + $0x10] sm:$0xf]
      %v753 = vld [vmem:[%s747 + $0x14] sm:$0xf]
      %v754 = vld [vmem:[%s747 + $0x18] sm:$0xf]
      %v755 = vld [vmem:[%s747 + $0x1c] sm:$0xf]
      %v756 = vld [vmem:[%s747 + $0x20] sm:$0xf]
      %v757 = vld [vmem:[%s747 + $0x24] sm:$0xf]
      %v758 = vld [vmem:[%s747 + $0x28] sm:$0xf]
      %v759 = vld [vmem:[%s747 + $0x2c] sm:$0xf]
      %v760 = vld [vmem:[%s747 + $0x30] sm:$0xf]
      %v761 = vld [vmem:[%s747 + $0x34] sm:$0xf]
      %v762 = vld [vmem:[%s747 + $0x38] sm:$0xf]
      %v763 = vld [vmem:[%s747 + $0x3c] sm:$0xf]
      %v764 = vunpack.c.l.b16 %v376
      %v765 = vunpack.c.l.b16 %v386
      %v766 = vunpack.c.l.b16 %v400
      %v767 = vunpack.c.l.b16 %v410
      %v768 = vunpack.c.l.b16 %v424
      %v769 = vunpack.c.l.b16 %v434
      %v770 = vunpack.c.l.b16 %v448
      %v771 = vunpack.c.l.b16 %v458
      %v772 = vunpack.c.l.b16 %v472
      %v773 = vunpack.c.l.b16 %v482
      %v774 = vunpack.c.l.b16 %v496
      %v775 = vunpack.c.l.b16 %v506
      %v776 = vunpack.c.l.b16 %v520
      %v777 = vunpack.c.l.b16 %v530
      %v778 = vunpack.c.l.b16 %v544
      %v779 = vunpack.c.l.b16 %v554
      %v780 = vunpack.c.l.b16 %v568
      %v781 = vunpack.c.l.b16 %v578
      %v782 = vunpack.c.l.b16 %v592
      %v783 = vunpack.c.l.b16 %v602
      %v784 = vunpack.c.l.b16 %v616
      %v785 = vunpack.c.l.b16 %v626
      %v786 = vunpack.c.l.b16 %v640
      %v787 = vunpack.c.l.b16 %v650
      %v788 = vunpack.c.l.b16 %v664
      %v789 = vunpack.c.l.b16 %v674
      %v790 = vunpack.c.l.b16 %v688
      %v791 = vunpack.c.l.b16 %v698
      %v792 = vunpack.c.l.b16 %v712
      %v793 = vunpack.c.l.b16 %v722
      %v794 = vunpack.c.l.b16 %v736
      %v795 = vunpack.c.l.b16 %v746
      %v796 = vpack.c.b16 %v765, %v764
      %v797 = vpack.c.b16 %v767, %v766
      %v798 = vpack.c.b16 %v769, %v768
      %v799 = vpack.c.b16 %v771, %v770
      %v800 = vpack.c.b16 %v773, %v772
      %v801 = vpack.c.b16 %v775, %v774
      %v802 = vpack.c.b16 %v777, %v776
      %v803 = vpack.c.b16 %v779, %v778
      %v804 = vpack.c.b16 %v781, %v780
      %v805 = vpack.c.b16 %v783, %v782
      %v806 = vpack.c.b16 %v785, %v784
      %v807 = vpack.c.b16 %v787, %v786
      %v808 = vpack.c.b16 %v789, %v788
      %v809 = vpack.c.b16 %v791, %v790
      %v810 = vpack.c.b16 %v793, %v792
      %v811 = vpack.c.b16 %v795, %v794
      %v844 = vunpack.c.l.b16 %v748
      %v845 = vunpack.c.l.b16 %v749
      %v846 = vunpack.c.l.b16 %v750
      %v847 = vunpack.c.l.b16 %v751
      %v848 = vunpack.c.l.b16 %v752
      %v849 = vunpack.c.l.b16 %v753
      %v850 = vunpack.c.l.b16 %v754
      %v851 = vunpack.c.l.b16 %v755
      %v852 = vunpack.c.l.b16 %v756
      %v853 = vunpack.c.l.b16 %v757
      %v854 = vunpack.c.l.b16 %v758
      %v855 = vunpack.c.l.b16 %v759
      %v856 = vunpack.c.l.b16 %v760
      %v857 = vunpack.c.l.b16 %v761
      %v858 = vunpack.c.l.b16 %v762
      %v859 = vunpack.c.l.b16 %v763
      %v860 = vpack.c.b16 %v845, %v844
      %v861 = vpack.c.b16 %v847, %v846
      %v862 = vpack.c.b16 %v849, %v848
      %v863 = vpack.c.b16 %v851, %v850
      %v864 = vpack.c.b16 %v853, %v852
      %v865 = vpack.c.b16 %v855, %v854
      %v866 = vpack.c.b16 %v857, %v856
      %v867 = vpack.c.b16 %v859, %v858
      %876 = vmatpush.bf16.msra.mxu0 %v867
      %877 = vmatpush.bf16.msra.mxu0 %v866
      %878 = vmatpush.bf16.msra.mxu0 %v865
      %879 = vmatpush.bf16.msra.mxu0 %v864
      %880 = vmatpush.bf16.msra.mxu0 %v863
      %881 = vmatpush.bf16.msra.mxu0 %v862
      %882 = vmatpush.bf16.msra.mxu0 %v861
      %883 = vmatpush.bf16.msra.mxu0 %v860
      %884 = vmatmul.bf16.gmra.mxu0 %v796
      %v885 = vpop.f32.mrf.mxu0
      %v886 = vadd.f32 0.0, %v885
      %v887 = vpop.f32.mrf.mxu0
      %v888 = vadd.f32 0.0, %v887
      %889 = vmatmul.bf16.gmra.mxu0 %v797
      %v890 = vpop.f32.mrf.mxu0
      %v891 = vadd.f32 0.0, %v890
      %v892 = vpop.f32.mrf.mxu0
      %v893 = vadd.f32 0.0, %v892
      %894 = vmatmul.bf16.gmra.mxu0 %v798
      %v895 = vpop.f32.mrf.mxu0
      %v896 = vadd.f32 0.0, %v895
      %v897 = vpop.f32.mrf.mxu0
      %v898 = vadd.f32 0.0, %v897
      %899 = vmatmul.bf16.gmra.mxu0 %v799
      %v900 = vpop.f32.mrf.mxu0
      %v901 = vadd.f32 0.0, %v900
      %v902 = vpop.f32.mrf.mxu0
      %v903 = vadd.f32 0.0, %v902
      %904 = vmatmul.bf16.gmra.mxu0 %v800
      %v905 = vpop.f32.mrf.mxu0
      %v906 = vadd.f32 0.0, %v905
      %v907 = vpop.f32.mrf.mxu0
      %v908 = vadd.f32 0.0, %v907
      %909 = vmatmul.bf16.gmra.mxu0 %v801
      %v910 = vpop.f32.mrf.mxu0
      %v911 = vadd.f32 0.0, %v910
      %v912 = vpop.f32.mrf.mxu0
      %v913 = vadd.f32 0.0, %v912
      %914 = vmatmul.bf16.gmra.mxu0 %v802
      %v915 = vpop.f32.mrf.mxu0
      %v916 = vadd.f32 0.0, %v915
      %v917 = vpop.f32.mrf.mxu0
      %v918 = vadd.f32 0.0, %v917
      %919 = vmatmul.bf16.gmra.mxu0 %v803
      %v920 = vpop.f32.mrf.mxu0
      %v921 = vadd.f32 0.0, %v920
      %v922 = vpop.f32.mrf.mxu0
      %v923 = vadd.f32 0.0, %v922
      %924 = vmatmul.bf16.gmra.mxu0 %v804
      %v925 = vpop.f32.mrf.mxu0
      %v926 = vadd.f32 0.0, %v925
      %v927 = vpop.f32.mrf.mxu0
      %v928 = vadd.f32 0.0, %v927
      %929 = vmatmul.bf16.gmra.mxu0 %v805
      %v930 = vpop.f32.mrf.mxu0
      %v931 = vadd.f32 0.0, %v930
      %v932 = vpop.f32.mrf.mxu0
      %v933 = vadd.f32 0.0, %v932
      %934 = vmatmul.bf16.gmra.mxu0 %v806
      %v935 = vpop.f32.mrf.mxu0
      %v936 = vadd.f32 0.0, %v935
      %v937 = vpop.f32.mrf.mxu0
      %v938 = vadd.f32 0.0, %v937
      %939 = vmatmul.bf16.gmra.mxu0 %v807
      %v940 = vpop.f32.mrf.mxu0
      %v941 = vadd.f32 0.0, %v940
      %v942 = vpop.f32.mrf.mxu0
      %v943 = vadd.f32 0.0, %v942
      %944 = vmatmul.bf16.gmra.mxu0 %v808
      %v945 = vpop.f32.mrf.mxu0
      %v946 = vadd.f32 0.0, %v945
      %v947 = vpop.f32.mrf.mxu0
      %v948 = vadd.f32 0.0, %v947
      %949 = vmatmul.bf16.gmra.mxu0 %v809
      %v950 = vpop.f32.mrf.mxu0
      %v951 = vadd.f32 0.0, %v950
      %v952 = vpop.f32.mrf.mxu0
      %v953 = vadd.f32 0.0, %v952
      %954 = vmatmul.bf16.gmra.mxu0 %v810
      %v955 = vpop.f32.mrf.mxu0
      %v956 = vadd.f32 0.0, %v955
      %v957 = vpop.f32.mrf.mxu0
      %v958 = vadd.f32 0.0, %v957
      %959 = vmatmul.bf16.gmra.mxu0 %v811
      %v960 = vpop.f32.mrf.mxu0
      %v961 = vadd.f32 0.0, %v960
      %v962 = vpop.f32.mrf.mxu0
      %v963 = vadd.f32 0.0, %v962
      %964 = vdwg.mxu0
      %v997 = vunpack.c.l.b16 %v296
      %v998 = vunpack.c.l.b16 %v297
      %v999 = vunpack.c.l.b16 %v299
      %v1000 = vunpack.c.l.b16 %v300
      %v1001 = vunpack.c.l.b16 %v302
      %v1002 = vunpack.c.l.b16 %v303
      %v1003 = vunpack.c.l.b16 %v305
      %v1004 = vunpack.c.l.b16 %v306
      %v1005 = vunpack.c.l.b16 %v308
      %v1006 = vunpack.c.l.b16 %v309
      %v1007 = vunpack.c.l.b16 %v311
      %v1008 = vunpack.c.l.b16 %v312
      %v1009 = vunpack.c.l.b16 %v314
      %v1010 = vunpack.c.l.b16 %v315
      %v1011 = vunpack.c.l.b16 %v317
      %v1012 = vunpack.c.l.b16 %v318
      %v1013 = vunpack.c.l.b16 %v320
      %v1014 = vunpack.c.l.b16 %v321
      %v1015 = vunpack.c.l.b16 %v323
      %v1016 = vunpack.c.l.b16 %v324
      %v1017 = vunpack.c.l.b16 %v326
      %v1018 = vunpack.c.l.b16 %v327
      %v1019 = vunpack.c.l.b16 %v329
      %v1020 = vunpack.c.l.b16 %v330
      %v1021 = vunpack.c.l.b16 %v332
      %v1022 = vunpack.c.l.b16 %v333
      %v1023 = vunpack.c.l.b16 %v335
      %v1024 = vunpack.c.l.b16 %v336
      %v1025 = vunpack.c.l.b16 %v338
      %v1026 = vunpack.c.l.b16 %v339
      %v1027 = vunpack.c.l.b16 %v341
      %v1028 = vunpack.c.l.b16 %v342
      %v1029 = vpack.c.b16 %v998, %v997
      %v1030 = vpack.c.b16 %v1000, %v999
      %v1031 = vpack.c.b16 %v1002, %v1001
      %v1032 = vpack.c.b16 %v1004, %v1003
      %v1033 = vpack.c.b16 %v1006, %v1005
      %v1034 = vpack.c.b16 %v1008, %v1007
      %v1035 = vpack.c.b16 %v1010, %v1009
      %v1036 = vpack.c.b16 %v1012, %v1011
      %v1037 = vpack.c.b16 %v1014, %v1013
      %v1038 = vpack.c.b16 %v1016, %v1015
      %v1039 = vpack.c.b16 %v1018, %v1017
      %v1040 = vpack.c.b16 %v1020, %v1019
      %v1041 = vpack.c.b16 %v1022, %v1021
      %v1042 = vpack.c.b16 %v1024, %v1023
      %v1043 = vpack.c.b16 %v1026, %v1025
      %v1044 = vpack.c.b16 %v1028, %v1027
      %v1077 = vunpack.c.l.b16 %v344
      %v1078 = vunpack.c.l.b16 %v345
      %v1079 = vunpack.c.l.b16 %v346
      %v1080 = vunpack.c.l.b16 %v347
      %v1081 = vunpack.c.l.b16 %v348
      %v1082 = vunpack.c.l.b16 %v349
      %v1083 = vunpack.c.l.b16 %v350
      %v1084 = vunpack.c.l.b16 %v351
      %v1085 = vunpack.c.l.b16 %v352
      %v1086 = vunpack.c.l.b16 %v353
      %v1087 = vunpack.c.l.b16 %v354
      %v1088 = vunpack.c.l.b16 %v355
      %v1089 = vunpack.c.l.b16 %v356
      %v1090 = vunpack.c.l.b16 %v357
      %v1091 = vunpack.c.l.b16 %v358
      %v1092 = vunpack.c.l.b16 %v359
      %v1093 = vpack.c.b16 %v1078, %v1077
      %v1094 = vpack.c.b16 %v1080, %v1079
      %v1095 = vpack.c.b16 %v1082, %v1081
      %v1096 = vpack.c.b16 %v1084, %v1083
      %v1097 = vpack.c.b16 %v1086, %v1085
      %v1098 = vpack.c.b16 %v1088, %v1087
      %v1099 = vpack.c.b16 %v1090, %v1089
      %v1100 = vpack.c.b16 %v1092, %v1091
      %1109 = vmatpush.bf16.msra.mxu0 %v1100
      %1110 = vmatpush.bf16.msra.mxu0 %v1099
      %1111 = vmatpush.bf16.msra.mxu0 %v1098
      %1112 = vmatpush.bf16.msra.mxu0 %v1097
      %1113 = vmatpush.bf16.msra.mxu0 %v1096
      %1114 = vmatpush.bf16.msra.mxu0 %v1095
      %1115 = vmatpush.bf16.msra.mxu0 %v1094
      %1116 = vmatpush.bf16.msra.mxu0 %v1093
      %1117 = vmatmul.bf16.gmra.mxu0 %v1029
      %v1118 = vpop.f32.mrf.mxu0
      %v1119 = vadd.f32 %v886, %v1118
      %v1120 = vpop.f32.mrf.mxu0
      %v1121 = vadd.f32 %v888, %v1120
      %1122 = vmatmul.bf16.gmra.mxu0 %v1030
      %v1123 = vpop.f32.mrf.mxu0
      %v1124 = vadd.f32 %v891, %v1123
      %v1125 = vpop.f32.mrf.mxu0
      %v1126 = vadd.f32 %v893, %v1125
      %1127 = vmatmul.bf16.gmra.mxu0 %v1031
      %v1128 = vpop.f32.mrf.mxu0
      %v1129 = vadd.f32 %v896, %v1128
      %v1130 = vpop.f32.mrf.mxu0
      %v1131 = vadd.f32 %v898, %v1130
      %1132 = vmatmul.bf16.gmra.mxu0 %v1032
      %v1133 = vpop.f32.mrf.mxu0
      %v1134 = vadd.f32 %v901, %v1133
      %v1135 = vpop.f32.mrf.mxu0
      %v1136 = vadd.f32 %v903, %v1135
      %1137 = vmatmul.bf16.gmra.mxu0 %v1033
      %v1138 = vpop.f32.mrf.mxu0
      %v1139 = vadd.f32 %v906, %v1138
      %v1140 = vpop.f32.mrf.mxu0
      %v1141 = vadd.f32 %v908, %v1140
      %1142 = vmatmul.bf16.gmra.mxu0 %v1034
      %v1143 = vpop.f32.mrf.mxu0
      %v1144 = vadd.f32 %v911, %v1143
      %v1145 = vpop.f32.mrf.mxu0
      %v1146 = vadd.f32 %v913, %v1145
      %1147 = vmatmul.bf16.gmra.mxu0 %v1035
      %v1148 = vpop.f32.mrf.mxu0
      %v1149 = vadd.f32 %v916, %v1148
      %v1150 = vpop.f32.mrf.mxu0
      %v1151 = vadd.f32 %v918, %v1150
      %1152 = vmatmul.bf16.gmra.mxu0 %v1036
      %v1153 = vpop.f32.mrf.mxu0
      %v1154 = vadd.f32 %v921, %v1153
      %v1155 = vpop.f32.mrf.mxu0
      %v1156 = vadd.f32 %v923, %v1155
      %1157 = vmatmul.bf16.gmra.mxu0 %v1037
      %v1158 = vpop.f32.mrf.mxu0
      %v1159 = vadd.f32 %v926, %v1158
      %v1160 = vpop.f32.mrf.mxu0
      %v1161 = vadd.f32 %v928, %v1160
      %1162 = vmatmul.bf16.gmra.mxu0 %v1038
      %v1163 = vpop.f32.mrf.mxu0
      %v1164 = vadd.f32 %v931, %v1163
      %v1165 = vpop.f32.mrf.mxu0
      %v1166 = vadd.f32 %v933, %v1165
      %1167 = vmatmul.bf16.gmra.mxu0 %v1039
      %v1168 = vpop.f32.mrf.mxu0
      %v1169 = vadd.f32 %v936, %v1168
      %v1170 = vpop.f32.mrf.mxu0
      %v1171 = vadd.f32 %v938, %v1170
      %1172 = vmatmul.bf16.gmra.mxu0 %v1040
      %v1173 = vpop.f32.mrf.mxu0
      %v1174 = vadd.f32 %v941, %v1173
      %v1175 = vpop.f32.mrf.mxu0
      %v1176 = vadd.f32 %v943, %v1175
      %1177 = vmatmul.bf16.gmra.mxu0 %v1041
      %v1178 = vpop.f32.mrf.mxu0
      %v1179 = vadd.f32 %v946, %v1178
      %v1180 = vpop.f32.mrf.mxu0
      %v1181 = vadd.f32 %v948, %v1180
      %1182 = vmatmul.bf16.gmra.mxu0 %v1042
      %v1183 = vpop.f32.mrf.mxu0
      %v1184 = vadd.f32 %v951, %v1183
      %v1185 = vpop.f32.mrf.mxu0
      %v1186 = vadd.f32 %v953, %v1185
      %1187 = vmatmul.bf16.gmra.mxu0 %v1043
      %v1188 = vpop.f32.mrf.mxu0
      %v1189 = vadd.f32 %v956, %v1188
      %v1190 = vpop.f32.mrf.mxu0
      %v1191 = vadd.f32 %v958, %v1190
      %1192 = vmatmul.bf16.gmra.mxu0 %v1044
      %v1193 = vpop.f32.mrf.mxu0
      %v1194 = vadd.f32 %v961, %v1193
      %v1195 = vpop.f32.mrf.mxu0
      %v1196 = vadd.f32 %v963, %v1195
      %1197 = vdwg.mxu0
      %vm1214 = vcmask 1042432
      %vm1215 = vcmask 1046532
      %vm1216 = vmor %vm1214, %vm1215
      %v1217 = vrot.slane %v296, 5
      %v1218 = vrot.slane %v1217, 4
      %v1219 = vrot.slane %v297, 5
      %v1220 = vsel %vm1216, %v1218, %v1219
      %v1221 = vrot.slane %v1219, 4
      %v1222 = vrot.slane %v298, 5
      %v1223 = vsel %vm1216, %v1221, %v1222
      %v1224 = vrot.slane %v299, 5
      %v1225 = vrot.slane %v1224, 4
      %v1226 = vrot.slane %v300, 5
      %v1227 = vsel %vm1216, %v1225, %v1226
      %v1228 = vrot.slane %v1226, 4
      %v1229 = vrot.slane %v301, 5
      %v1230 = vsel %vm1216, %v1228, %v1229
      %v1231 = vrot.slane %v302, 5
      %v1232 = vrot.slane %v1231, 4
      %v1233 = vrot.slane %v303, 5
      %v1234 = vsel %vm1216, %v1232, %v1233
      %v1235 = vrot.slane %v1233, 4
      %v1236 = vrot.slane %v304, 5
      %v1237 = vsel %vm1216, %v1235, %v1236
      %v1238 = vrot.slane %v305, 5
      %v1239 = vrot.slane %v1238, 4
      %v1240 = vrot.slane %v306, 5
      %v1241 = vsel %vm1216, %v1239, %v1240
      %v1242 = vrot.slane %v1240, 4
      %v1243 = vrot.slane %v307, 5
      %v1244 = vsel %vm1216, %v1242, %v1243
      %v1245 = vrot.slane %v308, 5
      %v1246 = vrot.slane %v1245, 4
      %v1247 = vrot.slane %v309, 5
      %v1248 = vsel %vm1216, %v1246, %v1247
      %v1249 = vrot.slane %v1247, 4
      %v1250 = vrot.slane %v310, 5
      %v1251 = vsel %vm1216, %v1249, %v1250
      %v1252 = vrot.slane %v311, 5
      %v1253 = vrot.slane %v1252, 4
      %v1254 = vrot.slane %v312, 5
      %v1255 = vsel %vm1216, %v1253, %v1254
      %v1256 = vrot.slane %v1254, 4
      %v1257 = vrot.slane %v313, 5
      %v1258 = vsel %vm1216, %v1256, %v1257
      %v1259 = vrot.slane %v314, 5
      %v1260 = vrot.slane %v1259, 4
      %v1261 = vrot.slane %v315, 5
      %v1262 = vsel %vm1216, %v1260, %v1261
      %v1263 = vrot.slane %v1261, 4
      %v1264 = vrot.slane %v316, 5
      %v1265 = vsel %vm1216, %v1263, %v1264
      %v1266 = vrot.slane %v317, 5
      %v1267 = vrot.slane %v1266, 4
      %v1268 = vrot.slane %v318, 5
      %v1269 = vsel %vm1216, %v1267, %v1268
      %v1270 = vrot.slane %v1268, 4
      %v1271 = vrot.slane %v319, 5
      %v1272 = vsel %vm1216, %v1270, %v1271
      %v1273 = vrot.slane %v320, 5
      %v1274 = vrot.slane %v1273, 4
      %v1275 = vrot.slane %v321, 5
      %v1276 = vsel %vm1216, %v1274, %v1275
      %v1277 = vrot.slane %v1275, 4
      %v1278 = vrot.slane %v322, 5
      %v1279 = vsel %vm1216, %v1277, %v1278
      %v1280 = vrot.slane %v323, 5
      %v1281 = vrot.slane %v1280, 4
      %v1282 = vrot.slane %v324, 5
      %v1283 = vsel %vm1216, %v1281, %v1282
      %v1284 = vrot.slane %v1282, 4
      %v1285 = vrot.slane %v325, 5
      %v1286 = vsel %vm1216, %v1284, %v1285
      %v1287 = vrot.slane %v326, 5
      %v1288 = vrot.slane %v1287, 4
      %v1289 = vrot.slane %v327, 5
      %v1290 = vsel %vm1216, %v1288, %v1289
      %v1291 = vrot.slane %v1289, 4
      %v1292 = vrot.slane %v328, 5
      %v1293 = vsel %vm1216, %v1291, %v1292
      %v1294 = vrot.slane %v329, 5
      %v1295 = vrot.slane %v1294, 4
      %v1296 = vrot.slane %v330, 5
      %v1297 = vsel %vm1216, %v1295, %v1296
      %v1298 = vrot.slane %v1296, 4
      %v1299 = vrot.slane %v331, 5
      %v1300 = vsel %vm1216, %v1298, %v1299
      %v1301 = vrot.slane %v332, 5
      %v1302 = vrot.slane %v1301, 4
      %v1303 = vrot.slane %v333, 5
      %v1304 = vsel %vm1216, %v1302, %v1303
      %v1305 = vrot.slane %v1303, 4
      %v1306 = vrot.slane %v334, 5
      %v1307 = vsel %vm1216, %v1305, %v1306
      %v1308 = vrot.slane %v335, 5
      %v1309 = vrot.slane %v1308, 4
      %v1310 = vrot.slane %v336, 5
      %v1311 = vsel %vm1216, %v1309, %v1310
      %v1312 = vrot.slane %v1310, 4
      %v1313 = vrot.slane %v337, 5
      %v1314 = vsel %vm1216, %v1312, %v1313
      %v1315 = vrot.slane %v338, 5
      %v1316 = vrot.slane %v1315, 4
      %v1317 = vrot.slane %v339, 5
      %v1318 = vsel %vm1216, %v1316, %v1317
      %v1319 = vrot.slane %v1317, 4
      %v1320 = vrot.slane %v340, 5
      %v1321 = vsel %vm1216, %v1319, %v1320
      %v1322 = vrot.slane %v341, 5
      %v1323 = vrot.slane %v1322, 4
      %v1324 = vrot.slane %v342, 5
      %v1325 = vsel %vm1216, %v1323, %v1324
      %v1326 = vrot.slane %v1324, 4
      %v1327 = vrot.slane %v343, 5
      %v1328 = vsel %vm1216, %v1326, %v1327
      %s1329 = scalar_lea.vmem %s246, 128
      %v1330 = vld [vmem:[%s1329] sm:$0xf]
      %v1331 = vld [vmem:[%s1329 + $0x4] sm:$0xf]
      %v1332 = vld [vmem:[%s1329 + $0x8] sm:$0xf]
      %v1333 = vld [vmem:[%s1329 + $0xc] sm:$0xf]
      %v1334 = vld [vmem:[%s1329 + $0x10] sm:$0xf]
      %v1335 = vld [vmem:[%s1329 + $0x14] sm:$0xf]
      %v1336 = vld [vmem:[%s1329 + $0x18] sm:$0xf]
      %v1337 = vld [vmem:[%s1329 + $0x1c] sm:$0xf]
      %v1338 = vld [vmem:[%s1329 + $0x20] sm:$0xf]
      %v1339 = vld [vmem:[%s1329 + $0x24] sm:$0xf]
      %v1340 = vld [vmem:[%s1329 + $0x28] sm:$0xf]
      %v1341 = vld [vmem:[%s1329 + $0x2c] sm:$0xf]
      %v1342 = vld [vmem:[%s1329 + $0x30] sm:$0xf]
      %v1343 = vld [vmem:[%s1329 + $0x34] sm:$0xf]
      %v1344 = vld [vmem:[%s1329 + $0x38] sm:$0xf]
      %v1345 = vld [vmem:[%s1329 + $0x3c] sm:$0xf]
      %v1346 = vunpack.c.l.b16 %v1220
      %v1347 = vunpack.c.l.b16 %v1223
      %v1348 = vunpack.c.l.b16 %v1227
      %v1349 = vunpack.c.l.b16 %v1230
      %v1350 = vunpack.c.l.b16 %v1234
      %v1351 = vunpack.c.l.b16 %v1237
      %v1352 = vunpack.c.l.b16 %v1241
      %v1353 = vunpack.c.l.b16 %v1244
      %v1354 = vunpack.c.l.b16 %v1248
      %v1355 = vunpack.c.l.b16 %v1251
      %v1356 = vunpack.c.l.b16 %v1255
      %v1357 = vunpack.c.l.b16 %v1258
      %v1358 = vunpack.c.l.b16 %v1262
      %v1359 = vunpack.c.l.b16 %v1265
      %v1360 = vunpack.c.l.b16 %v1269
      %v1361 = vunpack.c.l.b16 %v1272
      %v1362 = vunpack.c.l.b16 %v1276
      %v1363 = vunpack.c.l.b16 %v1279
      %v1364 = vunpack.c.l.b16 %v1283
      %v1365 = vunpack.c.l.b16 %v1286
      %v1366 = vunpack.c.l.b16 %v1290
      %v1367 = vunpack.c.l.b16 %v1293
      %v1368 = vunpack.c.l.b16 %v1297
      %v1369 = vunpack.c.l.b16 %v1300
      %v1370 = vunpack.c.l.b16 %v1304
      %v1371 = vunpack.c.l.b16 %v1307
      %v1372 = vunpack.c.l.b16 %v1311
      %v1373 = vunpack.c.l.b16 %v1314
      %v1374 = vunpack.c.l.b16 %v1318
      %v1375 = vunpack.c.l.b16 %v1321
      %v1376 = vunpack.c.l.b16 %v1325
      %v1377 = vunpack.c.l.b16 %v1328
      %v1378 = vpack.c.b16 %v1347, %v1346
      %v1379 = vpack.c.b16 %v1349, %v1348
      %v1380 = vpack.c.b16 %v1351, %v1350
      %v1381 = vpack.c.b16 %v1353, %v1352
      %v1382 = vpack.c.b16 %v1355, %v1354
      %v1383 = vpack.c.b16 %v1357, %v1356
      %v1384 = vpack.c.b16 %v1359, %v1358
      %v1385 = vpack.c.b16 %v1361, %v1360
      %v1386 = vpack.c.b16 %v1363, %v1362
      %v1387 = vpack.c.b16 %v1365, %v1364
      %v1388 = vpack.c.b16 %v1367, %v1366
      %v1389 = vpack.c.b16 %v1369, %v1368
      %v1390 = vpack.c.b16 %v1371, %v1370
      %v1391 = vpack.c.b16 %v1373, %v1372
      %v1392 = vpack.c.b16 %v1375, %v1374
      %v1393 = vpack.c.b16 %v1377, %v1376
      %v1426 = vunpack.c.l.b16 %v1330
      %v1427 = vunpack.c.l.b16 %v1331
      %v1428 = vunpack.c.l.b16 %v1332
      %v1429 = vunpack.c.l.b16 %v1333
      %v1430 = vunpack.c.l.b16 %v1334
      %v1431 = vunpack.c.l.b16 %v1335
      %v1432 = vunpack.c.l.b16 %v1336
      %v1433 = vunpack.c.l.b16 %v1337
      %v1434 = vunpack.c.l.b16 %v1338
      %v1435 = vunpack.c.l.b16 %v1339
      %v1436 = vunpack.c.l.b16 %v1340
      %v1437 = vunpack.c.l.b16 %v1341
      %v1438 = vunpack.c.l.b16 %v1342
      %v1439 = vunpack.c.l.b16 %v1343
      %v1440 = vunpack.c.l.b16 %v1344
      %v1441 = vunpack.c.l.b16 %v1345
      %v1442 = vpack.c.b16 %v1427, %v1426
      %v1443 = vpack.c.b16 %v1429, %v1428
      %v1444 = vpack.c.b16 %v1431, %v1430
      %v1445 = vpack.c.b16 %v1433, %v1432
      %v1446 = vpack.c.b16 %v1435, %v1434
      %v1447 = vpack.c.b16 %v1437, %v1436
      %v1448 = vpack.c.b16 %v1439, %v1438
      %v1449 = vpack.c.b16 %v1441, %v1440
      %1458 = vmatpush.bf16.msra.mxu0 %v1449
      %1459 = vmatpush.bf16.msra.mxu0 %v1448
      %1460 = vmatpush.bf16.msra.mxu0 %v1447
      %1461 = vmatpush.bf16.msra.mxu0 %v1446
      %1462 = vmatpush.bf16.msra.mxu0 %v1445
      %1463 = vmatpush.bf16.msra.mxu0 %v1444
      %1464 = vmatpush.bf16.msra.mxu0 %v1443
      %1465 = vmatpush.bf16.msra.mxu0 %v1442
      %1466 = vmatmul.bf16.gmra.mxu0 %v1378
      %v1467 = vpop.f32.mrf.mxu0
      %v1468 = vadd.f32 0.0, %v1467
      %v1469 = vpop.f32.mrf.mxu0
      %v1470 = vadd.f32 0.0, %v1469
      %1471 = vmatmul.bf16.gmra.mxu0 %v1379
      %v1472 = vpop.f32.mrf.mxu0
      %v1473 = vadd.f32 0.0, %v1472
      %v1474 = vpop.f32.mrf.mxu0
      %v1475 = vadd.f32 0.0, %v1474
      %1476 = vmatmul.bf16.gmra.mxu0 %v1380
      %v1477 = vpop.f32.mrf.mxu0
      %v1478 = vadd.f32 0.0, %v1477
      %v1479 = vpop.f32.mrf.mxu0
      %v1480 = vadd.f32 0.0, %v1479
      %1481 = vmatmul.bf16.gmra.mxu0 %v1381
      %v1482 = vpop.f32.mrf.mxu0
      %v1483 = vadd.f32 0.0, %v1482
      %v1484 = vpop.f32.mrf.mxu0
      %v1485 = vadd.f32 0.0, %v1484
      %1486 = vmatmul.bf16.gmra.mxu0 %v1382
      %v1487 = vpop.f32.mrf.mxu0
      %v1488 = vadd.f32 0.0, %v1487
      %v1489 = vpop.f32.mrf.mxu0
      %v1490 = vadd.f32 0.0, %v1489
      %1491 = vmatmul.bf16.gmra.mxu0 %v1383
      %v1492 = vpop.f32.mrf.mxu0
      %v1493 = vadd.f32 0.0, %v1492
      %v1494 = vpop.f32.mrf.mxu0
      %v1495 = vadd.f32 0.0, %v1494
      %1496 = vmatmul.bf16.gmra.mxu0 %v1384
      %v1497 = vpop.f32.mrf.mxu0
      %v1498 = vadd.f32 0.0, %v1497
      %v1499 = vpop.f32.mrf.mxu0
      %v1500 = vadd.f32 0.0, %v1499
      %1501 = vmatmul.bf16.gmra.mxu0 %v1385
      %v1502 = vpop.f32.mrf.mxu0
      %v1503 = vadd.f32 0.0, %v1502
      %v1504 = vpop.f32.mrf.mxu0
      %v1505 = vadd.f32 0.0, %v1504
      %1506 = vmatmul.bf16.gmra.mxu0 %v1386
      %v1507 = vpop.f32.mrf.mxu0
      %v1508 = vadd.f32 0.0, %v1507
      %v1509 = vpop.f32.mrf.mxu0
      %v1510 = vadd.f32 0.0, %v1509
      %1511 = vmatmul.bf16.gmra.mxu0 %v1387
      %v1512 = vpop.f32.mrf.mxu0
      %v1513 = vadd.f32 0.0, %v1512
      %v1514 = vpop.f32.mrf.mxu0
      %v1515 = vadd.f32 0.0, %v1514
      %1516 = vmatmul.bf16.gmra.mxu0 %v1388
      %v1517 = vpop.f32.mrf.mxu0
      %v1518 = vadd.f32 0.0, %v1517
      %v1519 = vpop.f32.mrf.mxu0
      %v1520 = vadd.f32 0.0, %v1519
      %1521 = vmatmul.bf16.gmra.mxu0 %v1389
      %v1522 = vpop.f32.mrf.mxu0
      %v1523 = vadd.f32 0.0, %v1522
      %v1524 = vpop.f32.mrf.mxu0
      %v1525 = vadd.f32 0.0, %v1524
      %1526 = vmatmul.bf16.gmra.mxu0 %v1390
      %v1527 = vpop.f32.mrf.mxu0
      %v1528 = vadd.f32 0.0, %v1527
      %v1529 = vpop.f32.mrf.mxu0
      %v1530 = vadd.f32 0.0, %v1529
      %1531 = vmatmul.bf16.gmra.mxu0 %v1391
      %v1532 = vpop.f32.mrf.mxu0
      %v1533 = vadd.f32 0.0, %v1532
      %v1534 = vpop.f32.mrf.mxu0
      %v1535 = vadd.f32 0.0, %v1534
      %1536 = vmatmul.bf16.gmra.mxu0 %v1392
      %v1537 = vpop.f32.mrf.mxu0
      %v1538 = vadd.f32 0.0, %v1537
      %v1539 = vpop.f32.mrf.mxu0
      %v1540 = vadd.f32 0.0, %v1539
      %1541 = vmatmul.bf16.gmra.mxu0 %v1393
      %v1542 = vpop.f32.mrf.mxu0
      %v1543 = vadd.f32 0.0, %v1542
      %v1544 = vpop.f32.mrf.mxu0
      %v1545 = vadd.f32 0.0, %v1544
      %1546 = vdwg.mxu0
      %v1547 = vadd.f32 %v1119, %v1468
      %v1548 = vadd.f32 %v1121, %v1470
      %v1549 = vadd.f32 %v1124, %v1473
      %v1550 = vadd.f32 %v1126, %v1475
      %v1551 = vadd.f32 %v1129, %v1478
      %v1552 = vadd.f32 %v1131, %v1480
      %v1553 = vadd.f32 %v1134, %v1483
      %v1554 = vadd.f32 %v1136, %v1485
      %v1555 = vadd.f32 %v1139, %v1488
      %v1556 = vadd.f32 %v1141, %v1490
      %v1557 = vadd.f32 %v1144, %v1493
      %v1558 = vadd.f32 %v1146, %v1495
      %v1559 = vadd.f32 %v1149, %v1498
      %v1560 = vadd.f32 %v1151, %v1500
      %v1561 = vadd.f32 %v1154, %v1503
      %v1562 = vadd.f32 %v1156, %v1505
      %v1563 = vadd.f32 %v1159, %v1508
      %v1564 = vadd.f32 %v1161, %v1510
      %v1565 = vadd.f32 %v1164, %v1513
      %v1566 = vadd.f32 %v1166, %v1515
      %v1567 = vadd.f32 %v1169, %v1518
      %v1568 = vadd.f32 %v1171, %v1520
      %v1569 = vadd.f32 %v1174, %v1523
      %v1570 = vadd.f32 %v1176, %v1525
      %v1571 = vadd.f32 %v1179, %v1528
      %v1572 = vadd.f32 %v1181, %v1530
      %v1573 = vadd.f32 %v1184, %v1533
      %v1574 = vadd.f32 %v1186, %v1535
      %v1575 = vadd.f32 %v1189, %v1538
      %v1576 = vadd.f32 %v1191, %v1540
      %v1577 = vadd.f32 %v1194, %v1543
      %v1578 = vadd.f32 %v1196, %v1545
      %s1579 = scalar_lea.vmem %s237, 12
      %v1580 = vld [vmem:[%s1579] sm:$0xf]
      %v1581 = vld [vmem:[%s1579 + $0x4] sm:$0xf]
      %v1582 = vld [vmem:[%s1579 + $0x8] sm:$0x1]
      %v1583 = vld [vmem:[%s1579 + $0xc] sm:$0xf]
      %v1584 = vld [vmem:[%s1579 + $0x10] sm:$0xf]
      %v1585 = vld [vmem:[%s1579 + $0x14] sm:$0x1]
      %v1586 = vld [vmem:[%s1579 + $0x18] sm:$0xf]
      %v1587 = vld [vmem:[%s1579 + $0x1c] sm:$0xf]
      %v1588 = vld [vmem:[%s1579 + $0x20] sm:$0x1]
      %v1589 = vld [vmem:[%s1579 + $0x24] sm:$0xf]
      %v1590 = vld [vmem:[%s1579 + $0x28] sm:$0xf]
      %v1591 = vld [vmem:[%s1579 + $0x2c] sm:$0x1]
      %v1592 = vld [vmem:[%s1579 + $0x30] sm:$0xf]
      %v1593 = vld [vmem:[%s1579 + $0x34] sm:$0xf]
      %v1594 = vld [vmem:[%s1579 + $0x38] sm:$0x1]
      %v1595 = vld [vmem:[%s1579 + $0x3c] sm:$0xf]
      %v1596 = vld [vmem:[%s1579 + $0x40] sm:$0xf]
      %v1597 = vld [vmem:[%s1579 + $0x44] sm:$0x1]
      %v1598 = vld [vmem:[%s1579 + $0x48] sm:$0xf]
      %v1599 = vld [vmem:[%s1579 + $0x4c] sm:$0xf]
      %v1600 = vld [vmem:[%s1579 + $0x50] sm:$0x1]
      %v1601 = vld [vmem:[%s1579 + $0x54] sm:$0xf]
      %v1602 = vld [vmem:[%s1579 + $0x58] sm:$0xf]
      %v1603 = vld [vmem:[%s1579 + $0x5c] sm:$0x1]
      %v1604 = vld [vmem:[%s1579 + $0x60] sm:$0xf]
      %v1605 = vld [vmem:[%s1579 + $0x64] sm:$0xf]
      %v1606 = vld [vmem:[%s1579 + $0x68] sm:$0x1]
      %v1607 = vld [vmem:[%s1579 + $0x6c] sm:$0xf]
      %v1608 = vld [vmem:[%s1579 + $0x70] sm:$0xf]
      %v1609 = vld [vmem:[%s1579 + $0x74] sm:$0x1]
      %v1610 = vld [vmem:[%s1579 + $0x78] sm:$0xf]
      %v1611 = vld [vmem:[%s1579 + $0x7c] sm:$0xf]
      %v1612 = vld [vmem:[%s1579 + $0x80] sm:$0x1]
      %v1613 = vld [vmem:[%s1579 + $0x84] sm:$0xf]
      %v1614 = vld [vmem:[%s1579 + $0x88] sm:$0xf]
      %v1615 = vld [vmem:[%s1579 + $0x8c] sm:$0x1]
      %v1616 = vld [vmem:[%s1579 + $0x90] sm:$0xf]
      %v1617 = vld [vmem:[%s1579 + $0x94] sm:$0xf]
      %v1618 = vld [vmem:[%s1579 + $0x98] sm:$0x1]
      %v1619 = vld [vmem:[%s1579 + $0x9c] sm:$0xf]
      %v1620 = vld [vmem:[%s1579 + $0xa0] sm:$0xf]
      %v1621 = vld [vmem:[%s1579 + $0xa4] sm:$0x1]
      %v1622 = vld [vmem:[%s1579 + $0xa8] sm:$0xf]
      %v1623 = vld [vmem:[%s1579 + $0xac] sm:$0xf]
      %v1624 = vld [vmem:[%s1579 + $0xb0] sm:$0x1]
      %v1625 = vld [vmem:[%s1579 + $0xb4] sm:$0xf]
      %v1626 = vld [vmem:[%s1579 + $0xb8] sm:$0xf]
      %v1627 = vld [vmem:[%s1579 + $0xbc] sm:$0x1]
      %s1628 = scalar_lea.vmem %s246, 192
      %v1629 = vld [vmem:[%s1628] sm:$0xf]
      %v1630 = vld [vmem:[%s1628 + $0x4] sm:$0xf]
      %v1631 = vld [vmem:[%s1628 + $0x8] sm:$0xf]
      %v1632 = vld [vmem:[%s1628 + $0xc] sm:$0xf]
      %v1633 = vld [vmem:[%s1628 + $0x10] sm:$0xf]
      %v1634 = vld [vmem:[%s1628 + $0x14] sm:$0xf]
      %v1635 = vld [vmem:[%s1628 + $0x18] sm:$0xf]
      %v1636 = vld [vmem:[%s1628 + $0x1c] sm:$0xf]
      %v1637 = vld [vmem:[%s1628 + $0x20] sm:$0xf]
      %v1638 = vld [vmem:[%s1628 + $0x24] sm:$0xf]
      %v1639 = vld [vmem:[%s1628 + $0x28] sm:$0xf]
      %v1640 = vld [vmem:[%s1628 + $0x2c] sm:$0xf]
      %v1641 = vld [vmem:[%s1628 + $0x30] sm:$0xf]
      %v1642 = vld [vmem:[%s1628 + $0x34] sm:$0xf]
      %v1643 = vld [vmem:[%s1628 + $0x38] sm:$0xf]
      %v1644 = vld [vmem:[%s1628 + $0x3c] sm:$0xf]
      %v1677 = vunpack.c.l.b16 %v1580
      %v1678 = vunpack.c.l.b16 %v1581
      %v1679 = vunpack.c.l.b16 %v1583
      %v1680 = vunpack.c.l.b16 %v1584
      %v1681 = vunpack.c.l.b16 %v1586
      %v1682 = vunpack.c.l.b16 %v1587
      %v1683 = vunpack.c.l.b16 %v1589
      %v1684 = vunpack.c.l.b16 %v1590
      %v1685 = vunpack.c.l.b16 %v1592
      %v1686 = vunpack.c.l.b16 %v1593
      %v1687 = vunpack.c.l.b16 %v1595
      %v1688 = vunpack.c.l.b16 %v1596
      %v1689 = vunpack.c.l.b16 %v1598
      %v1690 = vunpack.c.l.b16 %v1599
      %v1691 = vunpack.c.l.b16 %v1601
      %v1692 = vunpack.c.l.b16 %v1602
      %v1693 = vunpack.c.l.b16 %v1604
      %v1694 = vunpack.c.l.b16 %v1605
      %v1695 = vunpack.c.l.b16 %v1607
      %v1696 = vunpack.c.l.b16 %v1608
      %v1697 = vunpack.c.l.b16 %v1610
      %v1698 = vunpack.c.l.b16 %v1611
      %v1699 = vunpack.c.l.b16 %v1613
      %v1700 = vunpack.c.l.b16 %v1614
      %v1701 = vunpack.c.l.b16 %v1616
      %v1702 = vunpack.c.l.b16 %v1617
      %v1703 = vunpack.c.l.b16 %v1619
      %v1704 = vunpack.c.l.b16 %v1620
      %v1705 = vunpack.c.l.b16 %v1622
      %v1706 = vunpack.c.l.b16 %v1623
      %v1707 = vunpack.c.l.b16 %v1625
      %v1708 = vunpack.c.l.b16 %v1626
      %v1709 = vpack.c.b16 %v1678, %v1677
      %v1710 = vpack.c.b16 %v1680, %v1679
      %v1711 = vpack.c.b16 %v1682, %v1681
      %v1712 = vpack.c.b16 %v1684, %v1683
      %v1713 = vpack.c.b16 %v1686, %v1685
      %v1714 = vpack.c.b16 %v1688, %v1687
      %v1715 = vpack.c.b16 %v1690, %v1689
      %v1716 = vpack.c.b16 %v1692, %v1691
      %v1717 = vpack.c.b16 %v1694, %v1693
      %v1718 = vpack.c.b16 %v1696, %v1695
      %v1719 = vpack.c.b16 %v1698, %v1697
      %v1720 = vpack.c.b16 %v1700, %v1699
      %v1721 = vpack.c.b16 %v1702, %v1701
      %v1722 = vpack.c.b16 %v1704, %v1703
      %v1723 = vpack.c.b16 %v1706, %v1705
      %v1724 = vpack.c.b16 %v1708, %v1707
      %v1757 = vunpack.c.l.b16 %v1629
      %v1758 = vunpack.c.l.b16 %v1630
      %v1759 = vunpack.c.l.b16 %v1631
      %v1760 = vunpack.c.l.b16 %v1632
      %v1761 = vunpack.c.l.b16 %v1633
      %v1762 = vunpack.c.l.b16 %v1634
      %v1763 = vunpack.c.l.b16 %v1635
      %v1764 = vunpack.c.l.b16 %v1636
      %v1765 = vunpack.c.l.b16 %v1637
      %v1766 = vunpack.c.l.b16 %v1638
      %v1767 = vunpack.c.l.b16 %v1639
      %v1768 = vunpack.c.l.b16 %v1640
      %v1769 = vunpack.c.l.b16 %v1641
      %v1770 = vunpack.c.l.b16 %v1642
      %v1771 = vunpack.c.l.b16 %v1643
      %v1772 = vunpack.c.l.b16 %v1644
      %v1773 = vpack.c.b16 %v1758, %v1757
      %v1774 = vpack.c.b16 %v1760, %v1759
      %v1775 = vpack.c.b16 %v1762, %v1761
      %v1776 = vpack.c.b16 %v1764, %v1763
      %v1777 = vpack.c.b16 %v1766, %v1765
      %v1778 = vpack.c.b16 %v1768, %v1767
      %v1779 = vpack.c.b16 %v1770, %v1769
      %v1780 = vpack.c.b16 %v1772, %v1771
      %1789 = vmatpush.bf16.msra.mxu0 %v1780
      %1790 = vmatpush.bf16.msra.mxu0 %v1779
      %1791 = vmatpush.bf16.msra.mxu0 %v1778
      %1792 = vmatpush.bf16.msra.mxu0 %v1777
      %1793 = vmatpush.bf16.msra.mxu0 %v1776
      %1794 = vmatpush.bf16.msra.mxu0 %v1775
      %1795 = vmatpush.bf16.msra.mxu0 %v1774
      %1796 = vmatpush.bf16.msra.mxu0 %v1773
      %1797 = vmatmul.bf16.gmra.mxu0 %v1709
      %v1798 = vpop.f32.mrf.mxu0
      %v1799 = vadd.f32 0.0, %v1798
      %v1800 = vpop.f32.mrf.mxu0
      %v1801 = vadd.f32 0.0, %v1800
      %1802 = vmatmul.bf16.gmra.mxu0 %v1710
      %v1803 = vpop.f32.mrf.mxu0
      %v1804 = vadd.f32 0.0, %v1803
      %v1805 = vpop.f32.mrf.mxu0
      %v1806 = vadd.f32 0.0, %v1805
      %1807 = vmatmul.bf16.gmra.mxu0 %v1711
      %v1808 = vpop.f32.mrf.mxu0
      %v1809 = vadd.f32 0.0, %v1808
      %v1810 = vpop.f32.mrf.mxu0
      %v1811 = vadd.f32 0.0, %v1810
      %1812 = vmatmul.bf16.gmra.mxu0 %v1712
      %v1813 = vpop.f32.mrf.mxu0
      %v1814 = vadd.f32 0.0, %v1813
      %v1815 = vpop.f32.mrf.mxu0
      %v1816 = vadd.f32 0.0, %v1815
      %1817 = vmatmul.bf16.gmra.mxu0 %v1713
      %v1818 = vpop.f32.mrf.mxu0
      %v1819 = vadd.f32 0.0, %v1818
      %v1820 = vpop.f32.mrf.mxu0
      %v1821 = vadd.f32 0.0, %v1820
      %1822 = vmatmul.bf16.gmra.mxu0 %v1714
      %v1823 = vpop.f32.mrf.mxu0
      %v1824 = vadd.f32 0.0, %v1823
      %v1825 = vpop.f32.mrf.mxu0
      %v1826 = vadd.f32 0.0, %v1825
      %1827 = vmatmul.bf16.gmra.mxu0 %v1715
      %v1828 = vpop.f32.mrf.mxu0
      %v1829 = vadd.f32 0.0, %v1828
      %v1830 = vpop.f32.mrf.mxu0
      %v1831 = vadd.f32 0.0, %v1830
      %1832 = vmatmul.bf16.gmra.mxu0 %v1716
      %v1833 = vpop.f32.mrf.mxu0
      %v1834 = vadd.f32 0.0, %v1833
      %v1835 = vpop.f32.mrf.mxu0
      %v1836 = vadd.f32 0.0, %v1835
      %1837 = vmatmul.bf16.gmra.mxu0 %v1717
      %v1838 = vpop.f32.mrf.mxu0
      %v1839 = vadd.f32 0.0, %v1838
      %v1840 = vpop.f32.mrf.mxu0
      %v1841 = vadd.f32 0.0, %v1840
      %1842 = vmatmul.bf16.gmra.mxu0 %v1718
      %v1843 = vpop.f32.mrf.mxu0
      %v1844 = vadd.f32 0.0, %v1843
      %v1845 = vpop.f32.mrf.mxu0
      %v1846 = vadd.f32 0.0, %v1845
      %1847 = vmatmul.bf16.gmra.mxu0 %v1719
      %v1848 = vpop.f32.mrf.mxu0
      %v1849 = vadd.f32 0.0, %v1848
      %v1850 = vpop.f32.mrf.mxu0
      %v1851 = vadd.f32 0.0, %v1850
      %1852 = vmatmul.bf16.gmra.mxu0 %v1720
      %v1853 = vpop.f32.mrf.mxu0
      %v1854 = vadd.f32 0.0, %v1853
      %v1855 = vpop.f32.mrf.mxu0
      %v1856 = vadd.f32 0.0, %v1855
      %1857 = vmatmul.bf16.gmra.mxu0 %v1721
      %v1858 = vpop.f32.mrf.mxu0
      %v1859 = vadd.f32 0.0, %v1858
      %v1860 = vpop.f32.mrf.mxu0
      %v1861 = vadd.f32 0.0, %v1860
      %1862 = vmatmul.bf16.gmra.mxu0 %v1722
      %v1863 = vpop.f32.mrf.mxu0
      %v1864 = vadd.f32 0.0, %v1863
      %v1865 = vpop.f32.mrf.mxu0
      %v1866 = vadd.f32 0.0, %v1865
      %1867 = vmatmul.bf16.gmra.mxu0 %v1723
      %v1868 = vpop.f32.mrf.mxu0
      %v1869 = vadd.f32 0.0, %v1868
      %v1870 = vpop.f32.mrf.mxu0
      %v1871 = vadd.f32 0.0, %v1870
      %1872 = vmatmul.bf16.gmra.mxu0 %v1724
      %v1873 = vpop.f32.mrf.mxu0
      %v1874 = vadd.f32 0.0, %v1873
      %v1875 = vpop.f32.mrf.mxu0
      %v1876 = vadd.f32 0.0, %v1875
      %1877 = vdwg.mxu0
      %v1878 = vadd.f32 %v1547, %v1799
      %v1879 = vadd.f32 %v1548, %v1801
      %v1880 = vadd.f32 %v1549, %v1804
      %v1881 = vadd.f32 %v1550, %v1806
      %v1882 = vadd.f32 %v1551, %v1809
      %v1883 = vadd.f32 %v1552, %v1811
      %v1884 = vadd.f32 %v1553, %v1814
      %v1885 = vadd.f32 %v1554, %v1816
      %v1886 = vadd.f32 %v1555, %v1819
      %v1887 = vadd.f32 %v1556, %v1821
      %v1888 = vadd.f32 %v1557, %v1824
      %v1889 = vadd.f32 %v1558, %v1826
      %v1890 = vadd.f32 %v1559, %v1829
      %v1891 = vadd.f32 %v1560, %v1831
      %v1892 = vadd.f32 %v1561, %v1834
      %v1893 = vadd.f32 %v1562, %v1836
      %v1894 = vadd.f32 %v1563, %v1839
      %v1895 = vadd.f32 %v1564, %v1841
      %v1896 = vadd.f32 %v1565, %v1844
      %v1897 = vadd.f32 %v1566, %v1846
      %v1898 = vadd.f32 %v1567, %v1849
      %v1899 = vadd.f32 %v1568, %v1851
      %v1900 = vadd.f32 %v1569, %v1854
      %v1901 = vadd.f32 %v1570, %v1856
      %v1902 = vadd.f32 %v1571, %v1859
      %v1903 = vadd.f32 %v1572, %v1861
      %v1904 = vadd.f32 %v1573, %v1864
      %v1905 = vadd.f32 %v1574, %v1866
      %v1906 = vadd.f32 %v1575, %v1869
      %v1907 = vadd.f32 %v1576, %v1871
      %v1908 = vadd.f32 %v1577, %v1874
      %v1909 = vadd.f32 %v1578, %v1876
      %v1911 = vshrl.u32 %v1580, 16
      %v1913 = vrot.slane %v1911, 4
      %v1914 = vshll.u32 %v1580, 16
      %v1916 = vrot.slane %v1914, 5
      %v1917 = vor.u32 %v1913, %v1916
      %v1918 = vrot.slane %v1917, 4
      %v1920 = vshll.u32 %v1581, 16
      %v1922 = vrot.slane %v1920, 5
      %v1923 = vsel %vm362, %v1918, %v1922
      %v1924 = vshrl.u32 %v1581, 16
      %v1926 = vrot.slane %v1924, 4
      %v1927 = vor.u32 %v1926, %v1922
      %v1928 = vrot.slane %v1927, 4
      %v1930 = vshll.u32 %v1582, 16
      %v1932 = vrot.slane %v1930, 5
      %v1933 = vsel %vm362, %v1928, %v1932
      %v1935 = vshrl.u32 %v1583, 16
      %v1937 = vrot.slane %v1935, 4
      %v1938 = vshll.u32 %v1583, 16
      %v1940 = vrot.slane %v1938, 5
      %v1941 = vor.u32 %v1937, %v1940
      %v1942 = vrot.slane %v1941, 4
      %v1944 = vshll.u32 %v1584, 16
      %v1946 = vrot.slane %v1944, 5
      %v1947 = vsel %vm362, %v1942, %v1946
      %v1948 = vshrl.u32 %v1584, 16
      %v1950 = vrot.slane %v1948, 4
      %v1951 = vor.u32 %v1950, %v1946
      %v1952 = vrot.slane %v1951, 4
      %v1954 = vshll.u32 %v1585, 16
      %v1956 = vrot.slane %v1954, 5
      %v1957 = vsel %vm362, %v1952, %v1956
      %v1959 = vshrl.u32 %v1586, 16
      %v1961 = vrot.slane %v1959, 4
      %v1962 = vshll.u32 %v1586, 16
      %v1964 = vrot.slane %v1962, 5
      %v1965 = vor.u32 %v1961, %v1964
      %v1966 = vrot.slane %v1965, 4
      %v1968 = vshll.u32 %v1587, 16
      %v1970 = vrot.slane %v1968, 5
      %v1971 = vsel %vm362, %v1966, %v1970
      %v1972 = vshrl.u32 %v1587, 16
      %v1974 = vrot.slane %v1972, 4
      %v1975 = vor.u32 %v1974, %v1970
      %v1976 = vrot.slane %v1975, 4
      %v1978 = vshll.u32 %v1588, 16
      %v1980 = vrot.slane %v1978, 5
      %v1981 = vsel %vm362, %v1976, %v1980
      %v1983 = vshrl.u32 %v1589, 16
      %v1985 = vrot.slane %v1983, 4
      %v1986 = vshll.u32 %v1589, 16
      %v1988 = vrot.slane %v1986, 5
      %v1989 = vor.u32 %v1985, %v1988
      %v1990 = vrot.slane %v1989, 4
      %v1992 = vshll.u32 %v1590, 16
      %v1994 = vrot.slane %v1992, 5
      %v1995 = vsel %vm362, %v1990, %v1994
      %v1996 = vshrl.u32 %v1590, 16
      %v1998 = vrot.slane %v1996, 4
      %v1999 = vor.u32 %v1998, %v1994
      %v2000 = vrot.slane %v1999, 4
      %v2002 = vshll.u32 %v1591, 16
      %v2004 = vrot.slane %v2002, 5
      %v2005 = vsel %vm362, %v2000, %v2004
      %v2007 = vshrl.u32 %v1592, 16
      %v2009 = vrot.slane %v2007, 4
      %v2010 = vshll.u32 %v1592, 16
      %v2012 = vrot.slane %v2010, 5
      %v2013 = vor.u32 %v2009, %v2012
      %v2014 = vrot.slane %v2013, 4
      %v2016 = vshll.u32 %v1593, 16
      %v2018 = vrot.slane %v2016, 5
      %v2019 = vsel %vm362, %v2014, %v2018
      %v2020 = vshrl.u32 %v1593, 16
      %v2022 = vrot.slane %v2020, 4
      %v2023 = vor.u32 %v2022, %v2018
      %v2024 = vrot.slane %v2023, 4
      %v2026 = vshll.u32 %v1594, 16
      %v2028 = vrot.slane %v2026, 5
      %v2029 = vsel %vm362, %v2024, %v2028
      %v2031 = vshrl.u32 %v1595, 16
      %v2033 = vrot.slane %v2031, 4
      %v2034 = vshll.u32 %v1595, 16
      %v2036 = vrot.slane %v2034, 5
      %v2037 = vor.u32 %v2033, %v2036
      %v2038 = vrot.slane %v2037, 4
      %v2040 = vshll.u32 %v1596, 16
      %v2042 = vrot.slane %v2040, 5
      %v2043 = vsel %vm362, %v2038, %v2042
      %v2044 = vshrl.u32 %v1596, 16
      %v2046 = vrot.slane %v2044, 4
      %v2047 = vor.u32 %v2046, %v2042
      %v2048 = vrot.slane %v2047, 4
      %v2050 = vshll.u32 %v1597, 16
      %v2052 = vrot.slane %v2050, 5
      %v2053 = vsel %vm362, %v2048, %v2052
      %v2055 = vshrl.u32 %v1598, 16
      %v2057 = vrot.slane %v2055, 4
      %v2058 = vshll.u32 %v1598, 16
      %v2060 = vrot.slane %v2058, 5
      %v2061 = vor.u32 %v2057, %v2060
      %v2062 = vrot.slane %v2061, 4
      %v2064 = vshll.u32 %v1599, 16
      %v2066 = vrot.slane %v2064, 5
      %v2067 = vsel %vm362, %v2062, %v2066
      %v2068 = vshrl.u32 %v1599, 16
      %v2070 = vrot.slane %v2068, 4
      %v2071 = vor.u32 %v2070, %v2066
      %v2072 = vrot.slane %v2071, 4
      %v2074 = vshll.u32 %v1600, 16
      %v2076 = vrot.slane %v2074, 5
      %v2077 = vsel %vm362, %v2072, %v2076
      %v2079 = vshrl.u32 %v1601, 16
      %v2081 = vrot.slane %v2079, 4
      %v2082 = vshll.u32 %v1601, 16
      %v2084 = vrot.slane %v2082, 5
      %v2085 = vor.u32 %v2081, %v2084
      %v2086 = vrot.slane %v2085, 4
      %v2088 = vshll.u32 %v1602, 16
      %v2090 = vrot.slane %v2088, 5
      %v2091 = vsel %vm362, %v2086, %v2090
      %v2092 = vshrl.u32 %v1602, 16
      %v2094 = vrot.slane %v2092, 4
      %v2095 = vor.u32 %v2094, %v2090
      %v2096 = vrot.slane %v2095, 4
      %v2098 = vshll.u32 %v1603, 16
      %v2100 = vrot.slane %v2098, 5
      %v2101 = vsel %vm362, %v2096, %v2100
      %v2103 = vshrl.u32 %v1604, 16
      %v2105 = vrot.slane %v2103, 4
      %v2106 = vshll.u32 %v1604, 16
      %v2108 = vrot.slane %v2106, 5
      %v2109 = vor.u32 %v2105, %v2108
      %v2110 = vrot.slane %v2109, 4
      %v2112 = vshll.u32 %v1605, 16
      %v2114 = vrot.slane %v2112, 5
      %v2115 = vsel %vm362, %v2110, %v2114
      %v2116 = vshrl.u32 %v1605, 16
      %v2118 = vrot.slane %v2116, 4
      %v2119 = vor.u32 %v2118, %v2114
      %v2120 = vrot.slane %v2119, 4
      %v2122 = vshll.u32 %v1606, 16
      %v2124 = vrot.slane %v2122, 5
      %v2125 = vsel %vm362, %v2120, %v2124
      %v2127 = vshrl.u32 %v1607, 16
      %v2129 = vrot.slane %v2127, 4
      %v2130 = vshll.u32 %v1607, 16
      %v2132 = vrot.slane %v2130, 5
      %v2133 = vor.u32 %v2129, %v2132
      %v2134 = vrot.slane %v2133, 4
      %v2136 = vshll.u32 %v1608, 16
      %v2138 = vrot.slane %v2136, 5
      %v2139 = vsel %vm362, %v2134, %v2138
      %v2140 = vshrl.u32 %v1608, 16
      %v2142 = vrot.slane %v2140, 4
      %v2143 = vor.u32 %v2142, %v2138
      %v2144 = vrot.slane %v2143, 4
      %v2146 = vshll.u32 %v1609, 16
      %v2148 = vrot.slane %v2146, 5
      %v2149 = vsel %vm362, %v2144, %v2148
      %v2151 = vshrl.u32 %v1610, 16
      %v2153 = vrot.slane %v2151, 4
      %v2154 = vshll.u32 %v1610, 16
      %v2156 = vrot.slane %v2154, 5
      %v2157 = vor.u32 %v2153, %v2156
      %v2158 = vrot.slane %v2157, 4
      %v2160 = vshll.u32 %v1611, 16
      %v2162 = vrot.slane %v2160, 5
      %v2163 = vsel %vm362, %v2158, %v2162
      %v2164 = vshrl.u32 %v1611, 16
      %v2166 = vrot.slane %v2164, 4
      %v2167 = vor.u32 %v2166, %v2162
      %v2168 = vrot.slane %v2167, 4
      %v2170 = vshll.u32 %v1612, 16
      %v2172 = vrot.slane %v2170, 5
      %v2173 = vsel %vm362, %v2168, %v2172
      %v2175 = vshrl.u32 %v1613, 16
      %v2177 = vrot.slane %v2175, 4
      %v2178 = vshll.u32 %v1613, 16
      %v2180 = vrot.slane %v2178, 5
      %v2181 = vor.u32 %v2177, %v2180
      %v2182 = vrot.slane %v2181, 4
      %v2184 = vshll.u32 %v1614, 16
      %v2186 = vrot.slane %v2184, 5
      %v2187 = vsel %vm362, %v2182, %v2186
      %v2188 = vshrl.u32 %v1614, 16
      %v2190 = vrot.slane %v2188, 4
      %v2191 = vor.u32 %v2190, %v2186
      %v2192 = vrot.slane %v2191, 4
      %v2194 = vshll.u32 %v1615, 16
      %v2196 = vrot.slane %v2194, 5
      %v2197 = vsel %vm362, %v2192, %v2196
      %v2199 = vshrl.u32 %v1616, 16
      %v2201 = vrot.slane %v2199, 4
      %v2202 = vshll.u32 %v1616, 16
      %v2204 = vrot.slane %v2202, 5
      %v2205 = vor.u32 %v2201, %v2204
      %v2206 = vrot.slane %v2205, 4
      %v2208 = vshll.u32 %v1617, 16
      %v2210 = vrot.slane %v2208, 5
      %v2211 = vsel %vm362, %v2206, %v2210
      %v2212 = vshrl.u32 %v1617, 16
      %v2214 = vrot.slane %v2212, 4
      %v2215 = vor.u32 %v2214, %v2210
      %v2216 = vrot.slane %v2215, 4
      %v2218 = vshll.u32 %v1618, 16
      %v2220 = vrot.slane %v2218, 5
      %v2221 = vsel %vm362, %v2216, %v2220
      %v2223 = vshrl.u32 %v1619, 16
      %v2225 = vrot.slane %v2223, 4
      %v2226 = vshll.u32 %v1619, 16
      %v2228 = vrot.slane %v2226, 5
      %v2229 = vor.u32 %v2225, %v2228
      %v2230 = vrot.slane %v2229, 4
      %v2232 = vshll.u32 %v1620, 16
      %v2234 = vrot.slane %v2232, 5
      %v2235 = vsel %vm362, %v2230, %v2234
      %v2236 = vshrl.u32 %v1620, 16
      %v2238 = vrot.slane %v2236, 4
      %v2239 = vor.u32 %v2238, %v2234
      %v2240 = vrot.slane %v2239, 4
      %v2242 = vshll.u32 %v1621, 16
      %v2244 = vrot.slane %v2242, 5
      %v2245 = vsel %vm362, %v2240, %v2244
      %v2247 = vshrl.u32 %v1622, 16
      %v2249 = vrot.slane %v2247, 4
      %v2250 = vshll.u32 %v1622, 16
      %v2252 = vrot.slane %v2250, 5
      %v2253 = vor.u32 %v2249, %v2252
      %v2254 = vrot.slane %v2253, 4
      %v2256 = vshll.u32 %v1623, 16
      %v2258 = vrot.slane %v2256, 5
      %v2259 = vsel %vm362, %v2254, %v2258
      %v2260 = vshrl.u32 %v1623, 16
      %v2262 = vrot.slane %v2260, 4
      %v2263 = vor.u32 %v2262, %v2258
      %v2264 = vrot.slane %v2263, 4
      %v2266 = vshll.u32 %v1624, 16
      %v2268 = vrot.slane %v2266, 5
      %v2269 = vsel %vm362, %v2264, %v2268
      %v2271 = vshrl.u32 %v1625, 16
      %v2273 = vrot.slane %v2271, 4
      %v2274 = vshll.u32 %v1625, 16
      %v2276 = vrot.slane %v2274, 5
      %v2277 = vor.u32 %v2273, %v2276
      %v2278 = vrot.slane %v2277, 4
      %v2280 = vshll.u32 %v1626, 16
      %v2282 = vrot.slane %v2280, 5
      %v2283 = vsel %vm362, %v2278, %v2282
      %v2284 = vshrl.u32 %v1626, 16
      %v2286 = vrot.slane %v2284, 4
      %v2287 = vor.u32 %v2286, %v2282
      %v2288 = vrot.slane %v2287, 4
      %v2290 = vshll.u32 %v1627, 16
      %v2292 = vrot.slane %v2290, 5
      %v2293 = vsel %vm362, %v2288, %v2292
      %s2294 = scalar_lea.vmem %s246, 256
      %v2295 = vld [vmem:[%s2294] sm:$0xf]
      %v2296 = vld [vmem:[%s2294 + $0x4] sm:$0xf]
      %v2297 = vld [vmem:[%s2294 + $0x8] sm:$0xf]
      %v2298 = vld [vmem:[%s2294 + $0xc] sm:$0xf]
      %v2299 = vld [vmem:[%s2294 + $0x10] sm:$0xf]
      %v2300 = vld [vmem:[%s2294 + $0x14] sm:$0xf]
      %v2301 = vld [vmem:[%s2294 + $0x18] sm:$0xf]
      %v2302 = vld [vmem:[%s2294 + $0x1c] sm:$0xf]
      %v2303 = vld [vmem:[%s2294 + $0x20] sm:$0xf]
      %v2304 = vld [vmem:[%s2294 + $0x24] sm:$0xf]
      %v2305 = vld [vmem:[%s2294 + $0x28] sm:$0xf]
      %v2306 = vld [vmem:[%s2294 + $0x2c] sm:$0xf]
      %v2307 = vld [vmem:[%s2294 + $0x30] sm:$0xf]
      %v2308 = vld [vmem:[%s2294 + $0x34] sm:$0xf]
      %v2309 = vld [vmem:[%s2294 + $0x38] sm:$0xf]
      %v2310 = vld [vmem:[%s2294 + $0x3c] sm:$0xf]
      %v2311 = vunpack.c.l.b16 %v1923
      %v2312 = vunpack.c.l.b16 %v1933
      %v2313 = vunpack.c.l.b16 %v1947
      %v2314 = vunpack.c.l.b16 %v1957
      %v2315 = vunpack.c.l.b16 %v1971
      %v2316 = vunpack.c.l.b16 %v1981
      %v2317 = vunpack.c.l.b16 %v1995
      %v2318 = vunpack.c.l.b16 %v2005
      %v2319 = vunpack.c.l.b16 %v2019
      %v2320 = vunpack.c.l.b16 %v2029
      %v2321 = vunpack.c.l.b16 %v2043
      %v2322 = vunpack.c.l.b16 %v2053
      %v2323 = vunpack.c.l.b16 %v2067
      %v2324 = vunpack.c.l.b16 %v2077
      %v2325 = vunpack.c.l.b16 %v2091
      %v2326 = vunpack.c.l.b16 %v2101
      %v2327 = vunpack.c.l.b16 %v2115
      %v2328 = vunpack.c.l.b16 %v2125
      %v2329 = vunpack.c.l.b16 %v2139
      %v2330 = vunpack.c.l.b16 %v2149
      %v2331 = vunpack.c.l.b16 %v2163
      %v2332 = vunpack.c.l.b16 %v2173
      %v2333 = vunpack.c.l.b16 %v2187
      %v2334 = vunpack.c.l.b16 %v2197
      %v2335 = vunpack.c.l.b16 %v2211
      %v2336 = vunpack.c.l.b16 %v2221
      %v2337 = vunpack.c.l.b16 %v2235
      %v2338 = vunpack.c.l.b16 %v2245
      %v2339 = vunpack.c.l.b16 %v2259
      %v2340 = vunpack.c.l.b16 %v2269
      %v2341 = vunpack.c.l.b16 %v2283
      %v2342 = vunpack.c.l.b16 %v2293
      %v2343 = vpack.c.b16 %v2312, %v2311
      %v2344 = vpack.c.b16 %v2314, %v2313
      %v2345 = vpack.c.b16 %v2316, %v2315
      %v2346 = vpack.c.b16 %v2318, %v2317
      %v2347 = vpack.c.b16 %v2320, %v2319
      %v2348 = vpack.c.b16 %v2322, %v2321
      %v2349 = vpack.c.b16 %v2324, %v2323
      %v2350 = vpack.c.b16 %v2326, %v2325
      %v2351 = vpack.c.b16 %v2328, %v2327
      %v2352 = vpack.c.b16 %v2330, %v2329
      %v2353 = vpack.c.b16 %v2332, %v2331
      %v2354 = vpack.c.b16 %v2334, %v2333
      %v2355 = vpack.c.b16 %v2336, %v2335
      %v2356 = vpack.c.b16 %v2338, %v2337
      %v2357 = vpack.c.b16 %v2340, %v2339
      %v2358 = vpack.c.b16 %v2342, %v2341
      %v2391 = vunpack.c.l.b16 %v2295
      %v2392 = vunpack.c.l.b16 %v2296
      %v2393 = vunpack.c.l.b16 %v2297
      %v2394 = vunpack.c.l.b16 %v2298
      %v2395 = vunpack.c.l.b16 %v2299
      %v2396 = vunpack.c.l.b16 %v2300
      %v2397 = vunpack.c.l.b16 %v2301
      %v2398 = vunpack.c.l.b16 %v2302
      %v2399 = vunpack.c.l.b16 %v2303
      %v2400 = vunpack.c.l.b16 %v2304
      %v2401 = vunpack.c.l.b16 %v2305
      %v2402 = vunpack.c.l.b16 %v2306
      %v2403 = vunpack.c.l.b16 %v2307
      %v2404 = vunpack.c.l.b16 %v2308
      %v2405 = vunpack.c.l.b16 %v2309
      %v2406 = vunpack.c.l.b16 %v2310
      %v2407 = vpack.c.b16 %v2392, %v2391
      %v2408 = vpack.c.b16 %v2394, %v2393
      %v2409 = vpack.c.b16 %v2396, %v2395
      %v2410 = vpack.c.b16 %v2398, %v2397
      %v2411 = vpack.c.b16 %v2400, %v2399
      %v2412 = vpack.c.b16 %v2402, %v2401
      %v2413 = vpack.c.b16 %v2404, %v2403
      %v2414 = vpack.c.b16 %v2406, %v2405
      %2423 = vmatpush.bf16.msra.mxu0 %v2414
      %2424 = vmatpush.bf16.msra.mxu0 %v2413
      %2425 = vmatpush.bf16.msra.mxu0 %v2412
      %2426 = vmatpush.bf16.msra.mxu0 %v2411
      %2427 = vmatpush.bf16.msra.mxu0 %v2410
      %2428 = vmatpush.bf16.msra.mxu0 %v2409
      %2429 = vmatpush.bf16.msra.mxu0 %v2408
      %2430 = vmatpush.bf16.msra.mxu0 %v2407
      %2431 = vmatmul.bf16.gmra.mxu0 %v2343
      %v2432 = vpop.f32.mrf.mxu0
      %v2433 = vadd.f32 0.0, %v2432
      %v2434 = vpop.f32.mrf.mxu0
      %v2435 = vadd.f32 0.0, %v2434
      %2436 = vmatmul.bf16.gmra.mxu0 %v2344
      %v2437 = vpop.f32.mrf.mxu0
      %v2438 = vadd.f32 0.0, %v2437
      %v2439 = vpop.f32.mrf.mxu0
      %v2440 = vadd.f32 0.0, %v2439
      %2441 = vmatmul.bf16.gmra.mxu0 %v2345
      %v2442 = vpop.f32.mrf.mxu0
      %v2443 = vadd.f32 0.0, %v2442
      %v2444 = vpop.f32.mrf.mxu0
      %v2445 = vadd.f32 0.0, %v2444
      %2446 = vmatmul.bf16.gmra.mxu0 %v2346
      %v2447 = vpop.f32.mrf.mxu0
      %v2448 = vadd.f32 0.0, %v2447
      %v2449 = vpop.f32.mrf.mxu0
      %v2450 = vadd.f32 0.0, %v2449
      %2451 = vmatmul.bf16.gmra.mxu0 %v2347
      %v2452 = vpop.f32.mrf.mxu0
      %v2453 = vadd.f32 0.0, %v2452
      %v2454 = vpop.f32.mrf.mxu0
      %v2455 = vadd.f32 0.0, %v2454
      %2456 = vmatmul.bf16.gmra.mxu0 %v2348
      %v2457 = vpop.f32.mrf.mxu0
      %v2458 = vadd.f32 0.0, %v2457
      %v2459 = vpop.f32.mrf.mxu0
      %v2460 = vadd.f32 0.0, %v2459
      %2461 = vmatmul.bf16.gmra.mxu0 %v2349
      %v2462 = vpop.f32.mrf.mxu0
      %v2463 = vadd.f32 0.0, %v2462
      %v2464 = vpop.f32.mrf.mxu0
      %v2465 = vadd.f32 0.0, %v2464
      %2466 = vmatmul.bf16.gmra.mxu0 %v2350
      %v2467 = vpop.f32.mrf.mxu0
      %v2468 = vadd.f32 0.0, %v2467
      %v2469 = vpop.f32.mrf.mxu0
      %v2470 = vadd.f32 0.0, %v2469
      %2471 = vmatmul.bf16.gmra.mxu0 %v2351
      %v2472 = vpop.f32.mrf.mxu0
      %v2473 = vadd.f32 0.0, %v2472
      %v2474 = vpop.f32.mrf.mxu0
      %v2475 = vadd.f32 0.0, %v2474
      %2476 = vmatmul.bf16.gmra.mxu0 %v2352
      %v2477 = vpop.f32.mrf.mxu0
      %v2478 = vadd.f32 0.0, %v2477
      %v2479 = vpop.f32.mrf.mxu0
      %v2480 = vadd.f32 0.0, %v2479
      %2481 = vmatmul.bf16.gmra.mxu0 %v2353
      %v2482 = vpop.f32.mrf.mxu0
      %v2483 = vadd.f32 0.0, %v2482
      %v2484 = vpop.f32.mrf.mxu0
      %v2485 = vadd.f32 0.0, %v2484
      %2486 = vmatmul.bf16.gmra.mxu0 %v2354
      %v2487 = vpop.f32.mrf.mxu0
      %v2488 = vadd.f32 0.0, %v2487
      %v2489 = vpop.f32.mrf.mxu0
      %v2490 = vadd.f32 0.0, %v2489
      %2491 = vmatmul.bf16.gmra.mxu0 %v2355
      %v2492 = vpop.f32.mrf.mxu0
      %v2493 = vadd.f32 0.0, %v2492
      %v2494 = vpop.f32.mrf.mxu0
      %v2495 = vadd.f32 0.0, %v2494
      %2496 = vmatmul.bf16.gmra.mxu0 %v2356
      %v2497 = vpop.f32.mrf.mxu0
      %v2498 = vadd.f32 0.0, %v2497
      %v2499 = vpop.f32.mrf.mxu0
      %v2500 = vadd.f32 0.0, %v2499
      %2501 = vmatmul.bf16.gmra.mxu0 %v2357
      %v2502 = vpop.f32.mrf.mxu0
      %v2503 = vadd.f32 0.0, %v2502
      %v2504 = vpop.f32.mrf.mxu0
      %v2505 = vadd.f32 0.0, %v2504
      %2506 = vmatmul.bf16.gmra.mxu0 %v2358
      %v2507 = vpop.f32.mrf.mxu0
      %v2508 = vadd.f32 0.0, %v2507
      %v2509 = vpop.f32.mrf.mxu0
      %v2510 = vadd.f32 0.0, %v2509
      %2511 = vdwg.mxu0
      %v2512 = vadd.f32 %v1878, %v2433
      %v2513 = vadd.f32 %v1879, %v2435
      %v2514 = vadd.f32 %v1880, %v2438
      %v2515 = vadd.f32 %v1881, %v2440
      %v2516 = vadd.f32 %v1882, %v2443
      %v2517 = vadd.f32 %v1883, %v2445
      %v2518 = vadd.f32 %v1884, %v2448
      %v2519 = vadd.f32 %v1885, %v2450
      %v2520 = vadd.f32 %v1886, %v2453
      %v2521 = vadd.f32 %v1887, %v2455
      %v2522 = vadd.f32 %v1888, %v2458
      %v2523 = vadd.f32 %v1889, %v2460
      %v2524 = vadd.f32 %v1890, %v2463
      %v2525 = vadd.f32 %v1891, %v2465
      %v2526 = vadd.f32 %v1892, %v2468
      %v2527 = vadd.f32 %v1893, %v2470
      %v2528 = vadd.f32 %v1894, %v2473
      %v2529 = vadd.f32 %v1895, %v2475
      %v2530 = vadd.f32 %v1896, %v2478
      %v2531 = vadd.f32 %v1897, %v2480
      %v2532 = vadd.f32 %v1898, %v2483
      %v2533 = vadd.f32 %v1899, %v2485
      %v2534 = vadd.f32 %v1900, %v2488
      %v2535 = vadd.f32 %v1901, %v2490
      %v2536 = vadd.f32 %v1902, %v2493
      %v2537 = vadd.f32 %v1903, %v2495
      %v2538 = vadd.f32 %v1904, %v2498
      %v2539 = vadd.f32 %v1905, %v2500
      %v2540 = vadd.f32 %v1906, %v2503
      %v2541 = vadd.f32 %v1907, %v2505
      %v2542 = vadd.f32 %v1908, %v2508
      %v2543 = vadd.f32 %v1909, %v2510
      %v2560 = vrot.slane %v1580, 5
      %v2561 = vrot.slane %v2560, 4
      %v2562 = vrot.slane %v1581, 5
      %v2563 = vsel %vm1216, %v2561, %v2562
      %v2564 = vrot.slane %v2562, 4
      %v2565 = vrot.slane %v1582, 5
      %v2566 = vsel %vm1216, %v2564, %v2565
      %v2567 = vrot.slane %v1583, 5
      %v2568 = vrot.slane %v2567, 4
      %v2569 = vrot.slane %v1584, 5
      %v2570 = vsel %vm1216, %v2568, %v2569
      %v2571 = vrot.slane %v2569, 4
      %v2572 = vrot.slane %v1585, 5
      %v2573 = vsel %vm1216, %v2571, %v2572
      %v2574 = vrot.slane %v1586, 5
      %v2575 = vrot.slane %v2574, 4
      %v2576 = vrot.slane %v1587, 5
      %v2577 = vsel %vm1216, %v2575, %v2576
      %v2578 = vrot.slane %v2576, 4
      %v2579 = vrot.slane %v1588, 5
      %v2580 = vsel %vm1216, %v2578, %v2579
      %v2581 = vrot.slane %v1589, 5
      %v2582 = vrot.slane %v2581, 4
      %v2583 = vrot.slane %v1590, 5
      %v2584 = vsel %vm1216, %v2582, %v2583
      %v2585 = vrot.slane %v2583, 4
      %v2586 = vrot.slane %v1591, 5
      %v2587 = vsel %vm1216, %v2585, %v2586
      %v2588 = vrot.slane %v1592, 5
      %v2589 = vrot.slane %v2588, 4
      %v2590 = vrot.slane %v1593, 5
      %v2591 = vsel %vm1216, %v2589, %v2590
      %v2592 = vrot.slane %v2590, 4
      %v2593 = vrot.slane %v1594, 5
      %v2594 = vsel %vm1216, %v2592, %v2593
      %v2595 = vrot.slane %v1595, 5
      %v2596 = vrot.slane %v2595, 4
      %v2597 = vrot.slane %v1596, 5
      %v2598 = vsel %vm1216, %v2596, %v2597
      %v2599 = vrot.slane %v2597, 4
      %v2600 = vrot.slane %v1597, 5
      %v2601 = vsel %vm1216, %v2599, %v2600
      %v2602 = vrot.slane %v1598, 5
      %v2603 = vrot.slane %v2602, 4
      %v2604 = vrot.slane %v1599, 5
      %v2605 = vsel %vm1216, %v2603, %v2604
      %v2606 = vrot.slane %v2604, 4
      %v2607 = vrot.slane %v1600, 5
      %v2608 = vsel %vm1216, %v2606, %v2607
      %v2609 = vrot.slane %v1601, 5
      %v2610 = vrot.slane %v2609, 4
      %v2611 = vrot.slane %v1602, 5
      %v2612 = vsel %vm1216, %v2610, %v2611
      %v2613 = vrot.slane %v2611, 4
      %v2614 = vrot.slane %v1603, 5
      %v2615 = vsel %vm1216, %v2613, %v2614
      %v2616 = vrot.slane %v1604, 5
      %v2617 = vrot.slane %v2616, 4
      %v2618 = vrot.slane %v1605, 5
      %v2619 = vsel %vm1216, %v2617, %v2618
      %v2620 = vrot.slane %v2618, 4
      %v2621 = vrot.slane %v1606, 5
      %v2622 = vsel %vm1216, %v2620, %v2621
      %v2623 = vrot.slane %v1607, 5
      %v2624 = vrot.slane %v2623, 4
      %v2625 = vrot.slane %v1608, 5
      %v2626 = vsel %vm1216, %v2624, %v2625
      %v2627 = vrot.slane %v2625, 4
      %v2628 = vrot.slane %v1609, 5
      %v2629 = vsel %vm1216, %v2627, %v2628
      %v2630 = vrot.slane %v1610, 5
      %v2631 = vrot.slane %v2630, 4
      %v2632 = vrot.slane %v1611, 5
      %v2633 = vsel %vm1216, %v2631, %v2632
      %v2634 = vrot.slane %v2632, 4
      %v2635 = vrot.slane %v1612, 5
      %v2636 = vsel %vm1216, %v2634, %v2635
      %v2637 = vrot.slane %v1613, 5
      %v2638 = vrot.slane %v2637, 4
      %v2639 = vrot.slane %v1614, 5
      %v2640 = vsel %vm1216, %v2638, %v2639
      %v2641 = vrot.slane %v2639, 4
      %v2642 = vrot.slane %v1615, 5
      %v2643 = vsel %vm1216, %v2641, %v2642
      %v2644 = vrot.slane %v1616, 5
      %v2645 = vrot.slane %v2644, 4
      %v2646 = vrot.slane %v1617, 5
      %v2647 = vsel %vm1216, %v2645, %v2646
      %v2648 = vrot.slane %v2646, 4
      %v2649 = vrot.slane %v1618, 5
      %v2650 = vsel %vm1216, %v2648, %v2649
      %v2651 = vrot.slane %v1619, 5
      %v2652 = vrot.slane %v2651, 4
      %v2653 = vrot.slane %v1620, 5
      %v2654 = vsel %vm1216, %v2652, %v2653
      %v2655 = vrot.slane %v2653, 4
      %v2656 = vrot.slane %v1621, 5
      %v2657 = vsel %vm1216, %v2655, %v2656
      %v2658 = vrot.slane %v1622, 5
      %v2659 = vrot.slane %v2658, 4
      %v2660 = vrot.slane %v1623, 5
      %v2661 = vsel %vm1216, %v2659, %v2660
      %v2662 = vrot.slane %v2660, 4
      %v2663 = vrot.slane %v1624, 5
      %v2664 = vsel %vm1216, %v2662, %v2663
      %v2665 = vrot.slane %v1625, 5
      %v2666 = vrot.slane %v2665, 4
      %v2667 = vrot.slane %v1626, 5
      %v2668 = vsel %vm1216, %v2666, %v2667
      %v2669 = vrot.slane %v2667, 4
      %v2670 = vrot.slane %v1627, 5
      %v2671 = vsel %vm1216, %v2669, %v2670
      %s2672 = scalar_lea.vmem %s246, 320
      %v2673 = vld [vmem:[%s2672] sm:$0xf]
      %v2674 = vld [vmem:[%s2672 + $0x4] sm:$0xf]
      %v2675 = vld [vmem:[%s2672 + $0x8] sm:$0xf]
      %v2676 = vld [vmem:[%s2672 + $0xc] sm:$0xf]
      %v2677 = vld [vmem:[%s2672 + $0x10] sm:$0xf]
      %v2678 = vld [vmem:[%s2672 + $0x14] sm:$0xf]
      %v2679 = vld [vmem:[%s2672 + $0x18] sm:$0xf]
      %v2680 = vld [vmem:[%s2672 + $0x1c] sm:$0xf]
      %v2681 = vld [vmem:[%s2672 + $0x20] sm:$0xf]
      %v2682 = vld [vmem:[%s2672 + $0x24] sm:$0xf]
      %v2683 = vld [vmem:[%s2672 + $0x28] sm:$0xf]
      %v2684 = vld [vmem:[%s2672 + $0x2c] sm:$0xf]
      %v2685 = vld [vmem:[%s2672 + $0x30] sm:$0xf]
      %v2686 = vld [vmem:[%s2672 + $0x34] sm:$0xf]
      %v2687 = vld [vmem:[%s2672 + $0x38] sm:$0xf]
      %v2688 = vld [vmem:[%s2672 + $0x3c] sm:$0xf]
      %v2689 = vunpack.c.l.b16 %v2563
      %v2690 = vunpack.c.l.b16 %v2566
      %v2691 = vunpack.c.l.b16 %v2570
      %v2692 = vunpack.c.l.b16 %v2573
      %v2693 = vunpack.c.l.b16 %v2577
      %v2694 = vunpack.c.l.b16 %v2580
      %v2695 = vunpack.c.l.b16 %v2584
      %v2696 = vunpack.c.l.b16 %v2587
      %v2697 = vunpack.c.l.b16 %v2591
      %v2698 = vunpack.c.l.b16 %v2594
      %v2699 = vunpack.c.l.b16 %v2598
      %v2700 = vunpack.c.l.b16 %v2601
      %v2701 = vunpack.c.l.b16 %v2605
      %v2702 = vunpack.c.l.b16 %v2608
      %v2703 = vunpack.c.l.b16 %v2612
      %v2704 = vunpack.c.l.b16 %v2615
      %v2705 = vunpack.c.l.b16 %v2619
      %v2706 = vunpack.c.l.b16 %v2622
      %v2707 = vunpack.c.l.b16 %v2626
      %v2708 = vunpack.c.l.b16 %v2629
      %v2709 = vunpack.c.l.b16 %v2633
      %v2710 = vunpack.c.l.b16 %v2636
      %v2711 = vunpack.c.l.b16 %v2640
      %v2712 = vunpack.c.l.b16 %v2643
      %v2713 = vunpack.c.l.b16 %v2647
      %v2714 = vunpack.c.l.b16 %v2650
      %v2715 = vunpack.c.l.b16 %v2654
      %v2716 = vunpack.c.l.b16 %v2657
      %v2717 = vunpack.c.l.b16 %v2661
      %v2718 = vunpack.c.l.b16 %v2664
      %v2719 = vunpack.c.l.b16 %v2668
      %v2720 = vunpack.c.l.b16 %v2671
      %v2721 = vpack.c.b16 %v2690, %v2689
      %v2722 = vpack.c.b16 %v2692, %v2691
      %v2723 = vpack.c.b16 %v2694, %v2693
      %v2724 = vpack.c.b16 %v2696, %v2695
      %v2725 = vpack.c.b16 %v2698, %v2697
      %v2726 = vpack.c.b16 %v2700, %v2699
      %v2727 = vpack.c.b16 %v2702, %v2701
      %v2728 = vpack.c.b16 %v2704, %v2703
      %v2729 = vpack.c.b16 %v2706, %v2705
      %v2730 = vpack.c.b16 %v2708, %v2707
      %v2731 = vpack.c.b16 %v2710, %v2709
      %v2732 = vpack.c.b16 %v2712, %v2711
      %v2733 = vpack.c.b16 %v2714, %v2713
      %v2734 = vpack.c.b16 %v2716, %v2715
      %v2735 = vpack.c.b16 %v2718, %v2717
      %v2736 = vpack.c.b16 %v2720, %v2719
      %v2769 = vunpack.c.l.b16 %v2673
      %v2770 = vunpack.c.l.b16 %v2674
      %v2771 = vunpack.c.l.b16 %v2675
      %v2772 = vunpack.c.l.b16 %v2676
      %v2773 = vunpack.c.l.b16 %v2677
      %v2774 = vunpack.c.l.b16 %v2678
      %v2775 = vunpack.c.l.b16 %v2679
      %v2776 = vunpack.c.l.b16 %v2680
      %v2777 = vunpack.c.l.b16 %v2681
      %v2778 = vunpack.c.l.b16 %v2682
      %v2779 = vunpack.c.l.b16 %v2683
      %v2780 = vunpack.c.l.b16 %v2684
      %v2781 = vunpack.c.l.b16 %v2685
      %v2782 = vunpack.c.l.b16 %v2686
      %v2783 = vunpack.c.l.b16 %v2687
      %v2784 = vunpack.c.l.b16 %v2688
      %v2785 = vpack.c.b16 %v2770, %v2769
      %v2786 = vpack.c.b16 %v2772, %v2771
      %v2787 = vpack.c.b16 %v2774, %v2773
      %v2788 = vpack.c.b16 %v2776, %v2775
      %v2789 = vpack.c.b16 %v2778, %v2777
      %v2790 = vpack.c.b16 %v2780, %v2779
      %v2791 = vpack.c.b16 %v2782, %v2781
      %v2792 = vpack.c.b16 %v2784, %v2783
      %2801 = vmatpush.bf16.msra.mxu0 %v2792
      %2802 = vmatpush.bf16.msra.mxu0 %v2791
      %2803 = vmatpush.bf16.msra.mxu0 %v2790
      %2804 = vmatpush.bf16.msra.mxu0 %v2789
      %2805 = vmatpush.bf16.msra.mxu0 %v2788
      %2806 = vmatpush.bf16.msra.mxu0 %v2787
      %2807 = vmatpush.bf16.msra.mxu0 %v2786
      %2808 = vmatpush.bf16.msra.mxu0 %v2785
      %2809 = vmatmul.bf16.gmra.mxu0 %v2721
      %v2810 = vpop.f32.mrf.mxu0
      %v2811 = vadd.f32 0.0, %v2810
      %v2812 = vpop.f32.mrf.mxu0
      %v2813 = vadd.f32 0.0, %v2812
      %2814 = vmatmul.bf16.gmra.mxu0 %v2722
      %v2815 = vpop.f32.mrf.mxu0
      %v2816 = vadd.f32 0.0, %v2815
      %v2817 = vpop.f32.mrf.mxu0
      %v2818 = vadd.f32 0.0, %v2817
      %2819 = vmatmul.bf16.gmra.mxu0 %v2723
      %v2820 = vpop.f32.mrf.mxu0
      %v2821 = vadd.f32 0.0, %v2820
      %v2822 = vpop.f32.mrf.mxu0
      %v2823 = vadd.f32 0.0, %v2822
      %2824 = vmatmul.bf16.gmra.mxu0 %v2724
      %v2825 = vpop.f32.mrf.mxu0
      %v2826 = vadd.f32 0.0, %v2825
      %v2827 = vpop.f32.mrf.mxu0
      %v2828 = vadd.f32 0.0, %v2827
      %2829 = vmatmul.bf16.gmra.mxu0 %v2725
      %v2830 = vpop.f32.mrf.mxu0
      %v2831 = vadd.f32 0.0, %v2830
      %v2832 = vpop.f32.mrf.mxu0
      %v2833 = vadd.f32 0.0, %v2832
      %2834 = vmatmul.bf16.gmra.mxu0 %v2726
      %v2835 = vpop.f32.mrf.mxu0
      %v2836 = vadd.f32 0.0, %v2835
      %v2837 = vpop.f32.mrf.mxu0
      %v2838 = vadd.f32 0.0, %v2837
      %2839 = vmatmul.bf16.gmra.mxu0 %v2727
      %v2840 = vpop.f32.mrf.mxu0
      %v2841 = vadd.f32 0.0, %v2840
      %v2842 = vpop.f32.mrf.mxu0
      %v2843 = vadd.f32 0.0, %v2842
      %2844 = vmatmul.bf16.gmra.mxu0 %v2728
      %v2845 = vpop.f32.mrf.mxu0
      %v2846 = vadd.f32 0.0, %v2845
      %v2847 = vpop.f32.mrf.mxu0
      %v2848 = vadd.f32 0.0, %v2847
      %2849 = vmatmul.bf16.gmra.mxu0 %v2729
      %v2850 = vpop.f32.mrf.mxu0
      %v2851 = vadd.f32 0.0, %v2850
      %v2852 = vpop.f32.mrf.mxu0
      %v2853 = vadd.f32 0.0, %v2852
      %2854 = vmatmul.bf16.gmra.mxu0 %v2730
      %v2855 = vpop.f32.mrf.mxu0
      %v2856 = vadd.f32 0.0, %v2855
      %v2857 = vpop.f32.mrf.mxu0
      %v2858 = vadd.f32 0.0, %v2857
      %2859 = vmatmul.bf16.gmra.mxu0 %v2731
      %v2860 = vpop.f32.mrf.mxu0
      %v2861 = vadd.f32 0.0, %v2860
      %v2862 = vpop.f32.mrf.mxu0
      %v2863 = vadd.f32 0.0, %v2862
      %2864 = vmatmul.bf16.gmra.mxu0 %v2732
      %v2865 = vpop.f32.mrf.mxu0
      %v2866 = vadd.f32 0.0, %v2865
      %v2867 = vpop.f32.mrf.mxu0
      %v2868 = vadd.f32 0.0, %v2867
      %2869 = vmatmul.bf16.gmra.mxu0 %v2733
      %v2870 = vpop.f32.mrf.mxu0
      %v2871 = vadd.f32 0.0, %v2870
      %v2872 = vpop.f32.mrf.mxu0
      %v2873 = vadd.f32 0.0, %v2872
      %2874 = vmatmul.bf16.gmra.mxu0 %v2734
      %v2875 = vpop.f32.mrf.mxu0
      %v2876 = vadd.f32 0.0, %v2875
      %v2877 = vpop.f32.mrf.mxu0
      %v2878 = vadd.f32 0.0, %v2877
      %2879 = vmatmul.bf16.gmra.mxu0 %v2735
      %v2880 = vpop.f32.mrf.mxu0
      %v2881 = vadd.f32 0.0, %v2880
      %v2882 = vpop.f32.mrf.mxu0
      %v2883 = vadd.f32 0.0, %v2882
      %2884 = vmatmul.bf16.gmra.mxu0 %v2736
      %v2885 = vpop.f32.mrf.mxu0
      %v2886 = vadd.f32 0.0, %v2885
      %v2887 = vpop.f32.mrf.mxu0
      %v2888 = vadd.f32 0.0, %v2887
      %2889 = vdwg.mxu0
      %v2890 = vadd.f32 %v2512, %v2811
      %v2891 = vadd.f32 %v2513, %v2813
      %v2892 = vadd.f32 %v2514, %v2816
      %v2893 = vadd.f32 %v2515, %v2818
      %v2894 = vadd.f32 %v2516, %v2821
      %v2895 = vadd.f32 %v2517, %v2823
      %v2896 = vadd.f32 %v2518, %v2826
      %v2897 = vadd.f32 %v2519, %v2828
      %v2898 = vadd.f32 %v2520, %v2831
      %v2899 = vadd.f32 %v2521, %v2833
      %v2900 = vadd.f32 %v2522, %v2836
      %v2901 = vadd.f32 %v2523, %v2838
      %v2902 = vadd.f32 %v2524, %v2841
      %v2903 = vadd.f32 %v2525, %v2843
      %v2904 = vadd.f32 %v2526, %v2846
      %v2905 = vadd.f32 %v2527, %v2848
      %v2906 = vadd.f32 %v2528, %v2851
      %v2907 = vadd.f32 %v2529, %v2853
      %v2908 = vadd.f32 %v2530, %v2856
      %v2909 = vadd.f32 %v2531, %v2858
      %v2910 = vadd.f32 %v2532, %v2861
      %v2911 = vadd.f32 %v2533, %v2863
      %v2912 = vadd.f32 %v2534, %v2866
      %v2913 = vadd.f32 %v2535, %v2868
      %v2914 = vadd.f32 %v2536, %v2871
      %v2915 = vadd.f32 %v2537, %v2873
      %v2916 = vadd.f32 %v2538, %v2876
      %v2917 = vadd.f32 %v2539, %v2878
      %v2918 = vadd.f32 %v2540, %v2881
      %v2919 = vadd.f32 %v2541, %v2883
      %v2920 = vadd.f32 %v2542, %v2886
      %v2921 = vadd.f32 %v2543, %v2888
      %s2922 = scalar_lea.vmem %s237, 24
      %v2923 = vld [vmem:[%s2922] sm:$0xf]
      %v2924 = vld [vmem:[%s2922 + $0x4] sm:$0xf]
      %v2925 = vld [vmem:[%s2922 + $0x8] sm:$0x1]
      %v2926 = vld [vmem:[%s2922 + $0xc] sm:$0xf]
      %v2927 = vld [vmem:[%s2922 + $0x10] sm:$0xf]
      %v2928 = vld [vmem:[%s2922 + $0x14] sm:$0x1]
      %v2929 = vld [vmem:[%s2922 + $0x18] sm:$0xf]
      %v2930 = vld [vmem:[%s2922 + $0x1c] sm:$0xf]
      %v2931 = vld [vmem:[%s2922 + $0x20] sm:$0x1]
      %v2932 = vld [vmem:[%s2922 + $0x24] sm:$0xf]
      %v2933 = vld [vmem:[%s2922 + $0x28] sm:$0xf]
      %v2934 = vld [vmem:[%s2922 + $0x2c] sm:$0x1]
      %v2935 = vld [vmem:[%s2922 + $0x30] sm:$0xf]
      %v2936 = vld [vmem:[%s2922 + $0x34] sm:$0xf]
      %v2937 = vld [vmem:[%s2922 + $0x38] sm:$0x1]
      %v2938 = vld [vmem:[%s2922 + $0x3c] sm:$0xf]
      %v2939 = vld [vmem:[%s2922 + $0x40] sm:$0xf]
      %v2940 = vld [vmem:[%s2922 + $0x44] sm:$0x1]
      %v2941 = vld [vmem:[%s2922 + $0x48] sm:$0xf]
      %v2942 = vld [vmem:[%s2922 + $0x4c] sm:$0xf]
      %v2943 = vld [vmem:[%s2922 + $0x50] sm:$0x1]
      %v2944 = vld [vmem:[%s2922 + $0x54] sm:$0xf]
      %v2945 = vld [vmem:[%s2922 + $0x58] sm:$0xf]
      %v2946 = vld [vmem:[%s2922 + $0x5c] sm:$0x1]
      %v2947 = vld [vmem:[%s2922 + $0x60] sm:$0xf]
      %v2948 = vld [vmem:[%s2922 + $0x64] sm:$0xf]
      %v2949 = vld [vmem:[%s2922 + $0x68] sm:$0x1]
      %v2950 = vld [vmem:[%s2922 + $0x6c] sm:$0xf]
      %v2951 = vld [vmem:[%s2922 + $0x70] sm:$0xf]
      %v2952 = vld [vmem:[%s2922 + $0x74] sm:$0x1]
      %v2953 = vld [vmem:[%s2922 + $0x78] sm:$0xf]
      %v2954 = vld [vmem:[%s2922 + $0x7c] sm:$0xf]
      %v2955 = vld [vmem:[%s2922 + $0x80] sm:$0x1]
      %v2956 = vld [vmem:[%s2922 + $0x84] sm:$0xf]
      %v2957 = vld [vmem:[%s2922 + $0x88] sm:$0xf]
      %v2958 = vld [vmem:[%s2922 + $0x8c] sm:$0x1]
      %v2959 = vld [vmem:[%s2922 + $0x90] sm:$0xf]
      %v2960 = vld [vmem:[%s2922 + $0x94] sm:$0xf]
      %v2961 = vld [vmem:[%s2922 + $0x98] sm:$0x1]
      %v2962 = vld [vmem:[%s2922 + $0x9c] sm:$0xf]
      %v2963 = vld [vmem:[%s2922 + $0xa0] sm:$0xf]
      %v2964 = vld [vmem:[%s2922 + $0xa4] sm:$0x1]
      %v2965 = vld [vmem:[%s2922 + $0xa8] sm:$0xf]
      %v2966 = vld [vmem:[%s2922 + $0xac] sm:$0xf]
      %v2967 = vld [vmem:[%s2922 + $0xb0] sm:$0x1]
      %v2968 = vld [vmem:[%s2922 + $0xb4] sm:$0xf]
      %v2969 = vld [vmem:[%s2922 + $0xb8] sm:$0xf]
      %v2970 = vld [vmem:[%s2922 + $0xbc] sm:$0x1]
      %s2971 = scalar_lea.vmem %s246, 384
      %v2972 = vld [vmem:[%s2971] sm:$0xf]
      %v2973 = vld [vmem:[%s2971 + $0x4] sm:$0xf]
      %v2974 = vld [vmem:[%s2971 + $0x8] sm:$0xf]
      %v2975 = vld [vmem:[%s2971 + $0xc] sm:$0xf]
      %v2976 = vld [vmem:[%s2971 + $0x10] sm:$0xf]
      %v2977 = vld [vmem:[%s2971 + $0x14] sm:$0xf]
      %v2978 = vld [vmem:[%s2971 + $0x18] sm:$0xf]
      %v2979 = vld [vmem:[%s2971 + $0x1c] sm:$0xf]
      %v2980 = vld [vmem:[%s2971 + $0x20] sm:$0xf]
      %v2981 = vld [vmem:[%s2971 + $0x24] sm:$0xf]
      %v2982 = vld [vmem:[%s2971 + $0x28] sm:$0xf]
      %v2983 = vld [vmem:[%s2971 + $0x2c] sm:$0xf]
      %v2984 = vld [vmem:[%s2971 + $0x30] sm:$0xf]
      %v2985 = vld [vmem:[%s2971 + $0x34] sm:$0xf]
      %v2986 = vld [vmem:[%s2971 + $0x38] sm:$0xf]
      %v2987 = vld [vmem:[%s2971 + $0x3c] sm:$0xf]
      %v3020 = vunpack.c.l.b16 %v2923
      %v3021 = vunpack.c.l.b16 %v2924
      %v3022 = vunpack.c.l.b16 %v2926
      %v3023 = vunpack.c.l.b16 %v2927
      %v3024 = vunpack.c.l.b16 %v2929
      %v3025 = vunpack.c.l.b16 %v2930
      %v3026 = vunpack.c.l.b16 %v2932
      %v3027 = vunpack.c.l.b16 %v2933
      %v3028 = vunpack.c.l.b16 %v2935
      %v3029 = vunpack.c.l.b16 %v2936
      %v3030 = vunpack.c.l.b16 %v2938
      %v3031 = vunpack.c.l.b16 %v2939
      %v3032 = vunpack.c.l.b16 %v2941
      %v3033 = vunpack.c.l.b16 %v2942
      %v3034 = vunpack.c.l.b16 %v2944
      %v3035 = vunpack.c.l.b16 %v2945
      %v3036 = vunpack.c.l.b16 %v2947
      %v3037 = vunpack.c.l.b16 %v2948
      %v3038 = vunpack.c.l.b16 %v2950
      %v3039 = vunpack.c.l.b16 %v2951
      %v3040 = vunpack.c.l.b16 %v2953
      %v3041 = vunpack.c.l.b16 %v2954
      %v3042 = vunpack.c.l.b16 %v2956
      %v3043 = vunpack.c.l.b16 %v2957
      %v3044 = vunpack.c.l.b16 %v2959
      %v3045 = vunpack.c.l.b16 %v2960
      %v3046 = vunpack.c.l.b16 %v2962
      %v3047 = vunpack.c.l.b16 %v2963
      %v3048 = vunpack.c.l.b16 %v2965
      %v3049 = vunpack.c.l.b16 %v2966
      %v3050 = vunpack.c.l.b16 %v2968
      %v3051 = vunpack.c.l.b16 %v2969
      %v3052 = vpack.c.b16 %v3021, %v3020
      %v3053 = vpack.c.b16 %v3023, %v3022
      %v3054 = vpack.c.b16 %v3025, %v3024
      %v3055 = vpack.c.b16 %v3027, %v3026
      %v3056 = vpack.c.b16 %v3029, %v3028
      %v3057 = vpack.c.b16 %v3031, %v3030
      %v3058 = vpack.c.b16 %v3033, %v3032
      %v3059 = vpack.c.b16 %v3035, %v3034
      %v3060 = vpack.c.b16 %v3037, %v3036
      %v3061 = vpack.c.b16 %v3039, %v3038
      %v3062 = vpack.c.b16 %v3041, %v3040
      %v3063 = vpack.c.b16 %v3043, %v3042
      %v3064 = vpack.c.b16 %v3045, %v3044
      %v3065 = vpack.c.b16 %v3047, %v3046
      %v3066 = vpack.c.b16 %v3049, %v3048
      %v3067 = vpack.c.b16 %v3051, %v3050
      %v3100 = vunpack.c.l.b16 %v2972
      %v3101 = vunpack.c.l.b16 %v2973
      %v3102 = vunpack.c.l.b16 %v2974
      %v3103 = vunpack.c.l.b16 %v2975
      %v3104 = vunpack.c.l.b16 %v2976
      %v3105 = vunpack.c.l.b16 %v2977
      %v3106 = vunpack.c.l.b16 %v2978
      %v3107 = vunpack.c.l.b16 %v2979
      %v3108 = vunpack.c.l.b16 %v2980
      %v3109 = vunpack.c.l.b16 %v2981
      %v3110 = vunpack.c.l.b16 %v2982
      %v3111 = vunpack.c.l.b16 %v2983
      %v3112 = vunpack.c.l.b16 %v2984
      %v3113 = vunpack.c.l.b16 %v2985
      %v3114 = vunpack.c.l.b16 %v2986
      %v3115 = vunpack.c.l.b16 %v2987
      %v3116 = vpack.c.b16 %v3101, %v3100
      %v3117 = vpack.c.b16 %v3103, %v3102
      %v3118 = vpack.c.b16 %v3105, %v3104
      %v3119 = vpack.c.b16 %v3107, %v3106
      %v3120 = vpack.c.b16 %v3109, %v3108
      %v3121 = vpack.c.b16 %v3111, %v3110
      %v3122 = vpack.c.b16 %v3113, %v3112
      %v3123 = vpack.c.b16 %v3115, %v3114
      %3132 = vmatpush.bf16.msra.mxu0 %v3123
      %3133 = vmatpush.bf16.msra.mxu0 %v3122
      %3134 = vmatpush.bf16.msra.mxu0 %v3121
      %3135 = vmatpush.bf16.msra.mxu0 %v3120
      %3136 = vmatpush.bf16.msra.mxu0 %v3119
      %3137 = vmatpush.bf16.msra.mxu0 %v3118
      %3138 = vmatpush.bf16.msra.mxu0 %v3117
      %3139 = vmatpush.bf16.msra.mxu0 %v3116
      %3140 = vmatmul.bf16.gmra.mxu0 %v3052
      %v3141 = vpop.f32.mrf.mxu0
      %v3142 = vadd.f32 0.0, %v3141
      %v3143 = vpop.f32.mrf.mxu0
      %v3144 = vadd.f32 0.0, %v3143
      %3145 = vmatmul.bf16.gmra.mxu0 %v3053
      %v3146 = vpop.f32.mrf.mxu0
      %v3147 = vadd.f32 0.0, %v3146
      %v3148 = vpop.f32.mrf.mxu0
      %v3149 = vadd.f32 0.0, %v3148
      %3150 = vmatmul.bf16.gmra.mxu0 %v3054
      %v3151 = vpop.f32.mrf.mxu0
      %v3152 = vadd.f32 0.0, %v3151
      %v3153 = vpop.f32.mrf.mxu0
      %v3154 = vadd.f32 0.0, %v3153
      %3155 = vmatmul.bf16.gmra.mxu0 %v3055
      %v3156 = vpop.f32.mrf.mxu0
      %v3157 = vadd.f32 0.0, %v3156
      %v3158 = vpop.f32.mrf.mxu0
      %v3159 = vadd.f32 0.0, %v3158
      %3160 = vmatmul.bf16.gmra.mxu0 %v3056
      %v3161 = vpop.f32.mrf.mxu0
      %v3162 = vadd.f32 0.0, %v3161
      %v3163 = vpop.f32.mrf.mxu0
      %v3164 = vadd.f32 0.0, %v3163
      %3165 = vmatmul.bf16.gmra.mxu0 %v3057
      %v3166 = vpop.f32.mrf.mxu0
      %v3167 = vadd.f32 0.0, %v3166
      %v3168 = vpop.f32.mrf.mxu0
      %v3169 = vadd.f32 0.0, %v3168
      %3170 = vmatmul.bf16.gmra.mxu0 %v3058
      %v3171 = vpop.f32.mrf.mxu0
      %v3172 = vadd.f32 0.0, %v3171
      %v3173 = vpop.f32.mrf.mxu0
      %v3174 = vadd.f32 0.0, %v3173
      %3175 = vmatmul.bf16.gmra.mxu0 %v3059
      %v3176 = vpop.f32.mrf.mxu0
      %v3177 = vadd.f32 0.0, %v3176
      %v3178 = vpop.f32.mrf.mxu0
      %v3179 = vadd.f32 0.0, %v3178
      %3180 = vmatmul.bf16.gmra.mxu0 %v3060
      %v3181 = vpop.f32.mrf.mxu0
      %v3182 = vadd.f32 0.0, %v3181
      %v3183 = vpop.f32.mrf.mxu0
      %v3184 = vadd.f32 0.0, %v3183
      %3185 = vmatmul.bf16.gmra.mxu0 %v3061
      %v3186 = vpop.f32.mrf.mxu0
      %v3187 = vadd.f32 0.0, %v3186
      %v3188 = vpop.f32.mrf.mxu0
      %v3189 = vadd.f32 0.0, %v3188
      %3190 = vmatmul.bf16.gmra.mxu0 %v3062
      %v3191 = vpop.f32.mrf.mxu0
      %v3192 = vadd.f32 0.0, %v3191
      %v3193 = vpop.f32.mrf.mxu0
      %v3194 = vadd.f32 0.0, %v3193
      %3195 = vmatmul.bf16.gmra.mxu0 %v3063
      %v3196 = vpop.f32.mrf.mxu0
      %v3197 = vadd.f32 0.0, %v3196
      %v3198 = vpop.f32.mrf.mxu0
      %v3199 = vadd.f32 0.0, %v3198
      %3200 = vmatmul.bf16.gmra.mxu0 %v3064
      %v3201 = vpop.f32.mrf.mxu0
      %v3202 = vadd.f32 0.0, %v3201
      %v3203 = vpop.f32.mrf.mxu0
      %v3204 = vadd.f32 0.0, %v3203
      %3205 = vmatmul.bf16.gmra.mxu0 %v3065
      %v3206 = vpop.f32.mrf.mxu0
      %v3207 = vadd.f32 0.0, %v3206
      %v3208 = vpop.f32.mrf.mxu0
      %v3209 = vadd.f32 0.0, %v3208
      %3210 = vmatmul.bf16.gmra.mxu0 %v3066
      %v3211 = vpop.f32.mrf.mxu0
      %v3212 = vadd.f32 0.0, %v3211
      %v3213 = vpop.f32.mrf.mxu0
      %v3214 = vadd.f32 0.0, %v3213
      %3215 = vmatmul.bf16.gmra.mxu0 %v3067
      %v3216 = vpop.f32.mrf.mxu0
      %v3217 = vadd.f32 0.0, %v3216
      %v3218 = vpop.f32.mrf.mxu0
      %v3219 = vadd.f32 0.0, %v3218
      %3220 = vdwg.mxu0
      %v3221 = vadd.f32 %v2890, %v3142
      %v3222 = vadd.f32 %v2891, %v3144
      %v3223 = vadd.f32 %v2892, %v3147
      %v3224 = vadd.f32 %v2893, %v3149
      %v3225 = vadd.f32 %v2894, %v3152
      %v3226 = vadd.f32 %v2895, %v3154
      %v3227 = vadd.f32 %v2896, %v3157
      %v3228 = vadd.f32 %v2897, %v3159
      %v3229 = vadd.f32 %v2898, %v3162
      %v3230 = vadd.f32 %v2899, %v3164
      %v3231 = vadd.f32 %v2900, %v3167
      %v3232 = vadd.f32 %v2901, %v3169
      %v3233 = vadd.f32 %v2902, %v3172
      %v3234 = vadd.f32 %v2903, %v3174
      %v3235 = vadd.f32 %v2904, %v3177
      %v3236 = vadd.f32 %v2905, %v3179
      %v3237 = vadd.f32 %v2906, %v3182
      %v3238 = vadd.f32 %v2907, %v3184
      %v3239 = vadd.f32 %v2908, %v3187
      %v3240 = vadd.f32 %v2909, %v3189
      %v3241 = vadd.f32 %v2910, %v3192
      %v3242 = vadd.f32 %v2911, %v3194
      %v3243 = vadd.f32 %v2912, %v3197
      %v3244 = vadd.f32 %v2913, %v3199
      %v3245 = vadd.f32 %v2914, %v3202
      %v3246 = vadd.f32 %v2915, %v3204
      %v3247 = vadd.f32 %v2916, %v3207
      %v3248 = vadd.f32 %v2917, %v3209
      %v3249 = vadd.f32 %v2918, %v3212
      %v3250 = vadd.f32 %v2919, %v3214
      %v3251 = vadd.f32 %v2920, %v3217
      %v3252 = vadd.f32 %v2921, %v3219
      %v3254 = vshrl.u32 %v2923, 16
      %v3256 = vrot.slane %v3254, 4
      %v3257 = vshll.u32 %v2923, 16
      %v3259 = vrot.slane %v3257, 5
      %v3260 = vor.u32 %v3256, %v3259
      %v3261 = vrot.slane %v3260, 4
      %v3263 = vshll.u32 %v2924, 16
      %v3265 = vrot.slane %v3263, 5
      %v3266 = vsel %vm362, %v3261, %v3265
      %v3267 = vshrl.u32 %v2924, 16
      %v3269 = vrot.slane %v3267, 4
      %v3270 = vor.u32 %v3269, %v3265
      %v3271 = vrot.slane %v3270, 4
      %v3273 = vshll.u32 %v2925, 16
      %v3275 = vrot.slane %v3273, 5
      %v3276 = vsel %vm362, %v3271, %v3275
      %v3278 = vshrl.u32 %v2926, 16
      %v3280 = vrot.slane %v3278, 4
      %v3281 = vshll.u32 %v2926, 16
      %v3283 = vrot.slane %v3281, 5
      %v3284 = vor.u32 %v3280, %v3283
      %v3285 = vrot.slane %v3284, 4
      %v3287 = vshll.u32 %v2927, 16
      %v3289 = vrot.slane %v3287, 5
      %v3290 = vsel %vm362, %v3285, %v3289
      %v3291 = vshrl.u32 %v2927, 16
      %v3293 = vrot.slane %v3291, 4
      %v3294 = vor.u32 %v3293, %v3289
      %v3295 = vrot.slane %v3294, 4
      %v3297 = vshll.u32 %v2928, 16
      %v3299 = vrot.slane %v3297, 5
      %v3300 = vsel %vm362, %v3295, %v3299
      %v3302 = vshrl.u32 %v2929, 16
      %v3304 = vrot.slane %v3302, 4
      %v3305 = vshll.u32 %v2929, 16
      %v3307 = vrot.slane %v3305, 5
      %v3308 = vor.u32 %v3304, %v3307
      %v3309 = vrot.slane %v3308, 4
      %v3311 = vshll.u32 %v2930, 16
      %v3313 = vrot.slane %v3311, 5
      %v3314 = vsel %vm362, %v3309, %v3313
      %v3315 = vshrl.u32 %v2930, 16
      %v3317 = vrot.slane %v3315, 4
      %v3318 = vor.u32 %v3317, %v3313
      %v3319 = vrot.slane %v3318, 4
      %v3321 = vshll.u32 %v2931, 16
      %v3323 = vrot.slane %v3321, 5
      %v3324 = vsel %vm362, %v3319, %v3323
      %v3326 = vshrl.u32 %v2932, 16
      %v3328 = vrot.slane %v3326, 4
      %v3329 = vshll.u32 %v2932, 16
      %v3331 = vrot.slane %v3329, 5
      %v3332 = vor.u32 %v3328, %v3331
      %v3333 = vrot.slane %v3332, 4
      %v3335 = vshll.u32 %v2933, 16
      %v3337 = vrot.slane %v3335, 5
      %v3338 = vsel %vm362, %v3333, %v3337
      %v3339 = vshrl.u32 %v2933, 16
      %v3341 = vrot.slane %v3339, 4
      %v3342 = vor.u32 %v3341, %v3337
      %v3343 = vrot.slane %v3342, 4
      %v3345 = vshll.u32 %v2934, 16
      %v3347 = vrot.slane %v3345, 5
      %v3348 = vsel %vm362, %v3343, %v3347
      %v3350 = vshrl.u32 %v2935, 16
      %v3352 = vrot.slane %v3350, 4
      %v3353 = vshll.u32 %v2935, 16
      %v3355 = vrot.slane %v3353, 5
      %v3356 = vor.u32 %v3352, %v3355
      %v3357 = vrot.slane %v3356, 4
      %v3359 = vshll.u32 %v2936, 16
      %v3361 = vrot.slane %v3359, 5
      %v3362 = vsel %vm362, %v3357, %v3361
      %v3363 = vshrl.u32 %v2936, 16
      %v3365 = vrot.slane %v3363, 4
      %v3366 = vor.u32 %v3365, %v3361
      %v3367 = vrot.slane %v3366, 4
      %v3369 = vshll.u32 %v2937, 16
      %v3371 = vrot.slane %v3369, 5
      %v3372 = vsel %vm362, %v3367, %v3371
      %v3374 = vshrl.u32 %v2938, 16
      %v3376 = vrot.slane %v3374, 4
      %v3377 = vshll.u32 %v2938, 16
      %v3379 = vrot.slane %v3377, 5
      %v3380 = vor.u32 %v3376, %v3379
      %v3381 = vrot.slane %v3380, 4
      %v3383 = vshll.u32 %v2939, 16
      %v3385 = vrot.slane %v3383, 5
      %v3386 = vsel %vm362, %v3381, %v3385
      %v3387 = vshrl.u32 %v2939, 16
      %v3389 = vrot.slane %v3387, 4
      %v3390 = vor.u32 %v3389, %v3385
      %v3391 = vrot.slane %v3390, 4
      %v3393 = vshll.u32 %v2940, 16
      %v3395 = vrot.slane %v3393, 5
      %v3396 = vsel %vm362, %v3391, %v3395
      %v3398 = vshrl.u32 %v2941, 16
      %v3400 = vrot.slane %v3398, 4
      %v3401 = vshll.u32 %v2941, 16
      %v3403 = vrot.slane %v3401, 5
      %v3404 = vor.u32 %v3400, %v3403
      %v3405 = vrot.slane %v3404, 4
      %v3407 = vshll.u32 %v2942, 16
      %v3409 = vrot.slane %v3407, 5
      %v3410 = vsel %vm362, %v3405, %v3409
      %v3411 = vshrl.u32 %v2942, 16
      %v3413 = vrot.slane %v3411, 4
      %v3414 = vor.u32 %v3413, %v3409
      %v3415 = vrot.slane %v3414, 4
      %v3417 = vshll.u32 %v2943, 16
      %v3419 = vrot.slane %v3417, 5
      %v3420 = vsel %vm362, %v3415, %v3419
      %v3422 = vshrl.u32 %v2944, 16
      %v3424 = vrot.slane %v3422, 4
      %v3425 = vshll.u32 %v2944, 16
      %v3427 = vrot.slane %v3425, 5
      %v3428 = vor.u32 %v3424, %v3427
      %v3429 = vrot.slane %v3428, 4
      %v3431 = vshll.u32 %v2945, 16
      %v3433 = vrot.slane %v3431, 5
      %v3434 = vsel %vm362, %v3429, %v3433
      %v3435 = vshrl.u32 %v2945, 16
      %v3437 = vrot.slane %v3435, 4
      %v3438 = vor.u32 %v3437, %v3433
      %v3439 = vrot.slane %v3438, 4
      %v3441 = vshll.u32 %v2946, 16
      %v3443 = vrot.slane %v3441, 5
      %v3444 = vsel %vm362, %v3439, %v3443
      %v3446 = vshrl.u32 %v2947, 16
      %v3448 = vrot.slane %v3446, 4
      %v3449 = vshll.u32 %v2947, 16
      %v3451 = vrot.slane %v3449, 5
      %v3452 = vor.u32 %v3448, %v3451
      %v3453 = vrot.slane %v3452, 4
      %v3455 = vshll.u32 %v2948, 16
      %v3457 = vrot.slane %v3455, 5
      %v3458 = vsel %vm362, %v3453, %v3457
      %v3459 = vshrl.u32 %v2948, 16
      %v3461 = vrot.slane %v3459, 4
      %v3462 = vor.u32 %v3461, %v3457
      %v3463 = vrot.slane %v3462, 4
      %v3465 = vshll.u32 %v2949, 16
      %v3467 = vrot.slane %v3465, 5
      %v3468 = vsel %vm362, %v3463, %v3467
      %v3470 = vshrl.u32 %v2950, 16
      %v3472 = vrot.slane %v3470, 4
      %v3473 = vshll.u32 %v2950, 16
      %v3475 = vrot.slane %v3473, 5
      %v3476 = vor.u32 %v3472, %v3475
      %v3477 = vrot.slane %v3476, 4
      %v3479 = vshll.u32 %v2951, 16
      %v3481 = vrot.slane %v3479, 5
      %v3482 = vsel %vm362, %v3477, %v3481
      %v3483 = vshrl.u32 %v2951, 16
      %v3485 = vrot.slane %v3483, 4
      %v3486 = vor.u32 %v3485, %v3481
      %v3487 = vrot.slane %v3486, 4
      %v3489 = vshll.u32 %v2952, 16
      %v3491 = vrot.slane %v3489, 5
      %v3492 = vsel %vm362, %v3487, %v3491
      %v3494 = vshrl.u32 %v2953, 16
      %v3496 = vrot.slane %v3494, 4
      %v3497 = vshll.u32 %v2953, 16
      %v3499 = vrot.slane %v3497, 5
      %v3500 = vor.u32 %v3496, %v3499
      %v3501 = vrot.slane %v3500, 4
      %v3503 = vshll.u32 %v2954, 16
      %v3505 = vrot.slane %v3503, 5
      %v3506 = vsel %vm362, %v3501, %v3505
      %v3507 = vshrl.u32 %v2954, 16
      %v3509 = vrot.slane %v3507, 4
      %v3510 = vor.u32 %v3509, %v3505
      %v3511 = vrot.slane %v3510, 4
      %v3513 = vshll.u32 %v2955, 16
      %v3515 = vrot.slane %v3513, 5
      %v3516 = vsel %vm362, %v3511, %v3515
      %v3518 = vshrl.u32 %v2956, 16
      %v3520 = vrot.slane %v3518, 4
      %v3521 = vshll.u32 %v2956, 16
      %v3523 = vrot.slane %v3521, 5
      %v3524 = vor.u32 %v3520, %v3523
      %v3525 = vrot.slane %v3524, 4
      %v3527 = vshll.u32 %v2957, 16
      %v3529 = vrot.slane %v3527, 5
      %v3530 = vsel %vm362, %v3525, %v3529
      %v3531 = vshrl.u32 %v2957, 16
      %v3533 = vrot.slane %v3531, 4
      %v3534 = vor.u32 %v3533, %v3529
      %v3535 = vrot.slane %v3534, 4
      %v3537 = vshll.u32 %v2958, 16
      %v3539 = vrot.slane %v3537, 5
      %v3540 = vsel %vm362, %v3535, %v3539
      %v3542 = vshrl.u32 %v2959, 16
      %v3544 = vrot.slane %v3542, 4
      %v3545 = vshll.u32 %v2959, 16
      %v3547 = vrot.slane %v3545, 5
      %v3548 = vor.u32 %v3544, %v3547
      %v3549 = vrot.slane %v3548, 4
      %v3551 = vshll.u32 %v2960, 16
      %v3553 = vrot.slane %v3551, 5
      %v3554 = vsel %vm362, %v3549, %v3553
      %v3555 = vshrl.u32 %v2960, 16
      %v3557 = vrot.slane %v3555, 4
      %v3558 = vor.u32 %v3557, %v3553
      %v3559 = vrot.slane %v3558, 4
      %v3561 = vshll.u32 %v2961, 16
      %v3563 = vrot.slane %v3561, 5
      %v3564 = vsel %vm362, %v3559, %v3563
      %v3566 = vshrl.u32 %v2962, 16
      %v3568 = vrot.slane %v3566, 4
      %v3569 = vshll.u32 %v2962, 16
      %v3571 = vrot.slane %v3569, 5
      %v3572 = vor.u32 %v3568, %v3571
      %v3573 = vrot.slane %v3572, 4
      %v3575 = vshll.u32 %v2963, 16
      %v3577 = vrot.slane %v3575, 5
      %v3578 = vsel %vm362, %v3573, %v3577
      %v3579 = vshrl.u32 %v2963, 16
      %v3581 = vrot.slane %v3579, 4
      %v3582 = vor.u32 %v3581, %v3577
      %v3583 = vrot.slane %v3582, 4
      %v3585 = vshll.u32 %v2964, 16
      %v3587 = vrot.slane %v3585, 5
      %v3588 = vsel %vm362, %v3583, %v3587
      %v3590 = vshrl.u32 %v2965, 16
      %v3592 = vrot.slane %v3590, 4
      %v3593 = vshll.u32 %v2965, 16
      %v3595 = vrot.slane %v3593, 5
      %v3596 = vor.u32 %v3592, %v3595
      %v3597 = vrot.slane %v3596, 4
      %v3599 = vshll.u32 %v2966, 16
      %v3601 = vrot.slane %v3599, 5
      %v3602 = vsel %vm362, %v3597, %v3601
      %v3603 = vshrl.u32 %v2966, 16
      %v3605 = vrot.slane %v3603, 4
      %v3606 = vor.u32 %v3605, %v3601
      %v3607 = vrot.slane %v3606, 4
      %v3609 = vshll.u32 %v2967, 16
      %v3611 = vrot.slane %v3609, 5
      %v3612 = vsel %vm362, %v3607, %v3611
      %v3614 = vshrl.u32 %v2968, 16
      %v3616 = vrot.slane %v3614, 4
      %v3617 = vshll.u32 %v2968, 16
      %v3619 = vrot.slane %v3617, 5
      %v3620 = vor.u32 %v3616, %v3619
      %v3621 = vrot.slane %v3620, 4
      %v3623 = vshll.u32 %v2969, 16
      %v3625 = vrot.slane %v3623, 5
      %v3626 = vsel %vm362, %v3621, %v3625
      %v3627 = vshrl.u32 %v2969, 16
      %v3629 = vrot.slane %v3627, 4
      %v3630 = vor.u32 %v3629, %v3625
      %v3631 = vrot.slane %v3630, 4
      %v3633 = vshll.u32 %v2970, 16
      %v3635 = vrot.slane %v3633, 5
      %v3636 = vsel %vm362, %v3631, %v3635
      %s3637 = scalar_lea.vmem %s246, 448
      %v3638 = vld [vmem:[%s3637] sm:$0xf]
      %v3639 = vld [vmem:[%s3637 + $0x4] sm:$0xf]
      %v3640 = vld [vmem:[%s3637 + $0x8] sm:$0xf]
      %v3641 = vld [vmem:[%s3637 + $0xc] sm:$0xf]
      %v3642 = vld [vmem:[%s3637 + $0x10] sm:$0xf]
      %v3643 = vld [vmem:[%s3637 + $0x14] sm:$0xf]
      %v3644 = vld [vmem:[%s3637 + $0x18] sm:$0xf]
      %v3645 = vld [vmem:[%s3637 + $0x1c] sm:$0xf]
      %v3646 = vld [vmem:[%s3637 + $0x20] sm:$0xf]
      %v3647 = vld [vmem:[%s3637 + $0x24] sm:$0xf]
      %v3648 = vld [vmem:[%s3637 + $0x28] sm:$0xf]
      %v3649 = vld [vmem:[%s3637 + $0x2c] sm:$0xf]
      %v3650 = vld [vmem:[%s3637 + $0x30] sm:$0xf]
      %v3651 = vld [vmem:[%s3637 + $0x34] sm:$0xf]
      %v3652 = vld [vmem:[%s3637 + $0x38] sm:$0xf]
      %v3653 = vld [vmem:[%s3637 + $0x3c] sm:$0xf]
      %v3654 = vunpack.c.l.b16 %v3266
      %v3655 = vunpack.c.l.b16 %v3276
      %v3656 = vunpack.c.l.b16 %v3290
      %v3657 = vunpack.c.l.b16 %v3300
      %v3658 = vunpack.c.l.b16 %v3314
      %v3659 = vunpack.c.l.b16 %v3324
      %v3660 = vunpack.c.l.b16 %v3338
      %v3661 = vunpack.c.l.b16 %v3348
      %v3662 = vunpack.c.l.b16 %v3362
      %v3663 = vunpack.c.l.b16 %v3372
      %v3664 = vunpack.c.l.b16 %v3386
      %v3665 = vunpack.c.l.b16 %v3396
      %v3666 = vunpack.c.l.b16 %v3410
      %v3667 = vunpack.c.l.b16 %v3420
      %v3668 = vunpack.c.l.b16 %v3434
      %v3669 = vunpack.c.l.b16 %v3444
      %v3670 = vunpack.c.l.b16 %v3458
      %v3671 = vunpack.c.l.b16 %v3468
      %v3672 = vunpack.c.l.b16 %v3482
      %v3673 = vunpack.c.l.b16 %v3492
      %v3674 = vunpack.c.l.b16 %v3506
      %v3675 = vunpack.c.l.b16 %v3516
      %v3676 = vunpack.c.l.b16 %v3530
      %v3677 = vunpack.c.l.b16 %v3540
      %v3678 = vunpack.c.l.b16 %v3554
      %v3679 = vunpack.c.l.b16 %v3564
      %v3680 = vunpack.c.l.b16 %v3578
      %v3681 = vunpack.c.l.b16 %v3588
      %v3682 = vunpack.c.l.b16 %v3602
      %v3683 = vunpack.c.l.b16 %v3612
      %v3684 = vunpack.c.l.b16 %v3626
      %v3685 = vunpack.c.l.b16 %v3636
      %v3686 = vpack.c.b16 %v3655, %v3654
      %v3687 = vpack.c.b16 %v3657, %v3656
      %v3688 = vpack.c.b16 %v3659, %v3658
      %v3689 = vpack.c.b16 %v3661, %v3660
      %v3690 = vpack.c.b16 %v3663, %v3662
      %v3691 = vpack.c.b16 %v3665, %v3664
      %v3692 = vpack.c.b16 %v3667, %v3666
      %v3693 = vpack.c.b16 %v3669, %v3668
      %v3694 = vpack.c.b16 %v3671, %v3670
      %v3695 = vpack.c.b16 %v3673, %v3672
      %v3696 = vpack.c.b16 %v3675, %v3674
      %v3697 = vpack.c.b16 %v3677, %v3676
      %v3698 = vpack.c.b16 %v3679, %v3678
      %v3699 = vpack.c.b16 %v3681, %v3680
      %v3700 = vpack.c.b16 %v3683, %v3682
      %v3701 = vpack.c.b16 %v3685, %v3684
      %v3734 = vunpack.c.l.b16 %v3638
      %v3735 = vunpack.c.l.b16 %v3639
      %v3736 = vunpack.c.l.b16 %v3640
      %v3737 = vunpack.c.l.b16 %v3641
      %v3738 = vunpack.c.l.b16 %v3642
      %v3739 = vunpack.c.l.b16 %v3643
      %v3740 = vunpack.c.l.b16 %v3644
      %v3741 = vunpack.c.l.b16 %v3645
      %v3742 = vunpack.c.l.b16 %v3646
      %v3743 = vunpack.c.l.b16 %v3647
      %v3744 = vunpack.c.l.b16 %v3648
      %v3745 = vunpack.c.l.b16 %v3649
      %v3746 = vunpack.c.l.b16 %v3650
      %v3747 = vunpack.c.l.b16 %v3651
      %v3748 = vunpack.c.l.b16 %v3652
      %v3749 = vunpack.c.l.b16 %v3653
      %v3750 = vpack.c.b16 %v3735, %v3734
      %v3751 = vpack.c.b16 %v3737, %v3736
      %v3752 = vpack.c.b16 %v3739, %v3738
      %v3753 = vpack.c.b16 %v3741, %v3740
      %v3754 = vpack.c.b16 %v3743, %v3742
      %v3755 = vpack.c.b16 %v3745, %v3744
      %v3756 = vpack.c.b16 %v3747, %v3746
      %v3757 = vpack.c.b16 %v3749, %v3748
      %3766 = vmatpush.bf16.msra.mxu0 %v3757
      %3767 = vmatpush.bf16.msra.mxu0 %v3756
      %3768 = vmatpush.bf16.msra.mxu0 %v3755
      %3769 = vmatpush.bf16.msra.mxu0 %v3754
      %3770 = vmatpush.bf16.msra.mxu0 %v3753
      %3771 = vmatpush.bf16.msra.mxu0 %v3752
      %3772 = vmatpush.bf16.msra.mxu0 %v3751
      %3773 = vmatpush.bf16.msra.mxu0 %v3750
      %3774 = vmatmul.bf16.gmra.mxu0 %v3686
      %v3775 = vpop.f32.mrf.mxu0
      %v3776 = vadd.f32 0.0, %v3775
      %v3777 = vpop.f32.mrf.mxu0
      %v3778 = vadd.f32 0.0, %v3777
      %3779 = vmatmul.bf16.gmra.mxu0 %v3687
      %v3780 = vpop.f32.mrf.mxu0
      %v3781 = vadd.f32 0.0, %v3780
      %v3782 = vpop.f32.mrf.mxu0
      %v3783 = vadd.f32 0.0, %v3782
      %3784 = vmatmul.bf16.gmra.mxu0 %v3688
      %v3785 = vpop.f32.mrf.mxu0
      %v3786 = vadd.f32 0.0, %v3785
      %v3787 = vpop.f32.mrf.mxu0
      %v3788 = vadd.f32 0.0, %v3787
      %3789 = vmatmul.bf16.gmra.mxu0 %v3689
      %v3790 = vpop.f32.mrf.mxu0
      %v3791 = vadd.f32 0.0, %v3790
      %v3792 = vpop.f32.mrf.mxu0
      %v3793 = vadd.f32 0.0, %v3792
      %3794 = vmatmul.bf16.gmra.mxu0 %v3690
      %v3795 = vpop.f32.mrf.mxu0
      %v3796 = vadd.f32 0.0, %v3795
      %v3797 = vpop.f32.mrf.mxu0
      %v3798 = vadd.f32 0.0, %v3797
      %3799 = vmatmul.bf16.gmra.mxu0 %v3691
      %v3800 = vpop.f32.mrf.mxu0
      %v3801 = vadd.f32 0.0, %v3800
      %v3802 = vpop.f32.mrf.mxu0
      %v3803 = vadd.f32 0.0, %v3802
      %3804 = vmatmul.bf16.gmra.mxu0 %v3692
      %v3805 = vpop.f32.mrf.mxu0
      %v3806 = vadd.f32 0.0, %v3805
      %v3807 = vpop.f32.mrf.mxu0
      %v3808 = vadd.f32 0.0, %v3807
      %3809 = vmatmul.bf16.gmra.mxu0 %v3693
      %v3810 = vpop.f32.mrf.mxu0
      %v3811 = vadd.f32 0.0, %v3810
      %v3812 = vpop.f32.mrf.mxu0
      %v3813 = vadd.f32 0.0, %v3812
      %3814 = vmatmul.bf16.gmra.mxu0 %v3694
      %v3815 = vpop.f32.mrf.mxu0
      %v3816 = vadd.f32 0.0, %v3815
      %v3817 = vpop.f32.mrf.mxu0
      %v3818 = vadd.f32 0.0, %v3817
      %3819 = vmatmul.bf16.gmra.mxu0 %v3695
      %v3820 = vpop.f32.mrf.mxu0
      %v3821 = vadd.f32 0.0, %v3820
      %v3822 = vpop.f32.mrf.mxu0
      %v3823 = vadd.f32 0.0, %v3822
      %3824 = vmatmul.bf16.gmra.mxu0 %v3696
      %v3825 = vpop.f32.mrf.mxu0
      %v3826 = vadd.f32 0.0, %v3825
      %v3827 = vpop.f32.mrf.mxu0
      %v3828 = vadd.f32 0.0, %v3827
      %3829 = vmatmul.bf16.gmra.mxu0 %v3697
      %v3830 = vpop.f32.mrf.mxu0
      %v3831 = vadd.f32 0.0, %v3830
      %v3832 = vpop.f32.mrf.mxu0
      %v3833 = vadd.f32 0.0, %v3832
      %3834 = vmatmul.bf16.gmra.mxu0 %v3698
      %v3835 = vpop.f32.mrf.mxu0
      %v3836 = vadd.f32 0.0, %v3835
      %v3837 = vpop.f32.mrf.mxu0
      %v3838 = vadd.f32 0.0, %v3837
      %3839 = vmatmul.bf16.gmra.mxu0 %v3699
      %v3840 = vpop.f32.mrf.mxu0
      %v3841 = vadd.f32 0.0, %v3840
      %v3842 = vpop.f32.mrf.mxu0
      %v3843 = vadd.f32 0.0, %v3842
      %3844 = vmatmul.bf16.gmra.mxu0 %v3700
      %v3845 = vpop.f32.mrf.mxu0
      %v3846 = vadd.f32 0.0, %v3845
      %v3847 = vpop.f32.mrf.mxu0
      %v3848 = vadd.f32 0.0, %v3847
      %3849 = vmatmul.bf16.gmra.mxu0 %v3701
      %v3850 = vpop.f32.mrf.mxu0
      %v3851 = vadd.f32 0.0, %v3850
      %v3852 = vpop.f32.mrf.mxu0
      %v3853 = vadd.f32 0.0, %v3852
      %3854 = vdwg.mxu0
      %v3855 = vadd.f32 %v3221, %v3776
      %v3856 = vadd.f32 %v3222, %v3778
      %v3857 = vadd.f32 %v3223, %v3781
      %v3858 = vadd.f32 %v3224, %v3783
      %v3859 = vadd.f32 %v3225, %v3786
      %v3860 = vadd.f32 %v3226, %v3788
      %v3861 = vadd.f32 %v3227, %v3791
      %v3862 = vadd.f32 %v3228, %v3793
      %v3863 = vadd.f32 %v3229, %v3796
      %v3864 = vadd.f32 %v3230, %v3798
      %v3865 = vadd.f32 %v3231, %v3801
      %v3866 = vadd.f32 %v3232, %v3803
      %v3867 = vadd.f32 %v3233, %v3806
      %v3868 = vadd.f32 %v3234, %v3808
      %v3869 = vadd.f32 %v3235, %v3811
      %v3870 = vadd.f32 %v3236, %v3813
      %v3871 = vadd.f32 %v3237, %v3816
      %v3872 = vadd.f32 %v3238, %v3818
      %v3873 = vadd.f32 %v3239, %v3821
      %v3874 = vadd.f32 %v3240, %v3823
      %v3875 = vadd.f32 %v3241, %v3826
      %v3876 = vadd.f32 %v3242, %v3828
      %v3877 = vadd.f32 %v3243, %v3831
      %v3878 = vadd.f32 %v3244, %v3833
      %v3879 = vadd.f32 %v3245, %v3836
      %v3880 = vadd.f32 %v3246, %v3838
      %v3881 = vadd.f32 %v3247, %v3841
      %v3882 = vadd.f32 %v3248, %v3843
      %v3883 = vadd.f32 %v3249, %v3846
      %v3884 = vadd.f32 %v3250, %v3848
      %v3885 = vadd.f32 %v3251, %v3851
      %v3886 = vadd.f32 %v3252, %v3853
      %v3903 = vrot.slane %v2923, 5
      %v3904 = vrot.slane %v3903, 4
      %v3905 = vrot.slane %v2924, 5
      %v3906 = vsel %vm1216, %v3904, %v3905
      %v3907 = vrot.slane %v3905, 4
      %v3908 = vrot.slane %v2925, 5
      %v3909 = vsel %vm1216, %v3907, %v3908
      %v3910 = vrot.slane %v2926, 5
      %v3911 = vrot.slane %v3910, 4
      %v3912 = vrot.slane %v2927, 5
      %v3913 = vsel %vm1216, %v3911, %v3912
      %v3914 = vrot.slane %v3912, 4
      %v3915 = vrot.slane %v2928, 5
      %v3916 = vsel %vm1216, %v3914, %v3915
      %v3917 = vrot.slane %v2929, 5
      %v3918 = vrot.slane %v3917, 4
      %v3919 = vrot.slane %v2930, 5
      %v3920 = vsel %vm1216, %v3918, %v3919
      %v3921 = vrot.slane %v3919, 4
      %v3922 = vrot.slane %v2931, 5
      %v3923 = vsel %vm1216, %v3921, %v3922
      %v3924 = vrot.slane %v2932, 5
      %v3925 = vrot.slane %v3924, 4
      %v3926 = vrot.slane %v2933, 5
      %v3927 = vsel %vm1216, %v3925, %v3926
      %v3928 = vrot.slane %v3926, 4
      %v3929 = vrot.slane %v2934, 5
      %v3930 = vsel %vm1216, %v3928, %v3929
      %v3931 = vrot.slane %v2935, 5
      %v3932 = vrot.slane %v3931, 4
      %v3933 = vrot.slane %v2936, 5
      %v3934 = vsel %vm1216, %v3932, %v3933
      %v3935 = vrot.slane %v3933, 4
      %v3936 = vrot.slane %v2937, 5
      %v3937 = vsel %vm1216, %v3935, %v3936
      %v3938 = vrot.slane %v2938, 5
      %v3939 = vrot.slane %v3938, 4
      %v3940 = vrot.slane %v2939, 5
      %v3941 = vsel %vm1216, %v3939, %v3940
      %v3942 = vrot.slane %v3940, 4
      %v3943 = vrot.slane %v2940, 5
      %v3944 = vsel %vm1216, %v3942, %v3943
      %v3945 = vrot.slane %v2941, 5
      %v3946 = vrot.slane %v3945, 4
      %v3947 = vrot.slane %v2942, 5
      %v3948 = vsel %vm1216, %v3946, %v3947
      %v3949 = vrot.slane %v3947, 4
      %v3950 = vrot.slane %v2943, 5
      %v3951 = vsel %vm1216, %v3949, %v3950
      %v3952 = vrot.slane %v2944, 5
      %v3953 = vrot.slane %v3952, 4
      %v3954 = vrot.slane %v2945, 5
      %v3955 = vsel %vm1216, %v3953, %v3954
      %v3956 = vrot.slane %v3954, 4
      %v3957 = vrot.slane %v2946, 5
      %v3958 = vsel %vm1216, %v3956, %v3957
      %v3959 = vrot.slane %v2947, 5
      %v3960 = vrot.slane %v3959, 4
      %v3961 = vrot.slane %v2948, 5
      %v3962 = vsel %vm1216, %v3960, %v3961
      %v3963 = vrot.slane %v3961, 4
      %v3964 = vrot.slane %v2949, 5
      %v3965 = vsel %vm1216, %v3963, %v3964
      %v3966 = vrot.slane %v2950, 5
      %v3967 = vrot.slane %v3966, 4
      %v3968 = vrot.slane %v2951, 5
      %v3969 = vsel %vm1216, %v3967, %v3968
      %v3970 = vrot.slane %v3968, 4
      %v3971 = vrot.slane %v2952, 5
      %v3972 = vsel %vm1216, %v3970, %v3971
      %v3973 = vrot.slane %v2953, 5
      %v3974 = vrot.slane %v3973, 4
      %v3975 = vrot.slane %v2954, 5
      %v3976 = vsel %vm1216, %v3974, %v3975
      %v3977 = vrot.slane %v3975, 4
      %v3978 = vrot.slane %v2955, 5
      %v3979 = vsel %vm1216, %v3977, %v3978
      %v3980 = vrot.slane %v2956, 5
      %v3981 = vrot.slane %v3980, 4
      %v3982 = vrot.slane %v2957, 5
      %v3983 = vsel %vm1216, %v3981, %v3982
      %v3984 = vrot.slane %v3982, 4
      %v3985 = vrot.slane %v2958, 5
      %v3986 = vsel %vm1216, %v3984, %v3985
      %v3987 = vrot.slane %v2959, 5
      %v3988 = vrot.slane %v3987, 4
      %v3989 = vrot.slane %v2960, 5
      %v3990 = vsel %vm1216, %v3988, %v3989
      %v3991 = vrot.slane %v3989, 4
      %v3992 = vrot.slane %v2961, 5
      %v3993 = vsel %vm1216, %v3991, %v3992
      %v3994 = vrot.slane %v2962, 5
      %v3995 = vrot.slane %v3994, 4
      %v3996 = vrot.slane %v2963, 5
      %v3997 = vsel %vm1216, %v3995, %v3996
      %v3998 = vrot.slane %v3996, 4
      %v3999 = vrot.slane %v2964, 5
      %v4000 = vsel %vm1216, %v3998, %v3999
      %v4001 = vrot.slane %v2965, 5
      %v4002 = vrot.slane %v4001, 4
      %v4003 = vrot.slane %v2966, 5
      %v4004 = vsel %vm1216, %v4002, %v4003
      %v4005 = vrot.slane %v4003, 4
      %v4006 = vrot.slane %v2967, 5
      %v4007 = vsel %vm1216, %v4005, %v4006
      %v4008 = vrot.slane %v2968, 5
      %v4009 = vrot.slane %v4008, 4
      %v4010 = vrot.slane %v2969, 5
      %v4011 = vsel %vm1216, %v4009, %v4010
      %v4012 = vrot.slane %v4010, 4
      %v4013 = vrot.slane %v2970, 5
      %v4014 = vsel %vm1216, %v4012, %v4013
      %s4015 = scalar_lea.vmem %s246, 512
      %v4016 = vld [vmem:[%s4015] sm:$0xf]
      %v4017 = vld [vmem:[%s4015 + $0x4] sm:$0xf]
      %v4018 = vld [vmem:[%s4015 + $0x8] sm:$0xf]
      %v4019 = vld [vmem:[%s4015 + $0xc] sm:$0xf]
      %v4020 = vld [vmem:[%s4015 + $0x10] sm:$0xf]
      %v4021 = vld [vmem:[%s4015 + $0x14] sm:$0xf]
      %v4022 = vld [vmem:[%s4015 + $0x18] sm:$0xf]
      %v4023 = vld [vmem:[%s4015 + $0x1c] sm:$0xf]
      %v4024 = vld [vmem:[%s4015 + $0x20] sm:$0xf]
      %v4025 = vld [vmem:[%s4015 + $0x24] sm:$0xf]
      %v4026 = vld [vmem:[%s4015 + $0x28] sm:$0xf]
      %v4027 = vld [vmem:[%s4015 + $0x2c] sm:$0xf]
      %v4028 = vld [vmem:[%s4015 + $0x30] sm:$0xf]
      %v4029 = vld [vmem:[%s4015 + $0x34] sm:$0xf]
      %v4030 = vld [vmem:[%s4015 + $0x38] sm:$0xf]
      %v4031 = vld [vmem:[%s4015 + $0x3c] sm:$0xf]
      %v4032 = vunpack.c.l.b16 %v3906
      %v4033 = vunpack.c.l.b16 %v3909
      %v4034 = vunpack.c.l.b16 %v3913
      %v4035 = vunpack.c.l.b16 %v3916
      %v4036 = vunpack.c.l.b16 %v3920
      %v4037 = vunpack.c.l.b16 %v3923
      %v4038 = vunpack.c.l.b16 %v3927
      %v4039 = vunpack.c.l.b16 %v3930
      %v4040 = vunpack.c.l.b16 %v3934
      %v4041 = vunpack.c.l.b16 %v3937
      %v4042 = vunpack.c.l.b16 %v3941
      %v4043 = vunpack.c.l.b16 %v3944
      %v4044 = vunpack.c.l.b16 %v3948
      %v4045 = vunpack.c.l.b16 %v3951
      %v4046 = vunpack.c.l.b16 %v3955
      %v4047 = vunpack.c.l.b16 %v3958
      %v4048 = vunpack.c.l.b16 %v3962
      %v4049 = vunpack.c.l.b16 %v3965
      %v4050 = vunpack.c.l.b16 %v3969
      %v4051 = vunpack.c.l.b16 %v3972
      %v4052 = vunpack.c.l.b16 %v3976
      %v4053 = vunpack.c.l.b16 %v3979
      %v4054 = vunpack.c.l.b16 %v3983
      %v4055 = vunpack.c.l.b16 %v3986
      %v4056 = vunpack.c.l.b16 %v3990
      %v4057 = vunpack.c.l.b16 %v3993
      %v4058 = vunpack.c.l.b16 %v3997
      %v4059 = vunpack.c.l.b16 %v4000
      %v4060 = vunpack.c.l.b16 %v4004
      %v4061 = vunpack.c.l.b16 %v4007
      %v4062 = vunpack.c.l.b16 %v4011
      %v4063 = vunpack.c.l.b16 %v4014
      %v4064 = vpack.c.b16 %v4033, %v4032
      %v4065 = vpack.c.b16 %v4035, %v4034
      %v4066 = vpack.c.b16 %v4037, %v4036
      %v4067 = vpack.c.b16 %v4039, %v4038
      %v4068 = vpack.c.b16 %v4041, %v4040
      %v4069 = vpack.c.b16 %v4043, %v4042
      %v4070 = vpack.c.b16 %v4045, %v4044
      %v4071 = vpack.c.b16 %v4047, %v4046
      %v4072 = vpack.c.b16 %v4049, %v4048
      %v4073 = vpack.c.b16 %v4051, %v4050
      %v4074 = vpack.c.b16 %v4053, %v4052
      %v4075 = vpack.c.b16 %v4055, %v4054
      %v4076 = vpack.c.b16 %v4057, %v4056
      %v4077 = vpack.c.b16 %v4059, %v4058
      %v4078 = vpack.c.b16 %v4061, %v4060
      %v4079 = vpack.c.b16 %v4063, %v4062
      %v4112 = vunpack.c.l.b16 %v4016
      %v4113 = vunpack.c.l.b16 %v4017
      %v4114 = vunpack.c.l.b16 %v4018
      %v4115 = vunpack.c.l.b16 %v4019
      %v4116 = vunpack.c.l.b16 %v4020
      %v4117 = vunpack.c.l.b16 %v4021
      %v4118 = vunpack.c.l.b16 %v4022
      %v4119 = vunpack.c.l.b16 %v4023
      %v4120 = vunpack.c.l.b16 %v4024
      %v4121 = vunpack.c.l.b16 %v4025
      %v4122 = vunpack.c.l.b16 %v4026
      %v4123 = vunpack.c.l.b16 %v4027
      %v4124 = vunpack.c.l.b16 %v4028
      %v4125 = vunpack.c.l.b16 %v4029
      %v4126 = vunpack.c.l.b16 %v4030
      %v4127 = vunpack.c.l.b16 %v4031
      %v4128 = vpack.c.b16 %v4113, %v4112
      %v4129 = vpack.c.b16 %v4115, %v4114
      %v4130 = vpack.c.b16 %v4117, %v4116
      %v4131 = vpack.c.b16 %v4119, %v4118
      %v4132 = vpack.c.b16 %v4121, %v4120
      %v4133 = vpack.c.b16 %v4123, %v4122
      %v4134 = vpack.c.b16 %v4125, %v4124
      %v4135 = vpack.c.b16 %v4127, %v4126
      %4144 = vmatpush.bf16.msra.mxu0 %v4135
      %4145 = vmatpush.bf16.msra.mxu0 %v4134
      %4146 = vmatpush.bf16.msra.mxu0 %v4133
      %4147 = vmatpush.bf16.msra.mxu0 %v4132
      %4148 = vmatpush.bf16.msra.mxu0 %v4131
      %4149 = vmatpush.bf16.msra.mxu0 %v4130
      %4150 = vmatpush.bf16.msra.mxu0 %v4129
      %4151 = vmatpush.bf16.msra.mxu0 %v4128
      %4152 = vmatmul.bf16.gmra.mxu0 %v4064
      %v4153 = vpop.f32.mrf.mxu0
      %v4154 = vadd.f32 0.0, %v4153
      %v4155 = vpop.f32.mrf.mxu0
      %v4156 = vadd.f32 0.0, %v4155
      %4157 = vmatmul.bf16.gmra.mxu0 %v4065
      %v4158 = vpop.f32.mrf.mxu0
      %v4159 = vadd.f32 0.0, %v4158
      %v4160 = vpop.f32.mrf.mxu0
      %v4161 = vadd.f32 0.0, %v4160
      %4162 = vmatmul.bf16.gmra.mxu0 %v4066
      %v4163 = vpop.f32.mrf.mxu0
      %v4164 = vadd.f32 0.0, %v4163
      %v4165 = vpop.f32.mrf.mxu0
      %v4166 = vadd.f32 0.0, %v4165
      %4167 = vmatmul.bf16.gmra.mxu0 %v4067
      %v4168 = vpop.f32.mrf.mxu0
      %v4169 = vadd.f32 0.0, %v4168
      %v4170 = vpop.f32.mrf.mxu0
      %v4171 = vadd.f32 0.0, %v4170
      %4172 = vmatmul.bf16.gmra.mxu0 %v4068
      %v4173 = vpop.f32.mrf.mxu0
      %v4174 = vadd.f32 0.0, %v4173
      %v4175 = vpop.f32.mrf.mxu0
      %v4176 = vadd.f32 0.0, %v4175
      %4177 = vmatmul.bf16.gmra.mxu0 %v4069
      %v4178 = vpop.f32.mrf.mxu0
      %v4179 = vadd.f32 0.0, %v4178
      %v4180 = vpop.f32.mrf.mxu0
      %v4181 = vadd.f32 0.0, %v4180
      %4182 = vmatmul.bf16.gmra.mxu0 %v4070
      %v4183 = vpop.f32.mrf.mxu0
      %v4184 = vadd.f32 0.0, %v4183
      %v4185 = vpop.f32.mrf.mxu0
      %v4186 = vadd.f32 0.0, %v4185
      %4187 = vmatmul.bf16.gmra.mxu0 %v4071
      %v4188 = vpop.f32.mrf.mxu0
      %v4189 = vadd.f32 0.0, %v4188
      %v4190 = vpop.f32.mrf.mxu0
      %v4191 = vadd.f32 0.0, %v4190
      %4192 = vmatmul.bf16.gmra.mxu0 %v4072
      %v4193 = vpop.f32.mrf.mxu0
      %v4194 = vadd.f32 0.0, %v4193
      %v4195 = vpop.f32.mrf.mxu0
      %v4196 = vadd.f32 0.0, %v4195
      %4197 = vmatmul.bf16.gmra.mxu0 %v4073
      %v4198 = vpop.f32.mrf.mxu0
      %v4199 = vadd.f32 0.0, %v4198
      %v4200 = vpop.f32.mrf.mxu0
      %v4201 = vadd.f32 0.0, %v4200
      %4202 = vmatmul.bf16.gmra.mxu0 %v4074
      %v4203 = vpop.f32.mrf.mxu0
      %v4204 = vadd.f32 0.0, %v4203
      %v4205 = vpop.f32.mrf.mxu0
      %v4206 = vadd.f32 0.0, %v4205
      %4207 = vmatmul.bf16.gmra.mxu0 %v4075
      %v4208 = vpop.f32.mrf.mxu0
      %v4209 = vadd.f32 0.0, %v4208
      %v4210 = vpop.f32.mrf.mxu0
      %v4211 = vadd.f32 0.0, %v4210
      %4212 = vmatmul.bf16.gmra.mxu0 %v4076
      %v4213 = vpop.f32.mrf.mxu0
      %v4214 = vadd.f32 0.0, %v4213
      %v4215 = vpop.f32.mrf.mxu0
      %v4216 = vadd.f32 0.0, %v4215
      %4217 = vmatmul.bf16.gmra.mxu0 %v4077
      %v4218 = vpop.f32.mrf.mxu0
      %v4219 = vadd.f32 0.0, %v4218
      %v4220 = vpop.f32.mrf.mxu0
      %v4221 = vadd.f32 0.0, %v4220
      %4222 = vmatmul.bf16.gmra.mxu0 %v4078
      %v4223 = vpop.f32.mrf.mxu0
      %v4224 = vadd.f32 0.0, %v4223
      %v4225 = vpop.f32.mrf.mxu0
      %v4226 = vadd.f32 0.0, %v4225
      %4227 = vmatmul.bf16.gmra.mxu0 %v4079
      %v4228 = vpop.f32.mrf.mxu0
      %v4229 = vadd.f32 0.0, %v4228
      %v4230 = vpop.f32.mrf.mxu0
      %v4231 = vadd.f32 0.0, %v4230
      %4232 = vdwg.mxu0
      %v4233 = vadd.f32 %v3855, %v4154
      %v4234 = vadd.f32 %v3856, %v4156
      %v4235 = vadd.f32 %v3857, %v4159
      %v4236 = vadd.f32 %v3858, %v4161
      %v4237 = vadd.f32 %v3859, %v4164
      %v4238 = vadd.f32 %v3860, %v4166
      %v4239 = vadd.f32 %v3861, %v4169
      %v4240 = vadd.f32 %v3862, %v4171
      %v4241 = vadd.f32 %v3863, %v4174
      %v4242 = vadd.f32 %v3864, %v4176
      %v4243 = vadd.f32 %v3865, %v4179
      %v4244 = vadd.f32 %v3866, %v4181
      %v4245 = vadd.f32 %v3867, %v4184
      %v4246 = vadd.f32 %v3868, %v4186
      %v4247 = vadd.f32 %v3869, %v4189
      %v4248 = vadd.f32 %v3870, %v4191
      %v4249 = vadd.f32 %v3871, %v4194
      %v4250 = vadd.f32 %v3872, %v4196
      %v4251 = vadd.f32 %v3873, %v4199
      %v4252 = vadd.f32 %v3874, %v4201
      %v4253 = vadd.f32 %v3875, %v4204
      %v4254 = vadd.f32 %v3876, %v4206
      %v4255 = vadd.f32 %v3877, %v4209
      %v4256 = vadd.f32 %v3878, %v4211
      %v4257 = vadd.f32 %v3879, %v4214
      %v4258 = vadd.f32 %v3880, %v4216
      %v4259 = vadd.f32 %v3881, %v4219
      %v4260 = vadd.f32 %v3882, %v4221
      %v4261 = vadd.f32 %v3883, %v4224
      %v4262 = vadd.f32 %v3884, %v4226
      %v4263 = vadd.f32 %v3885, %v4229
      %v4264 = vadd.f32 %v3886, %v4231
      %v4265 = vld [vmem:[#allocation2] sm:$0xff]
      %v4266 = vld [vmem:[#allocation2 + $0x8] sm:$0xff]
      %v4267 = vld [vmem:[#allocation2 + $0x10] sm:$0xff]
      %v4268 = vld [vmem:[#allocation2 + $0x18] sm:$0xff]
      %v4269 = vld [vmem:[#allocation2 + $0x20] sm:$0xff]
      %v4270 = vld [vmem:[#allocation2 + $0x28] sm:$0xff]
      %v4271 = vld [vmem:[#allocation2 + $0x30] sm:$0xff]
      %v4272 = vld [vmem:[#allocation2 + $0x38] sm:$0xff]
      %v4273 = vld [vmem:[#allocation2 + $0x40] sm:$0xff]
      %v4274 = vld [vmem:[#allocation2 + $0x48] sm:$0xff]
      %v4275 = vld [vmem:[#allocation2 + $0x50] sm:$0xff]
      %v4276 = vld [vmem:[#allocation2 + $0x58] sm:$0xff]
      %v4277 = vld [vmem:[#allocation2 + $0x60] sm:$0xff]
      %v4278 = vld [vmem:[#allocation2 + $0x68] sm:$0xff]
      %v4279 = vld [vmem:[#allocation2 + $0x70] sm:$0xff]
      %v4280 = vld [vmem:[#allocation2 + $0x78] sm:$0xff]
      %v4281 = vld [vmem:[#allocation2 + $0x80] sm:$0xff]
      %v4282 = vld [vmem:[#allocation2 + $0x88] sm:$0xff]
      %v4283 = vld [vmem:[#allocation2 + $0x90] sm:$0xff]
      %v4284 = vld [vmem:[#allocation2 + $0x98] sm:$0xff]
      %v4285 = vld [vmem:[#allocation2 + $0xa0] sm:$0xff]
      %v4286 = vld [vmem:[#allocation2 + $0xa8] sm:$0xff]
      %v4287 = vld [vmem:[#allocation2 + $0xb0] sm:$0xff]
      %v4288 = vld [vmem:[#allocation2 + $0xb8] sm:$0xff]
      %v4289 = vld [vmem:[#allocation2 + $0xc0] sm:$0xff]
      %v4290 = vld [vmem:[#allocation2 + $0xc8] sm:$0xff]
      %v4291 = vld [vmem:[#allocation2 + $0xd0] sm:$0xff]
      %v4292 = vld [vmem:[#allocation2 + $0xd8] sm:$0xff]
      %v4293 = vld [vmem:[#allocation2 + $0xe0] sm:$0xff]
      %v4294 = vld [vmem:[#allocation2 + $0xe8] sm:$0xff]
      %v4295 = vld [vmem:[#allocation2 + $0xf0] sm:$0xff]
      %v4296 = vld [vmem:[#allocation2 + $0xf8] sm:$0xff]
      %v4297 = vadd.f32 %v4265, %v4233
      %v4298 = vadd.f32 %v4266, %v4234
      %v4299 = vadd.f32 %v4267, %v4235
      %v4300 = vadd.f32 %v4268, %v4236
      %v4301 = vadd.f32 %v4269, %v4237
      %v4302 = vadd.f32 %v4270, %v4238
      %v4303 = vadd.f32 %v4271, %v4239
      %v4304 = vadd.f32 %v4272, %v4240
      %v4305 = vadd.f32 %v4273, %v4241
      %v4306 = vadd.f32 %v4274, %v4242
      %v4307 = vadd.f32 %v4275, %v4243
      %v4308 = vadd.f32 %v4276, %v4244
      %v4309 = vadd.f32 %v4277, %v4245
      %v4310 = vadd.f32 %v4278, %v4246
      %v4311 = vadd.f32 %v4279, %v4247
      %v4312 = vadd.f32 %v4280, %v4248
      %v4313 = vadd.f32 %v4281, %v4249
      %v4314 = vadd.f32 %v4282, %v4250
      %v4315 = vadd.f32 %v4283, %v4251
      %v4316 = vadd.f32 %v4284, %v4252
      %v4317 = vadd.f32 %v4285, %v4253
      %v4318 = vadd.f32 %v4286, %v4254
      %v4319 = vadd.f32 %v4287, %v4255
      %v4320 = vadd.f32 %v4288, %v4256
      %v4321 = vadd.f32 %v4289, %v4257
      %v4322 = vadd.f32 %v4290, %v4258
      %v4323 = vadd.f32 %v4291, %v4259
      %v4324 = vadd.f32 %v4292, %v4260
      %v4325 = vadd.f32 %v4293, %v4261
      %v4326 = vadd.f32 %v4294, %v4262
      %v4327 = vadd.f32 %v4295, %v4263
      %v4328 = vadd.f32 %v4296, %v4264
      %4329 = vst [vmem:[#allocation2] sm:$0xff] %v4297
      %4330 = vst [vmem:[#allocation2 + $0x8] sm:$0xff] %v4298
      %4331 = vst [vmem:[#allocation2 + $0x10] sm:$0xff] %v4299
      %4332 = vst [vmem:[#allocation2 + $0x18] sm:$0xff] %v4300
      %4333 = vst [vmem:[#allocation2 + $0x20] sm:$0xff] %v4301
      %4334 = vst [vmem:[#allocation2 + $0x28] sm:$0xff] %v4302
      %4335 = vst [vmem:[#allocation2 + $0x30] sm:$0xff] %v4303
      %4336 = vst [vmem:[#allocation2 + $0x38] sm:$0xff] %v4304
      %4337 = vst [vmem:[#allocation2 + $0x40] sm:$0xff] %v4305
      %4338 = vst [vmem:[#allocation2 + $0x48] sm:$0xff] %v4306
      %4339 = vst [vmem:[#allocation2 + $0x50] sm:$0xff] %v4307
      %4340 = vst [vmem:[#allocation2 + $0x58] sm:$0xff] %v4308
      %4341 = vst [vmem:[#allocation2 + $0x60] sm:$0xff] %v4309
      %4342 = vst [vmem:[#allocation2 + $0x68] sm:$0xff] %v4310
      %4343 = vst [vmem:[#allocation2 + $0x70] sm:$0xff] %v4311
      %4344 = vst [vmem:[#allocation2 + $0x78] sm:$0xff] %v4312
      %4345 = vst [vmem:[#allocation2 + $0x80] sm:$0xff] %v4313
      %4346 = vst [vmem:[#allocation2 + $0x88] sm:$0xff] %v4314
      %4347 = vst [vmem:[#allocation2 + $0x90] sm:$0xff] %v4315
      %4348 = vst [vmem:[#allocation2 + $0x98] sm:$0xff] %v4316
      %4349 = vst [vmem:[#allocation2 + $0xa0] sm:$0xff] %v4317
      %4350 = vst [vmem:[#allocation2 + $0xa8] sm:$0xff] %v4318
      %4351 = vst [vmem:[#allocation2 + $0xb0] sm:$0xff] %v4319
      %4352 = vst [vmem:[#allocation2 + $0xb8] sm:$0xff] %v4320
      %4353 = vst [vmem:[#allocation2 + $0xc0] sm:$0xff] %v4321
      %4354 = vst [vmem:[#allocation2 + $0xc8] sm:$0xff] %v4322
      %4355 = vst [vmem:[#allocation2 + $0xd0] sm:$0xff] %v4323
      %4356 = vst [vmem:[#allocation2 + $0xd8] sm:$0xff] %v4324
      %4357 = vst [vmem:[#allocation2 + $0xe0] sm:$0xff] %v4325
      %4358 = vst [vmem:[#allocation2 + $0xe8] sm:$0xff] %v4326
      %4359 = vst [vmem:[#allocation2 + $0xf0] sm:$0xff] %v4327
      %4360 = vst [vmem:[#allocation2 + $0xf8] sm:$0xff] %v4328
      // Predicated region
      $region37: #{basic_block_forward.2} parent=31 // pred_check
        %p4361 = pneg %p260
      $region38: #{basic_block_forward.2} parent=31 // pred_check_branch
        %4363 = sbr.rel (%p4361) target = $region40
      $region39: #{basic_block_forward.2} parent=31 // pred_region
        %v4364 = vld [vmem:[#allocation2] sm:$0xff]
        %v4365 = vld [vmem:[#allocation2 + $0x8] sm:$0xff]
        %v4366 = vld [vmem:[#allocation2 + $0x10] sm:$0xff]
        %v4367 = vld [vmem:[#allocation2 + $0x18] sm:$0xff]
        %v4368 = vld [vmem:[#allocation2 + $0x20] sm:$0xff]
        %v4369 = vld [vmem:[#allocation2 + $0x28] sm:$0xff]
        %v4370 = vld [vmem:[#allocation2 + $0x30] sm:$0xff]
        %v4371 = vld [vmem:[#allocation2 + $0x38] sm:$0xff]
        %v4372 = vld [vmem:[#allocation2 + $0x40] sm:$0xff]
        %v4373 = vld [vmem:[#allocation2 + $0x48] sm:$0xff]
        %v4374 = vld [vmem:[#allocation2 + $0x50] sm:$0xff]
        %v4375 = vld [vmem:[#allocation2 + $0x58] sm:$0xff]
        %v4376 = vld [vmem:[#allocation2 + $0x60] sm:$0xff]
        %v4377 = vld [vmem:[#allocation2 + $0x68] sm:$0xff]
        %v4378 = vld [vmem:[#allocation2 + $0x70] sm:$0xff]
        %v4379 = vld [vmem:[#allocation2 + $0x78] sm:$0xff]
        %v4380 = vld [vmem:[#allocation2 + $0x80] sm:$0xff]
        %v4381 = vld [vmem:[#allocation2 + $0x88] sm:$0xff]
        %v4382 = vld [vmem:[#allocation2 + $0x90] sm:$0xff]
        %v4383 = vld [vmem:[#allocation2 + $0x98] sm:$0xff]
        %v4384 = vld [vmem:[#allocation2 + $0xa0] sm:$0xff]
        %v4385 = vld [vmem:[#allocation2 + $0xa8] sm:$0xff]
        %v4386 = vld [vmem:[#allocation2 + $0xb0] sm:$0xff]
        %v4387 = vld [vmem:[#allocation2 + $0xb8] sm:$0xff]
        %v4388 = vld [vmem:[#allocation2 + $0xc0] sm:$0xff]
        %v4389 = vld [vmem:[#allocation2 + $0xc8] sm:$0xff]
        %v4390 = vld [vmem:[#allocation2 + $0xd0] sm:$0xff]
        %v4391 = vld [vmem:[#allocation2 + $0xd8] sm:$0xff]
        %v4392 = vld [vmem:[#allocation2 + $0xe0] sm:$0xff]
        %v4393 = vld [vmem:[#allocation2 + $0xe8] sm:$0xff]
        %v4394 = vld [vmem:[#allocation2 + $0xf0] sm:$0xff]
        %v4395 = vld [vmem:[#allocation2 + $0xf8] sm:$0xff]
        %v4396 = vld [vmem:[%s250] sm:$0x1]
        %v4398 = vperm.slane %v4396, 0
        %v4400 = vadd.f32 %v4364, %v4398
        %v4401 = vadd.f32 %v4365, %v4398
        %v4402 = vadd.f32 %v4366, %v4398
        %v4403 = vadd.f32 %v4367, %v4398
        %v4404 = vadd.f32 %v4368, %v4398
        %v4405 = vadd.f32 %v4369, %v4398
        %v4406 = vadd.f32 %v4370, %v4398
        %v4407 = vadd.f32 %v4371, %v4398
        %v4408 = vadd.f32 %v4372, %v4398
        %v4409 = vadd.f32 %v4373, %v4398
        %v4410 = vadd.f32 %v4374, %v4398
        %v4411 = vadd.f32 %v4375, %v4398
        %v4412 = vadd.f32 %v4376, %v4398
        %v4413 = vadd.f32 %v4377, %v4398
        %v4414 = vadd.f32 %v4378, %v4398
        %v4415 = vadd.f32 %v4379, %v4398
        %v4416 = vadd.f32 %v4380, %v4398
        %v4417 = vadd.f32 %v4381, %v4398
        %v4418 = vadd.f32 %v4382, %v4398
        %v4419 = vadd.f32 %v4383, %v4398
        %v4420 = vadd.f32 %v4384, %v4398
        %v4421 = vadd.f32 %v4385, %v4398
        %v4422 = vadd.f32 %v4386, %v4398
        %v4423 = vadd.f32 %v4387, %v4398
        %v4424 = vadd.f32 %v4388, %v4398
        %v4425 = vadd.f32 %v4389, %v4398
        %v4426 = vadd.f32 %v4390, %v4398
        %v4427 = vadd.f32 %v4391, %v4398
        %v4428 = vadd.f32 %v4392, %v4398
        %v4429 = vadd.f32 %v4393, %v4398
        %v4430 = vadd.f32 %v4394, %v4398
        %v4431 = vadd.f32 %v4395, %v4398
        %v4432 = vmax.f32 %v4400, 0.0
        %v4433 = vmax.f32 %v4401, 0.0
        %v4434 = vmax.f32 %v4402, 0.0
        %v4435 = vmax.f32 %v4403, 0.0
        %v4436 = vmax.f32 %v4404, 0.0
        %v4437 = vmax.f32 %v4405, 0.0
        %v4438 = vmax.f32 %v4406, 0.0
        %v4439 = vmax.f32 %v4407, 0.0
        %v4440 = vmax.f32 %v4408, 0.0
        %v4441 = vmax.f32 %v4409, 0.0
        %v4442 = vmax.f32 %v4410, 0.0
        %v4443 = vmax.f32 %v4411, 0.0
        %v4444 = vmax.f32 %v4412, 0.0
        %v4445 = vmax.f32 %v4413, 0.0
        %v4446 = vmax.f32 %v4414, 0.0
        %v4447 = vmax.f32 %v4415, 0.0
        %v4448 = vmax.f32 %v4416, 0.0
        %v4449 = vmax.f32 %v4417, 0.0
        %v4450 = vmax.f32 %v4418, 0.0
        %v4451 = vmax.f32 %v4419, 0.0
        %v4452 = vmax.f32 %v4420, 0.0
        %v4453 = vmax.f32 %v4421, 0.0
        %v4454 = vmax.f32 %v4422, 0.0
        %v4455 = vmax.f32 %v4423, 0.0
        %v4456 = vmax.f32 %v4424, 0.0
        %v4457 = vmax.f32 %v4425, 0.0
        %v4458 = vmax.f32 %v4426, 0.0
        %v4459 = vmax.f32 %v4427, 0.0
        %v4460 = vmax.f32 %v4428, 0.0
        %v4461 = vmax.f32 %v4429, 0.0
        %v4462 = vmax.f32 %v4430, 0.0
        %v4463 = vmax.f32 %v4431, 0.0
        %v4464 = vpack.c.bf16 %v4432, %v4432
        %v4465 = vpack.c.bf16 %v4433, %v4433
        %v4466 = vpack.c.bf16 %v4434, %v4434
        %v4467 = vpack.c.bf16 %v4435, %v4435
        %v4468 = vpack.c.bf16 %v4436, %v4436
        %v4469 = vpack.c.bf16 %v4437, %v4437
        %v4470 = vpack.c.bf16 %v4438, %v4438
        %v4471 = vpack.c.bf16 %v4439, %v4439
        %v4472 = vpack.c.bf16 %v4440, %v4440
        %v4473 = vpack.c.bf16 %v4441, %v4441
        %v4474 = vpack.c.bf16 %v4442, %v4442
        %v4475 = vpack.c.bf16 %v4443, %v4443
        %v4476 = vpack.c.bf16 %v4444, %v4444
        %v4477 = vpack.c.bf16 %v4445, %v4445
        %v4478 = vpack.c.bf16 %v4446, %v4446
        %v4479 = vpack.c.bf16 %v4447, %v4447
        %v4480 = vpack.c.bf16 %v4448, %v4448
        %v4481 = vpack.c.bf16 %v4449, %v4449
        %v4482 = vpack.c.bf16 %v4450, %v4450
        %v4483 = vpack.c.bf16 %v4451, %v4451
        %v4484 = vpack.c.bf16 %v4452, %v4452
        %v4485 = vpack.c.bf16 %v4453, %v4453
        %v4486 = vpack.c.bf16 %v4454, %v4454
        %v4487 = vpack.c.bf16 %v4455, %v4455
        %v4488 = vpack.c.bf16 %v4456, %v4456
        %v4489 = vpack.c.bf16 %v4457, %v4457
        %v4490 = vpack.c.bf16 %v4458, %v4458
        %v4491 = vpack.c.bf16 %v4459, %v4459
        %v4492 = vpack.c.bf16 %v4460, %v4460
        %v4493 = vpack.c.bf16 %v4461, %v4461
        %v4494 = vpack.c.bf16 %v4462, %v4462
        %v4495 = vpack.c.bf16 %v4463, %v4463
        %4496 = vst [vmem:[%s258] sm:$0xf] 0
        %4497 = vst [vmem:[%s258 + $0x4] sm:$0xf] 0
        %4498 = vst [vmem:[%s258 + $0x8] sm:$0x1] 0
        %4499 = vst [vmem:[%s258 + $0xc] sm:$0xf] 0
        %4500 = vst [vmem:[%s258 + $0x10] sm:$0xf] 0
        %4501 = vst [vmem:[%s258 + $0x14] sm:$0x1] 0
        %4502 = vst [vmem:[%s258 + $0x18] sm:$0xf] 0
        %4503 = vst [vmem:[%s258 + $0x1c] sm:$0xf] 0
        %4504 = vst [vmem:[%s258 + $0x20] sm:$0x1] 0
        %4505 = vst [vmem:[%s258 + $0x24] sm:$0xf] 0
        %4506 = vst [vmem:[%s258 + $0x28] sm:$0xf] 0
        %4507 = vst [vmem:[%s258 + $0x2c] sm:$0x1] 0
        %4508 = vst [vmem:[%s258 + $0x30] sm:$0xf] 0
        %4509 = vst [vmem:[%s258 + $0x34] sm:$0xf] 0
        %4510 = vst [vmem:[%s258 + $0x38] sm:$0x1] 0
        %4511 = vst [vmem:[%s258 + $0x3c] sm:$0xf] 0
        %4512 = vst [vmem:[%s258 + $0x40] sm:$0xf] 0
        %4513 = vst [vmem:[%s258 + $0x44] sm:$0x1] 0
        %4514 = vst [vmem:[%s258 + $0x48] sm:$0xf] 0
        %4515 = vst [vmem:[%s258 + $0x4c] sm:$0xf] 0
        %4516 = vst [vmem:[%s258 + $0x50] sm:$0x1] 0
        %4517 = vst [vmem:[%s258 + $0x54] sm:$0xf] 0
        %4518 = vst [vmem:[%s258 + $0x58] sm:$0xf] 0
        %4519 = vst [vmem:[%s258 + $0x5c] sm:$0x1] 0
        %4520 = vst [vmem:[%s258 + $0x60] sm:$0xf] 0
        %4521 = vst [vmem:[%s258 + $0x64] sm:$0xf] 0
        %4522 = vst [vmem:[%s258 + $0x68] sm:$0x1] 0
        %4523 = vst [vmem:[%s258 + $0x6c] sm:$0xf] 0
        %4524 = vst [vmem:[%s258 + $0x70] sm:$0xf] 0
        %4525 = vst [vmem:[%s258 + $0x74] sm:$0x1] 0
        %4526 = vst [vmem:[%s258 + $0x78] sm:$0xf] 0
        %4527 = vst [vmem:[%s258 + $0x7c] sm:$0xf] 0
        %4528 = vst [vmem:[%s258 + $0x80] sm:$0x1] 0
        %4529 = vst [vmem:[%s258 + $0x84] sm:$0xf] 0
        %4530 = vst [vmem:[%s258 + $0x88] sm:$0xf] 0
        %4531 = vst [vmem:[%s258 + $0x8c] sm:$0x1] 0
        %4532 = vst [vmem:[%s258 + $0x90] sm:$0xf] 0
        %4533 = vst [vmem:[%s258 + $0x94] sm:$0xf] 0
        %4534 = vst [vmem:[%s258 + $0x98] sm:$0x1] 0
        %4535 = vst [vmem:[%s258 + $0x9c] sm:$0xf] 0
        %4536 = vst [vmem:[%s258 + $0xa0] sm:$0xf] 0
        %4537 = vst [vmem:[%s258 + $0xa4] sm:$0x1] 0
        %4538 = vst [vmem:[%s258 + $0xa8] sm:$0xf] 0
        %4539 = vst [vmem:[%s258 + $0xac] sm:$0xf] 0
        %4540 = vst [vmem:[%s258 + $0xb0] sm:$0x1] 0
        %4541 = vst [vmem:[%s258 + $0xb4] sm:$0xf] 0
        %4542 = vst [vmem:[%s258 + $0xb8] sm:$0xf] 0
        %4543 = vst [vmem:[%s258 + $0xbc] sm:$0x1] 0
        %4544 = vst [vmem:[%s258 + $0xc0] sm:$0xf] 0
        %4545 = vst [vmem:[%s258 + $0xc4] sm:$0xf] 0
        %4546 = vst [vmem:[%s258 + $0xc8] sm:$0x1] 0
        %4547 = vst [vmem:[%s258 + $0xcc] sm:$0xf] 0
        %4548 = vst [vmem:[%s258 + $0xd0] sm:$0xf] 0
        %4549 = vst [vmem:[%s258 + $0xd4] sm:$0x1] 0
        %vm4550 = vsmask.f32 256
        %vm4551 = vsmask.f32 4368
        %vm4552 = vmor %vm4550, %vm4551
        %v4554 = vshrl.u32 %v4464, 16
        %v4556 = vrot.slane %v4554, 7
        %v4557 = vshll.u32 %v4464, 16
        %v4559 = vor.u32 %v4556, %v4557
        %v4560 = vrot.slane %v4556, 4
        %v4562 = vshrl.u32 %v4465, 16
        %v4564 = vrot.slane %v4562, 7
        %v4565 = vshll.u32 %v4465, 16
        %v4567 = vor.u32 %v4564, %v4565
        %v4568 = vsel %vm4552, %v4560, %v4567
        %v4569 = vrot.slane %v4564, 4
        %v4571 = vshrl.u32 %v4466, 16
        %v4573 = vrot.slane %v4571, 7
        %v4574 = vshll.u32 %v4466, 16
        %v4576 = vor.u32 %v4573, %v4574
        %v4577 = vrot.slane %v4573, 4
        %v4579 = vshrl.u32 %v4467, 16
        %v4581 = vrot.slane %v4579, 7
        %v4582 = vshll.u32 %v4467, 16
        %v4584 = vor.u32 %v4581, %v4582
        %v4585 = vsel %vm4552, %v4577, %v4584
        %v4586 = vrot.slane %v4581, 4
        %v4588 = vshrl.u32 %v4468, 16
        %v4590 = vrot.slane %v4588, 7
        %v4591 = vshll.u32 %v4468, 16
        %v4593 = vor.u32 %v4590, %v4591
        %v4594 = vrot.slane %v4590, 4
        %v4596 = vshrl.u32 %v4469, 16
        %v4598 = vrot.slane %v4596, 7
        %v4599 = vshll.u32 %v4469, 16
        %v4601 = vor.u32 %v4598, %v4599
        %v4602 = vsel %vm4552, %v4594, %v4601
        %v4603 = vrot.slane %v4598, 4
        %v4605 = vshrl.u32 %v4470, 16
        %v4607 = vrot.slane %v4605, 7
        %v4608 = vshll.u32 %v4470, 16
        %v4610 = vor.u32 %v4607, %v4608
        %v4611 = vrot.slane %v4607, 4
        %v4613 = vshrl.u32 %v4471, 16
        %v4615 = vrot.slane %v4613, 7
        %v4616 = vshll.u32 %v4471, 16
        %v4618 = vor.u32 %v4615, %v4616
        %v4619 = vsel %vm4552, %v4611, %v4618
        %v4620 = vrot.slane %v4615, 4
        %v4622 = vshrl.u32 %v4472, 16
        %v4624 = vrot.slane %v4622, 7
        %v4625 = vshll.u32 %v4472, 16
        %v4627 = vor.u32 %v4624, %v4625
        %v4628 = vrot.slane %v4624, 4
        %v4630 = vshrl.u32 %v4473, 16
        %v4632 = vrot.slane %v4630, 7
        %v4633 = vshll.u32 %v4473, 16
        %v4635 = vor.u32 %v4632, %v4633
        %v4636 = vsel %vm4552, %v4628, %v4635
        %v4637 = vrot.slane %v4632, 4
        %v4639 = vshrl.u32 %v4474, 16
        %v4641 = vrot.slane %v4639, 7
        %v4642 = vshll.u32 %v4474, 16
        %v4644 = vor.u32 %v4641, %v4642
        %v4645 = vrot.slane %v4641, 4
        %v4647 = vshrl.u32 %v4475, 16
        %v4649 = vrot.slane %v4647, 7
        %v4650 = vshll.u32 %v4475, 16
        %v4652 = vor.u32 %v4649, %v4650
        %v4653 = vsel %vm4552, %v4645, %v4652
        %v4654 = vrot.slane %v4649, 4
        %v4656 = vshrl.u32 %v4476, 16
        %v4658 = vrot.slane %v4656, 7
        %v4659 = vshll.u32 %v4476, 16
        %v4661 = vor.u32 %v4658, %v4659
        %v4662 = vrot.slane %v4658, 4
        %v4664 = vshrl.u32 %v4477, 16
        %v4666 = vrot.slane %v4664, 7
        %v4667 = vshll.u32 %v4477, 16
        %v4669 = vor.u32 %v4666, %v4667
        %v4670 = vsel %vm4552, %v4662, %v4669
        %v4671 = vrot.slane %v4666, 4
        %v4673 = vshrl.u32 %v4478, 16
        %v4675 = vrot.slane %v4673, 7
        %v4676 = vshll.u32 %v4478, 16
        %v4678 = vor.u32 %v4675, %v4676
        %v4679 = vrot.slane %v4675, 4
        %v4681 = vshrl.u32 %v4479, 16
        %v4683 = vrot.slane %v4681, 7
        %v4684 = vshll.u32 %v4479, 16
        %v4686 = vor.u32 %v4683, %v4684
        %v4687 = vsel %vm4552, %v4679, %v4686
        %v4688 = vrot.slane %v4683, 4
        %v4690 = vshrl.u32 %v4480, 16
        %v4692 = vrot.slane %v4690, 7
        %v4693 = vshll.u32 %v4480, 16
        %v4695 = vor.u32 %v4692, %v4693
        %v4696 = vrot.slane %v4692, 4
        %v4698 = vshrl.u32 %v4481, 16
        %v4700 = vrot.slane %v4698, 7
        %v4701 = vshll.u32 %v4481, 16
        %v4703 = vor.u32 %v4700, %v4701
        %v4704 = vsel %vm4552, %v4696, %v4703
        %v4705 = vrot.slane %v4700, 4
        %v4707 = vshrl.u32 %v4482, 16
        %v4709 = vrot.slane %v4707, 7
        %v4710 = vshll.u32 %v4482, 16
        %v4712 = vor.u32 %v4709, %v4710
        %v4713 = vrot.slane %v4709, 4
        %v4715 = vshrl.u32 %v4483, 16
        %v4717 = vrot.slane %v4715, 7
        %v4718 = vshll.u32 %v4483, 16
        %v4720 = vor.u32 %v4717, %v4718
        %v4721 = vsel %vm4552, %v4713, %v4720
        %v4722 = vrot.slane %v4717, 4
        %v4724 = vshrl.u32 %v4484, 16
        %v4726 = vrot.slane %v4724, 7
        %v4727 = vshll.u32 %v4484, 16
        %v4729 = vor.u32 %v4726, %v4727
        %v4730 = vrot.slane %v4726, 4
        %v4732 = vshrl.u32 %v4485, 16
        %v4734 = vrot.slane %v4732, 7
        %v4735 = vshll.u32 %v4485, 16
        %v4737 = vor.u32 %v4734, %v4735
        %v4738 = vsel %vm4552, %v4730, %v4737
        %v4739 = vrot.slane %v4734, 4
        %v4741 = vshrl.u32 %v4486, 16
        %v4743 = vrot.slane %v4741, 7
        %v4744 = vshll.u32 %v4486, 16
        %v4746 = vor.u32 %v4743, %v4744
        %v4747 = vrot.slane %v4743, 4
        %v4749 = vshrl.u32 %v4487, 16
        %v4751 = vrot.slane %v4749, 7
        %v4752 = vshll.u32 %v4487, 16
        %v4754 = vor.u32 %v4751, %v4752
        %v4755 = vsel %vm4552, %v4747, %v4754
        %v4756 = vrot.slane %v4751, 4
        %v4758 = vshrl.u32 %v4488, 16
        %v4760 = vrot.slane %v4758, 7
        %v4761 = vshll.u32 %v4488, 16
        %v4763 = vor.u32 %v4760, %v4761
        %v4764 = vrot.slane %v4760, 4
        %v4766 = vshrl.u32 %v4489, 16
        %v4768 = vrot.slane %v4766, 7
        %v4769 = vshll.u32 %v4489, 16
        %v4771 = vor.u32 %v4768, %v4769
        %v4772 = vsel %vm4552, %v4764, %v4771
        %v4773 = vrot.slane %v4768, 4
        %v4775 = vshrl.u32 %v4490, 16
        %v4777 = vrot.slane %v4775, 7
        %v4778 = vshll.u32 %v4490, 16
        %v4780 = vor.u32 %v4777, %v4778
        %v4781 = vrot.slane %v4777, 4
        %v4783 = vshrl.u32 %v4491, 16
        %v4785 = vrot.slane %v4783, 7
        %v4786 = vshll.u32 %v4491, 16
        %v4788 = vor.u32 %v4785, %v4786
        %v4789 = vsel %vm4552, %v4781, %v4788
        %v4790 = vrot.slane %v4785, 4
        %v4792 = vshrl.u32 %v4492, 16
        %v4794 = vrot.slane %v4792, 7
        %v4795 = vshll.u32 %v4492, 16
        %v4797 = vor.u32 %v4794, %v4795
        %v4798 = vrot.slane %v4794, 4
        %v4800 = vshrl.u32 %v4493, 16
        %v4802 = vrot.slane %v4800, 7
        %v4803 = vshll.u32 %v4493, 16
        %v4805 = vor.u32 %v4802, %v4803
        %v4806 = vsel %vm4552, %v4798, %v4805
        %v4807 = vrot.slane %v4802, 4
        %v4809 = vshrl.u32 %v4494, 16
        %v4811 = vrot.slane %v4809, 7
        %v4812 = vshll.u32 %v4494, 16
        %v4814 = vor.u32 %v4811, %v4812
        %v4815 = vrot.slane %v4811, 4
        %v4817 = vshrl.u32 %v4495, 16
        %v4819 = vrot.slane %v4817, 7
        %v4820 = vshll.u32 %v4495, 16
        %v4822 = vor.u32 %v4819, %v4820
        %v4823 = vsel %vm4552, %v4815, %v4822
        %v4824 = vrot.slane %v4819, 4
        %s4873 = scalar_lea.vmem %s258, 12
        %vm4874 = vcmask 1043456
        %vm4875 = vsmask.f32 7938
        %vm4876 = vmand %vm4874, %vm4875
        %v4877 = vld [vmem:[%s4873] sm:$0xf]
        %v4878 = vsel %vm4876, %v4559, %v4877
        %4879 = vst [vmem:[%s4873] sm:$0xf] %v4878
        %4880 = vst [vmem:[%s4873 + $0x4] sm:$0xf] %v4568
        %vm4881 = vcmask 1040384
        %vm4882 = vmand %vm4881, %vm4550
        %v4883 = vld [vmem:[%s4873 + $0x8] sm:$0x1]
        %v4884 = vsel %vm4882, %v4569, %v4883
        %4885 = vst [vmem:[%s4873 + $0x8] sm:$0x1] %v4884
        %v4886 = vld [vmem:[%s4873 + $0xc] sm:$0xf]
        %v4887 = vsel %vm4876, %v4576, %v4886
        %4888 = vst [vmem:[%s4873 + $0xc] sm:$0xf] %v4887
        %4889 = vst [vmem:[%s4873 + $0x10] sm:$0xf] %v4585
        %v4890 = vld [vmem:[%s4873 + $0x14] sm:$0x1]
        %v4891 = vsel %vm4882, %v4586, %v4890
        %4892 = vst [vmem:[%s4873 + $0x14] sm:$0x1] %v4891
        %v4893 = vld [vmem:[%s4873 + $0x18] sm:$0xf]
        %v4894 = vsel %vm4876, %v4593, %v4893
        %4895 = vst [vmem:[%s4873 + $0x18] sm:$0xf] %v4894
        %4896 = vst [vmem:[%s4873 + $0x1c] sm:$0xf] %v4602
        %v4897 = vld [vmem:[%s4873 + $0x20] sm:$0x1]
        %v4898 = vsel %vm4882, %v4603, %v4897
        %4899 = vst [vmem:[%s4873 + $0x20] sm:$0x1] %v4898
        %v4900 = vld [vmem:[%s4873 + $0x24] sm:$0xf]
        %v4901 = vsel %vm4876, %v4610, %v4900
        %4902 = vst [vmem:[%s4873 + $0x24] sm:$0xf] %v4901
        %4903 = vst [vmem:[%s4873 + $0x28] sm:$0xf] %v4619
        %v4904 = vld [vmem:[%s4873 + $0x2c] sm:$0x1]
        %v4905 = vsel %vm4882, %v4620, %v4904
        %4906 = vst [vmem:[%s4873 + $0x2c] sm:$0x1] %v4905
        %v4907 = vld [vmem:[%s4873 + $0x30] sm:$0xf]
        %v4908 = vsel %vm4876, %v4627, %v4907
        %4909 = vst [vmem:[%s4873 + $0x30] sm:$0xf] %v4908
        %4910 = vst [vmem:[%s4873 + $0x34] sm:$0xf] %v4636
        %v4911 = vld [vmem:[%s4873 + $0x38] sm:$0x1]
        %v4912 = vsel %vm4882, %v4637, %v4911
        %4913 = vst [vmem:[%s4873 + $0x38] sm:$0x1] %v4912
        %v4914 = vld [vmem:[%s4873 + $0x3c] sm:$0xf]
        %v4915 = vsel %vm4876, %v4644, %v4914
        %4916 = vst [vmem:[%s4873 + $0x3c] sm:$0xf] %v4915
        %4917 = vst [vmem:[%s4873 + $0x40] sm:$0xf] %v4653
        %v4918 = vld [vmem:[%s4873 + $0x44] sm:$0x1]
        %v4919 = vsel %vm4882, %v4654, %v4918
        %4920 = vst [vmem:[%s4873 + $0x44] sm:$0x1] %v4919
        %v4921 = vld [vmem:[%s4873 + $0x48] sm:$0xf]
        %v4922 = vsel %vm4876, %v4661, %v4921
        %4923 = vst [vmem:[%s4873 + $0x48] sm:$0xf] %v4922
        %4924 = vst [vmem:[%s4873 + $0x4c] sm:$0xf] %v4670
        %v4925 = vld [vmem:[%s4873 + $0x50] sm:$0x1]
        %v4926 = vsel %vm4882, %v4671, %v4925
        %4927 = vst [vmem:[%s4873 + $0x50] sm:$0x1] %v4926
        %v4928 = vld [vmem:[%s4873 + $0x54] sm:$0xf]
        %v4929 = vsel %vm4876, %v4678, %v4928
        %4930 = vst [vmem:[%s4873 + $0x54] sm:$0xf] %v4929
        %4931 = vst [vmem:[%s4873 + $0x58] sm:$0xf] %v4687
        %v4932 = vld [vmem:[%s4873 + $0x5c] sm:$0x1]
        %v4933 = vsel %vm4882, %v4688, %v4932
        %4934 = vst [vmem:[%s4873 + $0x5c] sm:$0x1] %v4933
        %v4935 = vld [vmem:[%s4873 + $0x60] sm:$0xf]
        %v4936 = vsel %vm4876, %v4695, %v4935
        %4937 = vst [vmem:[%s4873 + $0x60] sm:$0xf] %v4936
        %4938 = vst [vmem:[%s4873 + $0x64] sm:$0xf] %v4704
        %v4939 = vld [vmem:[%s4873 + $0x68] sm:$0x1]
        %v4940 = vsel %vm4882, %v4705, %v4939
        %4941 = vst [vmem:[%s4873 + $0x68] sm:$0x1] %v4940
        %v4942 = vld [vmem:[%s4873 + $0x6c] sm:$0xf]
        %v4943 = vsel %vm4876, %v4712, %v4942
        %4944 = vst [vmem:[%s4873 + $0x6c] sm:$0xf] %v4943
        %4945 = vst [vmem:[%s4873 + $0x70] sm:$0xf] %v4721
        %v4946 = vld [vmem:[%s4873 + $0x74] sm:$0x1]
        %v4947 = vsel %vm4882, %v4722, %v4946
        %4948 = vst [vmem:[%s4873 + $0x74] sm:$0x1] %v4947
        %v4949 = vld [vmem:[%s4873 + $0x78] sm:$0xf]
        %v4950 = vsel %vm4876, %v4729, %v4949
        %4951 = vst [vmem:[%s4873 + $0x78] sm:$0xf] %v4950
        %4952 = vst [vmem:[%s4873 + $0x7c] sm:$0xf] %v4738
        %v4953 = vld [vmem:[%s4873 + $0x80] sm:$0x1]
        %v4954 = vsel %vm4882, %v4739, %v4953
        %4955 = vst [vmem:[%s4873 + $0x80] sm:$0x1] %v4954
        %v4956 = vld [vmem:[%s4873 + $0x84] sm:$0xf]
        %v4957 = vsel %vm4876, %v4746, %v4956
        %4958 = vst [vmem:[%s4873 + $0x84] sm:$0xf] %v4957
        %4959 = vst [vmem:[%s4873 + $0x88] sm:$0xf] %v4755
        %v4960 = vld [vmem:[%s4873 + $0x8c] sm:$0x1]
        %v4961 = vsel %vm4882, %v4756, %v4960
        %4962 = vst [vmem:[%s4873 + $0x8c] sm:$0x1] %v4961
        %v4963 = vld [vmem:[%s4873 + $0x90] sm:$0xf]
        %v4964 = vsel %vm4876, %v4763, %v4963
        %4965 = vst [vmem:[%s4873 + $0x90] sm:$0xf] %v4964
        %4966 = vst [vmem:[%s4873 + $0x94] sm:$0xf] %v4772
        %v4967 = vld [vmem:[%s4873 + $0x98] sm:$0x1]
        %v4968 = vsel %vm4882, %v4773, %v4967
        %4969 = vst [vmem:[%s4873 + $0x98] sm:$0x1] %v4968
        %v4970 = vld [vmem:[%s4873 + $0x9c] sm:$0xf]
        %v4971 = vsel %vm4876, %v4780, %v4970
        %4972 = vst [vmem:[%s4873 + $0x9c] sm:$0xf] %v4971
        %4973 = vst [vmem:[%s4873 + $0xa0] sm:$0xf] %v4789
        %v4974 = vld [vmem:[%s4873 + $0xa4] sm:$0x1]
        %v4975 = vsel %vm4882, %v4790, %v4974
        %4976 = vst [vmem:[%s4873 + $0xa4] sm:$0x1] %v4975
        %v4977 = vld [vmem:[%s4873 + $0xa8] sm:$0xf]
        %v4978 = vsel %vm4876, %v4797, %v4977
        %4979 = vst [vmem:[%s4873 + $0xa8] sm:$0xf] %v4978
        %4980 = vst [vmem:[%s4873 + $0xac] sm:$0xf] %v4806
        %v4981 = vld [vmem:[%s4873 + $0xb0] sm:$0x1]
        %v4982 = vsel %vm4882, %v4807, %v4981
        %4983 = vst [vmem:[%s4873 + $0xb0] sm:$0x1] %v4982
        %v4984 = vld [vmem:[%s4873 + $0xb4] sm:$0xf]
        %v4985 = vsel %vm4876, %v4814, %v4984
        %4986 = vst [vmem:[%s4873 + $0xb4] sm:$0xf] %v4985
        %4987 = vst [vmem:[%s4873 + $0xb8] sm:$0xf] %v4823
        %v4988 = vld [vmem:[%s4873 + $0xbc] sm:$0x1]
        %v4989 = vsel %vm4882, %v4824, %v4988
        %4990 = vst [vmem:[%s4873 + $0xbc] sm:$0x1] %v4989
      $region40: #{basic_block_forward.2} parent=31 // pred_fallthru
        _
      %p4991 = scmp.lt.s32.totalorder %s19, 1
      %s4992 = scalar_select %p4991, %s19, 1
      %p4993 = scmp.lt.s32.totalorder %s20, 0
      %s4994 = scalar_select %p4993, %s20, 0
      %s4995 = smul.addr %s4992, 54
      %s4996 = sadd.s32 %s4994, %s4995
      %s4997 = smul.addr %s4996, 4
      %s4998 = scalar_lea.vmem %s3, %s4997
      // Predicated region
      $region41: #{basic_block_forward.2} parent=31 // pred_check
        %p4999 = pneg %p135
      $region42: #{basic_block_forward.2} parent=31 // pred_check_branch
        %5001 = sbr.rel (%p4999) target = $region44
      $region43: #{basic_block_forward.2} parent=31 // pred_region
        _
      $region44: #{basic_block_forward.2} parent=31 // pred_fallthru
        _
    $region32: #{basic_block_forward.2} parent=5 // pred_fallthru
      _
    %p5002 = scmp.le.s32.totalorder 2, %s9
    // Predicated region
    $region45: #{basic_block_forward.2} parent=5 // pred_check
      %p5003 = pneg %p5002
    $region46: #{basic_block_forward.2} parent=5 // pred_check_branch
      %5005 = sbr.rel (%p5003) target = $region48
    $region47: #{basic_block_forward.2} parent=5 // pred_region
      %s5006 = ssub.s32 %s9, 2
      // Predicated region
      $region49: #{basic_block_forward.2} parent=47 // pred_check
        %p5007 = pneg %p141
      $region50: #{basic_block_forward.2} parent=47 // pred_check_branch
        %5009 = sbr.rel (%p5007) target = $region52
      $region51: #{basic_block_forward.2} parent=47 // pred_region
        %p5010 = scmp.lt.s32.totalorder %s22, 1
        %s5011 = scalar_select %p5010, %s22, 1
        %p5012 = scmp.lt.s32.totalorder %s23, 0
        %s5013 = scalar_select %p5012, %s23, 0
        %s5014 = smul.addr %s5011, 54
        %s5015 = sadd.s32 %s5013, %s5014
        %s5016 = smul.addr %s5015, 4
        %s5017 = scalar_lea.vmem %s3, %s5016
      $region52: #{basic_block_forward.2} parent=47 // pred_fallthru
        _
    $region48: #{basic_block_forward.2} parent=5 // pred_fallthru
      _
  $region6: #{basic_block_forward.2} parent=0 // loop_footer
    %s13 = sadd.s32 1, %s9
  $region7: #{basic_block_forward.2} parent=0 // loop_footer_branch
    %8 = sbr.rel target = $region3
  $region8: #{basic_block_forward.2} parent=0 // loop_exit
    _

</llo_original>
